<compile_context>
chip_gen: v7x
topology: tpu7x:2x2x1
jax: 0.10.0
libtpu: 0.0.40
codegen_flags: <defaults>
</compile_context>

<pallas_src>
import functools

import jax
import jax.numpy as jnp
from jax.experimental import pallas as pl
from jax.experimental.pallas import tpu as pltpu

LEAK = 0.2
BN_EPS = 1e-5

# MXU input dtype.  Set to jnp.bfloat16 on v6e/v7x for ~3x MXU throughput
# (accumulation stays f32 via preferred_element_type); kept f32 here so the
# strict 1e-4 check against the f32 reference passes deterministically.
MATMUL_DTYPE = jnp.float32

VMEM_LIMIT_BYTES = 64 * 1024 * 1024   # safe on v5e/v6e (128 MiB) and v7x (64 MiB)
BN_TILE_ROWS = 1024                   # row-tile for the BN-apply kernel


def _compiler_params(semantics):
    return pltpu.CompilerParams(dimension_semantics=semantics,
                                vmem_limit_bytes=VMEM_LIMIT_BYTES)


# ----------------------------- Pallas kernels ------------------------------ #

def _conv4x4s2_acc(z_ref, w_ref, L, owp):
    """Fused-im2col 4x4 stride-2 conv as four shifted MXU matmuls.

    z_ref : (1, OHp*OWp, 4*Cin)  padded + space-to-depth'd input (one image)
    w_ref : (4, 4*Cin, Cout)     weights regrouped to match the 4 shifts
    Returns an (L, Cout) f32 accumulator where L = (OH-1)*OWp + OW.  Rows r
    with (r % OWp) >= OW are halo junk from the flattened layout and are
    dropped (or masked for statistics) downstream.
    """
    acc = None
    for i in range(2):
        for j in range(2):
            chunk = z_ref[0, pl.ds(i * owp + j, L), :].astype(MATMUL_DTYPE)
            wij = w_ref[2 * i + j].astype(MATMUL_DTYPE)
            d = jnp.dot(chunk, wij, preferred_element_type=jnp.float32)
            acc = d if acc is None else acc + d
    return acc


def _conv_bias_lrelu_kernel(z_ref, w_ref, b_ref, o_ref, *, L, owp):
    # layer 1: conv + bias + LeakyReLU(0.2), no BatchNorm
    y = _conv4x4s2_acc(z_ref, w_ref, L, owp) + b_ref[...]
    o_ref[0] = jnp.where(y > 0, y, LEAK * y)


def _conv_stats_kernel(z_ref, w_ref, y_ref, s1_ref, s2_ref, *, L, owp, ow):
    # BN layers, pass 1: conv (fused im2col) + per-channel sum / sum-of-squares
    # accumulated across the batch grid axis ("arbitrary").  The conv bias is
    # intentionally dropped: training-mode BN subtracts the batch mean, which
    # cancels a per-channel additive bias exactly.
    y = _conv4x4s2_acc(z_ref, w_ref, L, owp)
    y_ref[0] = y

    # mask out the halo junk rows so they do not pollute the batch statistics
    valid = (jax.lax.broadcasted_iota(jnp.int32, (L, 1), 0) % owp) < ow
    ym = jnp.where(valid, y, 0.0)

    @pl.when(pl.program_id(0) == 0)
    def _():
        s1_ref[...] = jnp.zeros_like(s1_ref)
        s2_ref[...] = jnp.zeros_like(s2_ref)

    s1_ref[...] += jnp.sum(ym, axis=0, keepdims=True)
    s2_ref[...] += jnp.sum(ym * ym, axis=0, keepdims=True)


def _bn_lrelu_kernel(y_ref, s1_ref, s2_ref, g_ref, be_ref, o_ref, *, inv_count):
    # BN layers, pass 2: normalize with the batch statistics (biased variance,
    # exactly PyTorch train-mode BN) + affine + LeakyReLU, folded to one FMA.
    mean = s1_ref[...] * inv_count
    var = jnp.maximum(s2_ref[...] * inv_count - mean * mean, 0.0)
    scale = g_ref[...] * jax.lax.rsqrt(var + BN_EPS)
    shift = be_ref[...] - mean * scale
    y = y_ref[...] * scale + shift
    o_ref[...] = jnp.where(y > 0, y, LEAK * y)


def _final_conv_kernel(x_ref, w_ref, o_ref, *, L, wp):
    # final 4x4 stride-1 conv with a single output channel, no bias:
    # VPU multiply-accumulate + one XLU lane reduction (an MXU matmul with
    # N=1 would waste the entire MXU output width and force 1-lane stores
    # for every partial product).
    acc = None
    for kh in range(4):
        for kw in range(4):
            chunk = x_ref[0, pl.ds(kh * wp + kw, L), :]
            term = chunk * w_ref[pl.ds(4 * kh + kw, 1), :]
            acc = term if acc is None else acc + term
    o_ref[0] = jnp.sum(acc, axis=-1, keepdims=True)


# ------------------------------- JAX glue ---------------------------------- #

def _pad_space_to_depth(x):
    """(N,H,W,C) -> flattened space-to-depth slab (N, OHp*OWp, 4C).

    z[n, a*OWp + b, (di*2+dj)*C + c] == pad(x)[n, 2a+di, 2b+dj, c].
    Pure layout change (no data expansion): the kernels rebuild the conv
    patches from this slab in VMEM instead of reading a 4x im2col matrix.
    """
    n, h, w, c = x.shape
    assert h % 2 == 0 and w % 2 == 0, "k=4,s=2,p=1 path assumes even spatial dims"
    xp = jnp.pad(x, ((0, 0), (1, 1), (1, 1), (0, 0)))
    ohp, owp = (h + 2) // 2, (w + 2) // 2
    z = xp.reshape(n, ohp, 2, owp, 2, c)
    z = z.transpose(0, 1, 3, 2, 4, 5).reshape(n, ohp * owp, 4 * c)
    return z, ohp, owp


def _regroup_weight(w):
    """(Cout,Cin,4,4) -> (4, 4*Cin, Cout): one (4Cin,Cout) matrix per 2x2 shift."""
    cout, cin = w.shape[:2]
    wm = jnp.transpose(w, (2, 3, 1, 0))                     # (kh, kw, cin, cout)
    blocks = [wm[2 * i:2 * i + 2, 2 * j:2 * j + 2].reshape(4 * cin, cout)
              for i in range(2) for j in range(2)]
    return jnp.stack(blocks, axis=0)


def _drop_junk_rows(y, oh, ow, owp):
    """(N, L, C) flattened conv output -> (N, OH, OW, C) (drop halo rows)."""
    n, L, c = y.shape
    y = jnp.pad(y, ((0, 0), (0, oh * owp - L), (0, 0)))
    return y.reshape(n, oh, owp, c)[:, :, :ow, :]


def _conv_cost(n, L, s, c4, cout):
    return pl.CostEstimate(
        flops=2 * n * 4 * L * c4 * cout, transcendentals=0,
        bytes_accessed=4 * (n * s * c4 + 4 * c4 * cout + n * L * cout))


def _conv_block_no_bn(x, w, b):
    n = x.shape[0]
    cout = w.shape[0]
    z, ohp, owp = _pad_space_to_depth(x)
    oh, ow = ohp - 1, owp - 1
    L = (oh - 1) * owp + ow
    s, c4 = z.shape[1], z.shape[2]
    wm = _regroup_weight(w)

    kernel = functools.partial(_conv_bias_lrelu_kernel, L=L, owp=owp)
    y = pl.pallas_call(
        kernel,
        grid=(n,),
        in_specs=[pl.BlockSpec((1, s, c4), lambda i: (i, 0, 0)),
                  pl.BlockSpec((4, c4, cout), lambda i: (0, 0, 0)),
                  pl.BlockSpec((1, cout), lambda i: (0, 0))],
        out_specs=pl.BlockSpec((1, L, cout), lambda i: (i, 0, 0)),
        out_shape=jax.ShapeDtypeStruct((n, L, cout), jnp.float32),
        compiler_params=_compiler_params(("parallel",)),
        cost_estimate=_conv_cost(n, L, s, c4, cout),
    )(z, wm, b.reshape(1, cout))
    return _drop_junk_rows(y, oh, ow, owp)


def _conv_block_bn(x, w, gamma, beta):
    n = x.shape[0]
    cout = w.shape[0]
    z, ohp, owp = _pad_space_to_depth(x)
    oh, ow = ohp - 1, owp - 1
    L = (oh - 1) * owp + ow
    s, c4 = z.shape[1], z.shape[2]
    wm = _regroup_weight(w)

    # pass 1: conv + cross-batch sum / sum-of-squares (accumulator outputs
    # map every grid step to block (0, 0) -> axis must be "arbitrary")
    kernel1 = functools.partial(_conv_stats_kernel, L=L, owp=owp, ow=ow)
    y, s1, s2 = pl.pallas_call(
        kernel1,
        grid=(n,),
        in_specs=[pl.BlockSpec((1, s, c4), lambda i: (i, 0, 0)),
                  pl.BlockSpec((4, c4, cout), lambda i: (0, 0, 0))],
        out_specs=(pl.BlockSpec((1, L, cout), lambda i: (i, 0, 0)),
                   pl.BlockSpec((1, cout), lambda i: (0, 0)),
                   pl.BlockSpec((1, cout), lambda i: (0, 0))),
        out_shape=(jax.ShapeDtypeStruct((n, L, cout), jnp.float32),
                   jax.ShapeDtypeStruct((1, cout), jnp.float32),
                   jax.ShapeDtypeStruct((1, cout), jnp.float32)),
        compiler_params=_compiler_params(("arbitrary",)),
        cost_estimate=_conv_cost(n, L, s, c4, cout),
    )(z, wm)

    # pass 2: normalize + affine + LeakyReLU, row-tiled "parallel" grid
    m = n * L
    tm = m if m <= BN_TILE_ROWS else BN_TILE_ROWS
    kernel2 = functools.partial(_bn_lrelu_kernel,
                                inv_count=1.0 / float(n * oh * ow))
    out = pl.pallas_call(
        kernel2,
        grid=(pl.cdiv(m, tm),),
        in_specs=[pl.BlockSpec((tm, cout), lambda i: (i, 0)),
                  pl.BlockSpec((1, cout), lambda i: (0, 0)),
                  pl.BlockSpec((1, cout), lambda i: (0, 0)),
                  pl.BlockSpec((1, cout), lambda i: (0, 0)),
                  pl.BlockSpec((1, cout), lambda i: (0, 0))],
        out_specs=pl.BlockSpec((tm, cout), lambda i: (i, 0)),
        out_shape=jax.ShapeDtypeStruct((m, cout), jnp.float32),
        compiler_params=_compiler_params(("parallel",)),
    )(y.reshape(m, cout), s1, s2,
      gamma.reshape(1, cout), beta.reshape(1, cout))
    return _drop_junk_rows(out.reshape(n, L, cout), oh, ow, owp)


def _final_conv(x, w):
    # nn.ZeroPad2d((1, 0, 1, 0)) + Conv2d(256, 1, 4, padding=1, bias=False)
    # -> total padding H=(2,1), W=(2,1), stride 1, output spatial == input.
    n, h, w_sp, cin = x.shape
    xp = jnp.pad(x, ((0, 0), (2, 1), (2, 1), (0, 0)))
    hp, wp = h + 3, w_sp + 3
    oh, ow = h, w_sp
    L = (oh - 1) * wp + ow
    xf = xp.reshape(n, hp * wp, cin)
    wm = jnp.transpose(w, (2, 3, 1, 0)).reshape(16, cin)    # row = kh*4+kw

    kernel = functools.partial(_final_conv_kernel, L=L, wp=wp)
    y = pl.pallas_call(
        kernel,
        grid=(n,),
        in_specs=[pl.BlockSpec((1, hp * wp, cin), lambda i: (i, 0, 0)),
                  pl.BlockSpec((16, cin), lambda i: (0, 0))],
        out_specs=pl.BlockSpec((1, L, 1), lambda i: (i, 0, 0)),
        out_shape=jax.ShapeDtypeStruct((n, L, 1), jnp.float32),
        compiler_params=_compiler_params(("parallel",)),
    )(xf, wm)
    return _drop_junk_rows(y, oh, ow, wp)


def discriminator_forward(img_a_nchw, img_b_nchw, p):
    x = jnp.concatenate([img_a_nchw, img_b_nchw], axis=1)    # channel concat
    x = jnp.transpose(x, (0, 2, 3, 1))                        # NCHW -> NHWC
    x = _conv_block_no_bn(x, p["w1"], p["b1"])
    # b2/b3/b4 are unused on purpose: BN's mean subtraction cancels them exactly
    x = _conv_block_bn(x, p["w2"], p["g2"], p["be2"])
    x = _conv_block_bn(x, p["w3"], p["g3"], p["be3"])
    x = _conv_block_bn(x, p["w4"], p["g4"], p["be4"])
    x = _final_conv(x, p["w5"])
    return jnp.transpose(x, (0, 3, 1, 2))                     # NHWC -> NCHW


# ---------------------------- pure-JAX reference ---------------------------- #

def _ref_forward(img_a, img_b, p):
    x = jnp.concatenate([img_a, img_b], axis=1)

    def conv(x, w, b, stride, pad):
        y = jax.lax.conv_general_dilated(
            x, w, (stride, stride), ((pad, pad), (pad, pad)),
            dimension_numbers=("NCHW", "OIHW", "NCHW"))
        if b is not None:
            y = y + b.reshape(1, -1, 1, 1)
        return y

    def bn(x, g, be):
        m = jnp.mean(x, axis=(0, 2, 3), keepdims=True)
        v = jnp.mean((x - m) ** 2, axis=(0, 2, 3), keepdims=True)
        return (x - m) / jnp.sqrt(v + BN_EPS) * g.reshape(1, -1, 1, 1) \
            + be.reshape(1, -1, 1, 1)

    lrelu = lambda t: jnp.where(t > 0, t, LEAK * t)
    x = lrelu(conv(x, p["w1"], p["b1"], 2, 1))
    x = lrelu(bn(conv(x, p["w2"], p["b2"], 2, 1), p["g2"], p["be2"]))
    x = lrelu(bn(conv(x, p["w3"], p["b3"], 2, 1), p["g3"], p["be3"]))
    x = lrelu(bn(conv(x, p["w4"], p["b4"], 2, 1), p["g4"], p["be4"]))
    x = jnp.pad(x, ((0, 0), (0, 0), (1, 0), (1, 0)))
    return conv(x, p["w5"], None, 1, 1)


# --------------------------------- params ----------------------------------- #

def init_params(key, in_ch=3):
    ks = jax.random.split(key, 16)

    def w(k, cout, cin):
        fan_in = cin * 16
        return jax.random.normal(k, (cout, cin, 4, 4), jnp.float32) / jnp.sqrt(fan_in)

    def vec(k, c, scale=0.1, offset=0.0):
        return offset + scale * jax.random.normal(k, (c,), jnp.float32)

    return {
        "w1": w(ks[0], 32, in_ch * 2), "b1": vec(ks[1], 32),
        "w2": w(ks[2], 64, 32), "b2": vec(ks[3], 64),
        "g2": vec(ks[4], 64, offset=1.0), "be2": vec(ks[5], 64),
        "w3": w(ks[6], 128, 64), "b3": vec(ks[7], 128),
        "g3": vec(ks[8], 128, offset=1.0), "be3": vec(ks[9], 128),
        "w4": w(ks[10], 256, 128), "b4": vec(ks[11], 256),
        "g4": vec(ks[12], 256, offset=1.0), "be4": vec(ks[13], 256),
        "w5": w(ks[14], 1, 256),   # final conv, bias=False
    }


if __name__ == "__main__":
    key = jax.random.PRNGKey(0)
    ka, kb, kp = jax.random.split(key, 3)
    # PyTorch-convention NCHW inputs, in_ch = 3 each (concat -> 6 channels)
    img_a = jax.random.normal(ka, (2, 3, 16, 16), jnp.float32)
    img_b = jax.random.normal(kb, (2, 3, 16, 16), jnp.float32)
    params = init_params(kp)

    out = jax.jit(discriminator_forward)(img_a, img_b, params)
    out = jax.block_until_ready(out)

    ref = jax.block_until_ready(_ref_forward(img_a, img_b, params))
    assert out.shape == ref.shape == (2, 1, 1, 1)
    assert jnp.allclose(out, ref, rtol=1e-4, atol=1e-4)

    print("KERNEL_OK")
</pallas_src>

<mosaic_0001>
module attributes {stable_mosaic.version = 11 : i64} {
  func.func @_conv_bias_lrelu_kernel(%arg0: i32, %arg1: memref<1x81x24xf32, #tpu.memory_space<vmem>>, %arg2: memref<4x24x32xf32, #tpu.memory_space<vmem>>, %arg3: memref<1x32xf32, #tpu.memory_space<vmem>>, %arg4: memref<1x71x32xf32, #tpu.memory_space<vmem>>) attributes {dimension_semantics = [#tpu.dimension_semantics<parallel>], iteration_bounds = array<i64: 2>, scalar_prefetch = 0 : i64, scratch_operands = 0 : i64, tpu.core_type = #tpu.core_type<tc>, window_params = [{transform_indices = @transform_0, window_bounds = array<i64: 1, 81, 24>}, {pipeline_mode = #tpu.pipeline_mode<synchronous>, transform_indices = @transform_1, window_bounds = array<i64: 4, 24, 32>}, {pipeline_mode = #tpu.pipeline_mode<synchronous>, transform_indices = @transform_2, window_bounds = array<i64: 1, 32>}, {transform_indices = @transform_3, window_bounds = array<i64: 1, 71, 32>}]} {
    %c0 = arith.constant 0 : index
    %c0_0 = arith.constant 0 : index
    %c0_1 = arith.constant 0 : index
    %0 = vector.load %arg1[%c0, %c0_0, %c0_1] : memref<1x81x24xf32, #tpu.memory_space<vmem>>, vector<1x71x24xf32>
    %1 = vector.shape_cast %0 : vector<1x71x24xf32> to vector<71x24xf32>
    %c0_2 = arith.constant 0 : index
    %c0_3 = arith.constant 0 : index
    %c0_4 = arith.constant 0 : index
    %2 = vector.load %arg2[%c0_2, %c0_3, %c0_4] : memref<4x24x32xf32, #tpu.memory_space<vmem>>, vector<1x24x32xf32>
    %3 = vector.shape_cast %2 : vector<1x24x32xf32> to vector<24x32xf32>
    %cst = arith.constant dense<0.000000e+00> : vector<71x32xf32>
    %4 = tpu.matmul %1, %3, %cst {dimension_numbers = #tpu.dot_dimension_numbers<[1], [0], [0], [1], [0, 0, 1, 1], [], []>} : vector<71x24xf32>, vector<24x32xf32>, vector<71x32xf32> -> vector<71x32xf32>
    %c0_5 = arith.constant 0 : index
    %c1 = arith.constant 1 : index
    %c0_6 = arith.constant 0 : index
    %5 = vector.load %arg1[%c0_5, %c1, %c0_6] : memref<1x81x24xf32, #tpu.memory_space<vmem>>, vector<1x71x24xf32>
    %6 = vector.shape_cast %5 : vector<1x71x24xf32> to vector<71x24xf32>
    %c1_7 = arith.constant 1 : index
    %c0_8 = arith.constant 0 : index
    %c0_9 = arith.constant 0 : index
    %7 = vector.load %arg2[%c1_7, %c0_8, %c0_9] : memref<4x24x32xf32, #tpu.memory_space<vmem>>, vector<1x24x32xf32>
    %8 = vector.shape_cast %7 : vector<1x24x32xf32> to vector<24x32xf32>
    %cst_10 = arith.constant dense<0.000000e+00> : vector<71x32xf32>
    %9 = tpu.matmul %6, %8, %cst_10 {dimension_numbers = #tpu.dot_dimension_numbers<[1], [0], [0], [1], [0, 0, 1, 1], [], []>} : vector<71x24xf32>, vector<24x32xf32>, vector<71x32xf32> -> vector<71x32xf32>
    %10 = arith.addf %4, %9 : vector<71x32xf32>
    %c0_11 = arith.constant 0 : index
    %c9 = arith.constant 9 : index
    %c0_12 = arith.constant 0 : index
    %11 = vector.load %arg1[%c0_11, %c9, %c0_12] : memref<1x81x24xf32, #tpu.memory_space<vmem>>, vector<1x71x24xf32>
    %12 = vector.shape_cast %11 : vector<1x71x24xf32> to vector<71x24xf32>
    %c2 = arith.constant 2 : index
    %c0_13 = arith.constant 0 : index
    %c0_14 = arith.constant 0 : index
    %13 = vector.load %arg2[%c2, %c0_13, %c0_14] : memref<4x24x32xf32, #tpu.memory_space<vmem>>, vector<1x24x32xf32>
    %14 = vector.shape_cast %13 : vector<1x24x32xf32> to vector<24x32xf32>
    %cst_15 = arith.constant dense<0.000000e+00> : vector<71x32xf32>
    %15 = tpu.matmul %12, %14, %cst_15 {dimension_numbers = #tpu.dot_dimension_numbers<[1], [0], [0], [1], [0, 0, 1, 1], [], []>} : vector<71x24xf32>, vector<24x32xf32>, vector<71x32xf32> -> vector<71x32xf32>
    %16 = arith.addf %10, %15 : vector<71x32xf32>
    %c0_16 = arith.constant 0 : index
    %c10 = arith.constant 10 : index
    %c0_17 = arith.constant 0 : index
    %17 = vector.load %arg1[%c0_16, %c10, %c0_17] : memref<1x81x24xf32, #tpu.memory_space<vmem>>, vector<1x71x24xf32>
    %18 = vector.shape_cast %17 : vector<1x71x24xf32> to vector<71x24xf32>
    %c3 = arith.constant 3 : index
    %c0_18 = arith.constant 0 : index
    %c0_19 = arith.constant 0 : index
    %19 = vector.load %arg2[%c3, %c0_18, %c0_19] : memref<4x24x32xf32, #tpu.memory_space<vmem>>, vector<1x24x32xf32>
    %20 = vector.shape_cast %19 : vector<1x24x32xf32> to vector<24x32xf32>
    %cst_20 = arith.constant dense<0.000000e+00> : vector<71x32xf32>
    %21 = tpu.matmul %18, %20, %cst_20 {dimension_numbers = #tpu.dot_dimension_numbers<[1], [0], [0], [1], [0, 0, 1, 1], [], []>} : vector<71x24xf32>, vector<24x32xf32>, vector<71x32xf32> -> vector<71x32xf32>
    %22 = arith.addf %16, %21 : vector<71x32xf32>
    %c0_21 = arith.constant 0 : index
    %c0_22 = arith.constant 0 : index
    %23 = vector.load %arg3[%c0_21, %c0_22] : memref<1x32xf32, #tpu.memory_space<vmem>>, vector<1x32xf32>
    %24 = vector.broadcast %23 : vector<1x32xf32> to vector<71x32xf32>
    %25 = arith.addf %22, %24 : vector<71x32xf32>
    %cst_23 = arith.constant 0.000000e+00 : f32
    %26 = vector.broadcast %cst_23 : f32 to vector<71x32xf32>
    %27 = arith.cmpf ogt, %25, %26 : vector<71x32xf32>
    %cst_24 = arith.constant 2.000000e-01 : f32
    %28 = vector.broadcast %cst_24 : f32 to vector<71x32xf32>
    %29 = arith.mulf %28, %25 : vector<71x32xf32>
    %30 = arith.select %27, %25, %29 : vector<71x32xi1>, vector<71x32xf32>
    %c0_25 = arith.constant 0 : index
    %c0_26 = arith.constant 0 : index
    %c0_27 = arith.constant 0 : index
    %31 = vector.load %arg4[%c0_25, %c0_26, %c0_27] : memref<1x71x32xf32, #tpu.memory_space<vmem>>, vector<1x71x32xf32>
    %32 = vector.shape_cast %31 : vector<1x71x32xf32> to vector<71x32xf32>
    %33 = vector.shape_cast %30 : vector<71x32xf32> to vector<1x71x32xf32>
    tpu.vector_store %arg4[%c0_25, %c0_26, %c0_27], %33 {strides = array<i32>} : memref<1x71x32xf32, #tpu.memory_space<vmem>>, vector<1x71x32xf32>,
    return
  }
  func.func @transform_0(%arg0: i32) -> (i32, i32, i32) {
    %c0_i32 = arith.constant 0 : i32
    %c0_i32_0 = arith.constant 0 : i32
    %c0_i32_1 = arith.constant 0 : i32
    return %arg0, %c0_i32, %c0_i32_0 : i32, i32, i32
  }
  func.func @transform_1(%arg0: i32) -> (i32, i32, i32) {
    %c0_i32 = arith.constant 0 : i32
    %c0_i32_0 = arith.constant 0 : i32
    %c0_i32_1 = arith.constant 0 : i32
    %c0_i32_2 = arith.constant 0 : i32
    return %c0_i32, %c0_i32_0, %c0_i32_1 : i32, i32, i32
  }
  func.func @transform_2(%arg0: i32) -> (i32, i32) {
    %c0_i32 = arith.constant 0 : i32
    %c0_i32_0 = arith.constant 0 : i32
    %c0_i32_1 = arith.constant 0 : i32
    return %c0_i32, %c0_i32_0 : i32, i32
  }
  func.func @transform_3(%arg0: i32) -> (i32, i32, i32) {
    %c0_i32 = arith.constant 0 : i32
    %c0_i32_0 = arith.constant 0 : i32
    %c0_i32_1 = arith.constant 0 : i32
    return %arg0, %c0_i32, %c0_i32_0 : i32, i32, i32
  }
}

module attributes {stable_mosaic.version = 11 : i64} {
  func.func @_conv_stats_kernel(%arg0: i32, %arg1: memref<1x25x128xf32, #tpu.memory_space<vmem>>, %arg2: memref<4x128x64xf32, #tpu.memory_space<vmem>>, %arg3: memref<1x19x64xf32, #tpu.memory_space<vmem>>, %arg4: memref<1x64xf32, #tpu.memory_space<vmem>>, %arg5: memref<1x64xf32, #tpu.memory_space<vmem>>) attributes {dimension_semantics = [#tpu.dimension_semantics<arbitrary>], iteration_bounds = array<i64: 2>, scalar_prefetch = 0 : i64, scratch_operands = 0 : i64, tpu.core_type = #tpu.core_type<tc>, window_params = [{transform_indices = @transform_0, window_bounds = array<i64: 1, 25, 128>}, {pipeline_mode = #tpu.pipeline_mode<synchronous>, transform_indices = @transform_1, window_bounds = array<i64: 4, 128, 64>}, {transform_indices = @transform_2, window_bounds = array<i64: 1, 19, 64>}, {pipeline_mode = #tpu.pipeline_mode<synchronous>, transform_indices = @transform_3, window_bounds = array<i64: 1, 64>}, {pipeline_mode = #tpu.pipeline_mode<synchronous>, transform_indices = @transform_4, window_bounds = array<i64: 1, 64>}]} {
    %c0 = arith.constant 0 : index
    %c0_0 = arith.constant 0 : index
    %c0_1 = arith.constant 0 : index
    %0 = vector.load %arg1[%c0, %c0_0, %c0_1] : memref<1x25x128xf32, #tpu.memory_space<vmem>>, vector<1x19x128xf32>
    %1 = vector.shape_cast %0 : vector<1x19x128xf32> to vector<19x128xf32>
    %c0_2 = arith.constant 0 : index
    %c0_3 = arith.constant 0 : index
    %c0_4 = arith.constant 0 : index
    %2 = vector.load %arg2[%c0_2, %c0_3, %c0_4] : memref<4x128x64xf32, #tpu.memory_space<vmem>>, vector<1x128x64xf32>
    %3 = vector.shape_cast %2 : vector<1x128x64xf32> to vector<128x64xf32>
    %cst = arith.constant dense<0.000000e+00> : vector<19x64xf32>
    %4 = tpu.matmul %1, %3, %cst {dimension_numbers = #tpu.dot_dimension_numbers<[1], [0], [0], [1], [0, 0, 1, 1], [], []>} : vector<19x128xf32>, vector<128x64xf32>, vector<19x64xf32> -> vector<19x64xf32>
    %c0_5 = arith.constant 0 : index
    %c1 = arith.constant 1 : index
    %c0_6 = arith.constant 0 : index
    %5 = vector.load %arg1[%c0_5, %c1, %c0_6] : memref<1x25x128xf32, #tpu.memory_space<vmem>>, vector<1x19x128xf32>
    %6 = vector.shape_cast %5 : vector<1x19x128xf32> to vector<19x128xf32>
    %c1_7 = arith.constant 1 : index
    %c0_8 = arith.constant 0 : index
    %c0_9 = arith.constant 0 : index
    %7 = vector.load %arg2[%c1_7, %c0_8, %c0_9] : memref<4x128x64xf32, #tpu.memory_space<vmem>>, vector<1x128x64xf32>
    %8 = vector.shape_cast %7 : vector<1x128x64xf32> to vector<128x64xf32>
    %cst_10 = arith.constant dense<0.000000e+00> : vector<19x64xf32>
    %9 = tpu.matmul %6, %8, %cst_10 {dimension_numbers = #tpu.dot_dimension_numbers<[1], [0], [0], [1], [0, 0, 1, 1], [], []>} : vector<19x128xf32>, vector<128x64xf32>, vector<19x64xf32> -> vector<19x64xf32>
    %10 = arith.addf %4, %9 : vector<19x64xf32>
    %c0_11 = arith.constant 0 : index
    %c5 = arith.constant 5 : index
    %c0_12 = arith.constant 0 : index
    %11 = vector.load %arg1[%c0_11, %c5, %c0_12] : memref<1x25x128xf32, #tpu.memory_space<vmem>>, vector<1x19x128xf32>
    %12 = vector.shape_cast %11 : vector<1x19x128xf32> to vector<19x128xf32>
    %c2 = arith.constant 2 : index
    %c0_13 = arith.constant 0 : index
    %c0_14 = arith.constant 0 : index
    %13 = vector.load %arg2[%c2, %c0_13, %c0_14] : memref<4x128x64xf32, #tpu.memory_space<vmem>>, vector<1x128x64xf32>
    %14 = vector.shape_cast %13 : vector<1x128x64xf32> to vector<128x64xf32>
    %cst_15 = arith.constant dense<0.000000e+00> : vector<19x64xf32>
    %15 = tpu.matmul %12, %14, %cst_15 {dimension_numbers = #tpu.dot_dimension_numbers<[1], [0], [0], [1], [0, 0, 1, 1], [], []>} : vector<19x128xf32>, vector<128x64xf32>, vector<19x64xf32> -> vector<19x64xf32>
    %16 = arith.addf %10, %15 : vector<19x64xf32>
    %c0_16 = arith.constant 0 : index
    %c6 = arith.constant 6 : index
    %c0_17 = arith.constant 0 : index
    %17 = vector.load %arg1[%c0_16, %c6, %c0_17] : memref<1x25x128xf32, #tpu.memory_space<vmem>>, vector<1x19x128xf32>
    %18 = vector.shape_cast %17 : vector<1x19x128xf32> to vector<19x128xf32>
    %c3 = arith.constant 3 : index
    %c0_18 = arith.constant 0 : index
    %c0_19 = arith.constant 0 : index
    %19 = vector.load %arg2[%c3, %c0_18, %c0_19] : memref<4x128x64xf32, #tpu.memory_space<vmem>>, vector<1x128x64xf32>
    %20 = vector.shape_cast %19 : vector<1x128x64xf32> to vector<128x64xf32>
    %cst_20 = arith.constant dense<0.000000e+00> : vector<19x64xf32>
    %21 = tpu.matmul %18, %20, %cst_20 {dimension_numbers = #tpu.dot_dimension_numbers<[1], [0], [0], [1], [0, 0, 1, 1], [], []>} : vector<19x128xf32>, vector<128x64xf32>, vector<19x64xf32> -> vector<19x64xf32>
    %22 = arith.addf %16, %21 : vector<19x64xf32>
    %c0_21 = arith.constant 0 : index
    %c0_22 = arith.constant 0 : index
    %c0_23 = arith.constant 0 : index
    %23 = vector.load %arg3[%c0_21, %c0_22, %c0_23] : memref<1x19x64xf32, #tpu.memory_space<vmem>>, vector<1x19x64xf32>
    %24 = vector.shape_cast %23 : vector<1x19x64xf32> to vector<19x64xf32>
    %25 = vector.shape_cast %22 : vector<19x64xf32> to vector<1x19x64xf32>
    tpu.vector_store %arg3[%c0_21, %c0_22, %c0_23], %25 {strides = array<i32>} : memref<1x19x64xf32, #tpu.memory_space<vmem>>, vector<1x19x64xf32>,
    %26 = tpu.iota {dimensions = array<i32: 0>} : vector<19x1xi32>
    %c5_i32 = arith.constant 5 : i32
    %c0_i32 = arith.constant 0 : i32
    %27 = arith.cmpi eq, %c5_i32, %c0_i32 : i32
    %c1_i32 = arith.constant 1 : i32
    %28 = arith.select %27, %c1_i32, %c5_i32 : i32
    %29 = vector.broadcast %28 : i32 to vector<19x1xi32>
    %30 = arith.remsi %26, %29 : vector<19x1xi32>
    %c0_i32_24 = arith.constant 0 : i32
    %31 = vector.broadcast %c0_i32_24 : i32 to vector<19x1xi32>
    %32 = arith.cmpi ne, %30, %31 : vector<19x1xi32>
    %c0_i32_25 = arith.constant 0 : i32
    %33 = vector.broadcast %c0_i32_25 : i32 to vector<19x1xi32>
    %34 = arith.cmpi slt, %30, %33 : vector<19x1xi32>
    %c0_i32_26 = arith.constant 0 : i32
    %35 = arith.cmpi slt, %28, %c0_i32_26 : i32
    %36 = vector.broadcast %35 : i1 to vector<19x1xi1>
    %37 = vector.broadcast %36 : vector<19x1xi1> to vector<19x1xi1>
    %38 = arith.xori %34, %37 : vector<19x1xi1>
    %39 = arith.andi %38, %32 : vector<19x1xi1>
    %40 = vector.broadcast %28 : i32 to vector<19x1xi32>
    %41 = arith.addi %30, %40 : vector<19x1xi32>
    %42 = arith.select %39, %41, %30 : vector<19x1xi1>, vector<19x1xi32>
    %c4_i32 = arith.constant 4 : i32
    %43 = vector.broadcast %c4_i32 : i32 to vector<19x1xi32>
    %44 = arith.cmpi slt, %42, %43 : vector<19x1xi32>
    %cst_27 = arith.constant 0.000000e+00 : f32
    %45 = vector.shape_cast %44 : vector<19x1xi1> to vector<19x1xi1>
    %46 = vector.broadcast %45 : vector<19x1xi1> to vector<19x64xi1>
    %47 = vector.broadcast %cst_27 : f32 to vector<19x64xf32>
    %48 = arith.select %46, %22, %47 : vector<19x64xi1>, vector<19x64xf32>
    %c0_i32_28 = arith.constant 0 : i32
    %49 = arith.cmpi eq, %arg0, %c0_i32_28 : i32
    %50 = arith.extui %49 : i1 to i32
    %c0_i32_29 = arith.constant 0 : i32
    %51 = arith.cmpi ne, %50, %c0_i32_29 : i32
    scf.if %51 {
      %cst_40 = arith.constant 0.000000e+00 : f32
      %63 = vector.broadcast %cst_40 : f32 to vector<1x64xf32>
      %c0_41 = arith.constant 0 : index
      %c0_42 = arith.constant 0 : index
      %64 = vector.load %arg4[%c0_41, %c0_42] : memref<1x64xf32, #tpu.memory_space<vmem>>, vector<1x64xf32>
      tpu.vector_store %arg4[%c0_41, %c0_42], %63 {strides = array<i32>} : memref<1x64xf32, #tpu.memory_space<vmem>>, vector<1x64xf32>,
      %cst_43 = arith.constant 0.000000e+00 : f32
      %65 = vector.broadcast %cst_43 : f32 to vector<1x64xf32>
      %c0_44 = arith.constant 0 : index
      %c0_45 = arith.constant 0 : index
      %66 = vector.load %arg5[%c0_44, %c0_45] : memref<1x64xf32, #tpu.memory_space<vmem>>, vector<1x64xf32>
      tpu.vector_store %arg5[%c0_44, %c0_45], %65 {strides = array<i32>} : memref<1x64xf32, #tpu.memory_space<vmem>>, vector<1x64xf32>,
    } else {
    }
    %c0_30 = arith.constant 0 : index
    %c0_31 = arith.constant 0 : index
    %52 = vector.load %arg4[%c0_30, %c0_31] : memref<1x64xf32, #tpu.memory_space<vmem>>, vector<1x64xf32>
    %cst_32 = arith.constant dense<0.000000e+00> : vector<64xf32>
    %53 = vector.multi_reduction <add>, %48, %cst_32 [0] : vector<19x64xf32> to vector<64xf32>
    %54 = vector.shape_cast %53 : vector<64xf32> to vector<1x64xf32>
    %55 = arith.addf %52, %54 : vector<1x64xf32>
    %c0_33 = arith.constant 0 : index
    %c0_34 = arith.constant 0 : index
    %56 = vector.load %arg4[%c0_33, %c0_34] : memref<1x64xf32, #tpu.memory_space<vmem>>, vector<1x64xf32>
    tpu.vector_store %arg4[%c0_33, %c0_34], %55 {strides = array<i32>} : memref<1x64xf32, #tpu.memory_space<vmem>>, vector<1x64xf32>,
    %c0_35 = arith.constant 0 : index
    %c0_36 = arith.constant 0 : index
    %57 = vector.load %arg5[%c0_35, %c0_36] : memref<1x64xf32, #tpu.memory_space<vmem>>, vector<1x64xf32>
    %58 = arith.mulf %48, %48 : vector<19x64xf32>
    %cst_37 = arith.constant dense<0.000000e+00> : vector<64xf32>
    %59 = vector.multi_reduction <add>, %58, %cst_37 [0] : vector<19x64xf32> to vector<64xf32>
    %60 = vector.shape_cast %59 : vector<64xf32> to vector<1x64xf32>
    %61 = arith.addf %57, %60 : vector<1x64xf32>
    %c0_38 = arith.constant 0 : index
    %c0_39 = arith.constant 0 : index
    %62 = vector.load %arg5[%c0_38, %c0_39] : memref<1x64xf32, #tpu.memory_space<vmem>>, vector<1x64xf32>
    tpu.vector_store %arg5[%c0_38, %c0_39], %61 {strides = array<i32>} : memref<1x64xf32, #tpu.memory_space<vmem>>, vector<1x64xf32>,
    return
  }
  func.func @transform_0(%arg0: i32) -> (i32, i32, i32) {
    %c0_i32 = arith.constant 0 : i32
    %c0_i32_0 = arith.constant 0 : i32
    %c0_i32_1 = arith.constant 0 : i32
    return %arg0, %c0_i32, %c0_i32_0 : i32, i32, i32
  }
  func.func @transform_1(%arg0: i32) -> (i32, i32, i32) {
    %c0_i32 = arith.constant 0 : i32
    %c0_i32_0 = arith.constant 0 : i32
    %c0_i32_1 = arith.constant 0 : i32
    %c0_i32_2 = arith.constant 0 : i32
    return %c0_i32, %c0_i32_0, %c0_i32_1 : i32, i32, i32
  }
  func.func @transform_2(%arg0: i32) -> (i32, i32, i32) {
    %c0_i32 = arith.constant 0 : i32
    %c0_i32_0 = arith.constant 0 : i32
    %c0_i32_1 = arith.constant 0 : i32
    return %arg0, %c0_i32, %c0_i32_0 : i32, i32, i32
  }
  func.func @transform_3(%arg0: i32) -> (i32, i32) {
    %c0_i32 = arith.constant 0 : i32
    %c0_i32_0 = arith.constant 0 : i32
    %c0_i32_1 = arith.constant 0 : i32
    return %c0_i32, %c0_i32_0 : i32, i32
  }
  func.func @transform_4(%arg0: i32) -> (i32, i32) {
    %c0_i32 = arith.constant 0 : i32
    %c0_i32_0 = arith.constant 0 : i32
    %c0_i32_1 = arith.constant 0 : i32
    return %c0_i32, %c0_i32_0 : i32, i32
  }
}

module attributes {stable_mosaic.version = 11 : i64} {
  func.func @_bn_lrelu_kernel(%arg0: i32, %arg1: memref<38x64xf32, #tpu.memory_space<vmem>>, %arg2: memref<1x64xf32, #tpu.memory_space<vmem>>, %arg3: memref<1x64xf32, #tpu.memory_space<vmem>>, %arg4: memref<1x64xf32, #tpu.memory_space<vmem>>, %arg5: memref<1x64xf32, #tpu.memory_space<vmem>>, %arg6: memref<38x64xf32, #tpu.memory_space<vmem>>) attributes {dimension_semantics = [#tpu.dimension_semantics<parallel>], iteration_bounds = array<i64: 1>, scalar_prefetch = 0 : i64, scratch_operands = 0 : i64, tpu.core_type = #tpu.core_type<tc>, window_params = [{transform_indices = @transform_0, window_bounds = array<i64: 38, 64>}, {pipeline_mode = #tpu.pipeline_mode<synchronous>, transform_indices = @transform_1, window_bounds = array<i64: 1, 64>}, {pipeline_mode = #tpu.pipeline_mode<synchronous>, transform_indices = @transform_2, window_bounds = array<i64: 1, 64>}, {pipeline_mode = #tpu.pipeline_mode<synchronous>, transform_indices = @transform_3, window_bounds = array<i64: 1, 64>}, {pipeline_mode = #tpu.pipeline_mode<synchronous>, transform_indices = @transform_4, window_bounds = array<i64: 1, 64>}, {transform_indices = @transform_5, window_bounds = array<i64: 38, 64>}]} {
    %c0 = arith.constant 0 : index
    %c0_0 = arith.constant 0 : index
    %0 = vector.load %arg2[%c0, %c0_0] : memref<1x64xf32, #tpu.memory_space<vmem>>, vector<1x64xf32>
    %cst = arith.constant 3.125000e-02 : f32
    %1 = vector.broadcast %cst : f32 to vector<1x64xf32>
    %2 = arith.mulf %0, %1 : vector<1x64xf32>
    %c0_1 = arith.constant 0 : index
    %c0_2 = arith.constant 0 : index
    %3 = vector.load %arg3[%c0_1, %c0_2] : memref<1x64xf32, #tpu.memory_space<vmem>>, vector<1x64xf32>
    %cst_3 = arith.constant 3.125000e-02 : f32
    %4 = vector.broadcast %cst_3 : f32 to vector<1x64xf32>
    %5 = arith.mulf %3, %4 : vector<1x64xf32>
    %6 = arith.mulf %2, %2 : vector<1x64xf32>
    %7 = arith.subf %5, %6 : vector<1x64xf32>
    %cst_4 = arith.constant 0.000000e+00 : f32
    %8 = vector.broadcast %cst_4 : f32 to vector<1x64xf32>
    %9 = arith.maximumf %7, %8 : vector<1x64xf32>
    %c0_5 = arith.constant 0 : index
    %c0_6 = arith.constant 0 : index
    %10 = vector.load %arg4[%c0_5, %c0_6] : memref<1x64xf32, #tpu.memory_space<vmem>>, vector<1x64xf32>
    %cst_7 = arith.constant 9.99999974E-6 : f32
    %11 = vector.broadcast %cst_7 : f32 to vector<1x64xf32>
    %12 = arith.addf %9, %11 : vector<1x64xf32>
    %13 = math.rsqrt %12 : vector<1x64xf32>
    %14 = arith.mulf %10, %13 : vector<1x64xf32>
    %c0_8 = arith.constant 0 : index
    %c0_9 = arith.constant 0 : index
    %15 = vector.load %arg5[%c0_8, %c0_9] : memref<1x64xf32, #tpu.memory_space<vmem>>, vector<1x64xf32>
    %16 = arith.mulf %2, %14 : vector<1x64xf32>
    %17 = arith.subf %15, %16 : vector<1x64xf32>
    %c0_10 = arith.constant 0 : index
    %c0_11 = arith.constant 0 : index
    %18 = vector.load %arg1[%c0_10, %c0_11] : memref<38x64xf32, #tpu.memory_space<vmem>>, vector<38x64xf32>
    %19 = vector.broadcast %14 : vector<1x64xf32> to vector<38x64xf32>
    %20 = arith.mulf %18, %19 : vector<38x64xf32>
    %21 = vector.broadcast %17 : vector<1x64xf32> to vector<38x64xf32>
    %22 = arith.addf %20, %21 : vector<38x64xf32>
    %cst_12 = arith.constant 0.000000e+00 : f32
    %23 = vector.broadcast %cst_12 : f32 to vector<38x64xf32>
    %24 = arith.cmpf ogt, %22, %23 : vector<38x64xf32>
    %cst_13 = arith.constant 2.000000e-01 : f32
    %25 = vector.broadcast %cst_13 : f32 to vector<38x64xf32>
    %26 = arith.mulf %25, %22 : vector<38x64xf32>
    %27 = arith.select %24, %22, %26 : vector<38x64xi1>, vector<38x64xf32>
    %c0_14 = arith.constant 0 : index
    %c0_15 = arith.constant 0 : index
    %28 = vector.load %arg6[%c0_14, %c0_15] : memref<38x64xf32, #tpu.memory_space<vmem>>, vector<38x64xf32>
    tpu.vector_store %arg6[%c0_14, %c0_15], %27 {strides = array<i32>} : memref<38x64xf32, #tpu.memory_space<vmem>>, vector<38x64xf32>,
    return
  }
  func.func @transform_0(%arg0: i32) -> (i32, i32) {
    %c0_i32 = arith.constant 0 : i32
    %c0_i32_0 = arith.constant 0 : i32
    return %arg0, %c0_i32 : i32, i32
  }
  func.func @transform_1(%arg0: i32) -> (i32, i32) {
    %c0_i32 = arith.constant 0 : i32
    %c0_i32_0 = arith.constant 0 : i32
    %c0_i32_1 = arith.constant 0 : i32
    return %c0_i32, %c0_i32_0 : i32, i32
  }
  func.func @transform_2(%arg0: i32) -> (i32, i32) {
    %c0_i32 = arith.constant 0 : i32
    %c0_i32_0 = arith.constant 0 : i32
    %c0_i32_1 = arith.constant 0 : i32
    return %c0_i32, %c0_i32_0 : i32, i32
  }
  func.func @transform_3(%arg0: i32) -> (i32, i32) {
    %c0_i32 = arith.constant 0 : i32
    %c0_i32_0 = arith.constant 0 : i32
    %c0_i32_1 = arith.constant 0 : i32
    return %c0_i32, %c0_i32_0 : i32, i32
  }
  func.func @transform_4(%arg0: i32) -> (i32, i32) {
    %c0_i32 = arith.constant 0 : i32
    %c0_i32_0 = arith.constant 0 : i32
    %c0_i32_1 = arith.constant 0 : i32
    return %c0_i32, %c0_i32_0 : i32, i32
  }
  func.func @transform_5(%arg0: i32) -> (i32, i32) {
    %c0_i32 = arith.constant 0 : i32
    %c0_i32_0 = arith.constant 0 : i32
    return %arg0, %c0_i32 : i32, i32
  }
}

module attributes {stable_mosaic.version = 11 : i64} {
  func.func @_bn_lrelu_kernel(%arg0: i32, %arg1: memref<10x128xf32, #tpu.memory_space<vmem>>, %arg2: memref<1x128xf32, #tpu.memory_space<vmem>>, %arg3: memref<1x128xf32, #tpu.memory_space<vmem>>, %arg4: memref<1x128xf32, #tpu.memory_space<vmem>>, %arg5: memref<1x128xf32, #tpu.memory_space<vmem>>, %arg6: memref<10x128xf32, #tpu.memory_space<vmem>>) attributes {dimension_semantics = [#tpu.dimension_semantics<parallel>], iteration_bounds = array<i64: 1>, scalar_prefetch = 0 : i64, scratch_operands = 0 : i64, tpu.core_type = #tpu.core_type<tc>, window_params = [{transform_indices = @transform_0, window_bounds = array<i64: 10, 128>}, {pipeline_mode = #tpu.pipeline_mode<synchronous>, transform_indices = @transform_1, window_bounds = array<i64: 1, 128>}, {pipeline_mode = #tpu.pipeline_mode<synchronous>, transform_indices = @transform_2, window_bounds = array<i64: 1, 128>}, {pipeline_mode = #tpu.pipeline_mode<synchronous>, transform_indices = @transform_3, window_bounds = array<i64: 1, 128>}, {pipeline_mode = #tpu.pipeline_mode<synchronous>, transform_indices = @transform_4, window_bounds = array<i64: 1, 128>}, {transform_indices = @transform_5, window_bounds = array<i64: 10, 128>}]} {
    %c0 = arith.constant 0 : index
    %c0_0 = arith.constant 0 : index
    %0 = vector.load %arg2[%c0, %c0_0] : memref<1x128xf32, #tpu.memory_space<vmem>>, vector<1x128xf32>
    %cst = arith.constant 1.250000e-01 : f32
    %1 = vector.broadcast %cst : f32 to vector<1x128xf32>
    %2 = arith.mulf %0, %1 : vector<1x128xf32>
    %c0_1 = arith.constant 0 : index
    %c0_2 = arith.constant 0 : index
    %3 = vector.load %arg3[%c0_1, %c0_2] : memref<1x128xf32, #tpu.memory_space<vmem>>, vector<1x128xf32>
    %cst_3 = arith.constant 1.250000e-01 : f32
    %4 = vector.broadcast %cst_3 : f32 to vector<1x128xf32>
    %5 = arith.mulf %3, %4 : vector<1x128xf32>
    %6 = arith.mulf %2, %2 : vector<1x128xf32>
    %7 = arith.subf %5, %6 : vector<1x128xf32>
    %cst_4 = arith.constant 0.000000e+00 : f32
    %8 = vector.broadcast %cst_4 : f32 to vector<1x128xf32>
    %9 = arith.maximumf %7, %8 : vector<1x128xf32>
    %c0_5 = arith.constant 0 : index
    %c0_6 = arith.constant 0 : index
    %10 = vector.load %arg4[%c0_5, %c0_6] : memref<1x128xf32, #tpu.memory_space<vmem>>, vector<1x128xf32>
    %cst_7 = arith.constant 9.99999974E-6 : f32
    %11 = vector.broadcast %cst_7 : f32 to vector<1x128xf32>
    %12 = arith.addf %9, %11 : vector<1x128xf32>
    %13 = math.rsqrt %12 : vector<1x128xf32>
    %14 = arith.mulf %10, %13 : vector<1x128xf32>
    %c0_8 = arith.constant 0 : index
    %c0_9 = arith.constant 0 : index
    %15 = vector.load %arg5[%c0_8, %c0_9] : memref<1x128xf32, #tpu.memory_space<vmem>>, vector<1x128xf32>
    %16 = arith.mulf %2, %14 : vector<1x128xf32>
    %17 = arith.subf %15, %16 : vector<1x128xf32>
    %c0_10 = arith.constant 0 : index
    %c0_11 = arith.constant 0 : index
    %18 = vector.load %arg1[%c0_10, %c0_11] : memref<10x128xf32, #tpu.memory_space<vmem>>, vector<10x128xf32>
    %19 = vector.broadcast %14 : vector<1x128xf32> to vector<10x128xf32>
    %20 = arith.mulf %18, %19 : vector<10x128xf32>
    %21 = vector.broadcast %17 : vector<1x128xf32> to vector<10x128xf32>
    %22 = arith.addf %20, %21 : vector<10x128xf32>
    %cst_12 = arith.constant 0.000000e+00 : f32
    %23 = vector.broadcast %cst_12 : f32 to vector<10x128xf32>
    %24 = arith.cmpf ogt, %22, %23 : vector<10x128xf32>
    %cst_13 = arith.constant 2.000000e-01 : f32
    %25 = vector.broadcast %cst_13 : f32 to vector<10x128xf32>
    %26 = arith.mulf %25, %22 : vector<10x128xf32>
    %27 = arith.select %24, %22, %26 : vector<10x128xi1>, vector<10x128xf32>
    %c0_14 = arith.constant 0 : index
    %c0_15 = arith.constant 0 : index
    %28 = vector.load %arg6[%c0_14, %c0_15] : memref<10x128xf32, #tpu.memory_space<vmem>>, vector<10x128xf32>
    tpu.vector_store %arg6[%c0_14, %c0_15], %27 {strides = array<i32>} : memref<10x128xf32, #tpu.memory_space<vmem>>, vector<10x128xf32>,
    return
  }
  func.func @transform_0(%arg0: i32) -> (i32, i32) {
    %c0_i32 = arith.constant 0 : i32
    %c0_i32_0 = arith.constant 0 : i32
    return %arg0, %c0_i32 : i32, i32
  }
  func.func @transform_1(%arg0: i32) -> (i32, i32) {
    %c0_i32 = arith.constant 0 : i32
    %c0_i32_0 = arith.constant 0 : i32
    %c0_i32_1 = arith.constant 0 : i32
    return %c0_i32, %c0_i32_0 : i32, i32
  }
  func.func @transform_2(%arg0: i32) -> (i32, i32) {
    %c0_i32 = arith.constant 0 : i32
    %c0_i32_0 = arith.constant 0 : i32
    %c0_i32_1 = arith.constant 0 : i32
    return %c0_i32, %c0_i32_0 : i32, i32
  }
  func.func @transform_3(%arg0: i32) -> (i32, i32) {
    %c0_i32 = arith.constant 0 : i32
    %c0_i32_0 = arith.constant 0 : i32
    %c0_i32_1 = arith.constant 0 : i32
    return %c0_i32, %c0_i32_0 : i32, i32
  }
  func.func @transform_4(%arg0: i32) -> (i32, i32) {
    %c0_i32 = arith.constant 0 : i32
    %c0_i32_0 = arith.constant 0 : i32
    %c0_i32_1 = arith.constant 0 : i32
    return %c0_i32, %c0_i32_0 : i32, i32
  }
  func.func @transform_5(%arg0: i32) -> (i32, i32) {
    %c0_i32 = arith.constant 0 : i32
    %c0_i32_0 = arith.constant 0 : i32
    return %arg0, %c0_i32 : i32, i32
  }
}

module attributes {stable_mosaic.version = 11 : i64} {
  func.func @_conv_stats_kernel(%arg0: i32, %arg1: memref<1x9x256xf32, #tpu.memory_space<vmem>>, %arg2: memref<4x256x128xf32, #tpu.memory_space<vmem>>, %arg3: memref<1x5x128xf32, #tpu.memory_space<vmem>>, %arg4: memref<1x128xf32, #tpu.memory_space<vmem>>, %arg5: memref<1x128xf32, #tpu.memory_space<vmem>>) attributes {dimension_semantics = [#tpu.dimension_semantics<arbitrary>], iteration_bounds = array<i64: 2>, scalar_prefetch = 0 : i64, scratch_operands = 0 : i64, tpu.core_type = #tpu.core_type<tc>, window_params = [{transform_indices = @transform_0, window_bounds = array<i64: 1, 9, 256>}, {pipeline_mode = #tpu.pipeline_mode<synchronous>, transform_indices = @transform_1, window_bounds = array<i64: 4, 256, 128>}, {transform_indices = @transform_2, window_bounds = array<i64: 1, 5, 128>}, {pipeline_mode = #tpu.pipeline_mode<synchronous>, transform_indices = @transform_3, window_bounds = array<i64: 1, 128>}, {pipeline_mode = #tpu.pipeline_mode<synchronous>, transform_indices = @transform_4, window_bounds = array<i64: 1, 128>}]} {
    %c0 = arith.constant 0 : index
    %c0_0 = arith.constant 0 : index
    %c0_1 = arith.constant 0 : index
    %0 = vector.load %arg1[%c0, %c0_0, %c0_1] : memref<1x9x256xf32, #tpu.memory_space<vmem>>, vector<1x5x256xf32>
    %1 = vector.shape_cast %0 : vector<1x5x256xf32> to vector<5x256xf32>
    %c0_2 = arith.constant 0 : index
    %c0_3 = arith.constant 0 : index
    %c0_4 = arith.constant 0 : index
    %2 = vector.load %arg2[%c0_2, %c0_3, %c0_4] : memref<4x256x128xf32, #tpu.memory_space<vmem>>, vector<1x256x128xf32>
    %3 = vector.shape_cast %2 : vector<1x256x128xf32> to vector<256x128xf32>
    %cst = arith.constant dense<0.000000e+00> : vector<5x128xf32>
    %4 = tpu.matmul %1, %3, %cst {dimension_numbers = #tpu.dot_dimension_numbers<[1], [0], [0], [1], [0, 0, 1, 1], [], []>} : vector<5x256xf32>, vector<256x128xf32>, vector<5x128xf32> -> vector<5x128xf32>
    %c0_5 = arith.constant 0 : index
    %c1 = arith.constant 1 : index
    %c0_6 = arith.constant 0 : index
    %5 = vector.load %arg1[%c0_5, %c1, %c0_6] : memref<1x9x256xf32, #tpu.memory_space<vmem>>, vector<1x5x256xf32>
    %6 = vector.shape_cast %5 : vector<1x5x256xf32> to vector<5x256xf32>
    %c1_7 = arith.constant 1 : index
    %c0_8 = arith.constant 0 : index
    %c0_9 = arith.constant 0 : index
    %7 = vector.load %arg2[%c1_7, %c0_8, %c0_9] : memref<4x256x128xf32, #tpu.memory_space<vmem>>, vector<1x256x128xf32>
    %8 = vector.shape_cast %7 : vector<1x256x128xf32> to vector<256x128xf32>
    %cst_10 = arith.constant dense<0.000000e+00> : vector<5x128xf32>
    %9 = tpu.matmul %6, %8, %cst_10 {dimension_numbers = #tpu.dot_dimension_numbers<[1], [0], [0], [1], [0, 0, 1, 1], [], []>} : vector<5x256xf32>, vector<256x128xf32>, vector<5x128xf32> -> vector<5x128xf32>
    %10 = arith.addf %4, %9 : vector<5x128xf32>
    %c0_11 = arith.constant 0 : index
    %c3 = arith.constant 3 : index
    %c0_12 = arith.constant 0 : index
    %11 = vector.load %arg1[%c0_11, %c3, %c0_12] : memref<1x9x256xf32, #tpu.memory_space<vmem>>, vector<1x5x256xf32>
    %12 = vector.shape_cast %11 : vector<1x5x256xf32> to vector<5x256xf32>
    %c2 = arith.constant 2 : index
    %c0_13 = arith.constant 0 : index
    %c0_14 = arith.constant 0 : index
    %13 = vector.load %arg2[%c2, %c0_13, %c0_14] : memref<4x256x128xf32, #tpu.memory_space<vmem>>, vector<1x256x128xf32>
    %14 = vector.shape_cast %13 : vector<1x256x128xf32> to vector<256x128xf32>
    %cst_15 = arith.constant dense<0.000000e+00> : vector<5x128xf32>
    %15 = tpu.matmul %12, %14, %cst_15 {dimension_numbers = #tpu.dot_dimension_numbers<[1], [0], [0], [1], [0, 0, 1, 1], [], []>} : vector<5x256xf32>, vector<256x128xf32>, vector<5x128xf32> -> vector<5x128xf32>
    %16 = arith.addf %10, %15 : vector<5x128xf32>
    %c0_16 = arith.constant 0 : index
    %c4 = arith.constant 4 : index
    %c0_17 = arith.constant 0 : index
    %17 = vector.load %arg1[%c0_16, %c4, %c0_17] : memref<1x9x256xf32, #tpu.memory_space<vmem>>, vector<1x5x256xf32>
    %18 = vector.shape_cast %17 : vector<1x5x256xf32> to vector<5x256xf32>
    %c3_18 = arith.constant 3 : index
    %c0_19 = arith.constant 0 : index
    %c0_20 = arith.constant 0 : index
    %19 = vector.load %arg2[%c3_18, %c0_19, %c0_20] : memref<4x256x128xf32, #tpu.memory_space<vmem>>, vector<1x256x128xf32>
    %20 = vector.shape_cast %19 : vector<1x256x128xf32> to vector<256x128xf32>
    %cst_21 = arith.constant dense<0.000000e+00> : vector<5x128xf32>
    %21 = tpu.matmul %18, %20, %cst_21 {dimension_numbers = #tpu.dot_dimension_numbers<[1], [0], [0], [1], [0, 0, 1, 1], [], []>} : vector<5x256xf32>, vector<256x128xf32>, vector<5x128xf32> -> vector<5x128xf32>
    %22 = arith.addf %16, %21 : vector<5x128xf32>
    %c0_22 = arith.constant 0 : index
    %c0_23 = arith.constant 0 : index
    %c0_24 = arith.constant 0 : index
    %23 = vector.load %arg3[%c0_22, %c0_23, %c0_24] : memref<1x5x128xf32, #tpu.memory_space<vmem>>, vector<1x5x128xf32>
    %24 = vector.shape_cast %23 : vector<1x5x128xf32> to vector<5x128xf32>
    %25 = vector.shape_cast %22 : vector<5x128xf32> to vector<1x5x128xf32>
    tpu.vector_store %arg3[%c0_22, %c0_23, %c0_24], %25 {strides = array<i32>} : memref<1x5x128xf32, #tpu.memory_space<vmem>>, vector<1x5x128xf32>,
    %26 = tpu.iota {dimensions = array<i32: 0>} : vector<5x1xi32>
    %c3_i32 = arith.constant 3 : i32
    %c0_i32 = arith.constant 0 : i32
    %27 = arith.cmpi eq, %c3_i32, %c0_i32 : i32
    %c1_i32 = arith.constant 1 : i32
    %28 = arith.select %27, %c1_i32, %c3_i32 : i32
    %29 = vector.broadcast %28 : i32 to vector<5x1xi32>
    %30 = arith.remsi %26, %29 : vector<5x1xi32>
    %c0_i32_25 = arith.constant 0 : i32
    %31 = vector.broadcast %c0_i32_25 : i32 to vector<5x1xi32>
    %32 = arith.cmpi ne, %30, %31 : vector<5x1xi32>
    %c0_i32_26 = arith.constant 0 : i32
    %33 = vector.broadcast %c0_i32_26 : i32 to vector<5x1xi32>
    %34 = arith.cmpi slt, %30, %33 : vector<5x1xi32>
    %c0_i32_27 = arith.constant 0 : i32
    %35 = arith.cmpi slt, %28, %c0_i32_27 : i32
    %36 = vector.broadcast %35 : i1 to vector<5x1xi1>
    %37 = vector.broadcast %36 : vector<5x1xi1> to vector<5x1xi1>
    %38 = arith.xori %34, %37 : vector<5x1xi1>
    %39 = arith.andi %38, %32 : vector<5x1xi1>
    %40 = vector.broadcast %28 : i32 to vector<5x1xi32>
    %41 = arith.addi %30, %40 : vector<5x1xi32>
    %42 = arith.select %39, %41, %30 : vector<5x1xi1>, vector<5x1xi32>
    %c2_i32 = arith.constant 2 : i32
    %43 = vector.broadcast %c2_i32 : i32 to vector<5x1xi32>
    %44 = arith.cmpi slt, %42, %43 : vector<5x1xi32>
    %cst_28 = arith.constant 0.000000e+00 : f32
    %45 = vector.shape_cast %44 : vector<5x1xi1> to vector<5x1xi1>
    %46 = vector.broadcast %45 : vector<5x1xi1> to vector<5x128xi1>
    %47 = vector.broadcast %cst_28 : f32 to vector<5x128xf32>
    %48 = arith.select %46, %22, %47 : vector<5x128xi1>, vector<5x128xf32>
    %c0_i32_29 = arith.constant 0 : i32
    %49 = arith.cmpi eq, %arg0, %c0_i32_29 : i32
    %50 = arith.extui %49 : i1 to i32
    %c0_i32_30 = arith.constant 0 : i32
    %51 = arith.cmpi ne, %50, %c0_i32_30 : i32
    scf.if %51 {
      %cst_41 = arith.constant 0.000000e+00 : f32
      %63 = vector.broadcast %cst_41 : f32 to vector<1x128xf32>
      %c0_42 = arith.constant 0 : index
      %c0_43 = arith.constant 0 : index
      %64 = vector.load %arg4[%c0_42, %c0_43] : memref<1x128xf32, #tpu.memory_space<vmem>>, vector<1x128xf32>
      tpu.vector_store %arg4[%c0_42, %c0_43], %63 {strides = array<i32>} : memref<1x128xf32, #tpu.memory_space<vmem>>, vector<1x128xf32>,
      %cst_44 = arith.constant 0.000000e+00 : f32
      %65 = vector.broadcast %cst_44 : f32 to vector<1x128xf32>
      %c0_45 = arith.constant 0 : index
      %c0_46 = arith.constant 0 : index
      %66 = vector.load %arg5[%c0_45, %c0_46] : memref<1x128xf32, #tpu.memory_space<vmem>>, vector<1x128xf32>
      tpu.vector_store %arg5[%c0_45, %c0_46], %65 {strides = array<i32>} : memref<1x128xf32, #tpu.memory_space<vmem>>, vector<1x128xf32>,
    } else {
    }
    %c0_31 = arith.constant 0 : index
    %c0_32 = arith.constant 0 : index
    %52 = vector.load %arg4[%c0_31, %c0_32] : memref<1x128xf32, #tpu.memory_space<vmem>>, vector<1x128xf32>
    %cst_33 = arith.constant dense<0.000000e+00> : vector<128xf32>
    %53 = vector.multi_reduction <add>, %48, %cst_33 [0] : vector<5x128xf32> to vector<128xf32>
    %54 = vector.shape_cast %53 : vector<128xf32> to vector<1x128xf32>
    %55 = arith.addf %52, %54 : vector<1x128xf32>
    %c0_34 = arith.constant 0 : index
    %c0_35 = arith.constant 0 : index
    %56 = vector.load %arg4[%c0_34, %c0_35] : memref<1x128xf32, #tpu.memory_space<vmem>>, vector<1x128xf32>
    tpu.vector_store %arg4[%c0_34, %c0_35], %55 {strides = array<i32>} : memref<1x128xf32, #tpu.memory_space<vmem>>, vector<1x128xf32>,
    %c0_36 = arith.constant 0 : index
    %c0_37 = arith.constant 0 : index
    %57 = vector.load %arg5[%c0_36, %c0_37] : memref<1x128xf32, #tpu.memory_space<vmem>>, vector<1x128xf32>
    %58 = arith.mulf %48, %48 : vector<5x128xf32>
    %cst_38 = arith.constant dense<0.000000e+00> : vector<128xf32>
    %59 = vector.multi_reduction <add>, %58, %cst_38 [0] : vector<5x128xf32> to vector<128xf32>
    %60 = vector.shape_cast %59 : vector<128xf32> to vector<1x128xf32>
    %61 = arith.addf %57, %60 : vector<1x128xf32>
    %c0_39 = arith.constant 0 : index
    %c0_40 = arith.constant 0 : index
    %62 = vector.load %arg5[%c0_39, %c0_40] : memref<1x128xf32, #tpu.memory_space<vmem>>, vector<1x128xf32>
    tpu.vector_store %arg5[%c0_39, %c0_40], %61 {strides = array<i32>} : memref<1x128xf32, #tpu.memory_space<vmem>>, vector<1x128xf32>,
    return
  }
  func.func @transform_0(%arg0: i32) -> (i32, i32, i32) {
    %c0_i32 = arith.constant 0 : i32
    %c0_i32_0 = arith.constant 0 : i32
    %c0_i32_1 = arith.constant 0 : i32
    return %arg0, %c0_i32, %c0_i32_0 : i32, i32, i32
  }
  func.func @transform_1(%arg0: i32) -> (i32, i32, i32) {
    %c0_i32 = arith.constant 0 : i32
    %c0_i32_0 = arith.constant 0 : i32
    %c0_i32_1 = arith.constant 0 : i32
    %c0_i32_2 = arith.constant 0 : i32
    return %c0_i32, %c0_i32_0, %c0_i32_1 : i32, i32, i32
  }
  func.func @transform_2(%arg0: i32) -> (i32, i32, i32) {
    %c0_i32 = arith.constant 0 : i32
    %c0_i32_0 = arith.constant 0 : i32
    %c0_i32_1 = arith.constant 0 : i32
    return %arg0, %c0_i32, %c0_i32_0 : i32, i32, i32
  }
  func.func @transform_3(%arg0: i32) -> (i32, i32) {
    %c0_i32 = arith.constant 0 : i32
    %c0_i32_0 = arith.constant 0 : i32
    %c0_i32_1 = arith.constant 0 : i32
    return %c0_i32, %c0_i32_0 : i32, i32
  }
  func.func @transform_4(%arg0: i32) -> (i32, i32) {
    %c0_i32 = arith.constant 0 : i32
    %c0_i32_0 = arith.constant 0 : i32
    %c0_i32_1 = arith.constant 0 : i32
    return %c0_i32, %c0_i32_0 : i32, i32
  }
}

module attributes {stable_mosaic.version = 11 : i64} {
  func.func @_conv_stats_kernel(%arg0: i32, %arg1: memref<1x4x512xf32, #tpu.memory_space<vmem>>, %arg2: memref<4x512x256xf32, #tpu.memory_space<vmem>>, %arg3: memref<1x1x256xf32, #tpu.memory_space<vmem>>, %arg4: memref<1x256xf32, #tpu.memory_space<vmem>>, %arg5: memref<1x256xf32, #tpu.memory_space<vmem>>) attributes {dimension_semantics = [#tpu.dimension_semantics<arbitrary>], iteration_bounds = array<i64: 2>, scalar_prefetch = 0 : i64, scratch_operands = 0 : i64, tpu.core_type = #tpu.core_type<tc>, window_params = [{transform_indices = @transform_0, window_bounds = array<i64: 1, 4, 512>}, {pipeline_mode = #tpu.pipeline_mode<synchronous>, transform_indices = @transform_1, window_bounds = array<i64: 4, 512, 256>}, {transform_indices = @transform_2, window_bounds = array<i64: 1, 1, 256>}, {pipeline_mode = #tpu.pipeline_mode<synchronous>, transform_indices = @transform_3, window_bounds = array<i64: 1, 256>}, {pipeline_mode = #tpu.pipeline_mode<synchronous>, transform_indices = @transform_4, window_bounds = array<i64: 1, 256>}]} {
    %c0 = arith.constant 0 : index
    %c0_0 = arith.constant 0 : index
    %c0_1 = arith.constant 0 : index
    %0 = vector.load %arg1[%c0, %c0_0, %c0_1] : memref<1x4x512xf32, #tpu.memory_space<vmem>>, vector<1x1x512xf32>
    %1 = vector.shape_cast %0 : vector<1x1x512xf32> to vector<1x512xf32>
    %c0_2 = arith.constant 0 : index
    %c0_3 = arith.constant 0 : index
    %c0_4 = arith.constant 0 : index
    %2 = vector.load %arg2[%c0_2, %c0_3, %c0_4] : memref<4x512x256xf32, #tpu.memory_space<vmem>>, vector<1x512x256xf32>
    %3 = vector.shape_cast %2 : vector<1x512x256xf32> to vector<512x256xf32>
    %cst = arith.constant dense<0.000000e+00> : vector<1x256xf32>
    %4 = tpu.matmul %1, %3, %cst {dimension_numbers = #tpu.dot_dimension_numbers<[1], [0], [0], [1], [0, 0, 1, 1], [], []>} : vector<1x512xf32>, vector<512x256xf32>, vector<1x256xf32> -> vector<1x256xf32>
    %c0_5 = arith.constant 0 : index
    %c1 = arith.constant 1 : index
    %c0_6 = arith.constant 0 : index
    %5 = vector.load %arg1[%c0_5, %c1, %c0_6] : memref<1x4x512xf32, #tpu.memory_space<vmem>>, vector<1x1x512xf32>
    %6 = vector.shape_cast %5 : vector<1x1x512xf32> to vector<1x512xf32>
    %c1_7 = arith.constant 1 : index
    %c0_8 = arith.constant 0 : index
    %c0_9 = arith.constant 0 : index
    %7 = vector.load %arg2[%c1_7, %c0_8, %c0_9] : memref<4x512x256xf32, #tpu.memory_space<vmem>>, vector<1x512x256xf32>
    %8 = vector.shape_cast %7 : vector<1x512x256xf32> to vector<512x256xf32>
    %cst_10 = arith.constant dense<0.000000e+00> : vector<1x256xf32>
    %9 = tpu.matmul %6, %8, %cst_10 {dimension_numbers = #tpu.dot_dimension_numbers<[1], [0], [0], [1], [0, 0, 1, 1], [], []>} : vector<1x512xf32>, vector<512x256xf32>, vector<1x256xf32> -> vector<1x256xf32>
    %10 = arith.addf %4, %9 : vector<1x256xf32>
    %c0_11 = arith.constant 0 : index
    %c2 = arith.constant 2 : index
    %c0_12 = arith.constant 0 : index
    %11 = vector.load %arg1[%c0_11, %c2, %c0_12] : memref<1x4x512xf32, #tpu.memory_space<vmem>>, vector<1x1x512xf32>
    %12 = vector.shape_cast %11 : vector<1x1x512xf32> to vector<1x512xf32>
    %c2_13 = arith.constant 2 : index
    %c0_14 = arith.constant 0 : index
    %c0_15 = arith.constant 0 : index
    %13 = vector.load %arg2[%c2_13, %c0_14, %c0_15] : memref<4x512x256xf32, #tpu.memory_space<vmem>>, vector<1x512x256xf32>
    %14 = vector.shape_cast %13 : vector<1x512x256xf32> to vector<512x256xf32>
    %cst_16 = arith.constant dense<0.000000e+00> : vector<1x256xf32>
    %15 = tpu.matmul %12, %14, %cst_16 {dimension_numbers = #tpu.dot_dimension_numbers<[1], [0], [0], [1], [0, 0, 1, 1], [], []>} : vector<1x512xf32>, vector<512x256xf32>, vector<1x256xf32> -> vector<1x256xf32>
    %16 = arith.addf %10, %15 : vector<1x256xf32>
    %c0_17 = arith.constant 0 : index
    %c3 = arith.constant 3 : index
    %c0_18 = arith.constant 0 : index
    %17 = vector.load %arg1[%c0_17, %c3, %c0_18] : memref<1x4x512xf32, #tpu.memory_space<vmem>>, vector<1x1x512xf32>
    %18 = vector.shape_cast %17 : vector<1x1x512xf32> to vector<1x512xf32>
    %c3_19 = arith.constant 3 : index
    %c0_20 = arith.constant 0 : index
    %c0_21 = arith.constant 0 : index
    %19 = vector.load %arg2[%c3_19, %c0_20, %c0_21] : memref<4x512x256xf32, #tpu.memory_space<vmem>>, vector<1x512x256xf32>
    %20 = vector.shape_cast %19 : vector<1x512x256xf32> to vector<512x256xf32>
    %cst_22 = arith.constant dense<0.000000e+00> : vector<1x256xf32>
    %21 = tpu.matmul %18, %20, %cst_22 {dimension_numbers = #tpu.dot_dimension_numbers<[1], [0], [0], [1], [0, 0, 1, 1], [], []>} : vector<1x512xf32>, vector<512x256xf32>, vector<1x256xf32> -> vector<1x256xf32>
    %22 = arith.addf %16, %21 : vector<1x256xf32>
    %c0_23 = arith.constant 0 : index
    %c0_24 = arith.constant 0 : index
    %c0_25 = arith.constant 0 : index
    %23 = vector.load %arg3[%c0_23, %c0_24, %c0_25] : memref<1x1x256xf32, #tpu.memory_space<vmem>>, vector<1x1x256xf32>
    %24 = vector.shape_cast %23 : vector<1x1x256xf32> to vector<1x256xf32>
    %25 = vector.shape_cast %22 : vector<1x256xf32> to vector<1x1x256xf32>
    tpu.vector_store %arg3[%c0_23, %c0_24, %c0_25], %25 {strides = array<i32>} : memref<1x1x256xf32, #tpu.memory_space<vmem>>, vector<1x1x256xf32>,
    %26 = tpu.iota {dimensions = array<i32: 0>} : vector<1x1xi32>
    %c2_i32 = arith.constant 2 : i32
    %c0_i32 = arith.constant 0 : i32
    %27 = arith.cmpi eq, %c2_i32, %c0_i32 : i32
    %c1_i32 = arith.constant 1 : i32
    %28 = arith.select %27, %c1_i32, %c2_i32 : i32
    %29 = vector.broadcast %28 : i32 to vector<1x1xi32>
    %30 = arith.remsi %26, %29 : vector<1x1xi32>
    %c0_i32_26 = arith.constant 0 : i32
    %31 = vector.broadcast %c0_i32_26 : i32 to vector<1x1xi32>
    %32 = arith.cmpi ne, %30, %31 : vector<1x1xi32>
    %c0_i32_27 = arith.constant 0 : i32
    %33 = vector.broadcast %c0_i32_27 : i32 to vector<1x1xi32>
    %34 = arith.cmpi slt, %30, %33 : vector<1x1xi32>
    %c0_i32_28 = arith.constant 0 : i32
    %35 = arith.cmpi slt, %28, %c0_i32_28 : i32
    %36 = vector.broadcast %35 : i1 to vector<1x1xi1>
    %37 = vector.broadcast %36 : vector<1x1xi1> to vector<1x1xi1>
    %38 = arith.xori %34, %37 : vector<1x1xi1>
    %39 = arith.andi %38, %32 : vector<1x1xi1>
    %40 = vector.broadcast %28 : i32 to vector<1x1xi32>
    %41 = arith.addi %30, %40 : vector<1x1xi32>
    %42 = arith.select %39, %41, %30 : vector<1x1xi1>, vector<1x1xi32>
    %c1_i32_29 = arith.constant 1 : i32
    %43 = vector.broadcast %c1_i32_29 : i32 to vector<1x1xi32>
    %44 = arith.cmpi slt, %42, %43 : vector<1x1xi32>
    %cst_30 = arith.constant 0.000000e+00 : f32
    %45 = vector.shape_cast %44 : vector<1x1xi1> to vector<1x1xi1>
    %46 = vector.broadcast %45 : vector<1x1xi1> to vector<1x256xi1>
    %47 = vector.broadcast %cst_30 : f32 to vector<1x256xf32>
    %48 = arith.select %46, %22, %47 : vector<1x256xi1>, vector<1x256xf32>
    %c0_i32_31 = arith.constant 0 : i32
    %49 = arith.cmpi eq, %arg0, %c0_i32_31 : i32
    %50 = arith.extui %49 : i1 to i32
    %c0_i32_32 = arith.constant 0 : i32
    %51 = arith.cmpi ne, %50, %c0_i32_32 : i32
    scf.if %51 {
      %cst_43 = arith.constant 0.000000e+00 : f32
      %63 = vector.broadcast %cst_43 : f32 to vector<1x256xf32>
      %c0_44 = arith.constant 0 : index
      %c0_45 = arith.constant 0 : index
      %64 = vector.load %arg4[%c0_44, %c0_45] : memref<1x256xf32, #tpu.memory_space<vmem>>, vector<1x256xf32>
      tpu.vector_store %arg4[%c0_44, %c0_45], %63 {strides = array<i32>} : memref<1x256xf32, #tpu.memory_space<vmem>>, vector<1x256xf32>,
      %cst_46 = arith.constant 0.000000e+00 : f32
      %65 = vector.broadcast %cst_46 : f32 to vector<1x256xf32>
      %c0_47 = arith.constant 0 : index
      %c0_48 = arith.constant 0 : index
      %66 = vector.load %arg5[%c0_47, %c0_48] : memref<1x256xf32, #tpu.memory_space<vmem>>, vector<1x256xf32>
      tpu.vector_store %arg5[%c0_47, %c0_48], %65 {strides = array<i32>} : memref<1x256xf32, #tpu.memory_space<vmem>>, vector<1x256xf32>,
    } else {
    }
    %c0_33 = arith.constant 0 : index
    %c0_34 = arith.constant 0 : index
    %52 = vector.load %arg4[%c0_33, %c0_34] : memref<1x256xf32, #tpu.memory_space<vmem>>, vector<1x256xf32>
    %cst_35 = arith.constant dense<0.000000e+00> : vector<256xf32>
    %53 = vector.multi_reduction <add>, %48, %cst_35 [0] : vector<1x256xf32> to vector<256xf32>
    %54 = vector.shape_cast %53 : vector<256xf32> to vector<1x256xf32>
    %55 = arith.addf %52, %54 : vector<1x256xf32>
    %c0_36 = arith.constant 0 : index
    %c0_37 = arith.constant 0 : index
    %56 = vector.load %arg4[%c0_36, %c0_37] : memref<1x256xf32, #tpu.memory_space<vmem>>, vector<1x256xf32>
    tpu.vector_store %arg4[%c0_36, %c0_37], %55 {strides = array<i32>} : memref<1x256xf32, #tpu.memory_space<vmem>>, vector<1x256xf32>,
    %c0_38 = arith.constant 0 : index
    %c0_39 = arith.constant 0 : index
    %57 = vector.load %arg5[%c0_38, %c0_39] : memref<1x256xf32, #tpu.memory_space<vmem>>, vector<1x256xf32>
    %58 = arith.mulf %48, %48 : vector<1x256xf32>
    %cst_40 = arith.constant dense<0.000000e+00> : vector<256xf32>
    %59 = vector.multi_reduction <add>, %58, %cst_40 [0] : vector<1x256xf32> to vector<256xf32>
    %60 = vector.shape_cast %59 : vector<256xf32> to vector<1x256xf32>
    %61 = arith.addf %57, %60 : vector<1x256xf32>
    %c0_41 = arith.constant 0 : index
    %c0_42 = arith.constant 0 : index
    %62 = vector.load %arg5[%c0_41, %c0_42] : memref<1x256xf32, #tpu.memory_space<vmem>>, vector<1x256xf32>
    tpu.vector_store %arg5[%c0_41, %c0_42], %61 {strides = array<i32>} : memref<1x256xf32, #tpu.memory_space<vmem>>, vector<1x256xf32>,
    return
  }
  func.func @transform_0(%arg0: i32) -> (i32, i32, i32) {
    %c0_i32 = arith.constant 0 : i32
    %c0_i32_0 = arith.constant 0 : i32
    %c0_i32_1 = arith.constant 0 : i32
    return %arg0, %c0_i32, %c0_i32_0 : i32, i32, i32
  }
  func.func @transform_1(%arg0: i32) -> (i32, i32, i32) {
    %c0_i32 = arith.constant 0 : i32
    %c0_i32_0 = arith.constant 0 : i32
    %c0_i32_1 = arith.constant 0 : i32
    %c0_i32_2 = arith.constant 0 : i32
    return %c0_i32, %c0_i32_0, %c0_i32_1 : i32, i32, i32
  }
  func.func @transform_2(%arg0: i32) -> (i32, i32, i32) {
    %c0_i32 = arith.constant 0 : i32
    %c0_i32_0 = arith.constant 0 : i32
    %c0_i32_1 = arith.constant 0 : i32
    return %arg0, %c0_i32, %c0_i32_0 : i32, i32, i32
  }
  func.func @transform_3(%arg0: i32) -> (i32, i32) {
    %c0_i32 = arith.constant 0 : i32
    %c0_i32_0 = arith.constant 0 : i32
    %c0_i32_1 = arith.constant 0 : i32
    return %c0_i32, %c0_i32_0 : i32, i32
  }
  func.func @transform_4(%arg0: i32) -> (i32, i32) {
    %c0_i32 = arith.constant 0 : i32
    %c0_i32_0 = arith.constant 0 : i32
    %c0_i32_1 = arith.constant 0 : i32
    return %c0_i32, %c0_i32_0 : i32, i32
  }
}

module attributes {stable_mosaic.version = 11 : i64} {
  func.func @_bn_lrelu_kernel(%arg0: i32, %arg1: memref<2x256xf32, #tpu.memory_space<vmem>>, %arg2: memref<1x256xf32, #tpu.memory_space<vmem>>, %arg3: memref<1x256xf32, #tpu.memory_space<vmem>>, %arg4: memref<1x256xf32, #tpu.memory_space<vmem>>, %arg5: memref<1x256xf32, #tpu.memory_space<vmem>>, %arg6: memref<2x256xf32, #tpu.memory_space<vmem>>) attributes {dimension_semantics = [#tpu.dimension_semantics<parallel>], iteration_bounds = array<i64: 1>, scalar_prefetch = 0 : i64, scratch_operands = 0 : i64, tpu.core_type = #tpu.core_type<tc>, window_params = [{transform_indices = @transform_0, window_bounds = array<i64: 2, 256>}, {pipeline_mode = #tpu.pipeline_mode<synchronous>, transform_indices = @transform_1, window_bounds = array<i64: 1, 256>}, {pipeline_mode = #tpu.pipeline_mode<synchronous>, transform_indices = @transform_2, window_bounds = array<i64: 1, 256>}, {pipeline_mode = #tpu.pipeline_mode<synchronous>, transform_indices = @transform_3, window_bounds = array<i64: 1, 256>}, {pipeline_mode = #tpu.pipeline_mode<synchronous>, transform_indices = @transform_4, window_bounds = array<i64: 1, 256>}, {transform_indices = @transform_5, window_bounds = array<i64: 2, 256>}]} {
    %c0 = arith.constant 0 : index
    %c0_0 = arith.constant 0 : index
    %0 = vector.load %arg2[%c0, %c0_0] : memref<1x256xf32, #tpu.memory_space<vmem>>, vector<1x256xf32>
    %cst = arith.constant 5.000000e-01 : f32
    %1 = vector.broadcast %cst : f32 to vector<1x256xf32>
    %2 = arith.mulf %0, %1 : vector<1x256xf32>
    %c0_1 = arith.constant 0 : index
    %c0_2 = arith.constant 0 : index
    %3 = vector.load %arg3[%c0_1, %c0_2] : memref<1x256xf32, #tpu.memory_space<vmem>>, vector<1x256xf32>
    %cst_3 = arith.constant 5.000000e-01 : f32
    %4 = vector.broadcast %cst_3 : f32 to vector<1x256xf32>
    %5 = arith.mulf %3, %4 : vector<1x256xf32>
    %6 = arith.mulf %2, %2 : vector<1x256xf32>
    %7 = arith.subf %5, %6 : vector<1x256xf32>
    %cst_4 = arith.constant 0.000000e+00 : f32
    %8 = vector.broadcast %cst_4 : f32 to vector<1x256xf32>
    %9 = arith.maximumf %7, %8 : vector<1x256xf32>
    %c0_5 = arith.constant 0 : index
    %c0_6 = arith.constant 0 : index
    %10 = vector.load %arg4[%c0_5, %c0_6] : memref<1x256xf32, #tpu.memory_space<vmem>>, vector<1x256xf32>
    %cst_7 = arith.constant 9.99999974E-6 : f32
    %11 = vector.broadcast %cst_7 : f32 to vector<1x256xf32>
    %12 = arith.addf %9, %11 : vector<1x256xf32>
    %13 = math.rsqrt %12 : vector<1x256xf32>
    %14 = arith.mulf %10, %13 : vector<1x256xf32>
    %c0_8 = arith.constant 0 : index
    %c0_9 = arith.constant 0 : index
    %15 = vector.load %arg5[%c0_8, %c0_9] : memref<1x256xf32, #tpu.memory_space<vmem>>, vector<1x256xf32>
    %16 = arith.mulf %2, %14 : vector<1x256xf32>
    %17 = arith.subf %15, %16 : vector<1x256xf32>
    %c0_10 = arith.constant 0 : index
    %c0_11 = arith.constant 0 : index
    %18 = vector.load %arg1[%c0_10, %c0_11] : memref<2x256xf32, #tpu.memory_space<vmem>>, vector<2x256xf32>
    %19 = vector.broadcast %14 : vector<1x256xf32> to vector<2x256xf32>
    %20 = arith.mulf %18, %19 : vector<2x256xf32>
    %21 = vector.broadcast %17 : vector<1x256xf32> to vector<2x256xf32>
    %22 = arith.addf %20, %21 : vector<2x256xf32>
    %cst_12 = arith.constant 0.000000e+00 : f32
    %23 = vector.broadcast %cst_12 : f32 to vector<2x256xf32>
    %24 = arith.cmpf ogt, %22, %23 : vector<2x256xf32>
    %cst_13 = arith.constant 2.000000e-01 : f32
    %25 = vector.broadcast %cst_13 : f32 to vector<2x256xf32>
    %26 = arith.mulf %25, %22 : vector<2x256xf32>
    %27 = arith.select %24, %22, %26 : vector<2x256xi1>, vector<2x256xf32>
    %c0_14 = arith.constant 0 : index
    %c0_15 = arith.constant 0 : index
    %28 = vector.load %arg6[%c0_14, %c0_15] : memref<2x256xf32, #tpu.memory_space<vmem>>, vector<2x256xf32>
    tpu.vector_store %arg6[%c0_14, %c0_15], %27 {strides = array<i32>} : memref<2x256xf32, #tpu.memory_space<vmem>>, vector<2x256xf32>,
    return
  }
  func.func @transform_0(%arg0: i32) -> (i32, i32) {
    %c0_i32 = arith.constant 0 : i32
    %c0_i32_0 = arith.constant 0 : i32
    return %arg0, %c0_i32 : i32, i32
  }
  func.func @transform_1(%arg0: i32) -> (i32, i32) {
    %c0_i32 = arith.constant 0 : i32
    %c0_i32_0 = arith.constant 0 : i32
    %c0_i32_1 = arith.constant 0 : i32
    return %c0_i32, %c0_i32_0 : i32, i32
  }
  func.func @transform_2(%arg0: i32) -> (i32, i32) {
    %c0_i32 = arith.constant 0 : i32
    %c0_i32_0 = arith.constant 0 : i32
    %c0_i32_1 = arith.constant 0 : i32
    return %c0_i32, %c0_i32_0 : i32, i32
  }
  func.func @transform_3(%arg0: i32) -> (i32, i32) {
    %c0_i32 = arith.constant 0 : i32
    %c0_i32_0 = arith.constant 0 : i32
    %c0_i32_1 = arith.constant 0 : i32
    return %c0_i32, %c0_i32_0 : i32, i32
  }
  func.func @transform_4(%arg0: i32) -> (i32, i32) {
    %c0_i32 = arith.constant 0 : i32
    %c0_i32_0 = arith.constant 0 : i32
    %c0_i32_1 = arith.constant 0 : i32
    return %c0_i32, %c0_i32_0 : i32, i32
  }
  func.func @transform_5(%arg0: i32) -> (i32, i32) {
    %c0_i32 = arith.constant 0 : i32
    %c0_i32_0 = arith.constant 0 : i32
    return %arg0, %c0_i32 : i32, i32
  }
}

module attributes {stable_mosaic.version = 11 : i64} {
  func.func @_final_conv_kernel(%arg0: i32, %arg1: memref<1x16x256xf32, #tpu.memory_space<vmem>>, %arg2: memref<16x256xf32, #tpu.memory_space<vmem>>, %arg3: memref<1x1x1xf32, #tpu.memory_space<vmem>>) attributes {dimension_semantics = [#tpu.dimension_semantics<parallel>], iteration_bounds = array<i64: 2>, scalar_prefetch = 0 : i64, scratch_operands = 0 : i64, tpu.core_type = #tpu.core_type<tc>, window_params = [{transform_indices = @transform_0, window_bounds = array<i64: 1, 16, 256>}, {pipeline_mode = #tpu.pipeline_mode<synchronous>, transform_indices = @transform_1, window_bounds = array<i64: 16, 256>}, {transform_indices = @transform_2, window_bounds = array<i64: 1, 1, 1>}]} {
    %c0 = arith.constant 0 : index
    %c0_0 = arith.constant 0 : index
    %c0_1 = arith.constant 0 : index
    %0 = vector.load %arg1[%c0, %c0_0, %c0_1] : memref<1x16x256xf32, #tpu.memory_space<vmem>>, vector<1x1x256xf32>
    %1 = vector.shape_cast %0 : vector<1x1x256xf32> to vector<1x256xf32>
    %c0_2 = arith.constant 0 : index
    %c0_3 = arith.constant 0 : index
    %2 = vector.load %arg2[%c0_2, %c0_3] : memref<16x256xf32, #tpu.memory_space<vmem>>, vector<1x256xf32>
    %3 = arith.mulf %1, %2 : vector<1x256xf32>
    %c0_4 = arith.constant 0 : index
    %c1 = arith.constant 1 : index
    %c0_5 = arith.constant 0 : index
    %4 = vector.load %arg1[%c0_4, %c1, %c0_5] : memref<1x16x256xf32, #tpu.memory_space<vmem>>, vector<1x1x256xf32>
    %5 = vector.shape_cast %4 : vector<1x1x256xf32> to vector<1x256xf32>
    %c1_6 = arith.constant 1 : index
    %c0_7 = arith.constant 0 : index
    %6 = vector.load %arg2[%c1_6, %c0_7] : memref<16x256xf32, #tpu.memory_space<vmem>>, vector<1x256xf32>
    %7 = arith.mulf %5, %6 : vector<1x256xf32>
    %8 = arith.addf %3, %7 : vector<1x256xf32>
    %c0_8 = arith.constant 0 : index
    %c2 = arith.constant 2 : index
    %c0_9 = arith.constant 0 : index
    %9 = vector.load %arg1[%c0_8, %c2, %c0_9] : memref<1x16x256xf32, #tpu.memory_space<vmem>>, vector<1x1x256xf32>
    %10 = vector.shape_cast %9 : vector<1x1x256xf32> to vector<1x256xf32>
    %c2_10 = arith.constant 2 : index
    %c0_11 = arith.constant 0 : index
    %11 = vector.load %arg2[%c2_10, %c0_11] : memref<16x256xf32, #tpu.memory_space<vmem>>, vector<1x256xf32>
    %12 = arith.mulf %10, %11 : vector<1x256xf32>
    %13 = arith.addf %8, %12 : vector<1x256xf32>
    %c0_12 = arith.constant 0 : index
    %c3 = arith.constant 3 : index
    %c0_13 = arith.constant 0 : index
    %14 = vector.load %arg1[%c0_12, %c3, %c0_13] : memref<1x16x256xf32, #tpu.memory_space<vmem>>, vector<1x1x256xf32>
    %15 = vector.shape_cast %14 : vector<1x1x256xf32> to vector<1x256xf32>
    %c3_14 = arith.constant 3 : index
    %c0_15 = arith.constant 0 : index
    %16 = vector.load %arg2[%c3_14, %c0_15] : memref<16x256xf32, #tpu.memory_space<vmem>>, vector<1x256xf32>
    %17 = arith.mulf %15, %16 : vector<1x256xf32>
    %18 = arith.addf %13, %17 : vector<1x256xf32>
    %c0_16 = arith.constant 0 : index
    %c4 = arith.constant 4 : index
    %c0_17 = arith.constant 0 : index
    %19 = vector.load %arg1[%c0_16, %c4, %c0_17] : memref<1x16x256xf32, #tpu.memory_space<vmem>>, vector<1x1x256xf32>
    %20 = vector.shape_cast %19 : vector<1x1x256xf32> to vector<1x256xf32>
    %c4_18 = arith.constant 4 : index
    %c0_19 = arith.constant 0 : index
    %21 = vector.load %arg2[%c4_18, %c0_19] : memref<16x256xf32, #tpu.memory_space<vmem>>, vector<1x256xf32>
    %22 = arith.mulf %20, %21 : vector<1x256xf32>
    %23 = arith.addf %18, %22 : vector<1x256xf32>
    %c0_20 = arith.constant 0 : index
    %c5 = arith.constant 5 : index
    %c0_21 = arith.constant 0 : index
    %24 = vector.load %arg1[%c0_20, %c5, %c0_21] : memref<1x16x256xf32, #tpu.memory_space<vmem>>, vector<1x1x256xf32>
    %25 = vector.shape_cast %24 : vector<1x1x256xf32> to vector<1x256xf32>
    %c5_22 = arith.constant 5 : index
    %c0_23 = arith.constant 0 : index
    %26 = vector.load %arg2[%c5_22, %c0_23] : memref<16x256xf32, #tpu.memory_space<vmem>>, vector<1x256xf32>
    %27 = arith.mulf %25, %26 : vector<1x256xf32>
    %28 = arith.addf %23, %27 : vector<1x256xf32>
    %c0_24 = arith.constant 0 : index
    %c6 = arith.constant 6 : index
    %c0_25 = arith.constant 0 : index
    %29 = vector.load %arg1[%c0_24, %c6, %c0_25] : memref<1x16x256xf32, #tpu.memory_space<vmem>>, vector<1x1x256xf32>
    %30 = vector.shape_cast %29 : vector<1x1x256xf32> to vector<1x256xf32>
    %c6_26 = arith.constant 6 : index
    %c0_27 = arith.constant 0 : index
    %31 = vector.load %arg2[%c6_26, %c0_27] : memref<16x256xf32, #tpu.memory_space<vmem>>, vector<1x256xf32>
    %32 = arith.mulf %30, %31 : vector<1x256xf32>
    %33 = arith.addf %28, %32 : vector<1x256xf32>
    %c0_28 = arith.constant 0 : index
    %c7 = arith.constant 7 : index
    %c0_29 = arith.constant 0 : index
    %34 = vector.load %arg1[%c0_28, %c7, %c0_29] : memref<1x16x256xf32, #tpu.memory_space<vmem>>, vector<1x1x256xf32>
    %35 = vector.shape_cast %34 : vector<1x1x256xf32> to vector<1x256xf32>
    %c7_30 = arith.constant 7 : index
    %c0_31 = arith.constant 0 : index
    %36 = vector.load %arg2[%c7_30, %c0_31] : memref<16x256xf32, #tpu.memory_space<vmem>>, vector<1x256xf32>
    %37 = arith.mulf %35, %36 : vector<1x256xf32>
    %38 = arith.addf %33, %37 : vector<1x256xf32>
    %c0_32 = arith.constant 0 : index
    %c8 = arith.constant 8 : index
    %c0_33 = arith.constant 0 : index
    %39 = vector.load %arg1[%c0_32, %c8, %c0_33] : memref<1x16x256xf32, #tpu.memory_space<vmem>>, vector<1x1x256xf32>
    %40 = vector.shape_cast %39 : vector<1x1x256xf32> to vector<1x256xf32>
    %c8_34 = arith.constant 8 : index
    %c0_35 = arith.constant 0 : index
    %41 = vector.load %arg2[%c8_34, %c0_35] : memref<16x256xf32, #tpu.memory_space<vmem>>, vector<1x256xf32>
    %42 = arith.mulf %40, %41 : vector<1x256xf32>
    %43 = arith.addf %38, %42 : vector<1x256xf32>
    %c0_36 = arith.constant 0 : index
    %c9 = arith.constant 9 : index
    %c0_37 = arith.constant 0 : index
    %44 = vector.load %arg1[%c0_36, %c9, %c0_37] : memref<1x16x256xf32, #tpu.memory_space<vmem>>, vector<1x1x256xf32>
    %45 = vector.shape_cast %44 : vector<1x1x256xf32> to vector<1x256xf32>
    %c9_38 = arith.constant 9 : index
    %c0_39 = arith.constant 0 : index
    %46 = vector.load %arg2[%c9_38, %c0_39] : memref<16x256xf32, #tpu.memory_space<vmem>>, vector<1x256xf32>
    %47 = arith.mulf %45, %46 : vector<1x256xf32>
    %48 = arith.addf %43, %47 : vector<1x256xf32>
    %c0_40 = arith.constant 0 : index
    %c10 = arith.constant 10 : index
    %c0_41 = arith.constant 0 : index
    %49 = vector.load %arg1[%c0_40, %c10, %c0_41] : memref<1x16x256xf32, #tpu.memory_space<vmem>>, vector<1x1x256xf32>
    %50 = vector.shape_cast %49 : vector<1x1x256xf32> to vector<1x256xf32>
    %c10_42 = arith.constant 10 : index
    %c0_43 = arith.constant 0 : index
    %51 = vector.load %arg2[%c10_42, %c0_43] : memref<16x256xf32, #tpu.memory_space<vmem>>, vector<1x256xf32>
    %52 = arith.mulf %50, %51 : vector<1x256xf32>
    %53 = arith.addf %48, %52 : vector<1x256xf32>
    %c0_44 = arith.constant 0 : index
    %c11 = arith.constant 11 : index
    %c0_45 = arith.constant 0 : index
    %54 = vector.load %arg1[%c0_44, %c11, %c0_45] : memref<1x16x256xf32, #tpu.memory_space<vmem>>, vector<1x1x256xf32>
    %55 = vector.shape_cast %54 : vector<1x1x256xf32> to vector<1x256xf32>
    %c11_46 = arith.constant 11 : index
    %c0_47 = arith.constant 0 : index
    %56 = vector.load %arg2[%c11_46, %c0_47] : memref<16x256xf32, #tpu.memory_space<vmem>>, vector<1x256xf32>
    %57 = arith.mulf %55, %56 : vector<1x256xf32>
    %58 = arith.addf %53, %57 : vector<1x256xf32>
    %c0_48 = arith.constant 0 : index
    %c12 = arith.constant 12 : index
    %c0_49 = arith.constant 0 : index
    %59 = vector.load %arg1[%c0_48, %c12, %c0_49] : memref<1x16x256xf32, #tpu.memory_space<vmem>>, vector<1x1x256xf32>
    %60 = vector.shape_cast %59 : vector<1x1x256xf32> to vector<1x256xf32>
    %c12_50 = arith.constant 12 : index
    %c0_51 = arith.constant 0 : index
    %61 = vector.load %arg2[%c12_50, %c0_51] : memref<16x256xf32, #tpu.memory_space<vmem>>, vector<1x256xf32>
    %62 = arith.mulf %60, %61 : vector<1x256xf32>
    %63 = arith.addf %58, %62 : vector<1x256xf32>
    %c0_52 = arith.constant 0 : index
    %c13 = arith.constant 13 : index
    %c0_53 = arith.constant 0 : index
    %64 = vector.load %arg1[%c0_52, %c13, %c0_53] : memref<1x16x256xf32, #tpu.memory_space<vmem>>, vector<1x1x256xf32>
    %65 = vector.shape_cast %64 : vector<1x1x256xf32> to vector<1x256xf32>
    %c13_54 = arith.constant 13 : index
    %c0_55 = arith.constant 0 : index
    %66 = vector.load %arg2[%c13_54, %c0_55] : memref<16x256xf32, #tpu.memory_space<vmem>>, vector<1x256xf32>
    %67 = arith.mulf %65, %66 : vector<1x256xf32>
    %68 = arith.addf %63, %67 : vector<1x256xf32>
    %c0_56 = arith.constant 0 : index
    %c14 = arith.constant 14 : index
    %c0_57 = arith.constant 0 : index
    %69 = vector.load %arg1[%c0_56, %c14, %c0_57] : memref<1x16x256xf32, #tpu.memory_space<vmem>>, vector<1x1x256xf32>
    %70 = vector.shape_cast %69 : vector<1x1x256xf32> to vector<1x256xf32>
    %c14_58 = arith.constant 14 : index
    %c0_59 = arith.constant 0 : index
    %71 = vector.load %arg2[%c14_58, %c0_59] : memref<16x256xf32, #tpu.memory_space<vmem>>, vector<1x256xf32>
    %72 = arith.mulf %70, %71 : vector<1x256xf32>
    %73 = arith.addf %68, %72 : vector<1x256xf32>
    %c0_60 = arith.constant 0 : index
    %c15 = arith.constant 15 : index
    %c0_61 = arith.constant 0 : index
    %74 = vector.load %arg1[%c0_60, %c15, %c0_61] : memref<1x16x256xf32, #tpu.memory_space<vmem>>, vector<1x1x256xf32>
    %75 = vector.shape_cast %74 : vector<1x1x256xf32> to vector<1x256xf32>
    %c15_62 = arith.constant 15 : index
    %c0_63 = arith.constant 0 : index
    %76 = vector.load %arg2[%c15_62, %c0_63] : memref<16x256xf32, #tpu.memory_space<vmem>>, vector<1x256xf32>
    %77 = arith.mulf %75, %76 : vector<1x256xf32>
    %78 = arith.addf %73, %77 : vector<1x256xf32>
    %cst = arith.constant dense<0.000000e+00> : vector<1xf32>
    %79 = vector.multi_reduction <add>, %78, %cst [1] : vector<1x256xf32> to vector<1xf32>
    %80 = vector.shape_cast %79 : vector<1xf32> to vector<1x1xf32>
    %c0_64 = arith.constant 0 : index
    %c0_65 = arith.constant 0 : index
    %c0_66 = arith.constant 0 : index
    %81 = vector.load %arg3[%c0_64, %c0_65, %c0_66] : memref<1x1x1xf32, #tpu.memory_space<vmem>>, vector<1x1x1xf32>
    %82 = vector.shape_cast %81 : vector<1x1x1xf32> to vector<1x1xf32>
    %83 = vector.shape_cast %80 : vector<1x1xf32> to vector<1x1x1xf32>
    tpu.vector_store %arg3[%c0_64, %c0_65, %c0_66], %83 {strides = array<i32>} : memref<1x1x1xf32, #tpu.memory_space<vmem>>, vector<1x1x1xf32>,
    return
  }
  func.func @transform_0(%arg0: i32) -> (i32, i32, i32) {
    %c0_i32 = arith.constant 0 : i32
    %c0_i32_0 = arith.constant 0 : i32
    %c0_i32_1 = arith.constant 0 : i32
    return %arg0, %c0_i32, %c0_i32_0 : i32, i32, i32
  }
  func.func @transform_1(%arg0: i32) -> (i32, i32) {
    %c0_i32 = arith.constant 0 : i32
    %c0_i32_0 = arith.constant 0 : i32
    %c0_i32_1 = arith.constant 0 : i32
    return %c0_i32, %c0_i32_0 : i32, i32
  }
  func.func @transform_2(%arg0: i32) -> (i32, i32, i32) {
    %c0_i32 = arith.constant 0 : i32
    %c0_i32_0 = arith.constant 0 : i32
    %c0_i32_1 = arith.constant 0 : i32
    return %arg0, %c0_i32, %c0_i32_0 : i32, i32, i32
  }
}

</mosaic_0001>

<llo_original>
// kernel: discriminator_forward.8
$region0: #{discriminator_forward.8}
  #allocation0 [shape = 'u32[]', space=smem, size = 0x4, offset = 0x4, fixed_abs, tag = 'smem constant byte address 0x4 - core index']
  #allocation1 [shape = 'u32[144,128]{1,0:T(1,128)}', space=vmem, size = 0x12000, scoped, tag = 'internal scratch']
  %s0 = inlined_call_operand.hbm [shape: f32[2,81,24], index: 0, kind: input, shape index: {}]
  %s1 = inlined_call_operand.hbm [shape: f32[4,24,32], index: 1, kind: input, shape index: {}]
  %s2 = inlined_call_operand.hbm [shape: f32[1,32], index: 2, kind: input, shape index: {}]
  %s3 = inlined_call_operand.hbm [shape: f32[2,71,32], index: 3, kind: output, shape index: {}]
  %s4 = sld [smem:[#allocation0]]
  $region57: #{discriminator_forward.8} parent=0
    _
  %s6 = ssub.s32 1, %s4
  %s7 = scalar_select 0, %s6, %s4
  $region1: #{discriminator_forward.8} parent=0
    #allocation2 [shape = 'u8[90112]{0}', space=vmem, size = 0x16000, scoped, tag = 'input window, operand 0']
    #allocation3 [shape = 's32[2]{0}', space=sflag, size = 0x8, scoped, tag = 'scoped memory for discriminator_forward.8']
    #allocation4 [shape = 's32[2]{0}', space=sflag, size = 0x8, scoped, tag = 'scoped memory for discriminator_forward.8']
    #allocation5 [shape = 'u8[49152]{0}', space=vmem, size = 0xc000, scoped, tag = 'input window, operand 1, single buffered']
    #allocation6 [shape = 's32[1]{0}', space=sflag, size = 0x4, scoped, tag = 'scoped memory for discriminator_forward.8']
    #allocation7 [shape = 'u8[512]{0}', space=vmem, size = 0x400, scoped, tag = 'input window, operand 2, single buffered']
    #allocation8 [shape = 'u8[73728]{0}', space=vmem, size = 0x12000, scoped, tag = 'output window, operand 0']
    %8 = vsyncpa [#allocation3], 0
    %s9 = scalar_lea.sflag [#allocation3], 1
    %10 = vsyncpa %s9, 0
    %11 = vsyncpa [#allocation6], 0
    %12 = vsyncpa [#allocation4], 0
    %s13 = scalar_lea.sflag [#allocation4], 1
    %14 = vsyncpa %s13, 0
    loop: start=0, step=1, limit=4
    $region2: #{discriminator_forward.8} parent=1 // loop_pre_header
      _
    $region3: #{discriminator_forward.8} parent=1 // loop_header
      %s16 = sphi 0, %s20
      %p17 = scmp.ge.s32.totalorder %s16, 4
      %s26 = sphi 0, %s28
      %s29 = sphi 0, %s26
      %s30 = sphi 0, %s29
      %s46 = sphi 0, %s30
      %s50 = sphi 0, %s50
      %s52 = sphi 0, %s50
      %s53 = sphi 0, %s52
      %s67 = sphi 0, %s53
      %s71 = sphi 0, %s71
      %s73 = sphi 0, %s71
      %s74 = sphi 0, %s73
      %s88 = sphi 0, %s74
      %s94 = sphi 0, %s96
      %s97 = sphi 0, %s94
      %s98 = sphi 0, %s97
      %s114 = sphi 0, %s98
    $region4: #{discriminator_forward.8} parent=1 // loop_header_branch
      %19 = sbr.rel (%p17) target = $region8
    $region5: #{discriminator_forward.8} parent=1 // loop_body
      %s21 = ssub.s32 %s16, 1
      %s22 = ssub.s32 %s16, 2
      %s23 = sadd.s32 %s16, 1
      %s24 = ssub.s32 %s16, %s23
      %p25 = scmp.eq.s32.totalorder %s24, 0
      %s27 = sadd.s32 %s26, 1
      %s28 = scalar_select %p25, %s26, %s27
      %p31 = pneg %p25
      %p32 = scmp.eq.s32.totalorder %s16, 1
      %p33 = por %p31, %p32
      %p34 = scmp.ne.s32.totalorder %s26, %s29
      %p35 = scmp.eq.s32.totalorder %s16, 0
      %p36 = por %p34, %p35
      %p37 = scmp.ne.s32.totalorder %s26, %s29
      %p38 = scmp.eq.s32.totalorder %s21, 1
      %p39 = por %p37, %p38
      %p40 = scmp.ne.s32.totalorder %s29, %s30
      %p41 = scmp.eq.s32.totalorder %s21, 0
      %p42 = por %p40, %p41
      %p43 = scmp.ne.s32.totalorder %s29, %s30
      %p44 = scmp.eq.s32.totalorder %s22, 1
      %p45 = por %p43, %p44
      %p47 = scmp.ne.s32.totalorder %s30, %s46
      %p48 = scmp.eq.s32.totalorder %s22, 0
      %p49 = por %p47, %p48
      %s51 = sadd.s32 %s50, 1
      %p54 = scmp.eq.s32.totalorder %s16, 1
      %p55 = scmp.ne.s32.totalorder %s50, %s52
      %p56 = scmp.eq.s32.totalorder %s16, 0
      %p57 = por %p55, %p56
      %p58 = scmp.ne.s32.totalorder %s50, %s52
      %p59 = scmp.eq.s32.totalorder %s21, 1
      %p60 = por %p58, %p59
      %p61 = scmp.ne.s32.totalorder %s52, %s53
      %p62 = scmp.eq.s32.totalorder %s21, 0
      %p63 = por %p61, %p62
      %p64 = scmp.ne.s32.totalorder %s52, %s53
      %p65 = scmp.eq.s32.totalorder %s22, 1
      %p66 = por %p64, %p65
      %p68 = scmp.ne.s32.totalorder %s53, %s67
      %p69 = scmp.eq.s32.totalorder %s22, 0
      %p70 = por %p68, %p69
      %s72 = sadd.s32 %s71, 1
      %p75 = scmp.eq.s32.totalorder %s16, 1
      %p76 = scmp.ne.s32.totalorder %s71, %s73
      %p77 = scmp.eq.s32.totalorder %s16, 0
      %p78 = por %p76, %p77
      %p79 = scmp.ne.s32.totalorder %s71, %s73
      %p80 = scmp.eq.s32.totalorder %s21, 1
      %p81 = por %p79, %p80
      %p82 = scmp.ne.s32.totalorder %s73, %s74
      %p83 = scmp.eq.s32.totalorder %s21, 0
      %p84 = por %p82, %p83
      %p85 = scmp.ne.s32.totalorder %s73, %s74
      %p86 = scmp.eq.s32.totalorder %s22, 1
      %p87 = por %p85, %p86
      %p89 = scmp.ne.s32.totalorder %s74, %s88
      %p90 = scmp.eq.s32.totalorder %s22, 0
      %p91 = por %p89, %p90
      %s92 = ssub.s32 %s16, %s23
      %p93 = scmp.eq.s32.totalorder %s92, 0
      %s95 = sadd.s32 %s94, 1
      %s96 = scalar_select %p93, %s94, %s95
      %p99 = pneg %p93
      %p100 = scmp.eq.s32.totalorder %s16, 1
      %p101 = por %p99, %p100
      %p102 = scmp.ne.s32.totalorder %s94, %s97
      %p103 = scmp.eq.s32.totalorder %s16, 0
      %p104 = por %p102, %p103
      %p105 = scmp.ne.s32.totalorder %s94, %s97
      %p106 = scmp.eq.s32.totalorder %s21, 1
      %p107 = por %p105, %p106
      %p108 = scmp.ne.s32.totalorder %s97, %s98
      %p109 = scmp.eq.s32.totalorder %s21, 0
      %p110 = por %p108, %p109
      %p111 = scmp.ne.s32.totalorder %s97, %s98
      %p112 = scmp.eq.s32.totalorder %s22, 1
      %p113 = por %p111, %p112
      %p115 = scmp.ne.s32.totalorder %s98, %s114
      %p116 = scmp.eq.s32.totalorder %s22, 0
      %p117 = por %p115, %p116
      %p118 = scmp.le.s32.totalorder 1, %s16
      %p119 = scmp.lt.s32.totalorder %s16, 3
      %p120 = pnand %p118, %p119
      %p121 = pneg %p120
      // Predicated region
      $region9: #{discriminator_forward.8} parent=5 // pred_check
        _
      $region10: #{discriminator_forward.8} parent=5 // pred_check_branch
        %123 = sbr.rel (%p120) target = $region12
      $region11: #{discriminator_forward.8} parent=5 // pred_region
        %s124 = ssub.s32 %s16, 1
        // Predicated region
        $region13: #{discriminator_forward.8} parent=11 // pred_check
          %p125 = pneg %p63
        $region14: #{discriminator_forward.8} parent=11 // pred_check_branch
          %127 = sbr.rel (%p125) target = $region16
        $region15: #{discriminator_forward.8} parent=11 // pred_region
          %s129 = ssub.s32 1536, 1536
          %130 = vsyncadd [#allocation6], %s129
          %s131 = sshll.u32 [#allocation5], 4
          %s132 = int_to_ptr.vmem [resolvable:$true] %s131
          %137 = dma.hbm_to_vmem [thread:$0]  %s1, 1536, %s132, [#allocation6], 128, 128, 8
        $region16: #{discriminator_forward.8} parent=11 // pred_fallthru
          _
        // Predicated region
        $region17: #{discriminator_forward.8} parent=11 // pred_check
          %p138 = pneg %p84
        $region18: #{discriminator_forward.8} parent=11 // pred_check_branch
          %140 = sbr.rel (%p138) target = $region20
        $region19: #{discriminator_forward.8} parent=11 // pred_region
          %s142 = ssub.s32 16, 16
          %143 = vsyncadd [#allocation6], %s142
          %s145 = sshll.u32 [#allocation7], 4
          %s146 = int_to_ptr.vmem [resolvable:$true] %s145
          %148 = dma.hbm_to_vmem [thread:$0]  %s2, 16, %s146, [#allocation6]
        $region20: #{discriminator_forward.8} parent=11 // pred_fallthru
          _
      $region12: #{discriminator_forward.8} parent=5 // pred_fallthru
        _
      %p149 = scmp.lt.s32.totalorder %s16, 2
      // Predicated region
      $region21: #{discriminator_forward.8} parent=5 // pred_check
        %p150 = pneg %p149
      $region22: #{discriminator_forward.8} parent=5 // pred_check_branch
        %152 = sbr.rel (%p150) target = $region24
      $region23: #{discriminator_forward.8} parent=5 // pred_region
        // Predicated region
        $region25: #{discriminator_forward.8} parent=23 // pred_check
          %p153 = pneg %p36
        $region26: #{discriminator_forward.8} parent=23 // pred_check_branch
          %155 = sbr.rel (%p153) target = $region28
        $region27: #{discriminator_forward.8} parent=23 // pred_region
          %s156 = sand.u32 %s26, 1
          %s157 = scalar_lea.sflag [#allocation3], %s156
          %s158 = sand.u32 %s26, 1
          %s159 = smul.addr %s158, 88
          %s160 = scalar_lea.vmem [#allocation2], %s159
          %s162 = ssub.s32 1408, 1408
          %163 = vsyncadd %s157, %s162
          %s164 = smul.addr %s16, 11
          %s165 = smul.addr %s164, 128
          %s166 = scalar_lea.hbm %s0, %s165
          %s167 = sshll.u32 %s160, 4
          %s168 = int_to_ptr.vmem [resolvable:$true] %s167
          %173 = dma.hbm_to_vmem [thread:$0]  %s166, 1408, %s168, %s157, 128, 128, 8
        $region28: #{discriminator_forward.8} parent=23 // pred_fallthru
          _
      $region24: #{discriminator_forward.8} parent=5 // pred_fallthru
        _
      %p174 = scmp.le.s32.totalorder 1, %s16
      %p175 = scmp.lt.s32.totalorder %s16, 3
      %p176 = pnand %p174, %p175
      %p177 = pneg %p176
      // Predicated region
      $region29: #{discriminator_forward.8} parent=5 // pred_check
        _
      $region30: #{discriminator_forward.8} parent=5 // pred_check_branch
        %179 = sbr.rel (%p176) target = $region32
      $region31: #{discriminator_forward.8} parent=5 // pred_region
        %s180 = ssub.s32 %s16, 1
        %s181 = sand.u32 %s29, 1
        %s182 = scalar_lea.sflag [#allocation3], %s181
        %s183 = sand.u32 %s29, 1
        %s184 = smul.addr %s183, 88
        %s185 = scalar_lea.vmem [#allocation2], %s184
        // Predicated region
        $region33: #{discriminator_forward.8} parent=31 // pred_check
          %p186 = pneg %p42
        $region34: #{discriminator_forward.8} parent=31 // pred_check_branch
          %188 = sbr.rel (%p186) target = $region36
        $region35: #{discriminator_forward.8} parent=31 // pred_region
          %189 = dma.done %s182, 1408
        $region36: #{discriminator_forward.8} parent=31 // pred_fallthru
          _
        // Predicated region
        $region37: #{discriminator_forward.8} parent=31 // pred_check
          %p190 = pneg %p63
        $region38: #{discriminator_forward.8} parent=31 // pred_check_branch
          %192 = sbr.rel (%p190) target = $region40
        $region39: #{discriminator_forward.8} parent=31 // pred_region
          %193 = dma.done [#allocation6], 1536
        $region40: #{discriminator_forward.8} parent=31 // pred_fallthru
          _
        // Predicated region
        $region41: #{discriminator_forward.8} parent=31 // pred_check
          %p194 = pneg %p84
        $region42: #{discriminator_forward.8} parent=31 // pred_check_branch
          %196 = sbr.rel (%p194) target = $region44
        $region43: #{discriminator_forward.8} parent=31 // pred_region
          %197 = dma.done [#allocation6], 16
        $region44: #{discriminator_forward.8} parent=31 // pred_fallthru
          _
        %s198 = sand.u32 %s29, 1
        %s199 = scalar_lea.sflag [#allocation3], %s198
        %s200 = sand.u32 %s29, 1
        %s201 = smul.addr %s200, 88
        %s202 = scalar_lea.vmem [#allocation2], %s201
        %p203 = pneg %p42
        %p204 = pneg %p39
        %p205 = pneg %p63
        %p206 = pneg %p60
        %p207 = pneg %p84
        %p208 = pneg %p81
        %p209 = pneg %p110
        %p210 = pneg %p107
        %s211 = sand.u32 %s97, 1
        %s212 = scalar_lea.sflag [#allocation4], %s211
        %s213 = sand.u32 %s97, 1
        %s214 = smul.addr %s213, 72
        %s215 = scalar_lea.vmem [#allocation8], %s214
        %v216 = vld [vmem:[%s185] sm:$0xff]
        %v217 = vld [vmem:[%s185 + $0x8] sm:$0xff]
        %v218 = vld [vmem:[%s185 + $0x10] sm:$0xff]
        %v219 = vld [vmem:[%s185 + $0x18] sm:$0xff]
        %v220 = vld [vmem:[%s185 + $0x20] sm:$0xff]
        %v221 = vld [vmem:[%s185 + $0x28] sm:$0xff]
        %v222 = vld [vmem:[%s185 + $0x30] sm:$0xff]
        %v223 = vld [vmem:[%s185 + $0x38] sm:$0xff]
        %v224 = vld [vmem:[%s185 + $0x40] sm:$0x7f]
        %v225 = vld [vmem:[#allocation5] sm:$0xff]
        %v226 = vld [vmem:[#allocation5 + $0x8] sm:$0xff]
        %v227 = vld [vmem:[#allocation5 + $0x10] sm:$0xff]
        %v228 = vld [vmem:[%s185 + $0x1] sm:$0xff]
        %v229 = vld [vmem:[%s185 + $0x9] sm:$0xff]
        %v230 = vld [vmem:[%s185 + $0x11] sm:$0xff]
        %v231 = vld [vmem:[%s185 + $0x19] sm:$0xff]
        %v232 = vld [vmem:[%s185 + $0x21] sm:$0xff]
        %v233 = vld [vmem:[%s185 + $0x29] sm:$0xff]
        %v234 = vld [vmem:[%s185 + $0x31] sm:$0xff]
        %v235 = vld [vmem:[%s185 + $0x39] sm:$0xff]
        %v236 = vld [vmem:[%s185 + $0x41] sm:$0x7f]
        %s237 = scalar_lea.vmem [#allocation5], 24
        %v238 = vld [vmem:[%s237] sm:$0xff]
        %v239 = vld [vmem:[%s237 + $0x8] sm:$0xff]
        %v240 = vld [vmem:[%s237 + $0x10] sm:$0xff]
        %vm241 = vcmask 195584
        %v243 = vsel %vm241, %v228, 0
        %v246 = vsel %vm241, %v229, 0
        %v249 = vsel %vm241, %v230, 0
        %v252 = vsel %vm241, %v231, 0
        %v255 = vsel %vm241, %v232, 0
        %v258 = vsel %vm241, %v233, 0
        %v261 = vsel %vm241, %v234, 0
        %v264 = vsel %vm241, %v235, 0
        %v267 = vsel %vm241, %v236, 0
        %269 = vmatprep.subr.mxu0 0.0
        %270 = vmatpush1.msra.mxu0 %v238
        %271 = vmatprep.subr.mxu0 0.0
        %272 = vmatpush1.msra.mxu0 %v239
        %273 = vmatprep.subr.mxu0 0.0
        %274 = vmatpush1.msra.mxu0 %v240
        %275 = vmatprep.subr.mxu0 0.0
        %276 = vmatpush1.msra.mxu0 0.0
        %277 = vmatprep.subr.mxu0 0.0
        %278 = vmatpush1.msra.mxu0 0.0
        %279 = vmatprep.subr.mxu0 0.0
        %280 = vmatpush1.msra.mxu0 0.0
        %281 = vmatprep.subr.mxu0 0.0
        %282 = vmatpush1.msra.mxu0 0.0
        %283 = vmatprep.subr.mxu0 0.0
        %284 = vmatpush1.msra.mxu0 0.0
        %285 = vmatprep.subr.mxu0 0.0
        %286 = vmatpush1.msra.mxu0 0.0
        %287 = vmatprep.subr.mxu0 0.0
        %288 = vmatpush1.msra.mxu0 0.0
        %289 = vmatprep.subr.mxu0 0.0
        %290 = vmatpush1.msra.mxu0 0.0
        %291 = vmatprep.subr.mxu0 0.0
        %292 = vmatpush1.msra.mxu0 0.0
        %293 = vmatprep.subr.mxu0 0.0
        %294 = vmatpush1.msra.mxu0 0.0
        %295 = vmatprep.subr.mxu0 0.0
        %296 = vmatpush1.msra.mxu0 0.0
        %297 = vmatprep.subr.mxu0 0.0
        %298 = vmatpush1.msra.mxu0 0.0
        %299 = vmatprep.subr.mxu0 0.0
        %300 = vmatpush1.msra.mxu0 0.0
        %301 = vmatprep.subr.mxu0 0.0
        %302 = vmatpush1.msra.mxu0 0.0
        %303 = vmatprep.subr.mxu0 0.0
        %304 = vmatpush1.msra.mxu0 0.0
        %305 = vmatprep.subr.mxu0 0.0
        %306 = vmatpush1.msra.mxu0 0.0
        %307 = vmatprep.subr.mxu0 0.0
        %308 = vmatpush1.msra.mxu0 0.0
        %309 = vmatprep.subr.mxu0 0.0
        %310 = vmatpush1.msra.mxu0 0.0
        %311 = vmatprep.subr.mxu0 0.0
        %312 = vmatpush1.msra.mxu0 0.0
        %313 = vmatprep.subr.mxu0 0.0
        %314 = vmatpush1.msra.mxu0 0.0
        %315 = vmatprep.subr.mxu0 0.0
        %316 = vmatpush1.msra.mxu0 0.0
        %317 = vmatprep.subr.mxu0 0.0
        %318 = vmatpush1.msra.mxu0 0.0
        %319 = vmatprep.subr.mxu0 0.0
        %320 = vmatpush1.msra.mxu0 0.0
        %321 = vmatprep.subr.mxu0 0.0
        %322 = vmatpush1.msra.mxu0 0.0
        %323 = vmatprep.subr.mxu0 0.0
        %324 = vmatpush1.msra.mxu0 0.0
        %325 = vmatprep.subr.mxu0 0.0
        %326 = vmatpush1.msra.mxu0 0.0
        %327 = vmatprep.subr.mxu0 0.0
        %328 = vmatpush1.msra.mxu0 0.0
        %329 = vmatprep.subr.mxu0 0.0
        %330 = vmatpush1.msra.mxu0 0.0
        %331 = vmatprep.subr.mxu0 0.0
        %332 = vmatpush1.msra.mxu0 0.0
        %333 = vmatprep.mubr.f32.mxu0 0.0
        %334 = vmatmul.mubr.f32.gmra.mrb[0].mxu0 %v243
        %v335 = vpop.f32.mrb[0].mxu0
        %v336 = vadd.f32 0.0, %v335
        %v337 = vpop.f32.mrb[0].mxu0
        %338 = vmatprep.mubr.f32.mxu0 0.0
        %339 = vmatmul.mubr.f32.gmra.mrb[0].mxu0 %v246
        %v340 = vpop.f32.mrb[0].mxu0
        %v341 = vadd.f32 0.0, %v340
        %v342 = vpop.f32.mrb[0].mxu0
        %343 = vmatprep.mubr.f32.mxu0 0.0
        %344 = vmatmul.mubr.f32.gmra.mrb[0].mxu0 %v249
        %v345 = vpop.f32.mrb[0].mxu0
        %v346 = vadd.f32 0.0, %v345
        %v347 = vpop.f32.mrb[0].mxu0
        %348 = vmatprep.mubr.f32.mxu0 0.0
        %349 = vmatmul.mubr.f32.gmra.mrb[0].mxu0 %v252
        %v350 = vpop.f32.mrb[0].mxu0
        %v351 = vadd.f32 0.0, %v350
        %v352 = vpop.f32.mrb[0].mxu0
        %353 = vmatprep.mubr.f32.mxu0 0.0
        %354 = vmatmul.mubr.f32.gmra.mrb[0].mxu0 %v255
        %v355 = vpop.f32.mrb[0].mxu0
        %v356 = vadd.f32 0.0, %v355
        %v357 = vpop.f32.mrb[0].mxu0
        %358 = vmatprep.mubr.f32.mxu0 0.0
        %359 = vmatmul.mubr.f32.gmra.mrb[0].mxu0 %v258
        %v360 = vpop.f32.mrb[0].mxu0
        %v361 = vadd.f32 0.0, %v360
        %v362 = vpop.f32.mrb[0].mxu0
        %363 = vmatprep.mubr.f32.mxu0 0.0
        %364 = vmatmul.mubr.f32.gmra.mrb[0].mxu0 %v261
        %v365 = vpop.f32.mrb[0].mxu0
        %v366 = vadd.f32 0.0, %v365
        %v367 = vpop.f32.mrb[0].mxu0
        %368 = vmatprep.mubr.f32.mxu0 0.0
        %369 = vmatmul.mubr.f32.gmra.mrb[0].mxu0 %v264
        %v370 = vpop.f32.mrb[0].mxu0
        %v371 = vadd.f32 0.0, %v370
        %v372 = vpop.f32.mrb[0].mxu0
        %373 = vmatprep.mubr.f32.mxu0 0.0
        %374 = vmatmul.mubr.f32.gmra.mrb[0].mxu0 %v267
        %v375 = vpop.f32.mrb[0].mxu0
        %v376 = vadd.f32 0.0, %v375
        %v377 = vpop.f32.mrb[0].mxu0
        %378 = vdwg.mxu0
        %v380 = vsel %vm241, %v216, 0
        %v383 = vsel %vm241, %v217, 0
        %v386 = vsel %vm241, %v218, 0
        %v389 = vsel %vm241, %v219, 0
        %v392 = vsel %vm241, %v220, 0
        %v395 = vsel %vm241, %v221, 0
        %v398 = vsel %vm241, %v222, 0
        %v401 = vsel %vm241, %v223, 0
        %v404 = vsel %vm241, %v224, 0
        %406 = vmatprep.subr.mxu0 0.0
        %407 = vmatpush1.msra.mxu0 %v225
        %408 = vmatprep.subr.mxu0 0.0
        %409 = vmatpush1.msra.mxu0 %v226
        %410 = vmatprep.subr.mxu0 0.0
        %411 = vmatpush1.msra.mxu0 %v227
        %412 = vmatprep.subr.mxu0 0.0
        %413 = vmatpush1.msra.mxu0 0.0
        %414 = vmatprep.subr.mxu0 0.0
        %415 = vmatpush1.msra.mxu0 0.0
        %416 = vmatprep.subr.mxu0 0.0
        %417 = vmatpush1.msra.mxu0 0.0
        %418 = vmatprep.subr.mxu0 0.0
        %419 = vmatpush1.msra.mxu0 0.0
        %420 = vmatprep.subr.mxu0 0.0
        %421 = vmatpush1.msra.mxu0 0.0
        %422 = vmatprep.subr.mxu0 0.0
        %423 = vmatpush1.msra.mxu0 0.0
        %424 = vmatprep.subr.mxu0 0.0
        %425 = vmatpush1.msra.mxu0 0.0
        %426 = vmatprep.subr.mxu0 0.0
        %427 = vmatpush1.msra.mxu0 0.0
        %428 = vmatprep.subr.mxu0 0.0
        %429 = vmatpush1.msra.mxu0 0.0
        %430 = vmatprep.subr.mxu0 0.0
        %431 = vmatpush1.msra.mxu0 0.0
        %432 = vmatprep.subr.mxu0 0.0
        %433 = vmatpush1.msra.mxu0 0.0
        %434 = vmatprep.subr.mxu0 0.0
        %435 = vmatpush1.msra.mxu0 0.0
        %436 = vmatprep.subr.mxu0 0.0
        %437 = vmatpush1.msra.mxu0 0.0
        %438 = vmatprep.subr.mxu0 0.0
        %439 = vmatpush1.msra.mxu0 0.0
        %440 = vmatprep.subr.mxu0 0.0
        %441 = vmatpush1.msra.mxu0 0.0
        %442 = vmatprep.subr.mxu0 0.0
        %443 = vmatpush1.msra.mxu0 0.0
        %444 = vmatprep.subr.mxu0 0.0
        %445 = vmatpush1.msra.mxu0 0.0
        %446 = vmatprep.subr.mxu0 0.0
        %447 = vmatpush1.msra.mxu0 0.0
        %448 = vmatprep.subr.mxu0 0.0
        %449 = vmatpush1.msra.mxu0 0.0
        %450 = vmatprep.subr.mxu0 0.0
        %451 = vmatpush1.msra.mxu0 0.0
        %452 = vmatprep.subr.mxu0 0.0
        %453 = vmatpush1.msra.mxu0 0.0
        %454 = vmatprep.subr.mxu0 0.0
        %455 = vmatpush1.msra.mxu0 0.0
        %456 = vmatprep.subr.mxu0 0.0
        %457 = vmatpush1.msra.mxu0 0.0
        %458 = vmatprep.subr.mxu0 0.0
        %459 = vmatpush1.msra.mxu0 0.0
        %460 = vmatprep.subr.mxu0 0.0
        %461 = vmatpush1.msra.mxu0 0.0
        %462 = vmatprep.subr.mxu0 0.0
        %463 = vmatpush1.msra.mxu0 0.0
        %464 = vmatprep.subr.mxu0 0.0
        %465 = vmatpush1.msra.mxu0 0.0
        %466 = vmatprep.subr.mxu0 0.0
        %467 = vmatpush1.msra.mxu0 0.0
        %468 = vmatprep.subr.mxu0 0.0
        %469 = vmatpush1.msra.mxu0 0.0
        %470 = vmatprep.mubr.f32.mxu0 0.0
        %471 = vmatmul.mubr.f32.gmra.mrb[0].mxu0 %v380
        %v472 = vpop.f32.mrb[0].mxu0
        %v473 = vadd.f32 %v336, %v472
        %v474 = vpop.f32.mrb[0].mxu0
        %475 = vmatprep.mubr.f32.mxu0 0.0
        %476 = vmatmul.mubr.f32.gmra.mrb[0].mxu0 %v383
        %v477 = vpop.f32.mrb[0].mxu0
        %v478 = vadd.f32 %v341, %v477
        %v479 = vpop.f32.mrb[0].mxu0
        %480 = vmatprep.mubr.f32.mxu0 0.0
        %481 = vmatmul.mubr.f32.gmra.mrb[0].mxu0 %v386
        %v482 = vpop.f32.mrb[0].mxu0
        %v483 = vadd.f32 %v346, %v482
        %v484 = vpop.f32.mrb[0].mxu0
        %485 = vmatprep.mubr.f32.mxu0 0.0
        %486 = vmatmul.mubr.f32.gmra.mrb[0].mxu0 %v389
        %v487 = vpop.f32.mrb[0].mxu0
        %v488 = vadd.f32 %v351, %v487
        %v489 = vpop.f32.mrb[0].mxu0
        %490 = vmatprep.mubr.f32.mxu0 0.0
        %491 = vmatmul.mubr.f32.gmra.mrb[0].mxu0 %v392
        %v492 = vpop.f32.mrb[0].mxu0
        %v493 = vadd.f32 %v356, %v492
        %v494 = vpop.f32.mrb[0].mxu0
        %495 = vmatprep.mubr.f32.mxu0 0.0
        %496 = vmatmul.mubr.f32.gmra.mrb[0].mxu0 %v395
        %v497 = vpop.f32.mrb[0].mxu0
        %v498 = vadd.f32 %v361, %v497
        %v499 = vpop.f32.mrb[0].mxu0
        %500 = vmatprep.mubr.f32.mxu0 0.0
        %501 = vmatmul.mubr.f32.gmra.mrb[0].mxu0 %v398
        %v502 = vpop.f32.mrb[0].mxu0
        %v503 = vadd.f32 %v366, %v502
        %v504 = vpop.f32.mrb[0].mxu0
        %505 = vmatprep.mubr.f32.mxu0 0.0
        %506 = vmatmul.mubr.f32.gmra.mrb[0].mxu0 %v401
        %v507 = vpop.f32.mrb[0].mxu0
        %v508 = vadd.f32 %v371, %v507
        %v509 = vpop.f32.mrb[0].mxu0
        %510 = vmatprep.mubr.f32.mxu0 0.0
        %511 = vmatmul.mubr.f32.gmra.mrb[0].mxu0 %v404
        %v512 = vpop.f32.mrb[0].mxu0
        %v513 = vadd.f32 %v376, %v512
        %v514 = vpop.f32.mrb[0].mxu0
        %515 = vdwg.mxu0
        %v516 = vld [vmem:[%s185 + $0x9] sm:$0xff]
        %v517 = vld [vmem:[%s185 + $0x11] sm:$0xff]
        %v518 = vld [vmem:[%s185 + $0x19] sm:$0xff]
        %v519 = vld [vmem:[%s185 + $0x21] sm:$0xff]
        %v520 = vld [vmem:[%s185 + $0x29] sm:$0xff]
        %v521 = vld [vmem:[%s185 + $0x31] sm:$0xff]
        %v522 = vld [vmem:[%s185 + $0x39] sm:$0xff]
        %v523 = vld [vmem:[%s185 + $0x41] sm:$0xff]
        %v524 = vld [vmem:[%s185 + $0x49] sm:$0x7f]
        %s525 = scalar_lea.vmem [#allocation5], 48
        %v526 = vld [vmem:[%s525] sm:$0xff]
        %v527 = vld [vmem:[%s525 + $0x8] sm:$0xff]
        %v528 = vld [vmem:[%s525 + $0x10] sm:$0xff]
        %v530 = vsel %vm241, %v516, 0
        %v533 = vsel %vm241, %v517, 0
        %v536 = vsel %vm241, %v518, 0
        %v539 = vsel %vm241, %v519, 0
        %v542 = vsel %vm241, %v520, 0
        %v545 = vsel %vm241, %v521, 0
        %v548 = vsel %vm241, %v522, 0
        %v551 = vsel %vm241, %v523, 0
        %v554 = vsel %vm241, %v524, 0
        %556 = vmatprep.subr.mxu0 0.0
        %557 = vmatpush1.msra.mxu0 %v526
        %558 = vmatprep.subr.mxu0 0.0
        %559 = vmatpush1.msra.mxu0 %v527
        %560 = vmatprep.subr.mxu0 0.0
        %561 = vmatpush1.msra.mxu0 %v528
        %562 = vmatprep.subr.mxu0 0.0
        %563 = vmatpush1.msra.mxu0 0.0
        %564 = vmatprep.subr.mxu0 0.0
        %565 = vmatpush1.msra.mxu0 0.0
        %566 = vmatprep.subr.mxu0 0.0
        %567 = vmatpush1.msra.mxu0 0.0
        %568 = vmatprep.subr.mxu0 0.0
        %569 = vmatpush1.msra.mxu0 0.0
        %570 = vmatprep.subr.mxu0 0.0
        %571 = vmatpush1.msra.mxu0 0.0
        %572 = vmatprep.subr.mxu0 0.0
        %573 = vmatpush1.msra.mxu0 0.0
        %574 = vmatprep.subr.mxu0 0.0
        %575 = vmatpush1.msra.mxu0 0.0
        %576 = vmatprep.subr.mxu0 0.0
        %577 = vmatpush1.msra.mxu0 0.0
        %578 = vmatprep.subr.mxu0 0.0
        %579 = vmatpush1.msra.mxu0 0.0
        %580 = vmatprep.subr.mxu0 0.0
        %581 = vmatpush1.msra.mxu0 0.0
        %582 = vmatprep.subr.mxu0 0.0
        %583 = vmatpush1.msra.mxu0 0.0
        %584 = vmatprep.subr.mxu0 0.0
        %585 = vmatpush1.msra.mxu0 0.0
        %586 = vmatprep.subr.mxu0 0.0
        %587 = vmatpush1.msra.mxu0 0.0
        %588 = vmatprep.subr.mxu0 0.0
        %589 = vmatpush1.msra.mxu0 0.0
        %590 = vmatprep.subr.mxu0 0.0
        %591 = vmatpush1.msra.mxu0 0.0
        %592 = vmatprep.subr.mxu0 0.0
        %593 = vmatpush1.msra.mxu0 0.0
        %594 = vmatprep.subr.mxu0 0.0
        %595 = vmatpush1.msra.mxu0 0.0
        %596 = vmatprep.subr.mxu0 0.0
        %597 = vmatpush1.msra.mxu0 0.0
        %598 = vmatprep.subr.mxu0 0.0
        %599 = vmatpush1.msra.mxu0 0.0
        %600 = vmatprep.subr.mxu0 0.0
        %601 = vmatpush1.msra.mxu0 0.0
        %602 = vmatprep.subr.mxu0 0.0
        %603 = vmatpush1.msra.mxu0 0.0
        %604 = vmatprep.subr.mxu0 0.0
        %605 = vmatpush1.msra.mxu0 0.0
        %606 = vmatprep.subr.mxu0 0.0
        %607 = vmatpush1.msra.mxu0 0.0
        %608 = vmatprep.subr.mxu0 0.0
        %609 = vmatpush1.msra.mxu0 0.0
        %610 = vmatprep.subr.mxu0 0.0
        %611 = vmatpush1.msra.mxu0 0.0
        %612 = vmatprep.subr.mxu0 0.0
        %613 = vmatpush1.msra.mxu0 0.0
        %614 = vmatprep.subr.mxu0 0.0
        %615 = vmatpush1.msra.mxu0 0.0
        %616 = vmatprep.subr.mxu0 0.0
        %617 = vmatpush1.msra.mxu0 0.0
        %618 = vmatprep.subr.mxu0 0.0
        %619 = vmatpush1.msra.mxu0 0.0
        %620 = vmatprep.mubr.f32.mxu0 0.0
        %621 = vmatmul.mubr.f32.gmra.mrb[0].mxu0 %v530
        %v622 = vpop.f32.mrb[0].mxu0
        %v623 = vadd.f32 0.0, %v622
        %v624 = vpop.f32.mrb[0].mxu0
        %625 = vmatprep.mubr.f32.mxu0 0.0
        %626 = vmatmul.mubr.f32.gmra.mrb[0].mxu0 %v533
        %v627 = vpop.f32.mrb[0].mxu0
        %v628 = vadd.f32 0.0, %v627
        %v629 = vpop.f32.mrb[0].mxu0
        %630 = vmatprep.mubr.f32.mxu0 0.0
        %631 = vmatmul.mubr.f32.gmra.mrb[0].mxu0 %v536
        %v632 = vpop.f32.mrb[0].mxu0
        %v633 = vadd.f32 0.0, %v632
        %v634 = vpop.f32.mrb[0].mxu0
        %635 = vmatprep.mubr.f32.mxu0 0.0
        %636 = vmatmul.mubr.f32.gmra.mrb[0].mxu0 %v539
        %v637 = vpop.f32.mrb[0].mxu0
        %v638 = vadd.f32 0.0, %v637
        %v639 = vpop.f32.mrb[0].mxu0
        %640 = vmatprep.mubr.f32.mxu0 0.0
        %641 = vmatmul.mubr.f32.gmra.mrb[0].mxu0 %v542
        %v642 = vpop.f32.mrb[0].mxu0
        %v643 = vadd.f32 0.0, %v642
        %v644 = vpop.f32.mrb[0].mxu0
        %645 = vmatprep.mubr.f32.mxu0 0.0
        %646 = vmatmul.mubr.f32.gmra.mrb[0].mxu0 %v545
        %v647 = vpop.f32.mrb[0].mxu0
        %v648 = vadd.f32 0.0, %v647
        %v649 = vpop.f32.mrb[0].mxu0
        %650 = vmatprep.mubr.f32.mxu0 0.0
        %651 = vmatmul.mubr.f32.gmra.mrb[0].mxu0 %v548
        %v652 = vpop.f32.mrb[0].mxu0
        %v653 = vadd.f32 0.0, %v652
        %v654 = vpop.f32.mrb[0].mxu0
        %655 = vmatprep.mubr.f32.mxu0 0.0
        %656 = vmatmul.mubr.f32.gmra.mrb[0].mxu0 %v551
        %v657 = vpop.f32.mrb[0].mxu0
        %v658 = vadd.f32 0.0, %v657
        %v659 = vpop.f32.mrb[0].mxu0
        %660 = vmatprep.mubr.f32.mxu0 0.0
        %661 = vmatmul.mubr.f32.gmra.mrb[0].mxu0 %v554
        %v662 = vpop.f32.mrb[0].mxu0
        %v663 = vadd.f32 0.0, %v662
        %v664 = vpop.f32.mrb[0].mxu0
        %665 = vdwg.mxu0
        %v666 = vadd.f32 %v473, %v623
        %v667 = vadd.f32 %v478, %v628
        %v668 = vadd.f32 %v483, %v633
        %v669 = vadd.f32 %v488, %v638
        %v670 = vadd.f32 %v493, %v643
        %v671 = vadd.f32 %v498, %v648
        %v672 = vadd.f32 %v503, %v653
        %v673 = vadd.f32 %v508, %v658
        %v674 = vadd.f32 %v513, %v663
        %v675 = vld [vmem:[%s185 + $0xa] sm:$0xff]
        %v676 = vld [vmem:[%s185 + $0x12] sm:$0xff]
        %v677 = vld [vmem:[%s185 + $0x1a] sm:$0xff]
        %v678 = vld [vmem:[%s185 + $0x22] sm:$0xff]
        %v679 = vld [vmem:[%s185 + $0x2a] sm:$0xff]
        %v680 = vld [vmem:[%s185 + $0x32] sm:$0xff]
        %v681 = vld [vmem:[%s185 + $0x3a] sm:$0xff]
        %v682 = vld [vmem:[%s185 + $0x42] sm:$0xff]
        %v683 = vld [vmem:[%s185 + $0x4a] sm:$0x7f]
        %s684 = scalar_lea.vmem [#allocation5], 72
        %v685 = vld [vmem:[%s684] sm:$0xff]
        %v686 = vld [vmem:[%s684 + $0x8] sm:$0xff]
        %v687 = vld [vmem:[%s684 + $0x10] sm:$0xff]
        %v689 = vsel %vm241, %v675, 0
        %v692 = vsel %vm241, %v676, 0
        %v695 = vsel %vm241, %v677, 0
        %v698 = vsel %vm241, %v678, 0
        %v701 = vsel %vm241, %v679, 0
        %v704 = vsel %vm241, %v680, 0
        %v707 = vsel %vm241, %v681, 0
        %v710 = vsel %vm241, %v682, 0
        %v713 = vsel %vm241, %v683, 0
        %715 = vmatprep.subr.mxu0 0.0
        %716 = vmatpush1.msra.mxu0 %v685
        %717 = vmatprep.subr.mxu0 0.0
        %718 = vmatpush1.msra.mxu0 %v686
        %719 = vmatprep.subr.mxu0 0.0
        %720 = vmatpush1.msra.mxu0 %v687
        %721 = vmatprep.subr.mxu0 0.0
        %722 = vmatpush1.msra.mxu0 0.0
        %723 = vmatprep.subr.mxu0 0.0
        %724 = vmatpush1.msra.mxu0 0.0
        %725 = vmatprep.subr.mxu0 0.0
        %726 = vmatpush1.msra.mxu0 0.0
        %727 = vmatprep.subr.mxu0 0.0
        %728 = vmatpush1.msra.mxu0 0.0
        %729 = vmatprep.subr.mxu0 0.0
        %730 = vmatpush1.msra.mxu0 0.0
        %731 = vmatprep.subr.mxu0 0.0
        %732 = vmatpush1.msra.mxu0 0.0
        %733 = vmatprep.subr.mxu0 0.0
        %734 = vmatpush1.msra.mxu0 0.0
        %735 = vmatprep.subr.mxu0 0.0
        %736 = vmatpush1.msra.mxu0 0.0
        %737 = vmatprep.subr.mxu0 0.0
        %738 = vmatpush1.msra.mxu0 0.0
        %739 = vmatprep.subr.mxu0 0.0
        %740 = vmatpush1.msra.mxu0 0.0
        %741 = vmatprep.subr.mxu0 0.0
        %742 = vmatpush1.msra.mxu0 0.0
        %743 = vmatprep.subr.mxu0 0.0
        %744 = vmatpush1.msra.mxu0 0.0
        %745 = vmatprep.subr.mxu0 0.0
        %746 = vmatpush1.msra.mxu0 0.0
        %747 = vmatprep.subr.mxu0 0.0
        %748 = vmatpush1.msra.mxu0 0.0
        %749 = vmatprep.subr.mxu0 0.0
        %750 = vmatpush1.msra.mxu0 0.0
        %751 = vmatprep.subr.mxu0 0.0
        %752 = vmatpush1.msra.mxu0 0.0
        %753 = vmatprep.subr.mxu0 0.0
        %754 = vmatpush1.msra.mxu0 0.0
        %755 = vmatprep.subr.mxu0 0.0
        %756 = vmatpush1.msra.mxu0 0.0
        %757 = vmatprep.subr.mxu0 0.0
        %758 = vmatpush1.msra.mxu0 0.0
        %759 = vmatprep.subr.mxu0 0.0
        %760 = vmatpush1.msra.mxu0 0.0
        %761 = vmatprep.subr.mxu0 0.0
        %762 = vmatpush1.msra.mxu0 0.0
        %763 = vmatprep.subr.mxu0 0.0
        %764 = vmatpush1.msra.mxu0 0.0
        %765 = vmatprep.subr.mxu0 0.0
        %766 = vmatpush1.msra.mxu0 0.0
        %767 = vmatprep.subr.mxu0 0.0
        %768 = vmatpush1.msra.mxu0 0.0
        %769 = vmatprep.subr.mxu0 0.0
        %770 = vmatpush1.msra.mxu0 0.0
        %771 = vmatprep.subr.mxu0 0.0
        %772 = vmatpush1.msra.mxu0 0.0
        %773 = vmatprep.subr.mxu0 0.0
        %774 = vmatpush1.msra.mxu0 0.0
        %775 = vmatprep.subr.mxu0 0.0
        %776 = vmatpush1.msra.mxu0 0.0
        %777 = vmatprep.subr.mxu0 0.0
        %778 = vmatpush1.msra.mxu0 0.0
        %779 = vmatprep.mubr.f32.mxu0 0.0
        %780 = vmatmul.mubr.f32.gmra.mrb[0].mxu0 %v689
        %v781 = vpop.f32.mrb[0].mxu0
        %v782 = vadd.f32 0.0, %v781
        %v783 = vpop.f32.mrb[0].mxu0
        %784 = vmatprep.mubr.f32.mxu0 0.0
        %785 = vmatmul.mubr.f32.gmra.mrb[0].mxu0 %v692
        %v786 = vpop.f32.mrb[0].mxu0
        %v787 = vadd.f32 0.0, %v786
        %v788 = vpop.f32.mrb[0].mxu0
        %789 = vmatprep.mubr.f32.mxu0 0.0
        %790 = vmatmul.mubr.f32.gmra.mrb[0].mxu0 %v695
        %v791 = vpop.f32.mrb[0].mxu0
        %v792 = vadd.f32 0.0, %v791
        %v793 = vpop.f32.mrb[0].mxu0
        %794 = vmatprep.mubr.f32.mxu0 0.0
        %795 = vmatmul.mubr.f32.gmra.mrb[0].mxu0 %v698
        %v796 = vpop.f32.mrb[0].mxu0
        %v797 = vadd.f32 0.0, %v796
        %v798 = vpop.f32.mrb[0].mxu0
        %799 = vmatprep.mubr.f32.mxu0 0.0
        %800 = vmatmul.mubr.f32.gmra.mrb[0].mxu0 %v701
        %v801 = vpop.f32.mrb[0].mxu0
        %v802 = vadd.f32 0.0, %v801
        %v803 = vpop.f32.mrb[0].mxu0
        %804 = vmatprep.mubr.f32.mxu0 0.0
        %805 = vmatmul.mubr.f32.gmra.mrb[0].mxu0 %v704
        %v806 = vpop.f32.mrb[0].mxu0
        %v807 = vadd.f32 0.0, %v806
        %v808 = vpop.f32.mrb[0].mxu0
        %809 = vmatprep.mubr.f32.mxu0 0.0
        %810 = vmatmul.mubr.f32.gmra.mrb[0].mxu0 %v707
        %v811 = vpop.f32.mrb[0].mxu0
        %v812 = vadd.f32 0.0, %v811
        %v813 = vpop.f32.mrb[0].mxu0
        %814 = vmatprep.mubr.f32.mxu0 0.0
        %815 = vmatmul.mubr.f32.gmra.mrb[0].mxu0 %v710
        %v816 = vpop.f32.mrb[0].mxu0
        %v817 = vadd.f32 0.0, %v816
        %v818 = vpop.f32.mrb[0].mxu0
        %819 = vmatprep.mubr.f32.mxu0 0.0
        %820 = vmatmul.mubr.f32.gmra.mrb[0].mxu0 %v713
        %v821 = vpop.f32.mrb[0].mxu0
        %v822 = vadd.f32 0.0, %v821
        %v823 = vpop.f32.mrb[0].mxu0
        %824 = vdwg.mxu0
        %v825 = vadd.f32 %v666, %v782
        %v826 = vadd.f32 %v667, %v787
        %v827 = vadd.f32 %v668, %v792
        %v828 = vadd.f32 %v669, %v797
        %v829 = vadd.f32 %v670, %v802
        %v830 = vadd.f32 %v671, %v807
        %v831 = vadd.f32 %v672, %v812
        %v832 = vadd.f32 %v673, %v817
        %v833 = vadd.f32 %v674, %v822
        %v834 = vld [vmem:[#allocation7] sm:$0x1]
        %v836 = vlaneseq
        %v837 = vshrl.u32 %v836, 7
        %v838 = vsub.s32 0, %v837
        %v839 = vrot.slane %v834, %v838
        %v841 = vadd.f32 %v825, %v839
        %v842 = vadd.f32 %v826, %v839
        %v843 = vadd.f32 %v827, %v839
        %v844 = vadd.f32 %v828, %v839
        %v845 = vadd.f32 %v829, %v839
        %v846 = vadd.f32 %v830, %v839
        %v847 = vadd.f32 %v831, %v839
        %v848 = vadd.f32 %v832, %v839
        %v849 = vadd.f32 %v833, %v839
        %vm850 = vcmp.gt.f32.partialorder %v841, 0.0
        %vm851 = vcmp.gt.f32.partialorder %v842, 0.0
        %vm852 = vcmp.gt.f32.partialorder %v843, 0.0
        %vm853 = vcmp.gt.f32.partialorder %v844, 0.0
        %vm854 = vcmp.gt.f32.partialorder %v845, 0.0
        %vm855 = vcmp.gt.f32.partialorder %v846, 0.0
        %vm856 = vcmp.gt.f32.partialorder %v847, 0.0
        %vm857 = vcmp.gt.f32.partialorder %v848, 0.0
        %vm858 = vcmp.gt.f32.partialorder %v849, 0.0
        %v859 = vmul.f32 %v841, 0.2
        %v860 = vmul.f32 %v842, 0.2
        %v861 = vmul.f32 %v843, 0.2
        %v862 = vmul.f32 %v844, 0.2
        %v863 = vmul.f32 %v845, 0.2
        %v864 = vmul.f32 %v846, 0.2
        %v865 = vmul.f32 %v847, 0.2
        %v866 = vmul.f32 %v848, 0.2
        %v867 = vmul.f32 %v849, 0.2
        %v868 = vsel %vm850, %v841, %v859
        %v869 = vsel %vm851, %v842, %v860
        %v870 = vsel %vm852, %v843, %v861
        %v871 = vsel %vm853, %v844, %v862
        %v872 = vsel %vm854, %v845, %v863
        %v873 = vsel %vm855, %v846, %v864
        %v874 = vsel %vm856, %v847, %v865
        %v875 = vsel %vm857, %v848, %v866
        %v876 = vsel %vm858, %v849, %v867
        %vm877 = vcmask 261120
        %878 = vst.msk [vmem:[%s215] sm:$0xff] %vm877, %v868
        %879 = vst.msk [vmem:[%s215 + $0x8] sm:$0xff] %vm877, %v869
        %880 = vst.msk [vmem:[%s215 + $0x10] sm:$0xff] %vm877, %v870
        %881 = vst.msk [vmem:[%s215 + $0x18] sm:$0xff] %vm877, %v871
        %882 = vst.msk [vmem:[%s215 + $0x20] sm:$0xff] %vm877, %v872
        %883 = vst.msk [vmem:[%s215 + $0x28] sm:$0xff] %vm877, %v873
        %884 = vst.msk [vmem:[%s215 + $0x30] sm:$0xff] %vm877, %v874
        %885 = vst.msk [vmem:[%s215 + $0x38] sm:$0xff] %vm877, %v875
        %vm886 = vcmask 260096
        %887 = vst.msk [vmem:[%s215 + $0x40] sm:$0x7f] %vm886, %v876
        %s888 = sand.u32 %s97, 1
        %s889 = scalar_lea.sflag [#allocation4], %s888
        %s890 = sand.u32 %s97, 1
        %s891 = smul.addr %s890, 72
        %s892 = scalar_lea.vmem [#allocation8], %s891
        // Predicated region
        $region45: #{discriminator_forward.8} parent=31 // pred_check
          %p893 = pneg %p107
        $region46: #{discriminator_forward.8} parent=31 // pred_check_branch
          %895 = sbr.rel (%p893) target = $region48
        $region47: #{discriminator_forward.8} parent=31 // pred_region
          %s897 = ssub.s32 1152, 1152
          %898 = vsyncadd %s889, %s897
          %s899 = smul.addr %s21, 9
          %s900 = smul.addr %s899, 128
          %s901 = scalar_lea.hbm %s3, %s900
          %s902 = sshll.u32 %s892, 4
          %s903 = int_to_ptr.vmem [resolvable:$true] %s902
          %908 = dma.vmem_to_hbm [thread:$0]  %s903, 1152, %s901, %s889, 128, 128, 8
        $region48: #{discriminator_forward.8} parent=31 // pred_fallthru
          _
      $region32: #{discriminator_forward.8} parent=5 // pred_fallthru
        _
      %p909 = scmp.le.s32.totalorder 2, %s16
      // Predicated region
      $region49: #{discriminator_forward.8} parent=5 // pred_check
        %p910 = pneg %p909
      $region50: #{discriminator_forward.8} parent=5 // pred_check_branch
        %912 = sbr.rel (%p910) target = $region52
      $region51: #{discriminator_forward.8} parent=5 // pred_region
        %s913 = ssub.s32 %s16, 2
        // Predicated region
        $region53: #{discriminator_forward.8} parent=51 // pred_check
          %p914 = pneg %p113
        $region54: #{discriminator_forward.8} parent=51 // pred_check_branch
          %916 = sbr.rel (%p914) target = $region56
        $region55: #{discriminator_forward.8} parent=51 // pred_region
          %s917 = sand.u32 %s98, 1
          %s918 = scalar_lea.sflag [#allocation4], %s917
          %s919 = sand.u32 %s98, 1
          %s920 = smul.addr %s919, 72
          %s921 = scalar_lea.vmem [#allocation8], %s920
          %922 = dma.done %s918, 1152
        $region56: #{discriminator_forward.8} parent=51 // pred_fallthru
          _
      $region52: #{discriminator_forward.8} parent=5 // pred_fallthru
        _
    $region6: #{discriminator_forward.8} parent=1 // loop_footer
      %s20 = sadd.s32 1, %s16
    $region7: #{discriminator_forward.8} parent=1 // loop_footer_branch
      %15 = sbr.rel target = $region3
    $region8: #{discriminator_forward.8} parent=1 // loop_exit
      _
    %923 = vsyncpa [#allocation3], 1
    %s924 = scalar_lea.sflag [#allocation3], 1
    %925 = vsyncpa %s924, 1
    %926 = vsyncpa [#allocation6], 1
    %927 = vsyncpa [#allocation4], 1
    %s928 = scalar_lea.sflag [#allocation4], 1
    %929 = vsyncpa %s928, 1

// kernel: discriminator_forward.10
$region0: #{discriminator_forward.10}
  #allocation0 [shape = 'u32[]', space=smem, size = 0x4, offset = 0x4, fixed_abs, tag = 'smem constant byte address 0x4 - core index']
  #allocation1 [shape = 'u32[144,128]{1,0:T(1,128)}', space=vmem, size = 0x12000, scoped, tag = 'internal scratch']
  %s0 = inlined_call_operand.hbm [shape: f32[38,64], index: 0, kind: input, shape index: {}]
  %s1 = inlined_call_operand.hbm [shape: f32[1,64], index: 1, kind: input, shape index: {}]
  %s2 = inlined_call_operand.hbm [shape: f32[1,64], index: 2, kind: input, shape index: {}]
  %s3 = inlined_call_operand.hbm [shape: f32[1,64], index: 3, kind: input, shape index: {}]
  %s4 = inlined_call_operand.hbm [shape: f32[1,64], index: 4, kind: input, shape index: {}]
  %s5 = inlined_call_operand.hbm [shape: f32[38,64], index: 5, kind: output, shape index: {}]
  %s6 = sld [smem:[#allocation0]]
  $region50: #{discriminator_forward.10} parent=0
    _
  %s8 = ssub.s32 1, %s6
  %s9 = scalar_select 0, %s8, %s6
  $region1: #{discriminator_forward.10} parent=0
    #allocation2 [shape = 'u8[20480]{0}', space=vmem, size = 0x5000, scoped, tag = 'input window, operand 0, single buffered']
    #allocation3 [shape = 's32[1]{0}', space=sflag, size = 0x4, scoped, tag = 'scoped memory for discriminator_forward.10']
    #allocation4 [shape = 's32[1]{0}', space=sflag, size = 0x4, scoped, tag = 'scoped memory for discriminator_forward.10']
    #allocation5 [shape = 'u8[512]{0}', space=vmem, size = 0x400, scoped, tag = 'input window, operand 1, single buffered']
    #allocation6 [shape = 's32[1]{0}', space=sflag, size = 0x4, scoped, tag = 'scoped memory for discriminator_forward.10']
    #allocation7 [shape = 'u8[512]{0}', space=vmem, size = 0x400, scoped, tag = 'input window, operand 2, single buffered']
    #allocation8 [shape = 'u8[512]{0}', space=vmem, size = 0x400, scoped, tag = 'input window, operand 3, single buffered']
    #allocation9 [shape = 's32[1]{0}', space=sflag, size = 0x4, scoped, tag = 'scoped memory for discriminator_forward.10']
    #allocation10 [shape = 'u8[512]{0}', space=vmem, size = 0x400, scoped, tag = 'input window, operand 4, single buffered']
    #allocation11 [shape = 'u8[20480]{0}', space=vmem, size = 0x5000, scoped, tag = 'output window, operand 0, single buffered']
    %10 = vsyncpa [#allocation3], 0
    %11 = vsyncpa [#allocation6], 0
    %12 = vsyncpa [#allocation9], 0
    %13 = vsyncpa [#allocation4], 0
    // Predicated region
    $region2: #{discriminator_forward.10} parent=1 // pred_check
      _
    $region3: #{discriminator_forward.10} parent=1 // pred_check_branch
      %15 = sbr.rel (0) target = $region5
    $region4: #{discriminator_forward.10} parent=1 // pred_region
      %s17 = ssub.s32 640, 640
      %18 = vsyncadd [#allocation3], %s17
      %s19 = sshll.u32 [#allocation2], 4
      %s20 = int_to_ptr.vmem [resolvable:$true] %s19
      %25 = dma.hbm_to_vmem [thread:$0]  %s0, 640, %s20, [#allocation3], 128, 128, 8
    $region5: #{discriminator_forward.10} parent=1 // pred_fallthru
      _
    // Predicated region
    $region6: #{discriminator_forward.10} parent=1 // pred_check
      _
    $region7: #{discriminator_forward.10} parent=1 // pred_check_branch
      %27 = sbr.rel (0) target = $region9
    $region8: #{discriminator_forward.10} parent=1 // pred_region
      %s29 = ssub.s32 16, 16
      %30 = vsyncadd [#allocation6], %s29
      %s32 = sshll.u32 [#allocation5], 4
      %s33 = int_to_ptr.vmem [resolvable:$true] %s32
      %35 = dma.hbm_to_vmem [thread:$0]  %s1, 16, %s33, [#allocation6]
    $region9: #{discriminator_forward.10} parent=1 // pred_fallthru
      _
    // Predicated region
    $region10: #{discriminator_forward.10} parent=1 // pred_check
      _
    $region11: #{discriminator_forward.10} parent=1 // pred_check_branch
      %37 = sbr.rel (0) target = $region13
    $region12: #{discriminator_forward.10} parent=1 // pred_region
      %s39 = ssub.s32 16, 16
      %40 = vsyncadd [#allocation6], %s39
      %s42 = sshll.u32 [#allocation7], 4
      %s43 = int_to_ptr.vmem [resolvable:$true] %s42
      %45 = dma.hbm_to_vmem [thread:$0]  %s2, 16, %s43, [#allocation6]
    $region13: #{discriminator_forward.10} parent=1 // pred_fallthru
      _
    // Predicated region
    $region14: #{discriminator_forward.10} parent=1 // pred_check
      _
    $region15: #{discriminator_forward.10} parent=1 // pred_check_branch
      %47 = sbr.rel (0) target = $region17
    $region16: #{discriminator_forward.10} parent=1 // pred_region
      %s49 = ssub.s32 16, 16
      %50 = vsyncadd [#allocation9], %s49
      %s52 = sshll.u32 [#allocation8], 4
      %s53 = int_to_ptr.vmem [resolvable:$true] %s52
      %55 = dma.hbm_to_vmem [thread:$0]  %s3, 16, %s53, [#allocation9]
    $region17: #{discriminator_forward.10} parent=1 // pred_fallthru
      _
    // Predicated region
    $region18: #{discriminator_forward.10} parent=1 // pred_check
      _
    $region19: #{discriminator_forward.10} parent=1 // pred_check_branch
      %57 = sbr.rel (0) target = $region21
    $region20: #{discriminator_forward.10} parent=1 // pred_region
      %s59 = ssub.s32 16, 16
      %60 = vsyncadd [#allocation9], %s59
      %s62 = sshll.u32 [#allocation10], 4
      %s63 = int_to_ptr.vmem [resolvable:$true] %s62
      %65 = dma.hbm_to_vmem [thread:$0]  %s4, 16, %s63, [#allocation9]
    $region21: #{discriminator_forward.10} parent=1 // pred_fallthru
      _
    // Predicated region
    $region22: #{discriminator_forward.10} parent=1 // pred_check
      _
    $region23: #{discriminator_forward.10} parent=1 // pred_check_branch
      %67 = sbr.rel (0) target = $region25
    $region24: #{discriminator_forward.10} parent=1 // pred_region
      %68 = dma.done [#allocation3], 640
    $region25: #{discriminator_forward.10} parent=1 // pred_fallthru
      _
    // Predicated region
    $region26: #{discriminator_forward.10} parent=1 // pred_check
      _
    $region27: #{discriminator_forward.10} parent=1 // pred_check_branch
      %70 = sbr.rel (0) target = $region29
    $region28: #{discriminator_forward.10} parent=1 // pred_region
      %71 = dma.done [#allocation6], 16
    $region29: #{discriminator_forward.10} parent=1 // pred_fallthru
      _
    // Predicated region
    $region30: #{discriminator_forward.10} parent=1 // pred_check
      _
    $region31: #{discriminator_forward.10} parent=1 // pred_check_branch
      %73 = sbr.rel (0) target = $region33
    $region32: #{discriminator_forward.10} parent=1 // pred_region
      %74 = dma.done [#allocation6], 16
    $region33: #{discriminator_forward.10} parent=1 // pred_fallthru
      _
    // Predicated region
    $region34: #{discriminator_forward.10} parent=1 // pred_check
      _
    $region35: #{discriminator_forward.10} parent=1 // pred_check_branch
      %76 = sbr.rel (0) target = $region37
    $region36: #{discriminator_forward.10} parent=1 // pred_region
      %77 = dma.done [#allocation9], 16
    $region37: #{discriminator_forward.10} parent=1 // pred_fallthru
      _
    // Predicated region
    $region38: #{discriminator_forward.10} parent=1 // pred_check
      _
    $region39: #{discriminator_forward.10} parent=1 // pred_check_branch
      %79 = sbr.rel (0) target = $region41
    $region40: #{discriminator_forward.10} parent=1 // pred_region
      %80 = dma.done [#allocation9], 16
    $region41: #{discriminator_forward.10} parent=1 // pred_fallthru
      _
    %v81 = vld [vmem:[#allocation5] sm:$0x1]
    %v82 = vmul.f32 %v81, 0.03125
    %v83 = vld [vmem:[#allocation7] sm:$0x1]
    %v84 = vmul.f32 %v83, 0.03125
    %v85 = vmul.f32 %v82, %v82
    %v86 = vsub.f32 %v84, %v85
    %v87 = vmax.f32 %v86, 0.0
    %v88 = vld [vmem:[#allocation8] sm:$0x1]
    %v89 = vadd.f32 %v87, 1e-05
    %v90 = vrsqrt.pop %v89
    %v91 = vmul.f32 %v88, %v90
    %v92 = vld [vmem:[#allocation10] sm:$0x1]
    %v93 = vmul.f32 %v82, %v91
    %v94 = vsub.f32 %v92, %v93
    %v95 = vld [vmem:[#allocation2] sm:$0xff]
    %v96 = vld [vmem:[#allocation2 + $0x8] sm:$0xff]
    %v97 = vld [vmem:[#allocation2 + $0x10] sm:$0xff]
    %v98 = vld [vmem:[#allocation2 + $0x18] sm:$0xff]
    %v99 = vld [vmem:[#allocation2 + $0x20] sm:$0x3f]
    %v101 = vlaneseq
    %v102 = vshrl.u32 %v101, 7
    %v103 = vsub.s32 0, %v102
    %v104 = vrot.slane %v91, %v103
    %v106 = vmul.f32 %v95, %v104
    %v107 = vmul.f32 %v96, %v104
    %v108 = vmul.f32 %v97, %v104
    %v109 = vmul.f32 %v98, %v104
    %v110 = vmul.f32 %v99, %v104
    %v112 = vlaneseq
    %v113 = vshrl.u32 %v112, 7
    %v114 = vsub.s32 0, %v113
    %v115 = vrot.slane %v94, %v114
    %v117 = vadd.f32 %v106, %v115
    %v118 = vadd.f32 %v107, %v115
    %v119 = vadd.f32 %v108, %v115
    %v120 = vadd.f32 %v109, %v115
    %v121 = vadd.f32 %v110, %v115
    %vm122 = vcmp.gt.f32.partialorder %v117, 0.0
    %vm123 = vcmp.gt.f32.partialorder %v118, 0.0
    %vm124 = vcmp.gt.f32.partialorder %v119, 0.0
    %vm125 = vcmp.gt.f32.partialorder %v120, 0.0
    %vm126 = vcmp.gt.f32.partialorder %v121, 0.0
    %v127 = vmul.f32 %v117, 0.2
    %v128 = vmul.f32 %v118, 0.2
    %v129 = vmul.f32 %v119, 0.2
    %v130 = vmul.f32 %v120, 0.2
    %v131 = vmul.f32 %v121, 0.2
    %v132 = vsel %vm122, %v117, %v127
    %v133 = vsel %vm123, %v118, %v128
    %v134 = vsel %vm124, %v119, %v129
    %v135 = vsel %vm125, %v120, %v130
    %v136 = vsel %vm126, %v121, %v131
    %vm137 = vcmask 523264
    %138 = vst.msk [vmem:[#allocation11] sm:$0xff] %vm137, %v132
    %139 = vst.msk [vmem:[#allocation11 + $0x8] sm:$0xff] %vm137, %v133
    %140 = vst.msk [vmem:[#allocation11 + $0x10] sm:$0xff] %vm137, %v134
    %141 = vst.msk [vmem:[#allocation11 + $0x18] sm:$0xff] %vm137, %v135
    %vm142 = vcmask 521216
    %143 = vst.msk [vmem:[#allocation11 + $0x20] sm:$0x3f] %vm142, %v136
    // Predicated region
    $region42: #{discriminator_forward.10} parent=1 // pred_check
      _
    $region43: #{discriminator_forward.10} parent=1 // pred_check_branch
      %145 = sbr.rel (0) target = $region45
    $region44: #{discriminator_forward.10} parent=1 // pred_region
      %s147 = ssub.s32 640, 640
      %148 = vsyncadd [#allocation4], %s147
      %s149 = sshll.u32 [#allocation11], 4
      %s150 = int_to_ptr.vmem [resolvable:$true] %s149
      %155 = dma.vmem_to_hbm [thread:$0]  %s150, 640, %s5, [#allocation4], 128, 128, 8
    $region45: #{discriminator_forward.10} parent=1 // pred_fallthru
      _
    // Predicated region
    $region46: #{discriminator_forward.10} parent=1 // pred_check
      _
    $region47: #{discriminator_forward.10} parent=1 // pred_check_branch
      %157 = sbr.rel (0) target = $region49
    $region48: #{discriminator_forward.10} parent=1 // pred_region
      %158 = dma.done [#allocation4], 640
    $region49: #{discriminator_forward.10} parent=1 // pred_fallthru
      _
    %159 = vsyncpa [#allocation3], 1
    %160 = vsyncpa [#allocation6], 1
    %161 = vsyncpa [#allocation9], 1
    %162 = vsyncpa [#allocation4], 1

// kernel: discriminator_forward.9
$region0: #{discriminator_forward.9}
  #allocation0 [shape = 'u32[]', space=smem, size = 0x4, offset = 0x4, fixed_abs, tag = 'smem constant byte address 0x4 - core index']
  #allocation1 [shape = 'u32[144,128]{1,0:T(1,128)}', space=vmem, size = 0x12000, scoped, tag = 'internal scratch']
  %s0 = inlined_call_operand.hbm [shape: f32[2,25,128], index: 0, kind: input, shape index: {}]
  %s1 = inlined_call_operand.hbm [shape: f32[4,128,64], index: 1, kind: input, shape index: {}]
  %s2 = inlined_call_operand.hbm [shape: f32[2,19,64], index: 2, kind: output, shape index: {0}]
  %s3 = inlined_call_operand.hbm [shape: f32[1,64], index: 3, kind: output, shape index: {1}]
  %s4 = inlined_call_operand.hbm [shape: f32[1,64], index: 4, kind: output, shape index: {2}]
  %5 = xla_tuple %s2, %s3, %s4
  %s6 = sld [smem:[#allocation0]]
  $region69: #{discriminator_forward.9} parent=0
    _
  %s8 = ssub.s32 1, %s6
  %s9 = scalar_select 0, %s8, %s6
  $region1: #{discriminator_forward.9} parent=0
    #allocation2 [shape = 'u8[32768]{0}', space=vmem, size = 0x8000, scoped, tag = 'input window, operand 0']
    #allocation3 [shape = 's32[2]{0}', space=sflag, size = 0x8, scoped, tag = 'scoped memory for discriminator_forward.9']
    #allocation4 [shape = 's32[2]{0}', space=sflag, size = 0x8, scoped, tag = 'scoped memory for discriminator_forward.9']
    #allocation5 [shape = 'u8[262144]{0}', space=vmem, size = 0x40000, scoped, tag = 'input window, operand 1, single buffered']
    #allocation6 [shape = 's32[1]{0}', space=sflag, size = 0x4, scoped, tag = 'scoped memory for discriminator_forward.9']
    #allocation7 [shape = 'u8[24576]{0}', space=vmem, size = 0x6000, scoped, tag = 'output window, operand 0']
    #allocation8 [shape = 'u8[512]{0}', space=vmem, size = 0x400, scoped, tag = 'output window, operand 1, single buffered']
    #allocation9 [shape = 's32[1]{0}', space=sflag, size = 0x4, scoped, tag = 'scoped memory for discriminator_forward.9']
    #allocation10 [shape = 'u8[512]{0}', space=vmem, size = 0x400, scoped, tag = 'output window, operand 2, single buffered']
    %10 = vsyncpa [#allocation3], 0
    %s11 = scalar_lea.sflag [#allocation3], 1
    %12 = vsyncpa %s11, 0
    %13 = vsyncpa [#allocation6], 0
    %14 = vsyncpa [#allocation4], 0
    %s15 = scalar_lea.sflag [#allocation4], 1
    %16 = vsyncpa %s15, 0
    %17 = vsyncpa [#allocation9], 0
    loop: start=0, step=1, limit=4
    $region2: #{discriminator_forward.9} parent=1 // loop_pre_header
      _
    $region3: #{discriminator_forward.9} parent=1 // loop_header
      %s19 = sphi 0, %s23
      %p20 = scmp.ge.s32.totalorder %s19, 4
      %s29 = sphi 0, %s31
      %s32 = sphi 0, %s29
      %s33 = sphi 0, %s32
      %s49 = sphi 0, %s33
      %s53 = sphi 0, %s53
      %s55 = sphi 0, %s53
      %s56 = sphi 0, %s55
      %s70 = sphi 0, %s56
      %s76 = sphi 0, %s78
      %s79 = sphi 0, %s76
      %s80 = sphi 0, %s79
      %s96 = sphi 0, %s80
      %s100 = sphi 0, %s100
      %s102 = sphi 0, %s100
      %s103 = sphi 0, %s102
      %s117 = sphi 0, %s103
      %s121 = sphi 0, %s121
      %s123 = sphi 0, %s121
      %s124 = sphi 0, %s123
      %s138 = sphi 0, %s124
    $region4: #{discriminator_forward.9} parent=1 // loop_header_branch
      %22 = sbr.rel (%p20) target = $region8
    $region5: #{discriminator_forward.9} parent=1 // loop_body
      %s24 = ssub.s32 %s19, 1
      %s25 = ssub.s32 %s19, 2
      %s26 = sadd.s32 %s19, 1
      %s27 = ssub.s32 %s19, %s26
      %p28 = scmp.eq.s32.totalorder %s27, 0
      %s30 = sadd.s32 %s29, 1
      %s31 = scalar_select %p28, %s29, %s30
      %p34 = pneg %p28
      %p35 = scmp.eq.s32.totalorder %s19, 1
      %p36 = por %p34, %p35
      %p37 = scmp.ne.s32.totalorder %s29, %s32
      %p38 = scmp.eq.s32.totalorder %s19, 0
      %p39 = por %p37, %p38
      %p40 = scmp.ne.s32.totalorder %s29, %s32
      %p41 = scmp.eq.s32.totalorder %s24, 1
      %p42 = por %p40, %p41
      %p43 = scmp.ne.s32.totalorder %s32, %s33
      %p44 = scmp.eq.s32.totalorder %s24, 0
      %p45 = por %p43, %p44
      %p46 = scmp.ne.s32.totalorder %s32, %s33
      %p47 = scmp.eq.s32.totalorder %s25, 1
      %p48 = por %p46, %p47
      %p50 = scmp.ne.s32.totalorder %s33, %s49
      %p51 = scmp.eq.s32.totalorder %s25, 0
      %p52 = por %p50, %p51
      %s54 = sadd.s32 %s53, 1
      %p57 = scmp.eq.s32.totalorder %s19, 1
      %p58 = scmp.ne.s32.totalorder %s53, %s55
      %p59 = scmp.eq.s32.totalorder %s19, 0
      %p60 = por %p58, %p59
      %p61 = scmp.ne.s32.totalorder %s53, %s55
      %p62 = scmp.eq.s32.totalorder %s24, 1
      %p63 = por %p61, %p62
      %p64 = scmp.ne.s32.totalorder %s55, %s56
      %p65 = scmp.eq.s32.totalorder %s24, 0
      %p66 = por %p64, %p65
      %p67 = scmp.ne.s32.totalorder %s55, %s56
      %p68 = scmp.eq.s32.totalorder %s25, 1
      %p69 = por %p67, %p68
      %p71 = scmp.ne.s32.totalorder %s56, %s70
      %p72 = scmp.eq.s32.totalorder %s25, 0
      %p73 = por %p71, %p72
      %s74 = ssub.s32 %s19, %s26
      %p75 = scmp.eq.s32.totalorder %s74, 0
      %s77 = sadd.s32 %s76, 1
      %s78 = scalar_select %p75, %s76, %s77
      %p81 = pneg %p75
      %p82 = scmp.eq.s32.totalorder %s19, 1
      %p83 = por %p81, %p82
      %p84 = scmp.ne.s32.totalorder %s76, %s79
      %p85 = scmp.eq.s32.totalorder %s19, 0
      %p86 = por %p84, %p85
      %p87 = scmp.ne.s32.totalorder %s76, %s79
      %p88 = scmp.eq.s32.totalorder %s24, 1
      %p89 = por %p87, %p88
      %p90 = scmp.ne.s32.totalorder %s79, %s80
      %p91 = scmp.eq.s32.totalorder %s24, 0
      %p92 = por %p90, %p91
      %p93 = scmp.ne.s32.totalorder %s79, %s80
      %p94 = scmp.eq.s32.totalorder %s25, 1
      %p95 = por %p93, %p94
      %p97 = scmp.ne.s32.totalorder %s80, %s96
      %p98 = scmp.eq.s32.totalorder %s25, 0
      %p99 = por %p97, %p98
      %s101 = sadd.s32 %s100, 1
      %p104 = scmp.eq.s32.totalorder %s19, 1
      %p105 = scmp.ne.s32.totalorder %s100, %s102
      %p106 = scmp.eq.s32.totalorder %s19, 0
      %p107 = por %p105, %p106
      %p108 = scmp.ne.s32.totalorder %s100, %s102
      %p109 = scmp.eq.s32.totalorder %s24, 1
      %p110 = por %p108, %p109
      %p111 = scmp.ne.s32.totalorder %s102, %s103
      %p112 = scmp.eq.s32.totalorder %s24, 0
      %p113 = por %p111, %p112
      %p114 = scmp.ne.s32.totalorder %s102, %s103
      %p115 = scmp.eq.s32.totalorder %s25, 1
      %p116 = por %p114, %p115
      %p118 = scmp.ne.s32.totalorder %s103, %s117
      %p119 = scmp.eq.s32.totalorder %s25, 0
      %p120 = por %p118, %p119
      %s122 = sadd.s32 %s121, 1
      %p125 = scmp.eq.s32.totalorder %s19, 1
      %p126 = scmp.ne.s32.totalorder %s121, %s123
      %p127 = scmp.eq.s32.totalorder %s19, 0
      %p128 = por %p126, %p127
      %p129 = scmp.ne.s32.totalorder %s121, %s123
      %p130 = scmp.eq.s32.totalorder %s24, 1
      %p131 = por %p129, %p130
      %p132 = scmp.ne.s32.totalorder %s123, %s124
      %p133 = scmp.eq.s32.totalorder %s24, 0
      %p134 = por %p132, %p133
      %p135 = scmp.ne.s32.totalorder %s123, %s124
      %p136 = scmp.eq.s32.totalorder %s25, 1
      %p137 = por %p135, %p136
      %p139 = scmp.ne.s32.totalorder %s124, %s138
      %p140 = scmp.eq.s32.totalorder %s25, 0
      %p141 = por %p139, %p140
      %p142 = scmp.le.s32.totalorder 1, %s19
      %p143 = scmp.lt.s32.totalorder %s19, 3
      %p144 = pnand %p142, %p143
      %p145 = pneg %p144
      // Predicated region
      $region9: #{discriminator_forward.9} parent=5 // pred_check
        _
      $region10: #{discriminator_forward.9} parent=5 // pred_check_branch
        %147 = sbr.rel (%p144) target = $region12
      $region11: #{discriminator_forward.9} parent=5 // pred_region
        %s148 = ssub.s32 %s19, 1
        // Predicated region
        $region13: #{discriminator_forward.9} parent=11 // pred_check
          %p149 = pneg %p66
        $region14: #{discriminator_forward.9} parent=11 // pred_check_branch
          %151 = sbr.rel (%p149) target = $region16
        $region15: #{discriminator_forward.9} parent=11 // pred_region
          %s153 = ssub.s32 8192, 8192
          %154 = vsyncadd [#allocation6], %s153
          %s155 = sshll.u32 [#allocation5], 4
          %s156 = int_to_ptr.vmem [resolvable:$true] %s155
          %161 = dma.hbm_to_vmem [thread:$0]  %s1, 8192, %s156, [#allocation6], 128, 128, 8
        $region16: #{discriminator_forward.9} parent=11 // pred_fallthru
          _
      $region12: #{discriminator_forward.9} parent=5 // pred_fallthru
        _
      %p162 = scmp.lt.s32.totalorder %s19, 2
      // Predicated region
      $region17: #{discriminator_forward.9} parent=5 // pred_check
        %p163 = pneg %p162
      $region18: #{discriminator_forward.9} parent=5 // pred_check_branch
        %165 = sbr.rel (%p163) target = $region20
      $region19: #{discriminator_forward.9} parent=5 // pred_region
        // Predicated region
        $region21: #{discriminator_forward.9} parent=19 // pred_check
          %p166 = pneg %p39
        $region22: #{discriminator_forward.9} parent=19 // pred_check_branch
          %168 = sbr.rel (%p166) target = $region24
        $region23: #{discriminator_forward.9} parent=19 // pred_region
          %s169 = sand.u32 %s29, 1
          %s170 = scalar_lea.sflag [#allocation3], %s169
          %s171 = sand.u32 %s29, 1
          %s172 = smul.addr %s171, 32
          %s173 = scalar_lea.vmem [#allocation2], %s172
          %s175 = ssub.s32 512, 512
          %176 = vsyncadd %s170, %s175
          %s177 = smul.addr %s19, 4
          %s178 = smul.addr %s177, 128
          %s179 = scalar_lea.hbm %s0, %s178
          %s180 = sshll.u32 %s173, 4
          %s181 = int_to_ptr.vmem [resolvable:$true] %s180
          %186 = dma.hbm_to_vmem [thread:$0]  %s179, 512, %s181, %s170, 128, 128, 8
        $region24: #{discriminator_forward.9} parent=19 // pred_fallthru
          _
      $region20: #{discriminator_forward.9} parent=5 // pred_fallthru
        _
      %p187 = scmp.le.s32.totalorder 1, %s19
      %p188 = scmp.lt.s32.totalorder %s19, 3
      %p189 = pnand %p187, %p188
      %p190 = pneg %p189
      // Predicated region
      $region25: #{discriminator_forward.9} parent=5 // pred_check
        _
      $region26: #{discriminator_forward.9} parent=5 // pred_check_branch
        %192 = sbr.rel (%p189) target = $region28
      $region27: #{discriminator_forward.9} parent=5 // pred_region
        %s193 = ssub.s32 %s19, 1
        %s194 = sand.u32 %s32, 1
        %s195 = scalar_lea.sflag [#allocation3], %s194
        %s196 = sand.u32 %s32, 1
        %s197 = smul.addr %s196, 32
        %s198 = scalar_lea.vmem [#allocation2], %s197
        // Predicated region
        $region29: #{discriminator_forward.9} parent=27 // pred_check
          %p199 = pneg %p45
        $region30: #{discriminator_forward.9} parent=27 // pred_check_branch
          %201 = sbr.rel (%p199) target = $region32
        $region31: #{discriminator_forward.9} parent=27 // pred_region
          %202 = dma.done %s195, 512
        $region32: #{discriminator_forward.9} parent=27 // pred_fallthru
          _
        // Predicated region
        $region33: #{discriminator_forward.9} parent=27 // pred_check
          %p203 = pneg %p66
        $region34: #{discriminator_forward.9} parent=27 // pred_check_branch
          %205 = sbr.rel (%p203) target = $region36
        $region35: #{discriminator_forward.9} parent=27 // pred_region
          %206 = dma.done [#allocation6], 8192
        $region36: #{discriminator_forward.9} parent=27 // pred_fallthru
          _
        %s207 = sand.u32 %s32, 1
        %s208 = scalar_lea.sflag [#allocation3], %s207
        %s209 = sand.u32 %s32, 1
        %s210 = smul.addr %s209, 32
        %s211 = scalar_lea.vmem [#allocation2], %s210
        %p212 = pneg %p45
        %p213 = pneg %p42
        %p214 = pneg %p66
        %p215 = pneg %p63
        %p216 = pneg %p92
        %p217 = pneg %p89
        %s218 = sand.u32 %s79, 1
        %s219 = scalar_lea.sflag [#allocation4], %s218
        %s220 = sand.u32 %s79, 1
        %s221 = smul.addr %s220, 24
        %s222 = scalar_lea.vmem [#allocation7], %s221
        %p223 = pneg %p113
        %p224 = pneg %p110
        %p225 = pneg %p134
        %p226 = pneg %p131
        %v227 = vld [vmem:[%s198] sm:$0xff]
        %v228 = vld [vmem:[%s198 + $0x8] sm:$0xff]
        %v229 = vld [vmem:[%s198 + $0x10] sm:$0x7]
        %v230 = vld [vmem:[#allocation5] sm:$0xff]
        %v231 = vld [vmem:[#allocation5 + $0x8] sm:$0xff]
        %v232 = vld [vmem:[#allocation5 + $0x10] sm:$0xff]
        %v233 = vld [vmem:[#allocation5 + $0x18] sm:$0xff]
        %v234 = vld [vmem:[#allocation5 + $0x20] sm:$0xff]
        %v235 = vld [vmem:[#allocation5 + $0x28] sm:$0xff]
        %v236 = vld [vmem:[#allocation5 + $0x30] sm:$0xff]
        %v237 = vld [vmem:[#allocation5 + $0x38] sm:$0xff]
        %v238 = vld [vmem:[#allocation5 + $0x40] sm:$0xff]
        %v239 = vld [vmem:[#allocation5 + $0x48] sm:$0xff]
        %v240 = vld [vmem:[#allocation5 + $0x50] sm:$0xff]
        %v241 = vld [vmem:[#allocation5 + $0x58] sm:$0xff]
        %v242 = vld [vmem:[#allocation5 + $0x60] sm:$0xff]
        %v243 = vld [vmem:[#allocation5 + $0x68] sm:$0xff]
        %v244 = vld [vmem:[#allocation5 + $0x70] sm:$0xff]
        %v245 = vld [vmem:[#allocation5 + $0x78] sm:$0xff]
        %v246 = vld [vmem:[%s198 + $0x1] sm:$0xff]
        %v247 = vld [vmem:[%s198 + $0x9] sm:$0xff]
        %v248 = vld [vmem:[%s198 + $0x11] sm:$0x7]
        %s249 = scalar_lea.vmem [#allocation5], 128
        %v250 = vld [vmem:[%s249] sm:$0xff]
        %v251 = vld [vmem:[%s249 + $0x8] sm:$0xff]
        %v252 = vld [vmem:[%s249 + $0x10] sm:$0xff]
        %v253 = vld [vmem:[%s249 + $0x18] sm:$0xff]
        %v254 = vld [vmem:[%s249 + $0x20] sm:$0xff]
        %v255 = vld [vmem:[%s249 + $0x28] sm:$0xff]
        %v256 = vld [vmem:[%s249 + $0x30] sm:$0xff]
        %v257 = vld [vmem:[%s249 + $0x38] sm:$0xff]
        %v258 = vld [vmem:[%s249 + $0x40] sm:$0xff]
        %v259 = vld [vmem:[%s249 + $0x48] sm:$0xff]
        %v260 = vld [vmem:[%s249 + $0x50] sm:$0xff]
        %v261 = vld [vmem:[%s249 + $0x58] sm:$0xff]
        %v262 = vld [vmem:[%s249 + $0x60] sm:$0xff]
        %v263 = vld [vmem:[%s249 + $0x68] sm:$0xff]
        %v264 = vld [vmem:[%s249 + $0x70] sm:$0xff]
        %v265 = vld [vmem:[%s249 + $0x78] sm:$0xff]
        %266 = vmatprep.subr.mxu0 0.0
        %267 = vmatpush1.msra.mxu0 %v250
        %268 = vmatprep.subr.mxu0 0.0
        %269 = vmatpush1.msra.mxu0 %v251
        %270 = vmatprep.subr.mxu0 0.0
        %271 = vmatpush1.msra.mxu0 %v252
        %272 = vmatprep.subr.mxu0 0.0
        %273 = vmatpush1.msra.mxu0 %v253
        %274 = vmatprep.subr.mxu0 0.0
        %275 = vmatpush1.msra.mxu0 %v254
        %276 = vmatprep.subr.mxu0 0.0
        %277 = vmatpush1.msra.mxu0 %v255
        %278 = vmatprep.subr.mxu0 0.0
        %279 = vmatpush1.msra.mxu0 %v256
        %280 = vmatprep.subr.mxu0 0.0
        %281 = vmatpush1.msra.mxu0 %v257
        %282 = vmatprep.subr.mxu0 0.0
        %283 = vmatpush1.msra.mxu0 %v258
        %284 = vmatprep.subr.mxu0 0.0
        %285 = vmatpush1.msra.mxu0 %v259
        %286 = vmatprep.subr.mxu0 0.0
        %287 = vmatpush1.msra.mxu0 %v260
        %288 = vmatprep.subr.mxu0 0.0
        %289 = vmatpush1.msra.mxu0 %v261
        %290 = vmatprep.subr.mxu0 0.0
        %291 = vmatpush1.msra.mxu0 %v262
        %292 = vmatprep.subr.mxu0 0.0
        %293 = vmatpush1.msra.mxu0 %v263
        %294 = vmatprep.subr.mxu0 0.0
        %295 = vmatpush1.msra.mxu0 %v264
        %296 = vmatprep.subr.mxu0 0.0
        %297 = vmatpush1.msra.mxu0 %v265
        %298 = vmatprep.subr.mxu0 0.0
        %299 = vmatpush1.msra.mxu0 0.0
        %300 = vmatprep.subr.mxu0 0.0
        %301 = vmatpush1.msra.mxu0 0.0
        %302 = vmatprep.subr.mxu0 0.0
        %303 = vmatpush1.msra.mxu0 0.0
        %304 = vmatprep.subr.mxu0 0.0
        %305 = vmatpush1.msra.mxu0 0.0
        %306 = vmatprep.subr.mxu0 0.0
        %307 = vmatpush1.msra.mxu0 0.0
        %308 = vmatprep.subr.mxu0 0.0
        %309 = vmatpush1.msra.mxu0 0.0
        %310 = vmatprep.subr.mxu0 0.0
        %311 = vmatpush1.msra.mxu0 0.0
        %312 = vmatprep.subr.mxu0 0.0
        %313 = vmatpush1.msra.mxu0 0.0
        %314 = vmatprep.subr.mxu0 0.0
        %315 = vmatpush1.msra.mxu0 0.0
        %316 = vmatprep.subr.mxu0 0.0
        %317 = vmatpush1.msra.mxu0 0.0
        %318 = vmatprep.subr.mxu0 0.0
        %319 = vmatpush1.msra.mxu0 0.0
        %320 = vmatprep.subr.mxu0 0.0
        %321 = vmatpush1.msra.mxu0 0.0
        %322 = vmatprep.subr.mxu0 0.0
        %323 = vmatpush1.msra.mxu0 0.0
        %324 = vmatprep.subr.mxu0 0.0
        %325 = vmatpush1.msra.mxu0 0.0
        %326 = vmatprep.subr.mxu0 0.0
        %327 = vmatpush1.msra.mxu0 0.0
        %328 = vmatprep.subr.mxu0 0.0
        %329 = vmatpush1.msra.mxu0 0.0
        %330 = vmatprep.mubr.f32.mxu0 0.0
        %331 = vmatmul.mubr.f32.gmra.mrb[0].mxu0 %v246
        %v332 = vpop.f32.mrb[0].mxu0
        %v333 = vadd.f32 0.0, %v332
        %v334 = vpop.f32.mrb[0].mxu0
        %335 = vmatprep.mubr.f32.mxu0 0.0
        %336 = vmatmul.mubr.f32.gmra.mrb[0].mxu0 %v247
        %v337 = vpop.f32.mrb[0].mxu0
        %v338 = vadd.f32 0.0, %v337
        %v339 = vpop.f32.mrb[0].mxu0
        %340 = vmatprep.mubr.f32.mxu0 0.0
        %341 = vmatmul.mubr.f32.gmra.mrb[0].mxu0 %v248
        %v342 = vpop.f32.mrb[0].mxu0
        %v343 = vadd.f32 0.0, %v342
        %v344 = vpop.f32.mrb[0].mxu0
        %345 = vdwg.mxu0
        %346 = vmatprep.subr.mxu0 0.0
        %347 = vmatpush1.msra.mxu0 %v230
        %348 = vmatprep.subr.mxu0 0.0
        %349 = vmatpush1.msra.mxu0 %v231
        %350 = vmatprep.subr.mxu0 0.0
        %351 = vmatpush1.msra.mxu0 %v232
        %352 = vmatprep.subr.mxu0 0.0
        %353 = vmatpush1.msra.mxu0 %v233
        %354 = vmatprep.subr.mxu0 0.0
        %355 = vmatpush1.msra.mxu0 %v234
        %356 = vmatprep.subr.mxu0 0.0
        %357 = vmatpush1.msra.mxu0 %v235
        %358 = vmatprep.subr.mxu0 0.0
        %359 = vmatpush1.msra.mxu0 %v236
        %360 = vmatprep.subr.mxu0 0.0
        %361 = vmatpush1.msra.mxu0 %v237
        %362 = vmatprep.subr.mxu0 0.0
        %363 = vmatpush1.msra.mxu0 %v238
        %364 = vmatprep.subr.mxu0 0.0
        %365 = vmatpush1.msra.mxu0 %v239
        %366 = vmatprep.subr.mxu0 0.0
        %367 = vmatpush1.msra.mxu0 %v240
        %368 = vmatprep.subr.mxu0 0.0
        %369 = vmatpush1.msra.mxu0 %v241
        %370 = vmatprep.subr.mxu0 0.0
        %371 = vmatpush1.msra.mxu0 %v242
        %372 = vmatprep.subr.mxu0 0.0
        %373 = vmatpush1.msra.mxu0 %v243
        %374 = vmatprep.subr.mxu0 0.0
        %375 = vmatpush1.msra.mxu0 %v244
        %376 = vmatprep.subr.mxu0 0.0
        %377 = vmatpush1.msra.mxu0 %v245
        %378 = vmatprep.subr.mxu0 0.0
        %379 = vmatpush1.msra.mxu0 0.0
        %380 = vmatprep.subr.mxu0 0.0
        %381 = vmatpush1.msra.mxu0 0.0
        %382 = vmatprep.subr.mxu0 0.0
        %383 = vmatpush1.msra.mxu0 0.0
        %384 = vmatprep.subr.mxu0 0.0
        %385 = vmatpush1.msra.mxu0 0.0
        %386 = vmatprep.subr.mxu0 0.0
        %387 = vmatpush1.msra.mxu0 0.0
        %388 = vmatprep.subr.mxu0 0.0
        %389 = vmatpush1.msra.mxu0 0.0
        %390 = vmatprep.subr.mxu0 0.0
        %391 = vmatpush1.msra.mxu0 0.0
        %392 = vmatprep.subr.mxu0 0.0
        %393 = vmatpush1.msra.mxu0 0.0
        %394 = vmatprep.subr.mxu0 0.0
        %395 = vmatpush1.msra.mxu0 0.0
        %396 = vmatprep.subr.mxu0 0.0
        %397 = vmatpush1.msra.mxu0 0.0
        %398 = vmatprep.subr.mxu0 0.0
        %399 = vmatpush1.msra.mxu0 0.0
        %400 = vmatprep.subr.mxu0 0.0
        %401 = vmatpush1.msra.mxu0 0.0
        %402 = vmatprep.subr.mxu0 0.0
        %403 = vmatpush1.msra.mxu0 0.0
        %404 = vmatprep.subr.mxu0 0.0
        %405 = vmatpush1.msra.mxu0 0.0
        %406 = vmatprep.subr.mxu0 0.0
        %407 = vmatpush1.msra.mxu0 0.0
        %408 = vmatprep.subr.mxu0 0.0
        %409 = vmatpush1.msra.mxu0 0.0
        %410 = vmatprep.mubr.f32.mxu0 0.0
        %411 = vmatmul.mubr.f32.gmra.mrb[0].mxu0 %v227
        %v412 = vpop.f32.mrb[0].mxu0
        %v413 = vadd.f32 %v333, %v412
        %v414 = vpop.f32.mrb[0].mxu0
        %415 = vmatprep.mubr.f32.mxu0 0.0
        %416 = vmatmul.mubr.f32.gmra.mrb[0].mxu0 %v228
        %v417 = vpop.f32.mrb[0].mxu0
        %v418 = vadd.f32 %v338, %v417
        %v419 = vpop.f32.mrb[0].mxu0
        %420 = vmatprep.mubr.f32.mxu0 0.0
        %421 = vmatmul.mubr.f32.gmra.mrb[0].mxu0 %v229
        %v422 = vpop.f32.mrb[0].mxu0
        %v423 = vadd.f32 %v343, %v422
        %v424 = vpop.f32.mrb[0].mxu0
        %425 = vdwg.mxu0
        %v426 = vld [vmem:[%s198 + $0x5] sm:$0xff]
        %v427 = vld [vmem:[%s198 + $0xd] sm:$0xff]
        %v428 = vld [vmem:[%s198 + $0x15] sm:$0x7]
        %s429 = scalar_lea.vmem [#allocation5], 256
        %v430 = vld [vmem:[%s429] sm:$0xff]
        %v431 = vld [vmem:[%s429 + $0x8] sm:$0xff]
        %v432 = vld [vmem:[%s429 + $0x10] sm:$0xff]
        %v433 = vld [vmem:[%s429 + $0x18] sm:$0xff]
        %v434 = vld [vmem:[%s429 + $0x20] sm:$0xff]
        %v435 = vld [vmem:[%s429 + $0x28] sm:$0xff]
        %v436 = vld [vmem:[%s429 + $0x30] sm:$0xff]
        %v437 = vld [vmem:[%s429 + $0x38] sm:$0xff]
        %v438 = vld [vmem:[%s429 + $0x40] sm:$0xff]
        %v439 = vld [vmem:[%s429 + $0x48] sm:$0xff]
        %v440 = vld [vmem:[%s429 + $0x50] sm:$0xff]
        %v441 = vld [vmem:[%s429 + $0x58] sm:$0xff]
        %v442 = vld [vmem:[%s429 + $0x60] sm:$0xff]
        %v443 = vld [vmem:[%s429 + $0x68] sm:$0xff]
        %v444 = vld [vmem:[%s429 + $0x70] sm:$0xff]
        %v445 = vld [vmem:[%s429 + $0x78] sm:$0xff]
        %446 = vmatprep.subr.mxu0 0.0
        %447 = vmatpush1.msra.mxu0 %v430
        %448 = vmatprep.subr.mxu0 0.0
        %449 = vmatpush1.msra.mxu0 %v431
        %450 = vmatprep.subr.mxu0 0.0
        %451 = vmatpush1.msra.mxu0 %v432
        %452 = vmatprep.subr.mxu0 0.0
        %453 = vmatpush1.msra.mxu0 %v433
        %454 = vmatprep.subr.mxu0 0.0
        %455 = vmatpush1.msra.mxu0 %v434
        %456 = vmatprep.subr.mxu0 0.0
        %457 = vmatpush1.msra.mxu0 %v435
        %458 = vmatprep.subr.mxu0 0.0
        %459 = vmatpush1.msra.mxu0 %v436
        %460 = vmatprep.subr.mxu0 0.0
        %461 = vmatpush1.msra.mxu0 %v437
        %462 = vmatprep.subr.mxu0 0.0
        %463 = vmatpush1.msra.mxu0 %v438
        %464 = vmatprep.subr.mxu0 0.0
        %465 = vmatpush1.msra.mxu0 %v439
        %466 = vmatprep.subr.mxu0 0.0
        %467 = vmatpush1.msra.mxu0 %v440
        %468 = vmatprep.subr.mxu0 0.0
        %469 = vmatpush1.msra.mxu0 %v441
        %470 = vmatprep.subr.mxu0 0.0
        %471 = vmatpush1.msra.mxu0 %v442
        %472 = vmatprep.subr.mxu0 0.0
        %473 = vmatpush1.msra.mxu0 %v443
        %474 = vmatprep.subr.mxu0 0.0
        %475 = vmatpush1.msra.mxu0 %v444
        %476 = vmatprep.subr.mxu0 0.0
        %477 = vmatpush1.msra.mxu0 %v445
        %478 = vmatprep.subr.mxu0 0.0
        %479 = vmatpush1.msra.mxu0 0.0
        %480 = vmatprep.subr.mxu0 0.0
        %481 = vmatpush1.msra.mxu0 0.0
        %482 = vmatprep.subr.mxu0 0.0
        %483 = vmatpush1.msra.mxu0 0.0
        %484 = vmatprep.subr.mxu0 0.0
        %485 = vmatpush1.msra.mxu0 0.0
        %486 = vmatprep.subr.mxu0 0.0
        %487 = vmatpush1.msra.mxu0 0.0
        %488 = vmatprep.subr.mxu0 0.0
        %489 = vmatpush1.msra.mxu0 0.0
        %490 = vmatprep.subr.mxu0 0.0
        %491 = vmatpush1.msra.mxu0 0.0
        %492 = vmatprep.subr.mxu0 0.0
        %493 = vmatpush1.msra.mxu0 0.0
        %494 = vmatprep.subr.mxu0 0.0
        %495 = vmatpush1.msra.mxu0 0.0
        %496 = vmatprep.subr.mxu0 0.0
        %497 = vmatpush1.msra.mxu0 0.0
        %498 = vmatprep.subr.mxu0 0.0
        %499 = vmatpush1.msra.mxu0 0.0
        %500 = vmatprep.subr.mxu0 0.0
        %501 = vmatpush1.msra.mxu0 0.0
        %502 = vmatprep.subr.mxu0 0.0
        %503 = vmatpush1.msra.mxu0 0.0
        %504 = vmatprep.subr.mxu0 0.0
        %505 = vmatpush1.msra.mxu0 0.0
        %506 = vmatprep.subr.mxu0 0.0
        %507 = vmatpush1.msra.mxu0 0.0
        %508 = vmatprep.subr.mxu0 0.0
        %509 = vmatpush1.msra.mxu0 0.0
        %510 = vmatprep.mubr.f32.mxu0 0.0
        %511 = vmatmul.mubr.f32.gmra.mrb[0].mxu0 %v426
        %v512 = vpop.f32.mrb[0].mxu0
        %v513 = vadd.f32 0.0, %v512
        %v514 = vpop.f32.mrb[0].mxu0
        %515 = vmatprep.mubr.f32.mxu0 0.0
        %516 = vmatmul.mubr.f32.gmra.mrb[0].mxu0 %v427
        %v517 = vpop.f32.mrb[0].mxu0
        %v518 = vadd.f32 0.0, %v517
        %v519 = vpop.f32.mrb[0].mxu0
        %520 = vmatprep.mubr.f32.mxu0 0.0
        %521 = vmatmul.mubr.f32.gmra.mrb[0].mxu0 %v428
        %v522 = vpop.f32.mrb[0].mxu0
        %v523 = vadd.f32 0.0, %v522
        %v524 = vpop.f32.mrb[0].mxu0
        %525 = vdwg.mxu0
        %v526 = vadd.f32 %v413, %v513
        %v527 = vadd.f32 %v418, %v518
        %v528 = vadd.f32 %v423, %v523
        %v529 = vld [vmem:[%s198 + $0x6] sm:$0xff]
        %v530 = vld [vmem:[%s198 + $0xe] sm:$0xff]
        %v531 = vld [vmem:[%s198 + $0x16] sm:$0x7]
        %s532 = scalar_lea.vmem [#allocation5], 384
        %v533 = vld [vmem:[%s532] sm:$0xff]
        %v534 = vld [vmem:[%s532 + $0x8] sm:$0xff]
        %v535 = vld [vmem:[%s532 + $0x10] sm:$0xff]
        %v536 = vld [vmem:[%s532 + $0x18] sm:$0xff]
        %v537 = vld [vmem:[%s532 + $0x20] sm:$0xff]
        %v538 = vld [vmem:[%s532 + $0x28] sm:$0xff]
        %v539 = vld [vmem:[%s532 + $0x30] sm:$0xff]
        %v540 = vld [vmem:[%s532 + $0x38] sm:$0xff]
        %v541 = vld [vmem:[%s532 + $0x40] sm:$0xff]
        %v542 = vld [vmem:[%s532 + $0x48] sm:$0xff]
        %v543 = vld [vmem:[%s532 + $0x50] sm:$0xff]
        %v544 = vld [vmem:[%s532 + $0x58] sm:$0xff]
        %v545 = vld [vmem:[%s532 + $0x60] sm:$0xff]
        %v546 = vld [vmem:[%s532 + $0x68] sm:$0xff]
        %v547 = vld [vmem:[%s532 + $0x70] sm:$0xff]
        %v548 = vld [vmem:[%s532 + $0x78] sm:$0xff]
        %549 = vmatprep.subr.mxu0 0.0
        %550 = vmatpush1.msra.mxu0 %v533
        %551 = vmatprep.subr.mxu0 0.0
        %552 = vmatpush1.msra.mxu0 %v534
        %553 = vmatprep.subr.mxu0 0.0
        %554 = vmatpush1.msra.mxu0 %v535
        %555 = vmatprep.subr.mxu0 0.0
        %556 = vmatpush1.msra.mxu0 %v536
        %557 = vmatprep.subr.mxu0 0.0
        %558 = vmatpush1.msra.mxu0 %v537
        %559 = vmatprep.subr.mxu0 0.0
        %560 = vmatpush1.msra.mxu0 %v538
        %561 = vmatprep.subr.mxu0 0.0
        %562 = vmatpush1.msra.mxu0 %v539
        %563 = vmatprep.subr.mxu0 0.0
        %564 = vmatpush1.msra.mxu0 %v540
        %565 = vmatprep.subr.mxu0 0.0
        %566 = vmatpush1.msra.mxu0 %v541
        %567 = vmatprep.subr.mxu0 0.0
        %568 = vmatpush1.msra.mxu0 %v542
        %569 = vmatprep.subr.mxu0 0.0
        %570 = vmatpush1.msra.mxu0 %v543
        %571 = vmatprep.subr.mxu0 0.0
        %572 = vmatpush1.msra.mxu0 %v544
        %573 = vmatprep.subr.mxu0 0.0
        %574 = vmatpush1.msra.mxu0 %v545
        %575 = vmatprep.subr.mxu0 0.0
        %576 = vmatpush1.msra.mxu0 %v546
        %577 = vmatprep.subr.mxu0 0.0
        %578 = vmatpush1.msra.mxu0 %v547
        %579 = vmatprep.subr.mxu0 0.0
        %580 = vmatpush1.msra.mxu0 %v548
        %581 = vmatprep.subr.mxu0 0.0
        %582 = vmatpush1.msra.mxu0 0.0
        %583 = vmatprep.subr.mxu0 0.0
        %584 = vmatpush1.msra.mxu0 0.0
        %585 = vmatprep.subr.mxu0 0.0
        %586 = vmatpush1.msra.mxu0 0.0
        %587 = vmatprep.subr.mxu0 0.0
        %588 = vmatpush1.msra.mxu0 0.0
        %589 = vmatprep.subr.mxu0 0.0
        %590 = vmatpush1.msra.mxu0 0.0
        %591 = vmatprep.subr.mxu0 0.0
        %592 = vmatpush1.msra.mxu0 0.0
        %593 = vmatprep.subr.mxu0 0.0
        %594 = vmatpush1.msra.mxu0 0.0
        %595 = vmatprep.subr.mxu0 0.0
        %596 = vmatpush1.msra.mxu0 0.0
        %597 = vmatprep.subr.mxu0 0.0
        %598 = vmatpush1.msra.mxu0 0.0
        %599 = vmatprep.subr.mxu0 0.0
        %600 = vmatpush1.msra.mxu0 0.0
        %601 = vmatprep.subr.mxu0 0.0
        %602 = vmatpush1.msra.mxu0 0.0
        %603 = vmatprep.subr.mxu0 0.0
        %604 = vmatpush1.msra.mxu0 0.0
        %605 = vmatprep.subr.mxu0 0.0
        %606 = vmatpush1.msra.mxu0 0.0
        %607 = vmatprep.subr.mxu0 0.0
        %608 = vmatpush1.msra.mxu0 0.0
        %609 = vmatprep.subr.mxu0 0.0
        %610 = vmatpush1.msra.mxu0 0.0
        %611 = vmatprep.subr.mxu0 0.0
        %612 = vmatpush1.msra.mxu0 0.0
        %613 = vmatprep.mubr.f32.mxu0 0.0
        %614 = vmatmul.mubr.f32.gmra.mrb[0].mxu0 %v529
        %v615 = vpop.f32.mrb[0].mxu0
        %v616 = vadd.f32 0.0, %v615
        %v617 = vpop.f32.mrb[0].mxu0
        %618 = vmatprep.mubr.f32.mxu0 0.0
        %619 = vmatmul.mubr.f32.gmra.mrb[0].mxu0 %v530
        %v620 = vpop.f32.mrb[0].mxu0
        %v621 = vadd.f32 0.0, %v620
        %v622 = vpop.f32.mrb[0].mxu0
        %623 = vmatprep.mubr.f32.mxu0 0.0
        %624 = vmatmul.mubr.f32.gmra.mrb[0].mxu0 %v531
        %v625 = vpop.f32.mrb[0].mxu0
        %v626 = vadd.f32 0.0, %v625
        %v627 = vpop.f32.mrb[0].mxu0
        %628 = vdwg.mxu0
        %v629 = vadd.f32 %v526, %v616
        %v630 = vadd.f32 %v527, %v621
        %v631 = vadd.f32 %v528, %v626
        %vm632 = vcmask 523264
        %633 = vst.msk [vmem:[%s222] sm:$0xff] %vm632, %v629
        %634 = vst.msk [vmem:[%s222 + $0x8] sm:$0xff] %vm632, %v630
        %vm635 = vcmask 518144
        %636 = vst.msk [vmem:[%s222 + $0x10] sm:$0x7] %vm635, %v631
        %v637 = vlaneseq
        %v638 = vshrl.u32 %v637, 7
        %v639 = vadd.s32 %v638, 8
        %v640 = vadd.s32 %v638, 16
        %vm641 = vcmp.lt.s32.totalorder %v638, 0
        %v642 = vsub.s32 0, %v638
        %v643 = vsel %vm641, %v642, %v638
        %v644 = vmul.u32.u64.compose %v643, 3435973837
        %v645 = vextract.low.u32 %v644
        %v646 = vextract.high.u32 %v644
        %v647 = vshrl.u32 %v646, 2
        %v648 = vmul.u32 %v647, 5
        %v649 = vsub.s32 %v643, %v648
        %v650 = vsub.s32 0, %v649
        %v651 = vsel %vm641, %v650, %v649
        %vm652 = vcmp.lt.s32.totalorder %v639, 0
        %v653 = vsub.s32 0, %v639
        %v654 = vsel %vm652, %v653, %v639
        %v655 = vmul.u32.u64.compose %v654, 3435973837
        %v656 = vextract.low.u32 %v655
        %v657 = vextract.high.u32 %v655
        %v658 = vshrl.u32 %v657, 2
        %v659 = vmul.u32 %v658, 5
        %v660 = vsub.s32 %v654, %v659
        %v661 = vsub.s32 0, %v660
        %v662 = vsel %vm652, %v661, %v660
        %vm663 = vcmp.lt.s32.totalorder %v640, 0
        %v664 = vsub.s32 0, %v640
        %v665 = vsel %vm663, %v664, %v640
        %v666 = vmul.u32.u64.compose %v665, 3435973837
        %v667 = vextract.low.u32 %v666
        %v668 = vextract.high.u32 %v666
        %v669 = vshrl.u32 %v668, 2
        %v670 = vmul.u32 %v669, 5
        %v671 = vsub.s32 %v665, %v670
        %v672 = vsub.s32 0, %v671
        %v673 = vsel %vm663, %v672, %v671
        %vm674 = vcmp.ne.s32.totalorder %v651, 0
        %vm675 = vcmp.ne.s32.totalorder %v662, 0
        %vm676 = vcmp.ne.s32.totalorder %v673, 0
        %vm677 = vcmp.lt.s32.totalorder %v651, 0
        %vm678 = vcmp.lt.s32.totalorder %v662, 0
        %vm679 = vcmp.lt.s32.totalorder %v673, 0
        %vm680 = vmand %vm677, %vm674
        %vm681 = vmand %vm678, %vm675
        %vm682 = vmand %vm679, %vm676
        %v683 = vadd.s32 %v651, 5
        %v684 = vadd.s32 %v662, 5
        %v685 = vadd.s32 %v673, 5
        %v686 = vsel %vm680, %v683, %v651
        %v687 = vsel %vm681, %v684, %v662
        %v688 = vsel %vm682, %v685, %v673
        %vm689 = vcmp.lt.s32.totalorder %v686, 4
        %vm690 = vcmp.lt.s32.totalorder %v687, 4
        %vm691 = vcmp.lt.s32.totalorder %v688, 4
        %v692 = vsel %vm689, 1, 0
        %v693 = vsel %vm690, 1, 0
        %v694 = vsel %vm691, 1, 0
        %vm695 = vcmp.eq.s32.totalorder %v692, 1
        %vm696 = vcmp.eq.s32.totalorder %v693, 1
        %vm697 = vcmp.eq.s32.totalorder %v694, 1
        %v698 = vsel %vm695, %v629, 0.0
        %v699 = vsel %vm696, %v630, 0.0
        %v700 = vsel %vm697, %v631, 0.0
        %p701 = scmp.eq.s32.totalorder %s24, 0
        // Predicated region
        $region37: #{discriminator_forward.9} parent=27 // pred_check
          %p702 = pneg %p701
        $region38: #{discriminator_forward.9} parent=27 // pred_check_branch
          %704 = sbr.rel (%p702) target = $region40
        $region39: #{discriminator_forward.9} parent=27 // pred_region
          %vm705 = vcmask 516096
          %706 = vst.msk [vmem:[#allocation8] sm:$0x1] %vm705, 0.0
          %707 = vst.msk [vmem:[#allocation10] sm:$0x1] %vm705, 0.0
        $region40: #{discriminator_forward.9} parent=27 // pred_fallthru
          _
        %v708 = vld [vmem:[#allocation8] sm:$0x1]
        %v709 = vsel %vm632, %v698, 0.0
        %v710 = vsel %vm632, %v699, 0.0
        %v711 = vadd.f32 %v709, %v710
        %v712 = vsel %vm635, %v700, 0.0
        %v713 = vadd.f32 %v711, %v712
        %v714 = vrot.slane %v713, 4
        %v715 = vadd.f32 %v713, %v714
        %v716 = vrot.slane %v715, 2
        %v717 = vadd.f32 %v715, %v716
        %v718 = vrot.slane %v717, 1
        %v719 = vadd.f32 %v717, %v718
        %v720 = vadd.f32 %v708, %v719
        %vm721 = vcmask 516096
        %722 = vst.msk [vmem:[#allocation8] sm:$0x1] %vm721, %v720
        %v723 = vld [vmem:[#allocation10] sm:$0x1]
        %v724 = vmul.f32 %v698, %v698
        %v725 = vmul.f32 %v699, %v699
        %v726 = vmul.f32 %v700, %v700
        %v727 = vsel %vm632, %v724, 0.0
        %v728 = vsel %vm632, %v725, 0.0
        %v729 = vadd.f32 %v727, %v728
        %v730 = vsel %vm635, %v726, 0.0
        %v731 = vadd.f32 %v729, %v730
        %v732 = vrot.slane %v731, 4
        %v733 = vadd.f32 %v731, %v732
        %v734 = vrot.slane %v733, 2
        %v735 = vadd.f32 %v733, %v734
        %v736 = vrot.slane %v735, 1
        %v737 = vadd.f32 %v735, %v736
        %v738 = vadd.f32 %v723, %v737
        %739 = vst.msk [vmem:[#allocation10] sm:$0x1] %vm721, %v738
        %s740 = sand.u32 %s79, 1
        %s741 = scalar_lea.sflag [#allocation4], %s740
        %s742 = sand.u32 %s79, 1
        %s743 = smul.addr %s742, 24
        %s744 = scalar_lea.vmem [#allocation7], %s743
        // Predicated region
        $region41: #{discriminator_forward.9} parent=27 // pred_check
          %p745 = pneg %p89
        $region42: #{discriminator_forward.9} parent=27 // pred_check_branch
          %747 = sbr.rel (%p745) target = $region44
        $region43: #{discriminator_forward.9} parent=27 // pred_region
          %s749 = ssub.s32 384, 384
          %750 = vsyncadd %s741, %s749
          %s751 = smul.addr %s24, 3
          %s752 = smul.addr %s751, 128
          %s753 = scalar_lea.hbm %s2, %s752
          %s754 = sshll.u32 %s744, 4
          %s755 = int_to_ptr.vmem [resolvable:$true] %s754
          %760 = dma.vmem_to_hbm [thread:$0]  %s755, 384, %s753, %s741, 128, 128, 8
        $region44: #{discriminator_forward.9} parent=27 // pred_fallthru
          _
        // Predicated region
        $region45: #{discriminator_forward.9} parent=27 // pred_check
          %p761 = pneg %p110
        $region46: #{discriminator_forward.9} parent=27 // pred_check_branch
          %763 = sbr.rel (%p761) target = $region48
        $region47: #{discriminator_forward.9} parent=27 // pred_region
          %s765 = ssub.s32 16, 16
          %766 = vsyncadd [#allocation9], %s765
          %s768 = sshll.u32 [#allocation8], 4
          %s769 = int_to_ptr.vmem [resolvable:$true] %s768
          %771 = dma.vmem_to_hbm [thread:$0]  %s769, 16, %s3, [#allocation9]
        $region48: #{discriminator_forward.9} parent=27 // pred_fallthru
          _
        // Predicated region
        $region49: #{discriminator_forward.9} parent=27 // pred_check
          %p772 = pneg %p131
        $region50: #{discriminator_forward.9} parent=27 // pred_check_branch
          %774 = sbr.rel (%p772) target = $region52
        $region51: #{discriminator_forward.9} parent=27 // pred_region
          %s776 = ssub.s32 16, 16
          %777 = vsyncadd [#allocation9], %s776
          %s779 = sshll.u32 [#allocation10], 4
          %s780 = int_to_ptr.vmem [resolvable:$true] %s779
          %782 = dma.vmem_to_hbm [thread:$0]  %s780, 16, %s4, [#allocation9]
        $region52: #{discriminator_forward.9} parent=27 // pred_fallthru
          _
        // Predicated region
        $region53: #{discriminator_forward.9} parent=27 // pred_check
          %p783 = pneg %p110
        $region54: #{discriminator_forward.9} parent=27 // pred_check_branch
          %785 = sbr.rel (%p783) target = $region56
        $region55: #{discriminator_forward.9} parent=27 // pred_region
          %786 = dma.done [#allocation9], 16
        $region56: #{discriminator_forward.9} parent=27 // pred_fallthru
          _
        // Predicated region
        $region57: #{discriminator_forward.9} parent=27 // pred_check
          %p787 = pneg %p131
        $region58: #{discriminator_forward.9} parent=27 // pred_check_branch
          %789 = sbr.rel (%p787) target = $region60
        $region59: #{discriminator_forward.9} parent=27 // pred_region
          %790 = dma.done [#allocation9], 16
        $region60: #{discriminator_forward.9} parent=27 // pred_fallthru
          _
      $region28: #{discriminator_forward.9} parent=5 // pred_fallthru
        _
      %p791 = scmp.le.s32.totalorder 2, %s19
      // Predicated region
      $region61: #{discriminator_forward.9} parent=5 // pred_check
        %p792 = pneg %p791
      $region62: #{discriminator_forward.9} parent=5 // pred_check_branch
        %794 = sbr.rel (%p792) target = $region64
      $region63: #{discriminator_forward.9} parent=5 // pred_region
        %s795 = ssub.s32 %s19, 2
        // Predicated region
        $region65: #{discriminator_forward.9} parent=63 // pred_check
          %p796 = pneg %p95
        $region66: #{discriminator_forward.9} parent=63 // pred_check_branch
          %798 = sbr.rel (%p796) target = $region68
        $region67: #{discriminator_forward.9} parent=63 // pred_region
          %s799 = sand.u32 %s80, 1
          %s800 = scalar_lea.sflag [#allocation4], %s799
          %s801 = sand.u32 %s80, 1
          %s802 = smul.addr %s801, 24
          %s803 = scalar_lea.vmem [#allocation7], %s802
          %804 = dma.done %s800, 384
        $region68: #{discriminator_forward.9} parent=63 // pred_fallthru
          _
      $region64: #{discriminator_forward.9} parent=5 // pred_fallthru
        _
    $region6: #{discriminator_forward.9} parent=1 // loop_footer
      %s23 = sadd.s32 1, %s19
    $region7: #{discriminator_forward.9} parent=1 // loop_footer_branch
      %18 = sbr.rel target = $region3
    $region8: #{discriminator_forward.9} parent=1 // loop_exit
      _
    %805 = vsyncpa [#allocation3], 1
    %s806 = scalar_lea.sflag [#allocation3], 1
    %807 = vsyncpa %s806, 1
    %808 = vsyncpa [#allocation6], 1
    %809 = vsyncpa [#allocation4], 1
    %s810 = scalar_lea.sflag [#allocation4], 1
    %811 = vsyncpa %s810, 1
    %812 = vsyncpa [#allocation9], 1

// kernel: discriminator_forward.12
$region0: #{discriminator_forward.12}
  #allocation0 [shape = 'u32[]', space=smem, size = 0x4, offset = 0x4, fixed_abs, tag = 'smem constant byte address 0x4 - core index']
  #allocation1 [shape = 'u32[144,128]{1,0:T(1,128)}', space=vmem, size = 0x12000, scoped, tag = 'internal scratch']
  %s0 = inlined_call_operand.hbm [shape: f32[10,128], index: 0, kind: input, shape index: {}]
  %s1 = inlined_call_operand.hbm [shape: f32[1,128], index: 1, kind: input, shape index: {}]
  %s2 = inlined_call_operand.hbm [shape: f32[1,128], index: 2, kind: input, shape index: {}]
  %s3 = inlined_call_operand.hbm [shape: f32[1,128], index: 3, kind: input, shape index: {}]
  %s4 = inlined_call_operand.hbm [shape: f32[1,128], index: 4, kind: input, shape index: {}]
  %s5 = inlined_call_operand.hbm [shape: f32[10,128], index: 5, kind: output, shape index: {}]
  %s6 = sld [smem:[#allocation0]]
  $region50: #{discriminator_forward.12} parent=0
    _
  %s8 = ssub.s32 1, %s6
  %s9 = scalar_select 0, %s8, %s6
  $region1: #{discriminator_forward.12} parent=0
    #allocation2 [shape = 'u8[8192]{0}', space=vmem, size = 0x2000, scoped, tag = 'input window, operand 0, single buffered']
    #allocation3 [shape = 's32[1]{0}', space=sflag, size = 0x4, scoped, tag = 'scoped memory for discriminator_forward.12']
    #allocation4 [shape = 's32[1]{0}', space=sflag, size = 0x4, scoped, tag = 'scoped memory for discriminator_forward.12']
    #allocation5 [shape = 'u8[512]{0}', space=vmem, size = 0x400, scoped, tag = 'input window, operand 1, single buffered']
    #allocation6 [shape = 's32[1]{0}', space=sflag, size = 0x4, scoped, tag = 'scoped memory for discriminator_forward.12']
    #allocation7 [shape = 'u8[512]{0}', space=vmem, size = 0x400, scoped, tag = 'input window, operand 2, single buffered']
    #allocation8 [shape = 'u8[512]{0}', space=vmem, size = 0x400, scoped, tag = 'input window, operand 3, single buffered']
    #allocation9 [shape = 's32[1]{0}', space=sflag, size = 0x4, scoped, tag = 'scoped memory for discriminator_forward.12']
    #allocation10 [shape = 'u8[512]{0}', space=vmem, size = 0x400, scoped, tag = 'input window, operand 4, single buffered']
    #allocation11 [shape = 'u8[8192]{0}', space=vmem, size = 0x2000, scoped, tag = 'output window, operand 0, single buffered']
    %10 = vsyncpa [#allocation3], 0
    %11 = vsyncpa [#allocation6], 0
    %12 = vsyncpa [#allocation9], 0
    %13 = vsyncpa [#allocation4], 0
    // Predicated region
    $region2: #{discriminator_forward.12} parent=1 // pred_check
      _
    $region3: #{discriminator_forward.12} parent=1 // pred_check_branch
      %15 = sbr.rel (0) target = $region5
    $region4: #{discriminator_forward.12} parent=1 // pred_region
      %s17 = ssub.s32 256, 256
      %18 = vsyncadd [#allocation3], %s17
      %s19 = sshll.u32 [#allocation2], 4
      %s20 = int_to_ptr.vmem [resolvable:$true] %s19
      %25 = dma.hbm_to_vmem [thread:$0]  %s0, 256, %s20, [#allocation3], 128, 128, 8
    $region5: #{discriminator_forward.12} parent=1 // pred_fallthru
      _
    // Predicated region
    $region6: #{discriminator_forward.12} parent=1 // pred_check
      _
    $region7: #{discriminator_forward.12} parent=1 // pred_check_branch
      %27 = sbr.rel (0) target = $region9
    $region8: #{discriminator_forward.12} parent=1 // pred_region
      %s29 = ssub.s32 16, 16
      %30 = vsyncadd [#allocation6], %s29
      %s32 = sshll.u32 [#allocation5], 4
      %s33 = int_to_ptr.vmem [resolvable:$true] %s32
      %35 = dma.hbm_to_vmem [thread:$0]  %s1, 16, %s33, [#allocation6]
    $region9: #{discriminator_forward.12} parent=1 // pred_fallthru
      _
    // Predicated region
    $region10: #{discriminator_forward.12} parent=1 // pred_check
      _
    $region11: #{discriminator_forward.12} parent=1 // pred_check_branch
      %37 = sbr.rel (0) target = $region13
    $region12: #{discriminator_forward.12} parent=1 // pred_region
      %s39 = ssub.s32 16, 16
      %40 = vsyncadd [#allocation6], %s39
      %s42 = sshll.u32 [#allocation7], 4
      %s43 = int_to_ptr.vmem [resolvable:$true] %s42
      %45 = dma.hbm_to_vmem [thread:$0]  %s2, 16, %s43, [#allocation6]
    $region13: #{discriminator_forward.12} parent=1 // pred_fallthru
      _
    // Predicated region
    $region14: #{discriminator_forward.12} parent=1 // pred_check
      _
    $region15: #{discriminator_forward.12} parent=1 // pred_check_branch
      %47 = sbr.rel (0) target = $region17
    $region16: #{discriminator_forward.12} parent=1 // pred_region
      %s49 = ssub.s32 16, 16
      %50 = vsyncadd [#allocation9], %s49
      %s52 = sshll.u32 [#allocation8], 4
      %s53 = int_to_ptr.vmem [resolvable:$true] %s52
      %55 = dma.hbm_to_vmem [thread:$0]  %s3, 16, %s53, [#allocation9]
    $region17: #{discriminator_forward.12} parent=1 // pred_fallthru
      _
    // Predicated region
    $region18: #{discriminator_forward.12} parent=1 // pred_check
      _
    $region19: #{discriminator_forward.12} parent=1 // pred_check_branch
      %57 = sbr.rel (0) target = $region21
    $region20: #{discriminator_forward.12} parent=1 // pred_region
      %s59 = ssub.s32 16, 16
      %60 = vsyncadd [#allocation9], %s59
      %s62 = sshll.u32 [#allocation10], 4
      %s63 = int_to_ptr.vmem [resolvable:$true] %s62
      %65 = dma.hbm_to_vmem [thread:$0]  %s4, 16, %s63, [#allocation9]
    $region21: #{discriminator_forward.12} parent=1 // pred_fallthru
      _
    // Predicated region
    $region22: #{discriminator_forward.12} parent=1 // pred_check
      _
    $region23: #{discriminator_forward.12} parent=1 // pred_check_branch
      %67 = sbr.rel (0) target = $region25
    $region24: #{discriminator_forward.12} parent=1 // pred_region
      %68 = dma.done [#allocation3], 256
    $region25: #{discriminator_forward.12} parent=1 // pred_fallthru
      _
    // Predicated region
    $region26: #{discriminator_forward.12} parent=1 // pred_check
      _
    $region27: #{discriminator_forward.12} parent=1 // pred_check_branch
      %70 = sbr.rel (0) target = $region29
    $region28: #{discriminator_forward.12} parent=1 // pred_region
      %71 = dma.done [#allocation6], 16
    $region29: #{discriminator_forward.12} parent=1 // pred_fallthru
      _
    // Predicated region
    $region30: #{discriminator_forward.12} parent=1 // pred_check
      _
    $region31: #{discriminator_forward.12} parent=1 // pred_check_branch
      %73 = sbr.rel (0) target = $region33
    $region32: #{discriminator_forward.12} parent=1 // pred_region
      %74 = dma.done [#allocation6], 16
    $region33: #{discriminator_forward.12} parent=1 // pred_fallthru
      _
    // Predicated region
    $region34: #{discriminator_forward.12} parent=1 // pred_check
      _
    $region35: #{discriminator_forward.12} parent=1 // pred_check_branch
      %76 = sbr.rel (0) target = $region37
    $region36: #{discriminator_forward.12} parent=1 // pred_region
      %77 = dma.done [#allocation9], 16
    $region37: #{discriminator_forward.12} parent=1 // pred_fallthru
      _
    // Predicated region
    $region38: #{discriminator_forward.12} parent=1 // pred_check
      _
    $region39: #{discriminator_forward.12} parent=1 // pred_check_branch
      %79 = sbr.rel (0) target = $region41
    $region40: #{discriminator_forward.12} parent=1 // pred_region
      %80 = dma.done [#allocation9], 16
    $region41: #{discriminator_forward.12} parent=1 // pred_fallthru
      _
    %v81 = vld [vmem:[#allocation5] sm:$0x1]
    %v82 = vmul.f32 %v81, 0.125
    %v83 = vld [vmem:[#allocation7] sm:$0x1]
    %v84 = vmul.f32 %v83, 0.125
    %v85 = vmul.f32 %v82, %v82
    %v86 = vsub.f32 %v84, %v85
    %v87 = vmax.f32 %v86, 0.0
    %v88 = vld [vmem:[#allocation8] sm:$0x1]
    %v89 = vadd.f32 %v87, 1e-05
    %v90 = vrsqrt.pop %v89
    %v91 = vmul.f32 %v88, %v90
    %v92 = vld [vmem:[#allocation10] sm:$0x1]
    %v93 = vmul.f32 %v82, %v91
    %v94 = vsub.f32 %v92, %v93
    %v95 = vld [vmem:[#allocation2] sm:$0xff]
    %v96 = vld [vmem:[#allocation2 + $0x8] sm:$0x3]
    %v98 = vlaneseq
    %v99 = vshrl.u32 %v98, 7
    %v100 = vsub.s32 0, %v99
    %v101 = vrot.slane %v91, %v100
    %v103 = vmul.f32 %v95, %v101
    %v104 = vmul.f32 %v96, %v101
    %v106 = vlaneseq
    %v107 = vshrl.u32 %v106, 7
    %v108 = vsub.s32 0, %v107
    %v109 = vrot.slane %v94, %v108
    %v111 = vadd.f32 %v103, %v109
    %v112 = vadd.f32 %v104, %v109
    %vm113 = vcmp.gt.f32.partialorder %v111, 0.0
    %vm114 = vcmp.gt.f32.partialorder %v112, 0.0
    %v115 = vmul.f32 %v111, 0.2
    %v116 = vmul.f32 %v112, 0.2
    %v117 = vsel %vm113, %v111, %v115
    %v118 = vsel %vm114, %v112, %v116
    %119 = vst [vmem:[#allocation11] sm:$0xff] %v117
    %120 = vst [vmem:[#allocation11 + $0x8] sm:$0x3] %v118
    // Predicated region
    $region42: #{discriminator_forward.12} parent=1 // pred_check
      _
    $region43: #{discriminator_forward.12} parent=1 // pred_check_branch
      %122 = sbr.rel (0) target = $region45
    $region44: #{discriminator_forward.12} parent=1 // pred_region
      %s124 = ssub.s32 256, 256
      %125 = vsyncadd [#allocation4], %s124
      %s126 = sshll.u32 [#allocation11], 4
      %s127 = int_to_ptr.vmem [resolvable:$true] %s126
      %132 = dma.vmem_to_hbm [thread:$0]  %s127, 256, %s5, [#allocation4], 128, 128, 8
    $region45: #{discriminator_forward.12} parent=1 // pred_fallthru
      _
    // Predicated region
    $region46: #{discriminator_forward.12} parent=1 // pred_check
      _
    $region47: #{discriminator_forward.12} parent=1 // pred_check_branch
      %134 = sbr.rel (0) target = $region49
    $region48: #{discriminator_forward.12} parent=1 // pred_region
      %135 = dma.done [#allocation4], 256
    $region49: #{discriminator_forward.12} parent=1 // pred_fallthru
      _
    %136 = vsyncpa [#allocation3], 1
    %137 = vsyncpa [#allocation6], 1
    %138 = vsyncpa [#allocation9], 1
    %139 = vsyncpa [#allocation4], 1

// kernel: discriminator_forward.11
$region0: #{discriminator_forward.11}
  #allocation0 [shape = 'u32[]', space=smem, size = 0x4, offset = 0x4, fixed_abs, tag = 'smem constant byte address 0x4 - core index']
  #allocation1 [shape = 'u32[144,128]{1,0:T(1,128)}', space=vmem, size = 0x12000, scoped, tag = 'internal scratch']
  %s0 = inlined_call_operand.hbm [shape: f32[2,9,256], index: 0, kind: input, shape index: {}]
  %s1 = inlined_call_operand.hbm [shape: f32[4,256,128], index: 1, kind: input, shape index: {}]
  %s2 = inlined_call_operand.hbm [shape: f32[2,5,128], index: 2, kind: output, shape index: {0}]
  %s3 = inlined_call_operand.hbm [shape: f32[1,128], index: 3, kind: output, shape index: {1}]
  %s4 = inlined_call_operand.hbm [shape: f32[1,128], index: 4, kind: output, shape index: {2}]
  %5 = xla_tuple %s2, %s3, %s4
  %s6 = sld [smem:[#allocation0]]
  $region69: #{discriminator_forward.11} parent=0
    _
  %s8 = ssub.s32 1, %s6
  %s9 = scalar_select 0, %s8, %s6
  $region1: #{discriminator_forward.11} parent=0
    #allocation2 [shape = 'u8[32768]{0}', space=vmem, size = 0x8000, scoped, tag = 'input window, operand 0']
    #allocation3 [shape = 's32[2]{0}', space=sflag, size = 0x8, scoped, tag = 'scoped memory for discriminator_forward.11']
    #allocation4 [shape = 's32[2]{0}', space=sflag, size = 0x8, scoped, tag = 'scoped memory for discriminator_forward.11']
    #allocation5 [shape = 'u8[524288]{0}', space=vmem, size = 0x80000, scoped, tag = 'input window, operand 1, single buffered']
    #allocation6 [shape = 's32[1]{0}', space=sflag, size = 0x4, scoped, tag = 'scoped memory for discriminator_forward.11']
    #allocation7 [shape = 'u8[8192]{0}', space=vmem, size = 0x2000, scoped, tag = 'output window, operand 0']
    #allocation8 [shape = 'u8[512]{0}', space=vmem, size = 0x400, scoped, tag = 'output window, operand 1, single buffered']
    #allocation9 [shape = 's32[1]{0}', space=sflag, size = 0x4, scoped, tag = 'scoped memory for discriminator_forward.11']
    #allocation10 [shape = 'u8[512]{0}', space=vmem, size = 0x400, scoped, tag = 'output window, operand 2, single buffered']
    %10 = vsyncpa [#allocation3], 0
    %s11 = scalar_lea.sflag [#allocation3], 1
    %12 = vsyncpa %s11, 0
    %13 = vsyncpa [#allocation6], 0
    %14 = vsyncpa [#allocation4], 0
    %s15 = scalar_lea.sflag [#allocation4], 1
    %16 = vsyncpa %s15, 0
    %17 = vsyncpa [#allocation9], 0
    loop: start=0, step=1, limit=4
    $region2: #{discriminator_forward.11} parent=1 // loop_pre_header
      _
    $region3: #{discriminator_forward.11} parent=1 // loop_header
      %s19 = sphi 0, %s23
      %p20 = scmp.ge.s32.totalorder %s19, 4
      %s29 = sphi 0, %s31
      %s32 = sphi 0, %s29
      %s33 = sphi 0, %s32
      %s49 = sphi 0, %s33
      %s53 = sphi 0, %s53
      %s55 = sphi 0, %s53
      %s56 = sphi 0, %s55
      %s70 = sphi 0, %s56
      %s76 = sphi 0, %s78
      %s79 = sphi 0, %s76
      %s80 = sphi 0, %s79
      %s96 = sphi 0, %s80
      %s100 = sphi 0, %s100
      %s102 = sphi 0, %s100
      %s103 = sphi 0, %s102
      %s117 = sphi 0, %s103
      %s121 = sphi 0, %s121
      %s123 = sphi 0, %s121
      %s124 = sphi 0, %s123
      %s138 = sphi 0, %s124
    $region4: #{discriminator_forward.11} parent=1 // loop_header_branch
      %22 = sbr.rel (%p20) target = $region8
    $region5: #{discriminator_forward.11} parent=1 // loop_body
      %s24 = ssub.s32 %s19, 1
      %s25 = ssub.s32 %s19, 2
      %s26 = sadd.s32 %s19, 1
      %s27 = ssub.s32 %s19, %s26
      %p28 = scmp.eq.s32.totalorder %s27, 0
      %s30 = sadd.s32 %s29, 1
      %s31 = scalar_select %p28, %s29, %s30
      %p34 = pneg %p28
      %p35 = scmp.eq.s32.totalorder %s19, 1
      %p36 = por %p34, %p35
      %p37 = scmp.ne.s32.totalorder %s29, %s32
      %p38 = scmp.eq.s32.totalorder %s19, 0
      %p39 = por %p37, %p38
      %p40 = scmp.ne.s32.totalorder %s29, %s32
      %p41 = scmp.eq.s32.totalorder %s24, 1
      %p42 = por %p40, %p41
      %p43 = scmp.ne.s32.totalorder %s32, %s33
      %p44 = scmp.eq.s32.totalorder %s24, 0
      %p45 = por %p43, %p44
      %p46 = scmp.ne.s32.totalorder %s32, %s33
      %p47 = scmp.eq.s32.totalorder %s25, 1
      %p48 = por %p46, %p47
      %p50 = scmp.ne.s32.totalorder %s33, %s49
      %p51 = scmp.eq.s32.totalorder %s25, 0
      %p52 = por %p50, %p51
      %s54 = sadd.s32 %s53, 1
      %p57 = scmp.eq.s32.totalorder %s19, 1
      %p58 = scmp.ne.s32.totalorder %s53, %s55
      %p59 = scmp.eq.s32.totalorder %s19, 0
      %p60 = por %p58, %p59
      %p61 = scmp.ne.s32.totalorder %s53, %s55
      %p62 = scmp.eq.s32.totalorder %s24, 1
      %p63 = por %p61, %p62
      %p64 = scmp.ne.s32.totalorder %s55, %s56
      %p65 = scmp.eq.s32.totalorder %s24, 0
      %p66 = por %p64, %p65
      %p67 = scmp.ne.s32.totalorder %s55, %s56
      %p68 = scmp.eq.s32.totalorder %s25, 1
      %p69 = por %p67, %p68
      %p71 = scmp.ne.s32.totalorder %s56, %s70
      %p72 = scmp.eq.s32.totalorder %s25, 0
      %p73 = por %p71, %p72
      %s74 = ssub.s32 %s19, %s26
      %p75 = scmp.eq.s32.totalorder %s74, 0
      %s77 = sadd.s32 %s76, 1
      %s78 = scalar_select %p75, %s76, %s77
      %p81 = pneg %p75
      %p82 = scmp.eq.s32.totalorder %s19, 1
      %p83 = por %p81, %p82
      %p84 = scmp.ne.s32.totalorder %s76, %s79
      %p85 = scmp.eq.s32.totalorder %s19, 0
      %p86 = por %p84, %p85
      %p87 = scmp.ne.s32.totalorder %s76, %s79
      %p88 = scmp.eq.s32.totalorder %s24, 1
      %p89 = por %p87, %p88
      %p90 = scmp.ne.s32.totalorder %s79, %s80
      %p91 = scmp.eq.s32.totalorder %s24, 0
      %p92 = por %p90, %p91
      %p93 = scmp.ne.s32.totalorder %s79, %s80
      %p94 = scmp.eq.s32.totalorder %s25, 1
      %p95 = por %p93, %p94
      %p97 = scmp.ne.s32.totalorder %s80, %s96
      %p98 = scmp.eq.s32.totalorder %s25, 0
      %p99 = por %p97, %p98
      %s101 = sadd.s32 %s100, 1
      %p104 = scmp.eq.s32.totalorder %s19, 1
      %p105 = scmp.ne.s32.totalorder %s100, %s102
      %p106 = scmp.eq.s32.totalorder %s19, 0
      %p107 = por %p105, %p106
      %p108 = scmp.ne.s32.totalorder %s100, %s102
      %p109 = scmp.eq.s32.totalorder %s24, 1
      %p110 = por %p108, %p109
      %p111 = scmp.ne.s32.totalorder %s102, %s103
      %p112 = scmp.eq.s32.totalorder %s24, 0
      %p113 = por %p111, %p112
      %p114 = scmp.ne.s32.totalorder %s102, %s103
      %p115 = scmp.eq.s32.totalorder %s25, 1
      %p116 = por %p114, %p115
      %p118 = scmp.ne.s32.totalorder %s103, %s117
      %p119 = scmp.eq.s32.totalorder %s25, 0
      %p120 = por %p118, %p119
      %s122 = sadd.s32 %s121, 1
      %p125 = scmp.eq.s32.totalorder %s19, 1
      %p126 = scmp.ne.s32.totalorder %s121, %s123
      %p127 = scmp.eq.s32.totalorder %s19, 0
      %p128 = por %p126, %p127
      %p129 = scmp.ne.s32.totalorder %s121, %s123
      %p130 = scmp.eq.s32.totalorder %s24, 1
      %p131 = por %p129, %p130
      %p132 = scmp.ne.s32.totalorder %s123, %s124
      %p133 = scmp.eq.s32.totalorder %s24, 0
      %p134 = por %p132, %p133
      %p135 = scmp.ne.s32.totalorder %s123, %s124
      %p136 = scmp.eq.s32.totalorder %s25, 1
      %p137 = por %p135, %p136
      %p139 = scmp.ne.s32.totalorder %s124, %s138
      %p140 = scmp.eq.s32.totalorder %s25, 0
      %p141 = por %p139, %p140
      %p142 = scmp.le.s32.totalorder 1, %s19
      %p143 = scmp.lt.s32.totalorder %s19, 3
      %p144 = pnand %p142, %p143
      %p145 = pneg %p144
      // Predicated region
      $region9: #{discriminator_forward.11} parent=5 // pred_check
        _
      $region10: #{discriminator_forward.11} parent=5 // pred_check_branch
        %147 = sbr.rel (%p144) target = $region12
      $region11: #{discriminator_forward.11} parent=5 // pred_region
        %s148 = ssub.s32 %s19, 1
        // Predicated region
        $region13: #{discriminator_forward.11} parent=11 // pred_check
          %p149 = pneg %p66
        $region14: #{discriminator_forward.11} parent=11 // pred_check_branch
          %151 = sbr.rel (%p149) target = $region16
        $region15: #{discriminator_forward.11} parent=11 // pred_region
          %s153 = ssub.s32 16384, 16384
          %154 = vsyncadd [#allocation6], %s153
          %s155 = sshll.u32 [#allocation5], 4
          %s156 = int_to_ptr.vmem [resolvable:$true] %s155
          %161 = dma.hbm_to_vmem [thread:$0]  %s1, 16384, %s156, [#allocation6], 128, 128, 8
        $region16: #{discriminator_forward.11} parent=11 // pred_fallthru
          _
      $region12: #{discriminator_forward.11} parent=5 // pred_fallthru
        _
      %p162 = scmp.lt.s32.totalorder %s19, 2
      // Predicated region
      $region17: #{discriminator_forward.11} parent=5 // pred_check
        %p163 = pneg %p162
      $region18: #{discriminator_forward.11} parent=5 // pred_check_branch
        %165 = sbr.rel (%p163) target = $region20
      $region19: #{discriminator_forward.11} parent=5 // pred_region
        // Predicated region
        $region21: #{discriminator_forward.11} parent=19 // pred_check
          %p166 = pneg %p39
        $region22: #{discriminator_forward.11} parent=19 // pred_check_branch
          %168 = sbr.rel (%p166) target = $region24
        $region23: #{discriminator_forward.11} parent=19 // pred_region
          %s169 = sand.u32 %s29, 1
          %s170 = scalar_lea.sflag [#allocation3], %s169
          %s171 = sand.u32 %s29, 1
          %s172 = smul.addr %s171, 32
          %s173 = scalar_lea.vmem [#allocation2], %s172
          %s175 = ssub.s32 512, 512
          %176 = vsyncadd %s170, %s175
          %s177 = smul.addr %s19, 4
          %s178 = smul.addr %s177, 128
          %s179 = scalar_lea.hbm %s0, %s178
          %s180 = sshll.u32 %s173, 4
          %s181 = int_to_ptr.vmem [resolvable:$true] %s180
          %186 = dma.hbm_to_vmem [thread:$0]  %s179, 512, %s181, %s170, 256, 256, 16
        $region24: #{discriminator_forward.11} parent=19 // pred_fallthru
          _
      $region20: #{discriminator_forward.11} parent=5 // pred_fallthru
        _
      %p187 = scmp.le.s32.totalorder 1, %s19
      %p188 = scmp.lt.s32.totalorder %s19, 3
      %p189 = pnand %p187, %p188
      %p190 = pneg %p189
      // Predicated region
      $region25: #{discriminator_forward.11} parent=5 // pred_check
        _
      $region26: #{discriminator_forward.11} parent=5 // pred_check_branch
        %192 = sbr.rel (%p189) target = $region28
      $region27: #{discriminator_forward.11} parent=5 // pred_region
        %s193 = ssub.s32 %s19, 1
        %s194 = sand.u32 %s32, 1
        %s195 = scalar_lea.sflag [#allocation3], %s194
        %s196 = sand.u32 %s32, 1
        %s197 = smul.addr %s196, 32
        %s198 = scalar_lea.vmem [#allocation2], %s197
        // Predicated region
        $region29: #{discriminator_forward.11} parent=27 // pred_check
          %p199 = pneg %p45
        $region30: #{discriminator_forward.11} parent=27 // pred_check_branch
          %201 = sbr.rel (%p199) target = $region32
        $region31: #{discriminator_forward.11} parent=27 // pred_region
          %202 = dma.done %s195, 512
        $region32: #{discriminator_forward.11} parent=27 // pred_fallthru
          _
        // Predicated region
        $region33: #{discriminator_forward.11} parent=27 // pred_check
          %p203 = pneg %p66
        $region34: #{discriminator_forward.11} parent=27 // pred_check_branch
          %205 = sbr.rel (%p203) target = $region36
        $region35: #{discriminator_forward.11} parent=27 // pred_region
          %206 = dma.done [#allocation6], 16384
        $region36: #{discriminator_forward.11} parent=27 // pred_fallthru
          _
        %s207 = sand.u32 %s32, 1
        %s208 = scalar_lea.sflag [#allocation3], %s207
        %s209 = sand.u32 %s32, 1
        %s210 = smul.addr %s209, 32
        %s211 = scalar_lea.vmem [#allocation2], %s210
        %p212 = pneg %p45
        %p213 = pneg %p42
        %p214 = pneg %p66
        %p215 = pneg %p63
        %p216 = pneg %p92
        %p217 = pneg %p89
        %s218 = sand.u32 %s79, 1
        %s219 = scalar_lea.sflag [#allocation4], %s218
        %s220 = sand.u32 %s79, 1
        %s221 = smul.addr %s220, 8
        %s222 = scalar_lea.vmem [#allocation7], %s221
        %p223 = pneg %p113
        %p224 = pneg %p110
        %p225 = pneg %p134
        %p226 = pneg %p131
        %v227 = vld [vmem:[%s198] sm:$0x1f]
        %v228 = vld [vmem:[%s198 + $0x8] sm:$0x1f]
        %v229 = vld [vmem:[#allocation5] sm:$0xff]
        %v230 = vld [vmem:[#allocation5 + $0x8] sm:$0xff]
        %v231 = vld [vmem:[#allocation5 + $0x10] sm:$0xff]
        %v232 = vld [vmem:[#allocation5 + $0x18] sm:$0xff]
        %v233 = vld [vmem:[#allocation5 + $0x20] sm:$0xff]
        %v234 = vld [vmem:[#allocation5 + $0x28] sm:$0xff]
        %v235 = vld [vmem:[#allocation5 + $0x30] sm:$0xff]
        %v236 = vld [vmem:[#allocation5 + $0x38] sm:$0xff]
        %v237 = vld [vmem:[#allocation5 + $0x40] sm:$0xff]
        %v238 = vld [vmem:[#allocation5 + $0x48] sm:$0xff]
        %v239 = vld [vmem:[#allocation5 + $0x50] sm:$0xff]
        %v240 = vld [vmem:[#allocation5 + $0x58] sm:$0xff]
        %v241 = vld [vmem:[#allocation5 + $0x60] sm:$0xff]
        %v242 = vld [vmem:[#allocation5 + $0x68] sm:$0xff]
        %v243 = vld [vmem:[#allocation5 + $0x70] sm:$0xff]
        %v244 = vld [vmem:[#allocation5 + $0x78] sm:$0xff]
        %v245 = vld [vmem:[#allocation5 + $0x80] sm:$0xff]
        %v246 = vld [vmem:[#allocation5 + $0x88] sm:$0xff]
        %v247 = vld [vmem:[#allocation5 + $0x90] sm:$0xff]
        %v248 = vld [vmem:[#allocation5 + $0x98] sm:$0xff]
        %v249 = vld [vmem:[#allocation5 + $0xa0] sm:$0xff]
        %v250 = vld [vmem:[#allocation5 + $0xa8] sm:$0xff]
        %v251 = vld [vmem:[#allocation5 + $0xb0] sm:$0xff]
        %v252 = vld [vmem:[#allocation5 + $0xb8] sm:$0xff]
        %v253 = vld [vmem:[#allocation5 + $0xc0] sm:$0xff]
        %v254 = vld [vmem:[#allocation5 + $0xc8] sm:$0xff]
        %v255 = vld [vmem:[#allocation5 + $0xd0] sm:$0xff]
        %v256 = vld [vmem:[#allocation5 + $0xd8] sm:$0xff]
        %v257 = vld [vmem:[#allocation5 + $0xe0] sm:$0xff]
        %v258 = vld [vmem:[#allocation5 + $0xe8] sm:$0xff]
        %v259 = vld [vmem:[#allocation5 + $0xf0] sm:$0xff]
        %v260 = vld [vmem:[#allocation5 + $0xf8] sm:$0xff]
        %v261 = vld [vmem:[%s198] sm:$0x3e]
        %v262 = vld [vmem:[%s198 + $0x8] sm:$0x3e]
        %s263 = scalar_lea.vmem [#allocation5], 256
        %v264 = vld [vmem:[%s263] sm:$0xff]
        %v265 = vld [vmem:[%s263 + $0x8] sm:$0xff]
        %v266 = vld [vmem:[%s263 + $0x10] sm:$0xff]
        %v267 = vld [vmem:[%s263 + $0x18] sm:$0xff]
        %v268 = vld [vmem:[%s263 + $0x20] sm:$0xff]
        %v269 = vld [vmem:[%s263 + $0x28] sm:$0xff]
        %v270 = vld [vmem:[%s263 + $0x30] sm:$0xff]
        %v271 = vld [vmem:[%s263 + $0x38] sm:$0xff]
        %v272 = vld [vmem:[%s263 + $0x40] sm:$0xff]
        %v273 = vld [vmem:[%s263 + $0x48] sm:$0xff]
        %v274 = vld [vmem:[%s263 + $0x50] sm:$0xff]
        %v275 = vld [vmem:[%s263 + $0x58] sm:$0xff]
        %v276 = vld [vmem:[%s263 + $0x60] sm:$0xff]
        %v277 = vld [vmem:[%s263 + $0x68] sm:$0xff]
        %v278 = vld [vmem:[%s263 + $0x70] sm:$0xff]
        %v279 = vld [vmem:[%s263 + $0x78] sm:$0xff]
        %v280 = vld [vmem:[%s263 + $0x80] sm:$0xff]
        %v281 = vld [vmem:[%s263 + $0x88] sm:$0xff]
        %v282 = vld [vmem:[%s263 + $0x90] sm:$0xff]
        %v283 = vld [vmem:[%s263 + $0x98] sm:$0xff]
        %v284 = vld [vmem:[%s263 + $0xa0] sm:$0xff]
        %v285 = vld [vmem:[%s263 + $0xa8] sm:$0xff]
        %v286 = vld [vmem:[%s263 + $0xb0] sm:$0xff]
        %v287 = vld [vmem:[%s263 + $0xb8] sm:$0xff]
        %v288 = vld [vmem:[%s263 + $0xc0] sm:$0xff]
        %v289 = vld [vmem:[%s263 + $0xc8] sm:$0xff]
        %v290 = vld [vmem:[%s263 + $0xd0] sm:$0xff]
        %v291 = vld [vmem:[%s263 + $0xd8] sm:$0xff]
        %v292 = vld [vmem:[%s263 + $0xe0] sm:$0xff]
        %v293 = vld [vmem:[%s263 + $0xe8] sm:$0xff]
        %v294 = vld [vmem:[%s263 + $0xf0] sm:$0xff]
        %v295 = vld [vmem:[%s263 + $0xf8] sm:$0xff]
        %v298 = vrot.slane %v261, 1
        %v299 = vrot.slane %v262, 1
        %302 = vmatprep.subr.mxu0 0.0
        %303 = vmatpush1.msra.mxu0 %v264
        %304 = vmatprep.subr.mxu0 0.0
        %305 = vmatpush1.msra.mxu0 %v265
        %306 = vmatprep.subr.mxu0 0.0
        %307 = vmatpush1.msra.mxu0 %v266
        %308 = vmatprep.subr.mxu0 0.0
        %309 = vmatpush1.msra.mxu0 %v267
        %310 = vmatprep.subr.mxu0 0.0
        %311 = vmatpush1.msra.mxu0 %v268
        %312 = vmatprep.subr.mxu0 0.0
        %313 = vmatpush1.msra.mxu0 %v269
        %314 = vmatprep.subr.mxu0 0.0
        %315 = vmatpush1.msra.mxu0 %v270
        %316 = vmatprep.subr.mxu0 0.0
        %317 = vmatpush1.msra.mxu0 %v271
        %318 = vmatprep.subr.mxu0 0.0
        %319 = vmatpush1.msra.mxu0 %v272
        %320 = vmatprep.subr.mxu0 0.0
        %321 = vmatpush1.msra.mxu0 %v273
        %322 = vmatprep.subr.mxu0 0.0
        %323 = vmatpush1.msra.mxu0 %v274
        %324 = vmatprep.subr.mxu0 0.0
        %325 = vmatpush1.msra.mxu0 %v275
        %326 = vmatprep.subr.mxu0 0.0
        %327 = vmatpush1.msra.mxu0 %v276
        %328 = vmatprep.subr.mxu0 0.0
        %329 = vmatpush1.msra.mxu0 %v277
        %330 = vmatprep.subr.mxu0 0.0
        %331 = vmatpush1.msra.mxu0 %v278
        %332 = vmatprep.subr.mxu0 0.0
        %333 = vmatpush1.msra.mxu0 %v279
        %334 = vmatprep.subr.mxu0 0.0
        %335 = vmatpush1.msra.mxu0 %v280
        %336 = vmatprep.subr.mxu0 0.0
        %337 = vmatpush1.msra.mxu0 %v281
        %338 = vmatprep.subr.mxu0 0.0
        %339 = vmatpush1.msra.mxu0 %v282
        %340 = vmatprep.subr.mxu0 0.0
        %341 = vmatpush1.msra.mxu0 %v283
        %342 = vmatprep.subr.mxu0 0.0
        %343 = vmatpush1.msra.mxu0 %v284
        %344 = vmatprep.subr.mxu0 0.0
        %345 = vmatpush1.msra.mxu0 %v285
        %346 = vmatprep.subr.mxu0 0.0
        %347 = vmatpush1.msra.mxu0 %v286
        %348 = vmatprep.subr.mxu0 0.0
        %349 = vmatpush1.msra.mxu0 %v287
        %350 = vmatprep.subr.mxu0 0.0
        %351 = vmatpush1.msra.mxu0 %v288
        %352 = vmatprep.subr.mxu0 0.0
        %353 = vmatpush1.msra.mxu0 %v289
        %354 = vmatprep.subr.mxu0 0.0
        %355 = vmatpush1.msra.mxu0 %v290
        %356 = vmatprep.subr.mxu0 0.0
        %357 = vmatpush1.msra.mxu0 %v291
        %358 = vmatprep.subr.mxu0 0.0
        %359 = vmatpush1.msra.mxu0 %v292
        %360 = vmatprep.subr.mxu0 0.0
        %361 = vmatpush1.msra.mxu0 %v293
        %362 = vmatprep.subr.mxu0 0.0
        %363 = vmatpush1.msra.mxu0 %v294
        %364 = vmatprep.subr.mxu0 0.0
        %365 = vmatpush1.msra.mxu0 %v295
        %366 = vmatprep.mubr.f32.mxu0 %v299
        %367 = vmatmul.mubr.f32.gmra.mrb[0].mxu0 %v298
        %v368 = vpop.f32.mrb[0].mxu0
        %v369 = vadd.f32 0.0, %v368
        %v370 = vpop.f32.mrb[0].mxu0
        %371 = vdwg.mxu0
        %372 = vmatprep.subr.mxu0 0.0
        %373 = vmatpush1.msra.mxu0 %v229
        %374 = vmatprep.subr.mxu0 0.0
        %375 = vmatpush1.msra.mxu0 %v230
        %376 = vmatprep.subr.mxu0 0.0
        %377 = vmatpush1.msra.mxu0 %v231
        %378 = vmatprep.subr.mxu0 0.0
        %379 = vmatpush1.msra.mxu0 %v232
        %380 = vmatprep.subr.mxu0 0.0
        %381 = vmatpush1.msra.mxu0 %v233
        %382 = vmatprep.subr.mxu0 0.0
        %383 = vmatpush1.msra.mxu0 %v234
        %384 = vmatprep.subr.mxu0 0.0
        %385 = vmatpush1.msra.mxu0 %v235
        %386 = vmatprep.subr.mxu0 0.0
        %387 = vmatpush1.msra.mxu0 %v236
        %388 = vmatprep.subr.mxu0 0.0
        %389 = vmatpush1.msra.mxu0 %v237
        %390 = vmatprep.subr.mxu0 0.0
        %391 = vmatpush1.msra.mxu0 %v238
        %392 = vmatprep.subr.mxu0 0.0
        %393 = vmatpush1.msra.mxu0 %v239
        %394 = vmatprep.subr.mxu0 0.0
        %395 = vmatpush1.msra.mxu0 %v240
        %396 = vmatprep.subr.mxu0 0.0
        %397 = vmatpush1.msra.mxu0 %v241
        %398 = vmatprep.subr.mxu0 0.0
        %399 = vmatpush1.msra.mxu0 %v242
        %400 = vmatprep.subr.mxu0 0.0
        %401 = vmatpush1.msra.mxu0 %v243
        %402 = vmatprep.subr.mxu0 0.0
        %403 = vmatpush1.msra.mxu0 %v244
        %404 = vmatprep.subr.mxu0 0.0
        %405 = vmatpush1.msra.mxu0 %v245
        %406 = vmatprep.subr.mxu0 0.0
        %407 = vmatpush1.msra.mxu0 %v246
        %408 = vmatprep.subr.mxu0 0.0
        %409 = vmatpush1.msra.mxu0 %v247
        %410 = vmatprep.subr.mxu0 0.0
        %411 = vmatpush1.msra.mxu0 %v248
        %412 = vmatprep.subr.mxu0 0.0
        %413 = vmatpush1.msra.mxu0 %v249
        %414 = vmatprep.subr.mxu0 0.0
        %415 = vmatpush1.msra.mxu0 %v250
        %416 = vmatprep.subr.mxu0 0.0
        %417 = vmatpush1.msra.mxu0 %v251
        %418 = vmatprep.subr.mxu0 0.0
        %419 = vmatpush1.msra.mxu0 %v252
        %420 = vmatprep.subr.mxu0 0.0
        %421 = vmatpush1.msra.mxu0 %v253
        %422 = vmatprep.subr.mxu0 0.0
        %423 = vmatpush1.msra.mxu0 %v254
        %424 = vmatprep.subr.mxu0 0.0
        %425 = vmatpush1.msra.mxu0 %v255
        %426 = vmatprep.subr.mxu0 0.0
        %427 = vmatpush1.msra.mxu0 %v256
        %428 = vmatprep.subr.mxu0 0.0
        %429 = vmatpush1.msra.mxu0 %v257
        %430 = vmatprep.subr.mxu0 0.0
        %431 = vmatpush1.msra.mxu0 %v258
        %432 = vmatprep.subr.mxu0 0.0
        %433 = vmatpush1.msra.mxu0 %v259
        %434 = vmatprep.subr.mxu0 0.0
        %435 = vmatpush1.msra.mxu0 %v260
        %436 = vmatprep.mubr.f32.mxu0 %v228
        %437 = vmatmul.mubr.f32.gmra.mrb[0].mxu0 %v227
        %v438 = vpop.f32.mrb[0].mxu0
        %v439 = vadd.f32 %v369, %v438
        %v440 = vpop.f32.mrb[0].mxu0
        %441 = vdwg.mxu0
        %v442 = vld [vmem:[%s198] sm:$0xf8]
        %v443 = vld [vmem:[%s198 + $0x8] sm:$0xf8]
        %s444 = scalar_lea.vmem [#allocation5], 512
        %v445 = vld [vmem:[%s444] sm:$0xff]
        %v446 = vld [vmem:[%s444 + $0x8] sm:$0xff]
        %v447 = vld [vmem:[%s444 + $0x10] sm:$0xff]
        %v448 = vld [vmem:[%s444 + $0x18] sm:$0xff]
        %v449 = vld [vmem:[%s444 + $0x20] sm:$0xff]
        %v450 = vld [vmem:[%s444 + $0x28] sm:$0xff]
        %v451 = vld [vmem:[%s444 + $0x30] sm:$0xff]
        %v452 = vld [vmem:[%s444 + $0x38] sm:$0xff]
        %v453 = vld [vmem:[%s444 + $0x40] sm:$0xff]
        %v454 = vld [vmem:[%s444 + $0x48] sm:$0xff]
        %v455 = vld [vmem:[%s444 + $0x50] sm:$0xff]
        %v456 = vld [vmem:[%s444 + $0x58] sm:$0xff]
        %v457 = vld [vmem:[%s444 + $0x60] sm:$0xff]
        %v458 = vld [vmem:[%s444 + $0x68] sm:$0xff]
        %v459 = vld [vmem:[%s444 + $0x70] sm:$0xff]
        %v460 = vld [vmem:[%s444 + $0x78] sm:$0xff]
        %v461 = vld [vmem:[%s444 + $0x80] sm:$0xff]
        %v462 = vld [vmem:[%s444 + $0x88] sm:$0xff]
        %v463 = vld [vmem:[%s444 + $0x90] sm:$0xff]
        %v464 = vld [vmem:[%s444 + $0x98] sm:$0xff]
        %v465 = vld [vmem:[%s444 + $0xa0] sm:$0xff]
        %v466 = vld [vmem:[%s444 + $0xa8] sm:$0xff]
        %v467 = vld [vmem:[%s444 + $0xb0] sm:$0xff]
        %v468 = vld [vmem:[%s444 + $0xb8] sm:$0xff]
        %v469 = vld [vmem:[%s444 + $0xc0] sm:$0xff]
        %v470 = vld [vmem:[%s444 + $0xc8] sm:$0xff]
        %v471 = vld [vmem:[%s444 + $0xd0] sm:$0xff]
        %v472 = vld [vmem:[%s444 + $0xd8] sm:$0xff]
        %v473 = vld [vmem:[%s444 + $0xe0] sm:$0xff]
        %v474 = vld [vmem:[%s444 + $0xe8] sm:$0xff]
        %v475 = vld [vmem:[%s444 + $0xf0] sm:$0xff]
        %v476 = vld [vmem:[%s444 + $0xf8] sm:$0xff]
        %v479 = vrot.slane %v442, 3
        %v480 = vrot.slane %v443, 3
        %483 = vmatprep.subr.mxu0 0.0
        %484 = vmatpush1.msra.mxu0 %v445
        %485 = vmatprep.subr.mxu0 0.0
        %486 = vmatpush1.msra.mxu0 %v446
        %487 = vmatprep.subr.mxu0 0.0
        %488 = vmatpush1.msra.mxu0 %v447
        %489 = vmatprep.subr.mxu0 0.0
        %490 = vmatpush1.msra.mxu0 %v448
        %491 = vmatprep.subr.mxu0 0.0
        %492 = vmatpush1.msra.mxu0 %v449
        %493 = vmatprep.subr.mxu0 0.0
        %494 = vmatpush1.msra.mxu0 %v450
        %495 = vmatprep.subr.mxu0 0.0
        %496 = vmatpush1.msra.mxu0 %v451
        %497 = vmatprep.subr.mxu0 0.0
        %498 = vmatpush1.msra.mxu0 %v452
        %499 = vmatprep.subr.mxu0 0.0
        %500 = vmatpush1.msra.mxu0 %v453
        %501 = vmatprep.subr.mxu0 0.0
        %502 = vmatpush1.msra.mxu0 %v454
        %503 = vmatprep.subr.mxu0 0.0
        %504 = vmatpush1.msra.mxu0 %v455
        %505 = vmatprep.subr.mxu0 0.0
        %506 = vmatpush1.msra.mxu0 %v456
        %507 = vmatprep.subr.mxu0 0.0
        %508 = vmatpush1.msra.mxu0 %v457
        %509 = vmatprep.subr.mxu0 0.0
        %510 = vmatpush1.msra.mxu0 %v458
        %511 = vmatprep.subr.mxu0 0.0
        %512 = vmatpush1.msra.mxu0 %v459
        %513 = vmatprep.subr.mxu0 0.0
        %514 = vmatpush1.msra.mxu0 %v460
        %515 = vmatprep.subr.mxu0 0.0
        %516 = vmatpush1.msra.mxu0 %v461
        %517 = vmatprep.subr.mxu0 0.0
        %518 = vmatpush1.msra.mxu0 %v462
        %519 = vmatprep.subr.mxu0 0.0
        %520 = vmatpush1.msra.mxu0 %v463
        %521 = vmatprep.subr.mxu0 0.0
        %522 = vmatpush1.msra.mxu0 %v464
        %523 = vmatprep.subr.mxu0 0.0
        %524 = vmatpush1.msra.mxu0 %v465
        %525 = vmatprep.subr.mxu0 0.0
        %526 = vmatpush1.msra.mxu0 %v466
        %527 = vmatprep.subr.mxu0 0.0
        %528 = vmatpush1.msra.mxu0 %v467
        %529 = vmatprep.subr.mxu0 0.0
        %530 = vmatpush1.msra.mxu0 %v468
        %531 = vmatprep.subr.mxu0 0.0
        %532 = vmatpush1.msra.mxu0 %v469
        %533 = vmatprep.subr.mxu0 0.0
        %534 = vmatpush1.msra.mxu0 %v470
        %535 = vmatprep.subr.mxu0 0.0
        %536 = vmatpush1.msra.mxu0 %v471
        %537 = vmatprep.subr.mxu0 0.0
        %538 = vmatpush1.msra.mxu0 %v472
        %539 = vmatprep.subr.mxu0 0.0
        %540 = vmatpush1.msra.mxu0 %v473
        %541 = vmatprep.subr.mxu0 0.0
        %542 = vmatpush1.msra.mxu0 %v474
        %543 = vmatprep.subr.mxu0 0.0
        %544 = vmatpush1.msra.mxu0 %v475
        %545 = vmatprep.subr.mxu0 0.0
        %546 = vmatpush1.msra.mxu0 %v476
        %547 = vmatprep.mubr.f32.mxu0 %v480
        %548 = vmatmul.mubr.f32.gmra.mrb[0].mxu0 %v479
        %v549 = vpop.f32.mrb[0].mxu0
        %v550 = vadd.f32 0.0, %v549
        %v551 = vpop.f32.mrb[0].mxu0
        %552 = vdwg.mxu0
        %v553 = vadd.f32 %v439, %v550
        %v554 = vld [vmem:[%s198] sm:$0xf0]
        %v555 = vld [vmem:[%s198 + $0x8] sm:$0xf0]
        %v556 = vld [vmem:[%s198 + $0x10] sm:$0x1]
        %v557 = vld [vmem:[%s198 + $0x18] sm:$0x1]
        %s558 = scalar_lea.vmem [#allocation5], 768
        %v559 = vld [vmem:[%s558] sm:$0xff]
        %v560 = vld [vmem:[%s558 + $0x8] sm:$0xff]
        %v561 = vld [vmem:[%s558 + $0x10] sm:$0xff]
        %v562 = vld [vmem:[%s558 + $0x18] sm:$0xff]
        %v563 = vld [vmem:[%s558 + $0x20] sm:$0xff]
        %v564 = vld [vmem:[%s558 + $0x28] sm:$0xff]
        %v565 = vld [vmem:[%s558 + $0x30] sm:$0xff]
        %v566 = vld [vmem:[%s558 + $0x38] sm:$0xff]
        %v567 = vld [vmem:[%s558 + $0x40] sm:$0xff]
        %v568 = vld [vmem:[%s558 + $0x48] sm:$0xff]
        %v569 = vld [vmem:[%s558 + $0x50] sm:$0xff]
        %v570 = vld [vmem:[%s558 + $0x58] sm:$0xff]
        %v571 = vld [vmem:[%s558 + $0x60] sm:$0xff]
        %v572 = vld [vmem:[%s558 + $0x68] sm:$0xff]
        %v573 = vld [vmem:[%s558 + $0x70] sm:$0xff]
        %v574 = vld [vmem:[%s558 + $0x78] sm:$0xff]
        %v575 = vld [vmem:[%s558 + $0x80] sm:$0xff]
        %v576 = vld [vmem:[%s558 + $0x88] sm:$0xff]
        %v577 = vld [vmem:[%s558 + $0x90] sm:$0xff]
        %v578 = vld [vmem:[%s558 + $0x98] sm:$0xff]
        %v579 = vld [vmem:[%s558 + $0xa0] sm:$0xff]
        %v580 = vld [vmem:[%s558 + $0xa8] sm:$0xff]
        %v581 = vld [vmem:[%s558 + $0xb0] sm:$0xff]
        %v582 = vld [vmem:[%s558 + $0xb8] sm:$0xff]
        %v583 = vld [vmem:[%s558 + $0xc0] sm:$0xff]
        %v584 = vld [vmem:[%s558 + $0xc8] sm:$0xff]
        %v585 = vld [vmem:[%s558 + $0xd0] sm:$0xff]
        %v586 = vld [vmem:[%s558 + $0xd8] sm:$0xff]
        %v587 = vld [vmem:[%s558 + $0xe0] sm:$0xff]
        %v588 = vld [vmem:[%s558 + $0xe8] sm:$0xff]
        %v589 = vld [vmem:[%s558 + $0xf0] sm:$0xff]
        %v590 = vld [vmem:[%s558 + $0xf8] sm:$0xff]
        %vm595 = vcmask 1043456
        %v596 = vrot.slane %v554, 4
        %v597 = vrot.slane %v556, 4
        %v598 = vsel %vm595, %v596, %v597
        %v599 = vrot.slane %v555, 4
        %v600 = vrot.slane %v557, 4
        %v601 = vsel %vm595, %v599, %v600
        %604 = vmatprep.subr.mxu0 0.0
        %605 = vmatpush1.msra.mxu0 %v559
        %606 = vmatprep.subr.mxu0 0.0
        %607 = vmatpush1.msra.mxu0 %v560
        %608 = vmatprep.subr.mxu0 0.0
        %609 = vmatpush1.msra.mxu0 %v561
        %610 = vmatprep.subr.mxu0 0.0
        %611 = vmatpush1.msra.mxu0 %v562
        %612 = vmatprep.subr.mxu0 0.0
        %613 = vmatpush1.msra.mxu0 %v563
        %614 = vmatprep.subr.mxu0 0.0
        %615 = vmatpush1.msra.mxu0 %v564
        %616 = vmatprep.subr.mxu0 0.0
        %617 = vmatpush1.msra.mxu0 %v565
        %618 = vmatprep.subr.mxu0 0.0
        %619 = vmatpush1.msra.mxu0 %v566
        %620 = vmatprep.subr.mxu0 0.0
        %621 = vmatpush1.msra.mxu0 %v567
        %622 = vmatprep.subr.mxu0 0.0
        %623 = vmatpush1.msra.mxu0 %v568
        %624 = vmatprep.subr.mxu0 0.0
        %625 = vmatpush1.msra.mxu0 %v569
        %626 = vmatprep.subr.mxu0 0.0
        %627 = vmatpush1.msra.mxu0 %v570
        %628 = vmatprep.subr.mxu0 0.0
        %629 = vmatpush1.msra.mxu0 %v571
        %630 = vmatprep.subr.mxu0 0.0
        %631 = vmatpush1.msra.mxu0 %v572
        %632 = vmatprep.subr.mxu0 0.0
        %633 = vmatpush1.msra.mxu0 %v573
        %634 = vmatprep.subr.mxu0 0.0
        %635 = vmatpush1.msra.mxu0 %v574
        %636 = vmatprep.subr.mxu0 0.0
        %637 = vmatpush1.msra.mxu0 %v575
        %638 = vmatprep.subr.mxu0 0.0
        %639 = vmatpush1.msra.mxu0 %v576
        %640 = vmatprep.subr.mxu0 0.0
        %641 = vmatpush1.msra.mxu0 %v577
        %642 = vmatprep.subr.mxu0 0.0
        %643 = vmatpush1.msra.mxu0 %v578
        %644 = vmatprep.subr.mxu0 0.0
        %645 = vmatpush1.msra.mxu0 %v579
        %646 = vmatprep.subr.mxu0 0.0
        %647 = vmatpush1.msra.mxu0 %v580
        %648 = vmatprep.subr.mxu0 0.0
        %649 = vmatpush1.msra.mxu0 %v581
        %650 = vmatprep.subr.mxu0 0.0
        %651 = vmatpush1.msra.mxu0 %v582
        %652 = vmatprep.subr.mxu0 0.0
        %653 = vmatpush1.msra.mxu0 %v583
        %654 = vmatprep.subr.mxu0 0.0
        %655 = vmatpush1.msra.mxu0 %v584
        %656 = vmatprep.subr.mxu0 0.0
        %657 = vmatpush1.msra.mxu0 %v585
        %658 = vmatprep.subr.mxu0 0.0
        %659 = vmatpush1.msra.mxu0 %v586
        %660 = vmatprep.subr.mxu0 0.0
        %661 = vmatpush1.msra.mxu0 %v587
        %662 = vmatprep.subr.mxu0 0.0
        %663 = vmatpush1.msra.mxu0 %v588
        %664 = vmatprep.subr.mxu0 0.0
        %665 = vmatpush1.msra.mxu0 %v589
        %666 = vmatprep.subr.mxu0 0.0
        %667 = vmatpush1.msra.mxu0 %v590
        %668 = vmatprep.mubr.f32.mxu0 %v601
        %669 = vmatmul.mubr.f32.gmra.mrb[0].mxu0 %v598
        %v670 = vpop.f32.mrb[0].mxu0
        %v671 = vadd.f32 0.0, %v670
        %v672 = vpop.f32.mrb[0].mxu0
        %673 = vdwg.mxu0
        %v674 = vadd.f32 %v553, %v671
        %675 = vst [vmem:[%s222] sm:$0x1f] %v674
        %v676 = vlaneseq
        %v677 = vshrl.u32 %v676, 7
        %vm678 = vcmp.lt.s32.totalorder %v677, 0
        %v679 = vsub.s32 0, %v677
        %v680 = vsel %vm678, %v679, %v677
        %v681 = vmul.u32.u64.compose %v680, 2863311531
        %v682 = vextract.low.u32 %v681
        %v683 = vextract.high.u32 %v681
        %v684 = vshrl.u32 %v683, 1
        %v685 = vmul.u32 %v684, 3
        %v686 = vsub.s32 %v680, %v685
        %v687 = vsub.s32 0, %v686
        %v688 = vsel %vm678, %v687, %v686
        %vm689 = vcmp.ne.s32.totalorder %v688, 0
        %vm690 = vcmp.lt.s32.totalorder %v688, 0
        %vm691 = vmand %vm690, %vm689
        %v692 = vadd.s32 %v688, 3
        %v693 = vsel %vm691, %v692, %v688
        %vm694 = vcmp.lt.s32.totalorder %v693, 2
        %v695 = vsel %vm694, 1, 0
        %vm696 = vcmp.eq.s32.totalorder %v695, 1
        %v697 = vsel %vm696, %v674, 0.0
        %p698 = scmp.eq.s32.totalorder %s24, 0
        // Predicated region
        $region37: #{discriminator_forward.11} parent=27 // pred_check
          %p699 = pneg %p698
        $region38: #{discriminator_forward.11} parent=27 // pred_check_branch
          %701 = sbr.rel (%p699) target = $region40
        $region39: #{discriminator_forward.11} parent=27 // pred_region
          %702 = vst [vmem:[#allocation8] sm:$0x1] 0.0
          %703 = vst [vmem:[#allocation10] sm:$0x1] 0.0
        $region40: #{discriminator_forward.11} parent=27 // pred_fallthru
          _
        %v704 = vld [vmem:[#allocation8] sm:$0x1]
        %vm705 = vcmask 1044480
        %v706 = vsel %vm705, %v697, 0.0
        %v707 = vrot.slane %v706, 4
        %v708 = vadd.f32 %v706, %v707
        %v709 = vrot.slane %v708, 2
        %v710 = vadd.f32 %v708, %v709
        %v711 = vrot.slane %v710, 1
        %v712 = vadd.f32 %v710, %v711
        %v713 = vadd.f32 %v704, %v712
        %714 = vst [vmem:[#allocation8] sm:$0x1] %v713
        %v715 = vld [vmem:[#allocation10] sm:$0x1]
        %v716 = vmul.f32 %v697, %v697
        %v717 = vsel %vm705, %v716, 0.0
        %v718 = vrot.slane %v717, 4
        %v719 = vadd.f32 %v717, %v718
        %v720 = vrot.slane %v719, 2
        %v721 = vadd.f32 %v719, %v720
        %v722 = vrot.slane %v721, 1
        %v723 = vadd.f32 %v721, %v722
        %v724 = vadd.f32 %v715, %v723
        %725 = vst [vmem:[#allocation10] sm:$0x1] %v724
        %s726 = sand.u32 %s79, 1
        %s727 = scalar_lea.sflag [#allocation4], %s726
        %s728 = sand.u32 %s79, 1
        %s729 = smul.addr %s728, 8
        %s730 = scalar_lea.vmem [#allocation7], %s729
        // Predicated region
        $region41: #{discriminator_forward.11} parent=27 // pred_check
          %p731 = pneg %p89
        $region42: #{discriminator_forward.11} parent=27 // pred_check_branch
          %733 = sbr.rel (%p731) target = $region44
        $region43: #{discriminator_forward.11} parent=27 // pred_region
          %s735 = ssub.s32 128, 128
          %736 = vsyncadd %s727, %s735
          %s737 = smul.addr %s24, 128
          %s738 = scalar_lea.hbm %s2, %s737
          %s740 = sshll.u32 %s730, 4
          %s741 = int_to_ptr.vmem [resolvable:$true] %s740
          %743 = dma.vmem_to_hbm [thread:$0]  %s741, 128, %s738, %s727
        $region44: #{discriminator_forward.11} parent=27 // pred_fallthru
          _
        // Predicated region
        $region45: #{discriminator_forward.11} parent=27 // pred_check
          %p744 = pneg %p110
        $region46: #{discriminator_forward.11} parent=27 // pred_check_branch
          %746 = sbr.rel (%p744) target = $region48
        $region47: #{discriminator_forward.11} parent=27 // pred_region
          %s748 = ssub.s32 16, 16
          %749 = vsyncadd [#allocation9], %s748
          %s751 = sshll.u32 [#allocation8], 4
          %s752 = int_to_ptr.vmem [resolvable:$true] %s751
          %754 = dma.vmem_to_hbm [thread:$0]  %s752, 16, %s3, [#allocation9]
        $region48: #{discriminator_forward.11} parent=27 // pred_fallthru
          _
        // Predicated region
        $region49: #{discriminator_forward.11} parent=27 // pred_check
          %p755 = pneg %p131
        $region50: #{discriminator_forward.11} parent=27 // pred_check_branch
          %757 = sbr.rel (%p755) target = $region52
        $region51: #{discriminator_forward.11} parent=27 // pred_region
          %s759 = ssub.s32 16, 16
          %760 = vsyncadd [#allocation9], %s759
          %s762 = sshll.u32 [#allocation10], 4
          %s763 = int_to_ptr.vmem [resolvable:$true] %s762
          %765 = dma.vmem_to_hbm [thread:$0]  %s763, 16, %s4, [#allocation9]
        $region52: #{discriminator_forward.11} parent=27 // pred_fallthru
          _
        // Predicated region
        $region53: #{discriminator_forward.11} parent=27 // pred_check
          %p766 = pneg %p110
        $region54: #{discriminator_forward.11} parent=27 // pred_check_branch
          %768 = sbr.rel (%p766) target = $region56
        $region55: #{discriminator_forward.11} parent=27 // pred_region
          %769 = dma.done [#allocation9], 16
        $region56: #{discriminator_forward.11} parent=27 // pred_fallthru
          _
        // Predicated region
        $region57: #{discriminator_forward.11} parent=27 // pred_check
          %p770 = pneg %p131
        $region58: #{discriminator_forward.11} parent=27 // pred_check_branch
          %772 = sbr.rel (%p770) target = $region60
        $region59: #{discriminator_forward.11} parent=27 // pred_region
          %773 = dma.done [#allocation9], 16
        $region60: #{discriminator_forward.11} parent=27 // pred_fallthru
          _
      $region28: #{discriminator_forward.11} parent=5 // pred_fallthru
        _
      %p774 = scmp.le.s32.totalorder 2, %s19
      // Predicated region
      $region61: #{discriminator_forward.11} parent=5 // pred_check
        %p775 = pneg %p774
      $region62: #{discriminator_forward.11} parent=5 // pred_check_branch
        %777 = sbr.rel (%p775) target = $region64
      $region63: #{discriminator_forward.11} parent=5 // pred_region
        %s778 = ssub.s32 %s19, 2
        // Predicated region
        $region65: #{discriminator_forward.11} parent=63 // pred_check
          %p779 = pneg %p95
        $region66: #{discriminator_forward.11} parent=63 // pred_check_branch
          %781 = sbr.rel (%p779) target = $region68
        $region67: #{discriminator_forward.11} parent=63 // pred_region
          %s782 = sand.u32 %s80, 1
          %s783 = scalar_lea.sflag [#allocation4], %s782
          %s784 = sand.u32 %s80, 1
          %s785 = smul.addr %s784, 8
          %s786 = scalar_lea.vmem [#allocation7], %s785
          %787 = dma.done %s783, 128
        $region68: #{discriminator_forward.11} parent=63 // pred_fallthru
          _
      $region64: #{discriminator_forward.11} parent=5 // pred_fallthru
        _
    $region6: #{discriminator_forward.11} parent=1 // loop_footer
      %s23 = sadd.s32 1, %s19
    $region7: #{discriminator_forward.11} parent=1 // loop_footer_branch
      %18 = sbr.rel target = $region3
    $region8: #{discriminator_forward.11} parent=1 // loop_exit
      _
    %788 = vsyncpa [#allocation3], 1
    %s789 = scalar_lea.sflag [#allocation3], 1
    %790 = vsyncpa %s789, 1
    %791 = vsyncpa [#allocation6], 1
    %792 = vsyncpa [#allocation4], 1
    %s793 = scalar_lea.sflag [#allocation4], 1
    %794 = vsyncpa %s793, 1
    %795 = vsyncpa [#allocation9], 1

// kernel: discriminator_forward.14
$region0: #{discriminator_forward.14}
  #allocation0 [shape = 'u32[]', space=smem, size = 0x4, offset = 0x4, fixed_abs, tag = 'smem constant byte address 0x4 - core index']
  #allocation1 [shape = 'u32[144,128]{1,0:T(1,128)}', space=vmem, size = 0x12000, scoped, tag = 'internal scratch']
  %s0 = inlined_call_operand.hbm [shape: f32[2,256], index: 0, kind: input, shape index: {}]
  %s1 = inlined_call_operand.hbm [shape: f32[1,256], index: 1, kind: input, shape index: {}]
  %s2 = inlined_call_operand.hbm [shape: f32[1,256], index: 2, kind: input, shape index: {}]
  %s3 = inlined_call_operand.hbm [shape: f32[1,256], index: 3, kind: input, shape index: {}]
  %s4 = inlined_call_operand.hbm [shape: f32[1,256], index: 4, kind: input, shape index: {}]
  %s5 = inlined_call_operand.hbm [shape: f32[2,256], index: 5, kind: output, shape index: {}]
  %s6 = sld [smem:[#allocation0]]
  $region50: #{discriminator_forward.14} parent=0
    _
  %s8 = ssub.s32 1, %s6
  %s9 = scalar_select 0, %s8, %s6
  $region1: #{discriminator_forward.14} parent=0
    #allocation2 [shape = 'u8[2048]{0}', space=vmem, size = 0x800, scoped, tag = 'input window, operand 0, single buffered']
    #allocation3 [shape = 's32[1]{0}', space=sflag, size = 0x4, scoped, tag = 'scoped memory for discriminator_forward.14']
    #allocation4 [shape = 's32[1]{0}', space=sflag, size = 0x4, scoped, tag = 'scoped memory for discriminator_forward.14']
    #allocation5 [shape = 'u8[1024]{0}', space=vmem, size = 0x400, scoped, tag = 'input window, operand 1, single buffered']
    #allocation6 [shape = 's32[1]{0}', space=sflag, size = 0x4, scoped, tag = 'scoped memory for discriminator_forward.14']
    #allocation7 [shape = 'u8[1024]{0}', space=vmem, size = 0x400, scoped, tag = 'input window, operand 2, single buffered']
    #allocation8 [shape = 'u8[1024]{0}', space=vmem, size = 0x400, scoped, tag = 'input window, operand 3, single buffered']
    #allocation9 [shape = 's32[1]{0}', space=sflag, size = 0x4, scoped, tag = 'scoped memory for discriminator_forward.14']
    #allocation10 [shape = 'u8[1024]{0}', space=vmem, size = 0x400, scoped, tag = 'input window, operand 4, single buffered']
    #allocation11 [shape = 'u8[2048]{0}', space=vmem, size = 0x800, scoped, tag = 'output window, operand 0, single buffered']
    %10 = vsyncpa [#allocation3], 0
    %11 = vsyncpa [#allocation6], 0
    %12 = vsyncpa [#allocation9], 0
    %13 = vsyncpa [#allocation4], 0
    // Predicated region
    $region2: #{discriminator_forward.14} parent=1 // pred_check
      _
    $region3: #{discriminator_forward.14} parent=1 // pred_check_branch
      %15 = sbr.rel (0) target = $region5
    $region4: #{discriminator_forward.14} parent=1 // pred_region
      %s17 = ssub.s32 64, 64
      %18 = vsyncadd [#allocation3], %s17
      %s20 = sshll.u32 [#allocation2], 4
      %s21 = int_to_ptr.vmem [resolvable:$true] %s20
      %23 = dma.hbm_to_vmem [thread:$0]  %s0, 64, %s21, [#allocation3]
    $region5: #{discriminator_forward.14} parent=1 // pred_fallthru
      _
    // Predicated region
    $region6: #{discriminator_forward.14} parent=1 // pred_check
      _
    $region7: #{discriminator_forward.14} parent=1 // pred_check_branch
      %25 = sbr.rel (0) target = $region9
    $region8: #{discriminator_forward.14} parent=1 // pred_region
      %s27 = ssub.s32 32, 32
      %28 = vsyncadd [#allocation6], %s27
      %s30 = sshll.u32 [#allocation5], 4
      %s31 = int_to_ptr.vmem [resolvable:$true] %s30
      %33 = dma.hbm_to_vmem [thread:$0]  %s1, 32, %s31, [#allocation6]
    $region9: #{discriminator_forward.14} parent=1 // pred_fallthru
      _
    // Predicated region
    $region10: #{discriminator_forward.14} parent=1 // pred_check
      _
    $region11: #{discriminator_forward.14} parent=1 // pred_check_branch
      %35 = sbr.rel (0) target = $region13
    $region12: #{discriminator_forward.14} parent=1 // pred_region
      %s37 = ssub.s32 32, 32
      %38 = vsyncadd [#allocation6], %s37
      %s40 = sshll.u32 [#allocation7], 4
      %s41 = int_to_ptr.vmem [resolvable:$true] %s40
      %43 = dma.hbm_to_vmem [thread:$0]  %s2, 32, %s41, [#allocation6]
    $region13: #{discriminator_forward.14} parent=1 // pred_fallthru
      _
    // Predicated region
    $region14: #{discriminator_forward.14} parent=1 // pred_check
      _
    $region15: #{discriminator_forward.14} parent=1 // pred_check_branch
      %45 = sbr.rel (0) target = $region17
    $region16: #{discriminator_forward.14} parent=1 // pred_region
      %s47 = ssub.s32 32, 32
      %48 = vsyncadd [#allocation9], %s47
      %s50 = sshll.u32 [#allocation8], 4
      %s51 = int_to_ptr.vmem [resolvable:$true] %s50
      %53 = dma.hbm_to_vmem [thread:$0]  %s3, 32, %s51, [#allocation9]
    $region17: #{discriminator_forward.14} parent=1 // pred_fallthru
      _
    // Predicated region
    $region18: #{discriminator_forward.14} parent=1 // pred_check
      _
    $region19: #{discriminator_forward.14} parent=1 // pred_check_branch
      %55 = sbr.rel (0) target = $region21
    $region20: #{discriminator_forward.14} parent=1 // pred_region
      %s57 = ssub.s32 32, 32
      %58 = vsyncadd [#allocation9], %s57
      %s60 = sshll.u32 [#allocation10], 4
      %s61 = int_to_ptr.vmem [resolvable:$true] %s60
      %63 = dma.hbm_to_vmem [thread:$0]  %s4, 32, %s61, [#allocation9]
    $region21: #{discriminator_forward.14} parent=1 // pred_fallthru
      _
    // Predicated region
    $region22: #{discriminator_forward.14} parent=1 // pred_check
      _
    $region23: #{discriminator_forward.14} parent=1 // pred_check_branch
      %65 = sbr.rel (0) target = $region25
    $region24: #{discriminator_forward.14} parent=1 // pred_region
      %66 = dma.done [#allocation3], 64
    $region25: #{discriminator_forward.14} parent=1 // pred_fallthru
      _
    // Predicated region
    $region26: #{discriminator_forward.14} parent=1 // pred_check
      _
    $region27: #{discriminator_forward.14} parent=1 // pred_check_branch
      %68 = sbr.rel (0) target = $region29
    $region28: #{discriminator_forward.14} parent=1 // pred_region
      %69 = dma.done [#allocation6], 32
    $region29: #{discriminator_forward.14} parent=1 // pred_fallthru
      _
    // Predicated region
    $region30: #{discriminator_forward.14} parent=1 // pred_check
      _
    $region31: #{discriminator_forward.14} parent=1 // pred_check_branch
      %71 = sbr.rel (0) target = $region33
    $region32: #{discriminator_forward.14} parent=1 // pred_region
      %72 = dma.done [#allocation6], 32
    $region33: #{discriminator_forward.14} parent=1 // pred_fallthru
      _
    // Predicated region
    $region34: #{discriminator_forward.14} parent=1 // pred_check
      _
    $region35: #{discriminator_forward.14} parent=1 // pred_check_branch
      %74 = sbr.rel (0) target = $region37
    $region36: #{discriminator_forward.14} parent=1 // pred_region
      %75 = dma.done [#allocation9], 32
    $region37: #{discriminator_forward.14} parent=1 // pred_fallthru
      _
    // Predicated region
    $region38: #{discriminator_forward.14} parent=1 // pred_check
      _
    $region39: #{discriminator_forward.14} parent=1 // pred_check_branch
      %77 = sbr.rel (0) target = $region41
    $region40: #{discriminator_forward.14} parent=1 // pred_region
      %78 = dma.done [#allocation9], 32
    $region41: #{discriminator_forward.14} parent=1 // pred_fallthru
      _
    %v79 = vld [vmem:[#allocation5] sm:$0x3]
    %v80 = vmul.f32 %v79, 0.5
    %v81 = vld [vmem:[#allocation7] sm:$0x3]
    %v82 = vmul.f32 %v81, 0.5
    %v83 = vmul.f32 %v80, %v80
    %v84 = vsub.f32 %v82, %v83
    %v85 = vmax.f32 %v84, 0.0
    %v86 = vld [vmem:[#allocation8] sm:$0x3]
    %v87 = vadd.f32 %v85, 1e-05
    %v88 = vrsqrt.pop %v87
    %v89 = vmul.f32 %v86, %v88
    %v90 = vld [vmem:[#allocation10] sm:$0x3]
    %v91 = vmul.f32 %v80, %v89
    %v92 = vsub.f32 %v90, %v91
    %v93 = vld [vmem:[#allocation2] sm:$0xf]
    %v95 = vlaneseq
    %v96 = vshrl.u32 %v95, 7
    %v97 = vsub.s32 0, %v96
    %v98 = vrot.slane %v89, %v97
    %v99 = vlaneseq
    %v100 = vshrl.u32 %v99, 7
    %v101 = vsub.s32 1, %v100
    %v102 = vrot.slane %v89, %v101
    %v103 = vcombine.low %v98, %v102
    %v105 = vunpack.c.l.s4 1983009808
    %v106 = vunpack.c.0.s8 %v105
    %v107 = vlaneseq
    %v108 = vshrl.u32 %v107, 7
    %v109 = vsub.s32 %v106, %v108
    %v110 = vrot.slane %v103, %v109
    %v112 = vmul.f32 %v93, %v110
    %v114 = vlaneseq
    %v115 = vshrl.u32 %v114, 7
    %v116 = vsub.s32 0, %v115
    %v117 = vrot.slane %v92, %v116
    %v118 = vlaneseq
    %v119 = vshrl.u32 %v118, 7
    %v120 = vsub.s32 1, %v119
    %v121 = vrot.slane %v92, %v120
    %v122 = vcombine.low %v117, %v121
    %v124 = vunpack.c.l.s4 1983009808
    %v125 = vunpack.c.0.s8 %v124
    %v126 = vlaneseq
    %v127 = vshrl.u32 %v126, 7
    %v128 = vsub.s32 %v125, %v127
    %v129 = vrot.slane %v122, %v128
    %v131 = vadd.f32 %v112, %v129
    %vm132 = vcmp.gt.f32.partialorder %v131, 0.0
    %v133 = vmul.f32 %v131, 0.2
    %v134 = vsel %vm132, %v131, %v133
    %135 = vst [vmem:[#allocation11] sm:$0xf] %v134
    // Predicated region
    $region42: #{discriminator_forward.14} parent=1 // pred_check
      _
    $region43: #{discriminator_forward.14} parent=1 // pred_check_branch
      %137 = sbr.rel (0) target = $region45
    $region44: #{discriminator_forward.14} parent=1 // pred_region
      %s139 = ssub.s32 64, 64
      %140 = vsyncadd [#allocation4], %s139
      %s142 = sshll.u32 [#allocation11], 4
      %s143 = int_to_ptr.vmem [resolvable:$true] %s142
      %145 = dma.vmem_to_hbm [thread:$0]  %s143, 64, %s5, [#allocation4]
    $region45: #{discriminator_forward.14} parent=1 // pred_fallthru
      _
    // Predicated region
    $region46: #{discriminator_forward.14} parent=1 // pred_check
      _
    $region47: #{discriminator_forward.14} parent=1 // pred_check_branch
      %147 = sbr.rel (0) target = $region49
    $region48: #{discriminator_forward.14} parent=1 // pred_region
      %148 = dma.done [#allocation4], 64
    $region49: #{discriminator_forward.14} parent=1 // pred_fallthru
      _
    %149 = vsyncpa [#allocation3], 1
    %150 = vsyncpa [#allocation6], 1
    %151 = vsyncpa [#allocation9], 1
    %152 = vsyncpa [#allocation4], 1

// kernel: discriminator_forward.13
$region0: #{discriminator_forward.13}
  #allocation0 [shape = 'u32[]', space=smem, size = 0x4, offset = 0x4, fixed_abs, tag = 'smem constant byte address 0x4 - core index']
  #allocation1 [shape = 'u32[144,128]{1,0:T(1,128)}', space=vmem, size = 0x12000, scoped, tag = 'internal scratch']
  %s0 = inlined_call_operand.hbm [shape: f32[2,4,512], index: 0, kind: input, shape index: {}]
  %s1 = inlined_call_operand.hbm [shape: f32[4,512,256], index: 1, kind: input, shape index: {}]
  %s2 = inlined_call_operand.hbm [shape: f32[2,1,256], index: 2, kind: output, shape index: {0}]
  %s3 = inlined_call_operand.hbm [shape: f32[1,256], index: 3, kind: output, shape index: {1}]
  %s4 = inlined_call_operand.hbm [shape: f32[1,256], index: 4, kind: output, shape index: {2}]
  %5 = xla_tuple %s2, %s3, %s4
  %s6 = sld [smem:[#allocation0]]
  $region69: #{discriminator_forward.13} parent=0
    _
  %s8 = ssub.s32 1, %s6
  %s9 = scalar_select 0, %s8, %s6
  $region1: #{discriminator_forward.13} parent=0
    #allocation2 [shape = 'u8[16384]{0}', space=vmem, size = 0x4000, scoped, tag = 'input window, operand 0']
    #allocation3 [shape = 's32[2]{0}', space=sflag, size = 0x8, scoped, tag = 'scoped memory for discriminator_forward.13']
    #allocation4 [shape = 's32[2]{0}', space=sflag, size = 0x8, scoped, tag = 'scoped memory for discriminator_forward.13']
    #allocation5 [shape = 'u8[2097152]{0}', space=vmem, size = 0x200000, scoped, tag = 'input window, operand 1, single buffered']
    #allocation6 [shape = 's32[1]{0}', space=sflag, size = 0x4, scoped, tag = 'scoped memory for discriminator_forward.13']
    #allocation7 [shape = 'u8[2048]{0}', space=vmem, size = 0x800, scoped, tag = 'output window, operand 0']
    #allocation8 [shape = 'u8[1024]{0}', space=vmem, size = 0x400, scoped, tag = 'output window, operand 1, single buffered']
    #allocation9 [shape = 's32[1]{0}', space=sflag, size = 0x4, scoped, tag = 'scoped memory for discriminator_forward.13']
    #allocation10 [shape = 'u8[1024]{0}', space=vmem, size = 0x400, scoped, tag = 'output window, operand 2, single buffered']
    %10 = vsyncpa [#allocation3], 0
    %s11 = scalar_lea.sflag [#allocation3], 1
    %12 = vsyncpa %s11, 0
    %13 = vsyncpa [#allocation6], 0
    %14 = vsyncpa [#allocation4], 0
    %s15 = scalar_lea.sflag [#allocation4], 1
    %16 = vsyncpa %s15, 0
    %17 = vsyncpa [#allocation9], 0
    loop: start=0, step=1, limit=4
    $region2: #{discriminator_forward.13} parent=1 // loop_pre_header
      _
    $region3: #{discriminator_forward.13} parent=1 // loop_header
      %s19 = sphi 0, %s23
      %p20 = scmp.ge.s32.totalorder %s19, 4
      %s29 = sphi 0, %s31
      %s32 = sphi 0, %s29
      %s33 = sphi 0, %s32
      %s49 = sphi 0, %s33
      %s53 = sphi 0, %s53
      %s55 = sphi 0, %s53
      %s56 = sphi 0, %s55
      %s70 = sphi 0, %s56
      %s76 = sphi 0, %s78
      %s79 = sphi 0, %s76
      %s80 = sphi 0, %s79
      %s96 = sphi 0, %s80
      %s100 = sphi 0, %s100
      %s102 = sphi 0, %s100
      %s103 = sphi 0, %s102
      %s117 = sphi 0, %s103
      %s121 = sphi 0, %s121
      %s123 = sphi 0, %s121
      %s124 = sphi 0, %s123
      %s138 = sphi 0, %s124
    $region4: #{discriminator_forward.13} parent=1 // loop_header_branch
      %22 = sbr.rel (%p20) target = $region8
    $region5: #{discriminator_forward.13} parent=1 // loop_body
      %s24 = ssub.s32 %s19, 1
      %s25 = ssub.s32 %s19, 2
      %s26 = sadd.s32 %s19, 1
      %s27 = ssub.s32 %s19, %s26
      %p28 = scmp.eq.s32.totalorder %s27, 0
      %s30 = sadd.s32 %s29, 1
      %s31 = scalar_select %p28, %s29, %s30
      %p34 = pneg %p28
      %p35 = scmp.eq.s32.totalorder %s19, 1
      %p36 = por %p34, %p35
      %p37 = scmp.ne.s32.totalorder %s29, %s32
      %p38 = scmp.eq.s32.totalorder %s19, 0
      %p39 = por %p37, %p38
      %p40 = scmp.ne.s32.totalorder %s29, %s32
      %p41 = scmp.eq.s32.totalorder %s24, 1
      %p42 = por %p40, %p41
      %p43 = scmp.ne.s32.totalorder %s32, %s33
      %p44 = scmp.eq.s32.totalorder %s24, 0
      %p45 = por %p43, %p44
      %p46 = scmp.ne.s32.totalorder %s32, %s33
      %p47 = scmp.eq.s32.totalorder %s25, 1
      %p48 = por %p46, %p47
      %p50 = scmp.ne.s32.totalorder %s33, %s49
      %p51 = scmp.eq.s32.totalorder %s25, 0
      %p52 = por %p50, %p51
      %s54 = sadd.s32 %s53, 1
      %p57 = scmp.eq.s32.totalorder %s19, 1
      %p58 = scmp.ne.s32.totalorder %s53, %s55
      %p59 = scmp.eq.s32.totalorder %s19, 0
      %p60 = por %p58, %p59
      %p61 = scmp.ne.s32.totalorder %s53, %s55
      %p62 = scmp.eq.s32.totalorder %s24, 1
      %p63 = por %p61, %p62
      %p64 = scmp.ne.s32.totalorder %s55, %s56
      %p65 = scmp.eq.s32.totalorder %s24, 0
      %p66 = por %p64, %p65
      %p67 = scmp.ne.s32.totalorder %s55, %s56
      %p68 = scmp.eq.s32.totalorder %s25, 1
      %p69 = por %p67, %p68
      %p71 = scmp.ne.s32.totalorder %s56, %s70
      %p72 = scmp.eq.s32.totalorder %s25, 0
      %p73 = por %p71, %p72
      %s74 = ssub.s32 %s19, %s26
      %p75 = scmp.eq.s32.totalorder %s74, 0
      %s77 = sadd.s32 %s76, 1
      %s78 = scalar_select %p75, %s76, %s77
      %p81 = pneg %p75
      %p82 = scmp.eq.s32.totalorder %s19, 1
      %p83 = por %p81, %p82
      %p84 = scmp.ne.s32.totalorder %s76, %s79
      %p85 = scmp.eq.s32.totalorder %s19, 0
      %p86 = por %p84, %p85
      %p87 = scmp.ne.s32.totalorder %s76, %s79
      %p88 = scmp.eq.s32.totalorder %s24, 1
      %p89 = por %p87, %p88
      %p90 = scmp.ne.s32.totalorder %s79, %s80
      %p91 = scmp.eq.s32.totalorder %s24, 0
      %p92 = por %p90, %p91
      %p93 = scmp.ne.s32.totalorder %s79, %s80
      %p94 = scmp.eq.s32.totalorder %s25, 1
      %p95 = por %p93, %p94
      %p97 = scmp.ne.s32.totalorder %s80, %s96
      %p98 = scmp.eq.s32.totalorder %s25, 0
      %p99 = por %p97, %p98
      %s101 = sadd.s32 %s100, 1
      %p104 = scmp.eq.s32.totalorder %s19, 1
      %p105 = scmp.ne.s32.totalorder %s100, %s102
      %p106 = scmp.eq.s32.totalorder %s19, 0
      %p107 = por %p105, %p106
      %p108 = scmp.ne.s32.totalorder %s100, %s102
      %p109 = scmp.eq.s32.totalorder %s24, 1
      %p110 = por %p108, %p109
      %p111 = scmp.ne.s32.totalorder %s102, %s103
      %p112 = scmp.eq.s32.totalorder %s24, 0
      %p113 = por %p111, %p112
      %p114 = scmp.ne.s32.totalorder %s102, %s103
      %p115 = scmp.eq.s32.totalorder %s25, 1
      %p116 = por %p114, %p115
      %p118 = scmp.ne.s32.totalorder %s103, %s117
      %p119 = scmp.eq.s32.totalorder %s25, 0
      %p120 = por %p118, %p119
      %s122 = sadd.s32 %s121, 1
      %p125 = scmp.eq.s32.totalorder %s19, 1
      %p126 = scmp.ne.s32.totalorder %s121, %s123
      %p127 = scmp.eq.s32.totalorder %s19, 0
      %p128 = por %p126, %p127
      %p129 = scmp.ne.s32.totalorder %s121, %s123
      %p130 = scmp.eq.s32.totalorder %s24, 1
      %p131 = por %p129, %p130
      %p132 = scmp.ne.s32.totalorder %s123, %s124
      %p133 = scmp.eq.s32.totalorder %s24, 0
      %p134 = por %p132, %p133
      %p135 = scmp.ne.s32.totalorder %s123, %s124
      %p136 = scmp.eq.s32.totalorder %s25, 1
      %p137 = por %p135, %p136
      %p139 = scmp.ne.s32.totalorder %s124, %s138
      %p140 = scmp.eq.s32.totalorder %s25, 0
      %p141 = por %p139, %p140
      %p142 = scmp.le.s32.totalorder 1, %s19
      %p143 = scmp.lt.s32.totalorder %s19, 3
      %p144 = pnand %p142, %p143
      %p145 = pneg %p144
      // Predicated region
      $region9: #{discriminator_forward.13} parent=5 // pred_check
        _
      $region10: #{discriminator_forward.13} parent=5 // pred_check_branch
        %147 = sbr.rel (%p144) target = $region12
      $region11: #{discriminator_forward.13} parent=5 // pred_region
        %s148 = ssub.s32 %s19, 1
        // Predicated region
        $region13: #{discriminator_forward.13} parent=11 // pred_check
          %p149 = pneg %p66
        $region14: #{discriminator_forward.13} parent=11 // pred_check_branch
          %151 = sbr.rel (%p149) target = $region16
        $region15: #{discriminator_forward.13} parent=11 // pred_region
          %s153 = ssub.s32 65536, 65536
          %154 = vsyncadd [#allocation6], %s153
          %s155 = sshll.u32 [#allocation5], 4
          %s156 = int_to_ptr.vmem [resolvable:$true] %s155
          %161 = dma.hbm_to_vmem [thread:$0]  %s1, 65536, %s156, [#allocation6], 256, 256, 16
        $region16: #{discriminator_forward.13} parent=11 // pred_fallthru
          _
      $region12: #{discriminator_forward.13} parent=5 // pred_fallthru
        _
      %p162 = scmp.lt.s32.totalorder %s19, 2
      // Predicated region
      $region17: #{discriminator_forward.13} parent=5 // pred_check
        %p163 = pneg %p162
      $region18: #{discriminator_forward.13} parent=5 // pred_check_branch
        %165 = sbr.rel (%p163) target = $region20
      $region19: #{discriminator_forward.13} parent=5 // pred_region
        // Predicated region
        $region21: #{discriminator_forward.13} parent=19 // pred_check
          %p166 = pneg %p39
        $region22: #{discriminator_forward.13} parent=19 // pred_check_branch
          %168 = sbr.rel (%p166) target = $region24
        $region23: #{discriminator_forward.13} parent=19 // pred_region
          %s169 = sand.u32 %s29, 1
          %s170 = scalar_lea.sflag [#allocation3], %s169
          %s171 = sand.u32 %s29, 1
          %s172 = smul.addr %s171, 16
          %s173 = scalar_lea.vmem [#allocation2], %s172
          %s175 = ssub.s32 256, 256
          %176 = vsyncadd %s170, %s175
          %s177 = smul.addr %s19, 4
          %s178 = smul.addr %s177, 64
          %s179 = scalar_lea.hbm %s0, %s178
          %s181 = sshll.u32 %s173, 4
          %s182 = int_to_ptr.vmem [resolvable:$true] %s181
          %184 = dma.hbm_to_vmem [thread:$0]  %s179, 256, %s182, %s170
        $region24: #{discriminator_forward.13} parent=19 // pred_fallthru
          _
      $region20: #{discriminator_forward.13} parent=5 // pred_fallthru
        _
      %p185 = scmp.le.s32.totalorder 1, %s19
      %p186 = scmp.lt.s32.totalorder %s19, 3
      %p187 = pnand %p185, %p186
      %p188 = pneg %p187
      // Predicated region
      $region25: #{discriminator_forward.13} parent=5 // pred_check
        _
      $region26: #{discriminator_forward.13} parent=5 // pred_check_branch
        %190 = sbr.rel (%p187) target = $region28
      $region27: #{discriminator_forward.13} parent=5 // pred_region
        %s191 = ssub.s32 %s19, 1
        %s192 = sand.u32 %s32, 1
        %s193 = scalar_lea.sflag [#allocation3], %s192
        %s194 = sand.u32 %s32, 1
        %s195 = smul.addr %s194, 16
        %s196 = scalar_lea.vmem [#allocation2], %s195
        // Predicated region
        $region29: #{discriminator_forward.13} parent=27 // pred_check
          %p197 = pneg %p45
        $region30: #{discriminator_forward.13} parent=27 // pred_check_branch
          %199 = sbr.rel (%p197) target = $region32
        $region31: #{discriminator_forward.13} parent=27 // pred_region
          %200 = dma.done %s193, 256
        $region32: #{discriminator_forward.13} parent=27 // pred_fallthru
          _
        // Predicated region
        $region33: #{discriminator_forward.13} parent=27 // pred_check
          %p201 = pneg %p66
        $region34: #{discriminator_forward.13} parent=27 // pred_check_branch
          %203 = sbr.rel (%p201) target = $region36
        $region35: #{discriminator_forward.13} parent=27 // pred_region
          %204 = dma.done [#allocation6], 65536
        $region36: #{discriminator_forward.13} parent=27 // pred_fallthru
          _
        %s205 = sand.u32 %s32, 1
        %s206 = scalar_lea.sflag [#allocation3], %s205
        %s207 = sand.u32 %s32, 1
        %s208 = smul.addr %s207, 16
        %s209 = scalar_lea.vmem [#allocation2], %s208
        %p210 = pneg %p45
        %p211 = pneg %p42
        %p212 = pneg %p66
        %p213 = pneg %p63
        %p214 = pneg %p92
        %p215 = pneg %p89
        %s216 = sand.u32 %s79, 1
        %s217 = scalar_lea.sflag [#allocation4], %s216
        %s218 = sand.u32 %s79, 1
        %s219 = smul.addr %s218, 2
        %s220 = scalar_lea.vmem [#allocation7], %s219
        %p221 = pneg %p113
        %p222 = pneg %p110
        %p223 = pneg %p134
        %p224 = pneg %p131
        %v225 = vld [vmem:[%s196] ss:$4 sm:$0xf]
        %v226 = vld [vmem:[#allocation5] sm:$0xff]
        %v227 = vld [vmem:[#allocation5 + $0x8] sm:$0xff]
        %v228 = vld [vmem:[#allocation5 + $0x10] sm:$0xff]
        %v229 = vld [vmem:[#allocation5 + $0x18] sm:$0xff]
        %v230 = vld [vmem:[#allocation5 + $0x20] sm:$0xff]
        %v231 = vld [vmem:[#allocation5 + $0x28] sm:$0xff]
        %v232 = vld [vmem:[#allocation5 + $0x30] sm:$0xff]
        %v233 = vld [vmem:[#allocation5 + $0x38] sm:$0xff]
        %v234 = vld [vmem:[#allocation5 + $0x40] sm:$0xff]
        %v235 = vld [vmem:[#allocation5 + $0x48] sm:$0xff]
        %v236 = vld [vmem:[#allocation5 + $0x50] sm:$0xff]
        %v237 = vld [vmem:[#allocation5 + $0x58] sm:$0xff]
        %v238 = vld [vmem:[#allocation5 + $0x60] sm:$0xff]
        %v239 = vld [vmem:[#allocation5 + $0x68] sm:$0xff]
        %v240 = vld [vmem:[#allocation5 + $0x70] sm:$0xff]
        %v241 = vld [vmem:[#allocation5 + $0x78] sm:$0xff]
        %v242 = vld [vmem:[#allocation5 + $0x80] sm:$0xff]
        %v243 = vld [vmem:[#allocation5 + $0x88] sm:$0xff]
        %v244 = vld [vmem:[#allocation5 + $0x90] sm:$0xff]
        %v245 = vld [vmem:[#allocation5 + $0x98] sm:$0xff]
        %v246 = vld [vmem:[#allocation5 + $0xa0] sm:$0xff]
        %v247 = vld [vmem:[#allocation5 + $0xa8] sm:$0xff]
        %v248 = vld [vmem:[#allocation5 + $0xb0] sm:$0xff]
        %v249 = vld [vmem:[#allocation5 + $0xb8] sm:$0xff]
        %v250 = vld [vmem:[#allocation5 + $0xc0] sm:$0xff]
        %v251 = vld [vmem:[#allocation5 + $0xc8] sm:$0xff]
        %v252 = vld [vmem:[#allocation5 + $0xd0] sm:$0xff]
        %v253 = vld [vmem:[#allocation5 + $0xd8] sm:$0xff]
        %v254 = vld [vmem:[#allocation5 + $0xe0] sm:$0xff]
        %v255 = vld [vmem:[#allocation5 + $0xe8] sm:$0xff]
        %v256 = vld [vmem:[#allocation5 + $0xf0] sm:$0xff]
        %v257 = vld [vmem:[#allocation5 + $0xf8] sm:$0xff]
        %v258 = vld [vmem:[#allocation5 + $0x100] sm:$0xff]
        %v259 = vld [vmem:[#allocation5 + $0x108] sm:$0xff]
        %v260 = vld [vmem:[#allocation5 + $0x110] sm:$0xff]
        %v261 = vld [vmem:[#allocation5 + $0x118] sm:$0xff]
        %v262 = vld [vmem:[#allocation5 + $0x120] sm:$0xff]
        %v263 = vld [vmem:[#allocation5 + $0x128] sm:$0xff]
        %v264 = vld [vmem:[#allocation5 + $0x130] sm:$0xff]
        %v265 = vld [vmem:[#allocation5 + $0x138] sm:$0xff]
        %v266 = vld [vmem:[#allocation5 + $0x140] sm:$0xff]
        %v267 = vld [vmem:[#allocation5 + $0x148] sm:$0xff]
        %v268 = vld [vmem:[#allocation5 + $0x150] sm:$0xff]
        %v269 = vld [vmem:[#allocation5 + $0x158] sm:$0xff]
        %v270 = vld [vmem:[#allocation5 + $0x160] sm:$0xff]
        %v271 = vld [vmem:[#allocation5 + $0x168] sm:$0xff]
        %v272 = vld [vmem:[#allocation5 + $0x170] sm:$0xff]
        %v273 = vld [vmem:[#allocation5 + $0x178] sm:$0xff]
        %v274 = vld [vmem:[#allocation5 + $0x180] sm:$0xff]
        %v275 = vld [vmem:[#allocation5 + $0x188] sm:$0xff]
        %v276 = vld [vmem:[#allocation5 + $0x190] sm:$0xff]
        %v277 = vld [vmem:[#allocation5 + $0x198] sm:$0xff]
        %v278 = vld [vmem:[#allocation5 + $0x1a0] sm:$0xff]
        %v279 = vld [vmem:[#allocation5 + $0x1a8] sm:$0xff]
        %v280 = vld [vmem:[#allocation5 + $0x1b0] sm:$0xff]
        %v281 = vld [vmem:[#allocation5 + $0x1b8] sm:$0xff]
        %v282 = vld [vmem:[#allocation5 + $0x1c0] sm:$0xff]
        %v283 = vld [vmem:[#allocation5 + $0x1c8] sm:$0xff]
        %v284 = vld [vmem:[#allocation5 + $0x1d0] sm:$0xff]
        %v285 = vld [vmem:[#allocation5 + $0x1d8] sm:$0xff]
        %v286 = vld [vmem:[#allocation5 + $0x1e0] sm:$0xff]
        %v287 = vld [vmem:[#allocation5 + $0x1e8] sm:$0xff]
        %v288 = vld [vmem:[#allocation5 + $0x1f0] sm:$0xff]
        %v289 = vld [vmem:[#allocation5 + $0x1f8] sm:$0xff]
        %v290 = vld [vmem:[#allocation5 + $0x200] sm:$0xff]
        %v291 = vld [vmem:[#allocation5 + $0x208] sm:$0xff]
        %v292 = vld [vmem:[#allocation5 + $0x210] sm:$0xff]
        %v293 = vld [vmem:[#allocation5 + $0x218] sm:$0xff]
        %v294 = vld [vmem:[#allocation5 + $0x220] sm:$0xff]
        %v295 = vld [vmem:[#allocation5 + $0x228] sm:$0xff]
        %v296 = vld [vmem:[#allocation5 + $0x230] sm:$0xff]
        %v297 = vld [vmem:[#allocation5 + $0x238] sm:$0xff]
        %v298 = vld [vmem:[#allocation5 + $0x240] sm:$0xff]
        %v299 = vld [vmem:[#allocation5 + $0x248] sm:$0xff]
        %v300 = vld [vmem:[#allocation5 + $0x250] sm:$0xff]
        %v301 = vld [vmem:[#allocation5 + $0x258] sm:$0xff]
        %v302 = vld [vmem:[#allocation5 + $0x260] sm:$0xff]
        %v303 = vld [vmem:[#allocation5 + $0x268] sm:$0xff]
        %v304 = vld [vmem:[#allocation5 + $0x270] sm:$0xff]
        %v305 = vld [vmem:[#allocation5 + $0x278] sm:$0xff]
        %v306 = vld [vmem:[#allocation5 + $0x280] sm:$0xff]
        %v307 = vld [vmem:[#allocation5 + $0x288] sm:$0xff]
        %v308 = vld [vmem:[#allocation5 + $0x290] sm:$0xff]
        %v309 = vld [vmem:[#allocation5 + $0x298] sm:$0xff]
        %v310 = vld [vmem:[#allocation5 + $0x2a0] sm:$0xff]
        %v311 = vld [vmem:[#allocation5 + $0x2a8] sm:$0xff]
        %v312 = vld [vmem:[#allocation5 + $0x2b0] sm:$0xff]
        %v313 = vld [vmem:[#allocation5 + $0x2b8] sm:$0xff]
        %v314 = vld [vmem:[#allocation5 + $0x2c0] sm:$0xff]
        %v315 = vld [vmem:[#allocation5 + $0x2c8] sm:$0xff]
        %v316 = vld [vmem:[#allocation5 + $0x2d0] sm:$0xff]
        %v317 = vld [vmem:[#allocation5 + $0x2d8] sm:$0xff]
        %v318 = vld [vmem:[#allocation5 + $0x2e0] sm:$0xff]
        %v319 = vld [vmem:[#allocation5 + $0x2e8] sm:$0xff]
        %v320 = vld [vmem:[#allocation5 + $0x2f0] sm:$0xff]
        %v321 = vld [vmem:[#allocation5 + $0x2f8] sm:$0xff]
        %v322 = vld [vmem:[#allocation5 + $0x300] sm:$0xff]
        %v323 = vld [vmem:[#allocation5 + $0x308] sm:$0xff]
        %v324 = vld [vmem:[#allocation5 + $0x310] sm:$0xff]
        %v325 = vld [vmem:[#allocation5 + $0x318] sm:$0xff]
        %v326 = vld [vmem:[#allocation5 + $0x320] sm:$0xff]
        %v327 = vld [vmem:[#allocation5 + $0x328] sm:$0xff]
        %v328 = vld [vmem:[#allocation5 + $0x330] sm:$0xff]
        %v329 = vld [vmem:[#allocation5 + $0x338] sm:$0xff]
        %v330 = vld [vmem:[#allocation5 + $0x340] sm:$0xff]
        %v331 = vld [vmem:[#allocation5 + $0x348] sm:$0xff]
        %v332 = vld [vmem:[#allocation5 + $0x350] sm:$0xff]
        %v333 = vld [vmem:[#allocation5 + $0x358] sm:$0xff]
        %v334 = vld [vmem:[#allocation5 + $0x360] sm:$0xff]
        %v335 = vld [vmem:[#allocation5 + $0x368] sm:$0xff]
        %v336 = vld [vmem:[#allocation5 + $0x370] sm:$0xff]
        %v337 = vld [vmem:[#allocation5 + $0x378] sm:$0xff]
        %v338 = vld [vmem:[#allocation5 + $0x380] sm:$0xff]
        %v339 = vld [vmem:[#allocation5 + $0x388] sm:$0xff]
        %v340 = vld [vmem:[#allocation5 + $0x390] sm:$0xff]
        %v341 = vld [vmem:[#allocation5 + $0x398] sm:$0xff]
        %v342 = vld [vmem:[#allocation5 + $0x3a0] sm:$0xff]
        %v343 = vld [vmem:[#allocation5 + $0x3a8] sm:$0xff]
        %v344 = vld [vmem:[#allocation5 + $0x3b0] sm:$0xff]
        %v345 = vld [vmem:[#allocation5 + $0x3b8] sm:$0xff]
        %v346 = vld [vmem:[#allocation5 + $0x3c0] sm:$0xff]
        %v347 = vld [vmem:[#allocation5 + $0x3c8] sm:$0xff]
        %v348 = vld [vmem:[#allocation5 + $0x3d0] sm:$0xff]
        %v349 = vld [vmem:[#allocation5 + $0x3d8] sm:$0xff]
        %v350 = vld [vmem:[#allocation5 + $0x3e0] sm:$0xff]
        %v351 = vld [vmem:[#allocation5 + $0x3e8] sm:$0xff]
        %v352 = vld [vmem:[#allocation5 + $0x3f0] sm:$0xff]
        %v353 = vld [vmem:[#allocation5 + $0x3f8] sm:$0xff]
        %s354 = scalar_lea.vmem %s196, 1 [#allocation2]
        %v355 = vld [vmem:[%s354] ss:$4 sm:$0xf]
        %s356 = scalar_lea.vmem [#allocation5], 1024
        %v357 = vld [vmem:[%s356] sm:$0xff]
        %v358 = vld [vmem:[%s356 + $0x8] sm:$0xff]
        %v359 = vld [vmem:[%s356 + $0x10] sm:$0xff]
        %v360 = vld [vmem:[%s356 + $0x18] sm:$0xff]
        %v361 = vld [vmem:[%s356 + $0x20] sm:$0xff]
        %v362 = vld [vmem:[%s356 + $0x28] sm:$0xff]
        %v363 = vld [vmem:[%s356 + $0x30] sm:$0xff]
        %v364 = vld [vmem:[%s356 + $0x38] sm:$0xff]
        %v365 = vld [vmem:[%s356 + $0x40] sm:$0xff]
        %v366 = vld [vmem:[%s356 + $0x48] sm:$0xff]
        %v367 = vld [vmem:[%s356 + $0x50] sm:$0xff]
        %v368 = vld [vmem:[%s356 + $0x58] sm:$0xff]
        %v369 = vld [vmem:[%s356 + $0x60] sm:$0xff]
        %v370 = vld [vmem:[%s356 + $0x68] sm:$0xff]
        %v371 = vld [vmem:[%s356 + $0x70] sm:$0xff]
        %v372 = vld [vmem:[%s356 + $0x78] sm:$0xff]
        %v373 = vld [vmem:[%s356 + $0x80] sm:$0xff]
        %v374 = vld [vmem:[%s356 + $0x88] sm:$0xff]
        %v375 = vld [vmem:[%s356 + $0x90] sm:$0xff]
        %v376 = vld [vmem:[%s356 + $0x98] sm:$0xff]
        %v377 = vld [vmem:[%s356 + $0xa0] sm:$0xff]
        %v378 = vld [vmem:[%s356 + $0xa8] sm:$0xff]
        %v379 = vld [vmem:[%s356 + $0xb0] sm:$0xff]
        %v380 = vld [vmem:[%s356 + $0xb8] sm:$0xff]
        %v381 = vld [vmem:[%s356 + $0xc0] sm:$0xff]
        %v382 = vld [vmem:[%s356 + $0xc8] sm:$0xff]
        %v383 = vld [vmem:[%s356 + $0xd0] sm:$0xff]
        %v384 = vld [vmem:[%s356 + $0xd8] sm:$0xff]
        %v385 = vld [vmem:[%s356 + $0xe0] sm:$0xff]
        %v386 = vld [vmem:[%s356 + $0xe8] sm:$0xff]
        %v387 = vld [vmem:[%s356 + $0xf0] sm:$0xff]
        %v388 = vld [vmem:[%s356 + $0xf8] sm:$0xff]
        %v389 = vld [vmem:[%s356 + $0x100] sm:$0xff]
        %v390 = vld [vmem:[%s356 + $0x108] sm:$0xff]
        %v391 = vld [vmem:[%s356 + $0x110] sm:$0xff]
        %v392 = vld [vmem:[%s356 + $0x118] sm:$0xff]
        %v393 = vld [vmem:[%s356 + $0x120] sm:$0xff]
        %v394 = vld [vmem:[%s356 + $0x128] sm:$0xff]
        %v395 = vld [vmem:[%s356 + $0x130] sm:$0xff]
        %v396 = vld [vmem:[%s356 + $0x138] sm:$0xff]
        %v397 = vld [vmem:[%s356 + $0x140] sm:$0xff]
        %v398 = vld [vmem:[%s356 + $0x148] sm:$0xff]
        %v399 = vld [vmem:[%s356 + $0x150] sm:$0xff]
        %v400 = vld [vmem:[%s356 + $0x158] sm:$0xff]
        %v401 = vld [vmem:[%s356 + $0x160] sm:$0xff]
        %v402 = vld [vmem:[%s356 + $0x168] sm:$0xff]
        %v403 = vld [vmem:[%s356 + $0x170] sm:$0xff]
        %v404 = vld [vmem:[%s356 + $0x178] sm:$0xff]
        %v405 = vld [vmem:[%s356 + $0x180] sm:$0xff]
        %v406 = vld [vmem:[%s356 + $0x188] sm:$0xff]
        %v407 = vld [vmem:[%s356 + $0x190] sm:$0xff]
        %v408 = vld [vmem:[%s356 + $0x198] sm:$0xff]
        %v409 = vld [vmem:[%s356 + $0x1a0] sm:$0xff]
        %v410 = vld [vmem:[%s356 + $0x1a8] sm:$0xff]
        %v411 = vld [vmem:[%s356 + $0x1b0] sm:$0xff]
        %v412 = vld [vmem:[%s356 + $0x1b8] sm:$0xff]
        %v413 = vld [vmem:[%s356 + $0x1c0] sm:$0xff]
        %v414 = vld [vmem:[%s356 + $0x1c8] sm:$0xff]
        %v415 = vld [vmem:[%s356 + $0x1d0] sm:$0xff]
        %v416 = vld [vmem:[%s356 + $0x1d8] sm:$0xff]
        %v417 = vld [vmem:[%s356 + $0x1e0] sm:$0xff]
        %v418 = vld [vmem:[%s356 + $0x1e8] sm:$0xff]
        %v419 = vld [vmem:[%s356 + $0x1f0] sm:$0xff]
        %v420 = vld [vmem:[%s356 + $0x1f8] sm:$0xff]
        %v421 = vld [vmem:[%s356 + $0x200] sm:$0xff]
        %v422 = vld [vmem:[%s356 + $0x208] sm:$0xff]
        %v423 = vld [vmem:[%s356 + $0x210] sm:$0xff]
        %v424 = vld [vmem:[%s356 + $0x218] sm:$0xff]
        %v425 = vld [vmem:[%s356 + $0x220] sm:$0xff]
        %v426 = vld [vmem:[%s356 + $0x228] sm:$0xff]
        %v427 = vld [vmem:[%s356 + $0x230] sm:$0xff]
        %v428 = vld [vmem:[%s356 + $0x238] sm:$0xff]
        %v429 = vld [vmem:[%s356 + $0x240] sm:$0xff]
        %v430 = vld [vmem:[%s356 + $0x248] sm:$0xff]
        %v431 = vld [vmem:[%s356 + $0x250] sm:$0xff]
        %v432 = vld [vmem:[%s356 + $0x258] sm:$0xff]
        %v433 = vld [vmem:[%s356 + $0x260] sm:$0xff]
        %v434 = vld [vmem:[%s356 + $0x268] sm:$0xff]
        %v435 = vld [vmem:[%s356 + $0x270] sm:$0xff]
        %v436 = vld [vmem:[%s356 + $0x278] sm:$0xff]
        %v437 = vld [vmem:[%s356 + $0x280] sm:$0xff]
        %v438 = vld [vmem:[%s356 + $0x288] sm:$0xff]
        %v439 = vld [vmem:[%s356 + $0x290] sm:$0xff]
        %v440 = vld [vmem:[%s356 + $0x298] sm:$0xff]
        %v441 = vld [vmem:[%s356 + $0x2a0] sm:$0xff]
        %v442 = vld [vmem:[%s356 + $0x2a8] sm:$0xff]
        %v443 = vld [vmem:[%s356 + $0x2b0] sm:$0xff]
        %v444 = vld [vmem:[%s356 + $0x2b8] sm:$0xff]
        %v445 = vld [vmem:[%s356 + $0x2c0] sm:$0xff]
        %v446 = vld [vmem:[%s356 + $0x2c8] sm:$0xff]
        %v447 = vld [vmem:[%s356 + $0x2d0] sm:$0xff]
        %v448 = vld [vmem:[%s356 + $0x2d8] sm:$0xff]
        %v449 = vld [vmem:[%s356 + $0x2e0] sm:$0xff]
        %v450 = vld [vmem:[%s356 + $0x2e8] sm:$0xff]
        %v451 = vld [vmem:[%s356 + $0x2f0] sm:$0xff]
        %v452 = vld [vmem:[%s356 + $0x2f8] sm:$0xff]
        %v453 = vld [vmem:[%s356 + $0x300] sm:$0xff]
        %v454 = vld [vmem:[%s356 + $0x308] sm:$0xff]
        %v455 = vld [vmem:[%s356 + $0x310] sm:$0xff]
        %v456 = vld [vmem:[%s356 + $0x318] sm:$0xff]
        %v457 = vld [vmem:[%s356 + $0x320] sm:$0xff]
        %v458 = vld [vmem:[%s356 + $0x328] sm:$0xff]
        %v459 = vld [vmem:[%s356 + $0x330] sm:$0xff]
        %v460 = vld [vmem:[%s356 + $0x338] sm:$0xff]
        %v461 = vld [vmem:[%s356 + $0x340] sm:$0xff]
        %v462 = vld [vmem:[%s356 + $0x348] sm:$0xff]
        %v463 = vld [vmem:[%s356 + $0x350] sm:$0xff]
        %v464 = vld [vmem:[%s356 + $0x358] sm:$0xff]
        %v465 = vld [vmem:[%s356 + $0x360] sm:$0xff]
        %v466 = vld [vmem:[%s356 + $0x368] sm:$0xff]
        %v467 = vld [vmem:[%s356 + $0x370] sm:$0xff]
        %v468 = vld [vmem:[%s356 + $0x378] sm:$0xff]
        %v469 = vld [vmem:[%s356 + $0x380] sm:$0xff]
        %v470 = vld [vmem:[%s356 + $0x388] sm:$0xff]
        %v471 = vld [vmem:[%s356 + $0x390] sm:$0xff]
        %v472 = vld [vmem:[%s356 + $0x398] sm:$0xff]
        %v473 = vld [vmem:[%s356 + $0x3a0] sm:$0xff]
        %v474 = vld [vmem:[%s356 + $0x3a8] sm:$0xff]
        %v475 = vld [vmem:[%s356 + $0x3b0] sm:$0xff]
        %v476 = vld [vmem:[%s356 + $0x3b8] sm:$0xff]
        %v477 = vld [vmem:[%s356 + $0x3c0] sm:$0xff]
        %v478 = vld [vmem:[%s356 + $0x3c8] sm:$0xff]
        %v479 = vld [vmem:[%s356 + $0x3d0] sm:$0xff]
        %v480 = vld [vmem:[%s356 + $0x3d8] sm:$0xff]
        %v481 = vld [vmem:[%s356 + $0x3e0] sm:$0xff]
        %v482 = vld [vmem:[%s356 + $0x3e8] sm:$0xff]
        %v483 = vld [vmem:[%s356 + $0x3f0] sm:$0xff]
        %v484 = vld [vmem:[%s356 + $0x3f8] sm:$0xff]
        %v486 = vlaneseq
        %v487 = vshrl.u32 %v486, 7
        %v488 = vsub.s32 0, %v487
        %v489 = vrot.slane %v355, %v488
        %v490 = vlaneseq
        %v491 = vshrl.u32 %v490, 7
        %v492 = vsub.s32 1, %v491
        %v493 = vrot.slane %v355, %v492
        %v494 = vlaneseq
        %v495 = vshrl.u32 %v494, 7
        %v496 = vsub.s32 2, %v495
        %v497 = vrot.slane %v355, %v496
        %v498 = vlaneseq
        %v499 = vshrl.u32 %v498, 7
        %v500 = vsub.s32 3, %v499
        %v501 = vrot.slane %v355, %v500
        %506 = vmatprep.subr.mxu0 %v358
        %507 = vmatpush1.msra.mxu0 %v357
        %508 = vmatprep.subr.mxu0 %v360
        %509 = vmatpush1.msra.mxu0 %v359
        %510 = vmatprep.subr.mxu0 %v362
        %511 = vmatpush1.msra.mxu0 %v361
        %512 = vmatprep.subr.mxu0 %v364
        %513 = vmatpush1.msra.mxu0 %v363
        %514 = vmatprep.subr.mxu0 %v366
        %515 = vmatpush1.msra.mxu0 %v365
        %516 = vmatprep.subr.mxu0 %v368
        %517 = vmatpush1.msra.mxu0 %v367
        %518 = vmatprep.subr.mxu0 %v370
        %519 = vmatpush1.msra.mxu0 %v369
        %520 = vmatprep.subr.mxu0 %v372
        %521 = vmatpush1.msra.mxu0 %v371
        %522 = vmatprep.subr.mxu0 %v374
        %523 = vmatpush1.msra.mxu0 %v373
        %524 = vmatprep.subr.mxu0 %v376
        %525 = vmatpush1.msra.mxu0 %v375
        %526 = vmatprep.subr.mxu0 %v378
        %527 = vmatpush1.msra.mxu0 %v377
        %528 = vmatprep.subr.mxu0 %v380
        %529 = vmatpush1.msra.mxu0 %v379
        %530 = vmatprep.subr.mxu0 %v382
        %531 = vmatpush1.msra.mxu0 %v381
        %532 = vmatprep.subr.mxu0 %v384
        %533 = vmatpush1.msra.mxu0 %v383
        %534 = vmatprep.subr.mxu0 %v386
        %535 = vmatpush1.msra.mxu0 %v385
        %536 = vmatprep.subr.mxu0 %v388
        %537 = vmatpush1.msra.mxu0 %v387
        %538 = vmatprep.subr.mxu0 %v390
        %539 = vmatpush1.msra.mxu0 %v389
        %540 = vmatprep.subr.mxu0 %v392
        %541 = vmatpush1.msra.mxu0 %v391
        %542 = vmatprep.subr.mxu0 %v394
        %543 = vmatpush1.msra.mxu0 %v393
        %544 = vmatprep.subr.mxu0 %v396
        %545 = vmatpush1.msra.mxu0 %v395
        %546 = vmatprep.subr.mxu0 %v398
        %547 = vmatpush1.msra.mxu0 %v397
        %548 = vmatprep.subr.mxu0 %v400
        %549 = vmatpush1.msra.mxu0 %v399
        %550 = vmatprep.subr.mxu0 %v402
        %551 = vmatpush1.msra.mxu0 %v401
        %552 = vmatprep.subr.mxu0 %v404
        %553 = vmatpush1.msra.mxu0 %v403
        %554 = vmatprep.subr.mxu0 %v406
        %555 = vmatpush1.msra.mxu0 %v405
        %556 = vmatprep.subr.mxu0 %v408
        %557 = vmatpush1.msra.mxu0 %v407
        %558 = vmatprep.subr.mxu0 %v410
        %559 = vmatpush1.msra.mxu0 %v409
        %560 = vmatprep.subr.mxu0 %v412
        %561 = vmatpush1.msra.mxu0 %v411
        %562 = vmatprep.subr.mxu0 %v414
        %563 = vmatpush1.msra.mxu0 %v413
        %564 = vmatprep.subr.mxu0 %v416
        %565 = vmatpush1.msra.mxu0 %v415
        %566 = vmatprep.subr.mxu0 %v418
        %567 = vmatpush1.msra.mxu0 %v417
        %568 = vmatprep.subr.mxu0 %v420
        %569 = vmatpush1.msra.mxu0 %v419
        %570 = vmatprep.mubr.f32.mxu0 %v493
        %571 = vmatmul.mubr.f32.gmra.mrb[0].mxu0 %v489
        %v572 = vpop.f32.mrb[0].mxu0
        %v573 = vadd.f32 0.0, %v572
        %v574 = vpop.f32.mrb[0].mxu0
        %v575 = vadd.f32 0.0, %v574
        %576 = vdwg.mxu0
        %577 = vmatprep.subr.mxu0 %v422
        %578 = vmatpush1.msra.mxu0 %v421
        %579 = vmatprep.subr.mxu0 %v424
        %580 = vmatpush1.msra.mxu0 %v423
        %581 = vmatprep.subr.mxu0 %v426
        %582 = vmatpush1.msra.mxu0 %v425
        %583 = vmatprep.subr.mxu0 %v428
        %584 = vmatpush1.msra.mxu0 %v427
        %585 = vmatprep.subr.mxu0 %v430
        %586 = vmatpush1.msra.mxu0 %v429
        %587 = vmatprep.subr.mxu0 %v432
        %588 = vmatpush1.msra.mxu0 %v431
        %589 = vmatprep.subr.mxu0 %v434
        %590 = vmatpush1.msra.mxu0 %v433
        %591 = vmatprep.subr.mxu0 %v436
        %592 = vmatpush1.msra.mxu0 %v435
        %593 = vmatprep.subr.mxu0 %v438
        %594 = vmatpush1.msra.mxu0 %v437
        %595 = vmatprep.subr.mxu0 %v440
        %596 = vmatpush1.msra.mxu0 %v439
        %597 = vmatprep.subr.mxu0 %v442
        %598 = vmatpush1.msra.mxu0 %v441
        %599 = vmatprep.subr.mxu0 %v444
        %600 = vmatpush1.msra.mxu0 %v443
        %601 = vmatprep.subr.mxu0 %v446
        %602 = vmatpush1.msra.mxu0 %v445
        %603 = vmatprep.subr.mxu0 %v448
        %604 = vmatpush1.msra.mxu0 %v447
        %605 = vmatprep.subr.mxu0 %v450
        %606 = vmatpush1.msra.mxu0 %v449
        %607 = vmatprep.subr.mxu0 %v452
        %608 = vmatpush1.msra.mxu0 %v451
        %609 = vmatprep.subr.mxu0 %v454
        %610 = vmatpush1.msra.mxu0 %v453
        %611 = vmatprep.subr.mxu0 %v456
        %612 = vmatpush1.msra.mxu0 %v455
        %613 = vmatprep.subr.mxu0 %v458
        %614 = vmatpush1.msra.mxu0 %v457
        %615 = vmatprep.subr.mxu0 %v460
        %616 = vmatpush1.msra.mxu0 %v459
        %617 = vmatprep.subr.mxu0 %v462
        %618 = vmatpush1.msra.mxu0 %v461
        %619 = vmatprep.subr.mxu0 %v464
        %620 = vmatpush1.msra.mxu0 %v463
        %621 = vmatprep.subr.mxu0 %v466
        %622 = vmatpush1.msra.mxu0 %v465
        %623 = vmatprep.subr.mxu0 %v468
        %624 = vmatpush1.msra.mxu0 %v467
        %625 = vmatprep.subr.mxu0 %v470
        %626 = vmatpush1.msra.mxu0 %v469
        %627 = vmatprep.subr.mxu0 %v472
        %628 = vmatpush1.msra.mxu0 %v471
        %629 = vmatprep.subr.mxu0 %v474
        %630 = vmatpush1.msra.mxu0 %v473
        %631 = vmatprep.subr.mxu0 %v476
        %632 = vmatpush1.msra.mxu0 %v475
        %633 = vmatprep.subr.mxu0 %v478
        %634 = vmatpush1.msra.mxu0 %v477
        %635 = vmatprep.subr.mxu0 %v480
        %636 = vmatpush1.msra.mxu0 %v479
        %637 = vmatprep.subr.mxu0 %v482
        %638 = vmatpush1.msra.mxu0 %v481
        %639 = vmatprep.subr.mxu0 %v484
        %640 = vmatpush1.msra.mxu0 %v483
        %641 = vmatprep.mubr.f32.mxu0 %v501
        %642 = vmatmul.mubr.f32.gmra.mrb[0].mxu0 %v497
        %v643 = vpop.f32.mrb[0].mxu0
        %v644 = vadd.f32 %v573, %v643
        %v645 = vpop.f32.mrb[0].mxu0
        %v646 = vadd.f32 %v575, %v645
        %647 = vdwg.mxu0
        %v649 = vlaneseq
        %v650 = vshrl.u32 %v649, 7
        %v651 = vsub.s32 0, %v650
        %v652 = vrot.slane %v225, %v651
        %v653 = vlaneseq
        %v654 = vshrl.u32 %v653, 7
        %v655 = vsub.s32 1, %v654
        %v656 = vrot.slane %v225, %v655
        %v657 = vlaneseq
        %v658 = vshrl.u32 %v657, 7
        %v659 = vsub.s32 2, %v658
        %v660 = vrot.slane %v225, %v659
        %v661 = vlaneseq
        %v662 = vshrl.u32 %v661, 7
        %v663 = vsub.s32 3, %v662
        %v664 = vrot.slane %v225, %v663
        %669 = vmatprep.subr.mxu0 %v227
        %670 = vmatpush1.msra.mxu0 %v226
        %671 = vmatprep.subr.mxu0 %v229
        %672 = vmatpush1.msra.mxu0 %v228
        %673 = vmatprep.subr.mxu0 %v231
        %674 = vmatpush1.msra.mxu0 %v230
        %675 = vmatprep.subr.mxu0 %v233
        %676 = vmatpush1.msra.mxu0 %v232
        %677 = vmatprep.subr.mxu0 %v235
        %678 = vmatpush1.msra.mxu0 %v234
        %679 = vmatprep.subr.mxu0 %v237
        %680 = vmatpush1.msra.mxu0 %v236
        %681 = vmatprep.subr.mxu0 %v239
        %682 = vmatpush1.msra.mxu0 %v238
        %683 = vmatprep.subr.mxu0 %v241
        %684 = vmatpush1.msra.mxu0 %v240
        %685 = vmatprep.subr.mxu0 %v243
        %686 = vmatpush1.msra.mxu0 %v242
        %687 = vmatprep.subr.mxu0 %v245
        %688 = vmatpush1.msra.mxu0 %v244
        %689 = vmatprep.subr.mxu0 %v247
        %690 = vmatpush1.msra.mxu0 %v246
        %691 = vmatprep.subr.mxu0 %v249
        %692 = vmatpush1.msra.mxu0 %v248
        %693 = vmatprep.subr.mxu0 %v251
        %694 = vmatpush1.msra.mxu0 %v250
        %695 = vmatprep.subr.mxu0 %v253
        %696 = vmatpush1.msra.mxu0 %v252
        %697 = vmatprep.subr.mxu0 %v255
        %698 = vmatpush1.msra.mxu0 %v254
        %699 = vmatprep.subr.mxu0 %v257
        %700 = vmatpush1.msra.mxu0 %v256
        %701 = vmatprep.subr.mxu0 %v259
        %702 = vmatpush1.msra.mxu0 %v258
        %703 = vmatprep.subr.mxu0 %v261
        %704 = vmatpush1.msra.mxu0 %v260
        %705 = vmatprep.subr.mxu0 %v263
        %706 = vmatpush1.msra.mxu0 %v262
        %707 = vmatprep.subr.mxu0 %v265
        %708 = vmatpush1.msra.mxu0 %v264
        %709 = vmatprep.subr.mxu0 %v267
        %710 = vmatpush1.msra.mxu0 %v266
        %711 = vmatprep.subr.mxu0 %v269
        %712 = vmatpush1.msra.mxu0 %v268
        %713 = vmatprep.subr.mxu0 %v271
        %714 = vmatpush1.msra.mxu0 %v270
        %715 = vmatprep.subr.mxu0 %v273
        %716 = vmatpush1.msra.mxu0 %v272
        %717 = vmatprep.subr.mxu0 %v275
        %718 = vmatpush1.msra.mxu0 %v274
        %719 = vmatprep.subr.mxu0 %v277
        %720 = vmatpush1.msra.mxu0 %v276
        %721 = vmatprep.subr.mxu0 %v279
        %722 = vmatpush1.msra.mxu0 %v278
        %723 = vmatprep.subr.mxu0 %v281
        %724 = vmatpush1.msra.mxu0 %v280
        %725 = vmatprep.subr.mxu0 %v283
        %726 = vmatpush1.msra.mxu0 %v282
        %727 = vmatprep.subr.mxu0 %v285
        %728 = vmatpush1.msra.mxu0 %v284
        %729 = vmatprep.subr.mxu0 %v287
        %730 = vmatpush1.msra.mxu0 %v286
        %731 = vmatprep.subr.mxu0 %v289
        %732 = vmatpush1.msra.mxu0 %v288
        %733 = vmatprep.mubr.f32.mxu0 %v656
        %734 = vmatmul.mubr.f32.gmra.mrb[0].mxu0 %v652
        %v735 = vpop.f32.mrb[0].mxu0
        %v736 = vadd.f32 %v644, %v735
        %v737 = vpop.f32.mrb[0].mxu0
        %v738 = vadd.f32 %v646, %v737
        %739 = vdwg.mxu0
        %740 = vmatprep.subr.mxu0 %v291
        %741 = vmatpush1.msra.mxu0 %v290
        %742 = vmatprep.subr.mxu0 %v293
        %743 = vmatpush1.msra.mxu0 %v292
        %744 = vmatprep.subr.mxu0 %v295
        %745 = vmatpush1.msra.mxu0 %v294
        %746 = vmatprep.subr.mxu0 %v297
        %747 = vmatpush1.msra.mxu0 %v296
        %748 = vmatprep.subr.mxu0 %v299
        %749 = vmatpush1.msra.mxu0 %v298
        %750 = vmatprep.subr.mxu0 %v301
        %751 = vmatpush1.msra.mxu0 %v300
        %752 = vmatprep.subr.mxu0 %v303
        %753 = vmatpush1.msra.mxu0 %v302
        %754 = vmatprep.subr.mxu0 %v305
        %755 = vmatpush1.msra.mxu0 %v304
        %756 = vmatprep.subr.mxu0 %v307
        %757 = vmatpush1.msra.mxu0 %v306
        %758 = vmatprep.subr.mxu0 %v309
        %759 = vmatpush1.msra.mxu0 %v308
        %760 = vmatprep.subr.mxu0 %v311
        %761 = vmatpush1.msra.mxu0 %v310
        %762 = vmatprep.subr.mxu0 %v313
        %763 = vmatpush1.msra.mxu0 %v312
        %764 = vmatprep.subr.mxu0 %v315
        %765 = vmatpush1.msra.mxu0 %v314
        %766 = vmatprep.subr.mxu0 %v317
        %767 = vmatpush1.msra.mxu0 %v316
        %768 = vmatprep.subr.mxu0 %v319
        %769 = vmatpush1.msra.mxu0 %v318
        %770 = vmatprep.subr.mxu0 %v321
        %771 = vmatpush1.msra.mxu0 %v320
        %772 = vmatprep.subr.mxu0 %v323
        %773 = vmatpush1.msra.mxu0 %v322
        %774 = vmatprep.subr.mxu0 %v325
        %775 = vmatpush1.msra.mxu0 %v324
        %776 = vmatprep.subr.mxu0 %v327
        %777 = vmatpush1.msra.mxu0 %v326
        %778 = vmatprep.subr.mxu0 %v329
        %779 = vmatpush1.msra.mxu0 %v328
        %780 = vmatprep.subr.mxu0 %v331
        %781 = vmatpush1.msra.mxu0 %v330
        %782 = vmatprep.subr.mxu0 %v333
        %783 = vmatpush1.msra.mxu0 %v332
        %784 = vmatprep.subr.mxu0 %v335
        %785 = vmatpush1.msra.mxu0 %v334
        %786 = vmatprep.subr.mxu0 %v337
        %787 = vmatpush1.msra.mxu0 %v336
        %788 = vmatprep.subr.mxu0 %v339
        %789 = vmatpush1.msra.mxu0 %v338
        %790 = vmatprep.subr.mxu0 %v341
        %791 = vmatpush1.msra.mxu0 %v340
        %792 = vmatprep.subr.mxu0 %v343
        %793 = vmatpush1.msra.mxu0 %v342
        %794 = vmatprep.subr.mxu0 %v345
        %795 = vmatpush1.msra.mxu0 %v344
        %796 = vmatprep.subr.mxu0 %v347
        %797 = vmatpush1.msra.mxu0 %v346
        %798 = vmatprep.subr.mxu0 %v349
        %799 = vmatpush1.msra.mxu0 %v348
        %800 = vmatprep.subr.mxu0 %v351
        %801 = vmatpush1.msra.mxu0 %v350
        %802 = vmatprep.subr.mxu0 %v353
        %803 = vmatpush1.msra.mxu0 %v352
        %804 = vmatprep.mubr.f32.mxu0 %v664
        %805 = vmatmul.mubr.f32.gmra.mrb[0].mxu0 %v660
        %v806 = vpop.f32.mrb[0].mxu0
        %v807 = vadd.f32 %v736, %v806
        %v808 = vpop.f32.mrb[0].mxu0
        %v809 = vadd.f32 %v738, %v808
        %810 = vdwg.mxu0
        %s811 = scalar_lea.vmem %s196, 2 [#allocation2]
        %v812 = vld [vmem:[%s811] ss:$4 sm:$0xf]
        %s813 = scalar_lea.vmem [#allocation5], 2048
        %v814 = vld [vmem:[%s813] sm:$0xff]
        %v815 = vld [vmem:[%s813 + $0x8] sm:$0xff]
        %v816 = vld [vmem:[%s813 + $0x10] sm:$0xff]
        %v817 = vld [vmem:[%s813 + $0x18] sm:$0xff]
        %v818 = vld [vmem:[%s813 + $0x20] sm:$0xff]
        %v819 = vld [vmem:[%s813 + $0x28] sm:$0xff]
        %v820 = vld [vmem:[%s813 + $0x30] sm:$0xff]
        %v821 = vld [vmem:[%s813 + $0x38] sm:$0xff]
        %v822 = vld [vmem:[%s813 + $0x40] sm:$0xff]
        %v823 = vld [vmem:[%s813 + $0x48] sm:$0xff]
        %v824 = vld [vmem:[%s813 + $0x50] sm:$0xff]
        %v825 = vld [vmem:[%s813 + $0x58] sm:$0xff]
        %v826 = vld [vmem:[%s813 + $0x60] sm:$0xff]
        %v827 = vld [vmem:[%s813 + $0x68] sm:$0xff]
        %v828 = vld [vmem:[%s813 + $0x70] sm:$0xff]
        %v829 = vld [vmem:[%s813 + $0x78] sm:$0xff]
        %v830 = vld [vmem:[%s813 + $0x80] sm:$0xff]
        %v831 = vld [vmem:[%s813 + $0x88] sm:$0xff]
        %v832 = vld [vmem:[%s813 + $0x90] sm:$0xff]
        %v833 = vld [vmem:[%s813 + $0x98] sm:$0xff]
        %v834 = vld [vmem:[%s813 + $0xa0] sm:$0xff]
        %v835 = vld [vmem:[%s813 + $0xa8] sm:$0xff]
        %v836 = vld [vmem:[%s813 + $0xb0] sm:$0xff]
        %v837 = vld [vmem:[%s813 + $0xb8] sm:$0xff]
        %v838 = vld [vmem:[%s813 + $0xc0] sm:$0xff]
        %v839 = vld [vmem:[%s813 + $0xc8] sm:$0xff]
        %v840 = vld [vmem:[%s813 + $0xd0] sm:$0xff]
        %v841 = vld [vmem:[%s813 + $0xd8] sm:$0xff]
        %v842 = vld [vmem:[%s813 + $0xe0] sm:$0xff]
        %v843 = vld [vmem:[%s813 + $0xe8] sm:$0xff]
        %v844 = vld [vmem:[%s813 + $0xf0] sm:$0xff]
        %v845 = vld [vmem:[%s813 + $0xf8] sm:$0xff]
        %v846 = vld [vmem:[%s813 + $0x100] sm:$0xff]
        %v847 = vld [vmem:[%s813 + $0x108] sm:$0xff]
        %v848 = vld [vmem:[%s813 + $0x110] sm:$0xff]
        %v849 = vld [vmem:[%s813 + $0x118] sm:$0xff]
        %v850 = vld [vmem:[%s813 + $0x120] sm:$0xff]
        %v851 = vld [vmem:[%s813 + $0x128] sm:$0xff]
        %v852 = vld [vmem:[%s813 + $0x130] sm:$0xff]
        %v853 = vld [vmem:[%s813 + $0x138] sm:$0xff]
        %v854 = vld [vmem:[%s813 + $0x140] sm:$0xff]
        %v855 = vld [vmem:[%s813 + $0x148] sm:$0xff]
        %v856 = vld [vmem:[%s813 + $0x150] sm:$0xff]
        %v857 = vld [vmem:[%s813 + $0x158] sm:$0xff]
        %v858 = vld [vmem:[%s813 + $0x160] sm:$0xff]
        %v859 = vld [vmem:[%s813 + $0x168] sm:$0xff]
        %v860 = vld [vmem:[%s813 + $0x170] sm:$0xff]
        %v861 = vld [vmem:[%s813 + $0x178] sm:$0xff]
        %v862 = vld [vmem:[%s813 + $0x180] sm:$0xff]
        %v863 = vld [vmem:[%s813 + $0x188] sm:$0xff]
        %v864 = vld [vmem:[%s813 + $0x190] sm:$0xff]
        %v865 = vld [vmem:[%s813 + $0x198] sm:$0xff]
        %v866 = vld [vmem:[%s813 + $0x1a0] sm:$0xff]
        %v867 = vld [vmem:[%s813 + $0x1a8] sm:$0xff]
        %v868 = vld [vmem:[%s813 + $0x1b0] sm:$0xff]
        %v869 = vld [vmem:[%s813 + $0x1b8] sm:$0xff]
        %v870 = vld [vmem:[%s813 + $0x1c0] sm:$0xff]
        %v871 = vld [vmem:[%s813 + $0x1c8] sm:$0xff]
        %v872 = vld [vmem:[%s813 + $0x1d0] sm:$0xff]
        %v873 = vld [vmem:[%s813 + $0x1d8] sm:$0xff]
        %v874 = vld [vmem:[%s813 + $0x1e0] sm:$0xff]
        %v875 = vld [vmem:[%s813 + $0x1e8] sm:$0xff]
        %v876 = vld [vmem:[%s813 + $0x1f0] sm:$0xff]
        %v877 = vld [vmem:[%s813 + $0x1f8] sm:$0xff]
        %v878 = vld [vmem:[%s813 + $0x200] sm:$0xff]
        %v879 = vld [vmem:[%s813 + $0x208] sm:$0xff]
        %v880 = vld [vmem:[%s813 + $0x210] sm:$0xff]
        %v881 = vld [vmem:[%s813 + $0x218] sm:$0xff]
        %v882 = vld [vmem:[%s813 + $0x220] sm:$0xff]
        %v883 = vld [vmem:[%s813 + $0x228] sm:$0xff]
        %v884 = vld [vmem:[%s813 + $0x230] sm:$0xff]
        %v885 = vld [vmem:[%s813 + $0x238] sm:$0xff]
        %v886 = vld [vmem:[%s813 + $0x240] sm:$0xff]
        %v887 = vld [vmem:[%s813 + $0x248] sm:$0xff]
        %v888 = vld [vmem:[%s813 + $0x250] sm:$0xff]
        %v889 = vld [vmem:[%s813 + $0x258] sm:$0xff]
        %v890 = vld [vmem:[%s813 + $0x260] sm:$0xff]
        %v891 = vld [vmem:[%s813 + $0x268] sm:$0xff]
        %v892 = vld [vmem:[%s813 + $0x270] sm:$0xff]
        %v893 = vld [vmem:[%s813 + $0x278] sm:$0xff]
        %v894 = vld [vmem:[%s813 + $0x280] sm:$0xff]
        %v895 = vld [vmem:[%s813 + $0x288] sm:$0xff]
        %v896 = vld [vmem:[%s813 + $0x290] sm:$0xff]
        %v897 = vld [vmem:[%s813 + $0x298] sm:$0xff]
        %v898 = vld [vmem:[%s813 + $0x2a0] sm:$0xff]
        %v899 = vld [vmem:[%s813 + $0x2a8] sm:$0xff]
        %v900 = vld [vmem:[%s813 + $0x2b0] sm:$0xff]
        %v901 = vld [vmem:[%s813 + $0x2b8] sm:$0xff]
        %v902 = vld [vmem:[%s813 + $0x2c0] sm:$0xff]
        %v903 = vld [vmem:[%s813 + $0x2c8] sm:$0xff]
        %v904 = vld [vmem:[%s813 + $0x2d0] sm:$0xff]
        %v905 = vld [vmem:[%s813 + $0x2d8] sm:$0xff]
        %v906 = vld [vmem:[%s813 + $0x2e0] sm:$0xff]
        %v907 = vld [vmem:[%s813 + $0x2e8] sm:$0xff]
        %v908 = vld [vmem:[%s813 + $0x2f0] sm:$0xff]
        %v909 = vld [vmem:[%s813 + $0x2f8] sm:$0xff]
        %v910 = vld [vmem:[%s813 + $0x300] sm:$0xff]
        %v911 = vld [vmem:[%s813 + $0x308] sm:$0xff]
        %v912 = vld [vmem:[%s813 + $0x310] sm:$0xff]
        %v913 = vld [vmem:[%s813 + $0x318] sm:$0xff]
        %v914 = vld [vmem:[%s813 + $0x320] sm:$0xff]
        %v915 = vld [vmem:[%s813 + $0x328] sm:$0xff]
        %v916 = vld [vmem:[%s813 + $0x330] sm:$0xff]
        %v917 = vld [vmem:[%s813 + $0x338] sm:$0xff]
        %v918 = vld [vmem:[%s813 + $0x340] sm:$0xff]
        %v919 = vld [vmem:[%s813 + $0x348] sm:$0xff]
        %v920 = vld [vmem:[%s813 + $0x350] sm:$0xff]
        %v921 = vld [vmem:[%s813 + $0x358] sm:$0xff]
        %v922 = vld [vmem:[%s813 + $0x360] sm:$0xff]
        %v923 = vld [vmem:[%s813 + $0x368] sm:$0xff]
        %v924 = vld [vmem:[%s813 + $0x370] sm:$0xff]
        %v925 = vld [vmem:[%s813 + $0x378] sm:$0xff]
        %v926 = vld [vmem:[%s813 + $0x380] sm:$0xff]
        %v927 = vld [vmem:[%s813 + $0x388] sm:$0xff]
        %v928 = vld [vmem:[%s813 + $0x390] sm:$0xff]
        %v929 = vld [vmem:[%s813 + $0x398] sm:$0xff]
        %v930 = vld [vmem:[%s813 + $0x3a0] sm:$0xff]
        %v931 = vld [vmem:[%s813 + $0x3a8] sm:$0xff]
        %v932 = vld [vmem:[%s813 + $0x3b0] sm:$0xff]
        %v933 = vld [vmem:[%s813 + $0x3b8] sm:$0xff]
        %v934 = vld [vmem:[%s813 + $0x3c0] sm:$0xff]
        %v935 = vld [vmem:[%s813 + $0x3c8] sm:$0xff]
        %v936 = vld [vmem:[%s813 + $0x3d0] sm:$0xff]
        %v937 = vld [vmem:[%s813 + $0x3d8] sm:$0xff]
        %v938 = vld [vmem:[%s813 + $0x3e0] sm:$0xff]
        %v939 = vld [vmem:[%s813 + $0x3e8] sm:$0xff]
        %v940 = vld [vmem:[%s813 + $0x3f0] sm:$0xff]
        %v941 = vld [vmem:[%s813 + $0x3f8] sm:$0xff]
        %v943 = vlaneseq
        %v944 = vshrl.u32 %v943, 7
        %v945 = vsub.s32 0, %v944
        %v946 = vrot.slane %v812, %v945
        %v947 = vlaneseq
        %v948 = vshrl.u32 %v947, 7
        %v949 = vsub.s32 1, %v948
        %v950 = vrot.slane %v812, %v949
        %v951 = vlaneseq
        %v952 = vshrl.u32 %v951, 7
        %v953 = vsub.s32 2, %v952
        %v954 = vrot.slane %v812, %v953
        %v955 = vlaneseq
        %v956 = vshrl.u32 %v955, 7
        %v957 = vsub.s32 3, %v956
        %v958 = vrot.slane %v812, %v957
        %963 = vmatprep.subr.mxu0 %v815
        %964 = vmatpush1.msra.mxu0 %v814
        %965 = vmatprep.subr.mxu0 %v817
        %966 = vmatpush1.msra.mxu0 %v816
        %967 = vmatprep.subr.mxu0 %v819
        %968 = vmatpush1.msra.mxu0 %v818
        %969 = vmatprep.subr.mxu0 %v821
        %970 = vmatpush1.msra.mxu0 %v820
        %971 = vmatprep.subr.mxu0 %v823
        %972 = vmatpush1.msra.mxu0 %v822
        %973 = vmatprep.subr.mxu0 %v825
        %974 = vmatpush1.msra.mxu0 %v824
        %975 = vmatprep.subr.mxu0 %v827
        %976 = vmatpush1.msra.mxu0 %v826
        %977 = vmatprep.subr.mxu0 %v829
        %978 = vmatpush1.msra.mxu0 %v828
        %979 = vmatprep.subr.mxu0 %v831
        %980 = vmatpush1.msra.mxu0 %v830
        %981 = vmatprep.subr.mxu0 %v833
        %982 = vmatpush1.msra.mxu0 %v832
        %983 = vmatprep.subr.mxu0 %v835
        %984 = vmatpush1.msra.mxu0 %v834
        %985 = vmatprep.subr.mxu0 %v837
        %986 = vmatpush1.msra.mxu0 %v836
        %987 = vmatprep.subr.mxu0 %v839
        %988 = vmatpush1.msra.mxu0 %v838
        %989 = vmatprep.subr.mxu0 %v841
        %990 = vmatpush1.msra.mxu0 %v840
        %991 = vmatprep.subr.mxu0 %v843
        %992 = vmatpush1.msra.mxu0 %v842
        %993 = vmatprep.subr.mxu0 %v845
        %994 = vmatpush1.msra.mxu0 %v844
        %995 = vmatprep.subr.mxu0 %v847
        %996 = vmatpush1.msra.mxu0 %v846
        %997 = vmatprep.subr.mxu0 %v849
        %998 = vmatpush1.msra.mxu0 %v848
        %999 = vmatprep.subr.mxu0 %v851
        %1000 = vmatpush1.msra.mxu0 %v850
        %1001 = vmatprep.subr.mxu0 %v853
        %1002 = vmatpush1.msra.mxu0 %v852
        %1003 = vmatprep.subr.mxu0 %v855
        %1004 = vmatpush1.msra.mxu0 %v854
        %1005 = vmatprep.subr.mxu0 %v857
        %1006 = vmatpush1.msra.mxu0 %v856
        %1007 = vmatprep.subr.mxu0 %v859
        %1008 = vmatpush1.msra.mxu0 %v858
        %1009 = vmatprep.subr.mxu0 %v861
        %1010 = vmatpush1.msra.mxu0 %v860
        %1011 = vmatprep.subr.mxu0 %v863
        %1012 = vmatpush1.msra.mxu0 %v862
        %1013 = vmatprep.subr.mxu0 %v865
        %1014 = vmatpush1.msra.mxu0 %v864
        %1015 = vmatprep.subr.mxu0 %v867
        %1016 = vmatpush1.msra.mxu0 %v866
        %1017 = vmatprep.subr.mxu0 %v869
        %1018 = vmatpush1.msra.mxu0 %v868
        %1019 = vmatprep.subr.mxu0 %v871
        %1020 = vmatpush1.msra.mxu0 %v870
        %1021 = vmatprep.subr.mxu0 %v873
        %1022 = vmatpush1.msra.mxu0 %v872
        %1023 = vmatprep.subr.mxu0 %v875
        %1024 = vmatpush1.msra.mxu0 %v874
        %1025 = vmatprep.subr.mxu0 %v877
        %1026 = vmatpush1.msra.mxu0 %v876
        %1027 = vmatprep.mubr.f32.mxu0 %v950
        %1028 = vmatmul.mubr.f32.gmra.mrb[0].mxu0 %v946
        %v1029 = vpop.f32.mrb[0].mxu0
        %v1030 = vadd.f32 0.0, %v1029
        %v1031 = vpop.f32.mrb[0].mxu0
        %v1032 = vadd.f32 0.0, %v1031
        %1033 = vdwg.mxu0
        %1034 = vmatprep.subr.mxu0 %v879
        %1035 = vmatpush1.msra.mxu0 %v878
        %1036 = vmatprep.subr.mxu0 %v881
        %1037 = vmatpush1.msra.mxu0 %v880
        %1038 = vmatprep.subr.mxu0 %v883
        %1039 = vmatpush1.msra.mxu0 %v882
        %1040 = vmatprep.subr.mxu0 %v885
        %1041 = vmatpush1.msra.mxu0 %v884
        %1042 = vmatprep.subr.mxu0 %v887
        %1043 = vmatpush1.msra.mxu0 %v886
        %1044 = vmatprep.subr.mxu0 %v889
        %1045 = vmatpush1.msra.mxu0 %v888
        %1046 = vmatprep.subr.mxu0 %v891
        %1047 = vmatpush1.msra.mxu0 %v890
        %1048 = vmatprep.subr.mxu0 %v893
        %1049 = vmatpush1.msra.mxu0 %v892
        %1050 = vmatprep.subr.mxu0 %v895
        %1051 = vmatpush1.msra.mxu0 %v894
        %1052 = vmatprep.subr.mxu0 %v897
        %1053 = vmatpush1.msra.mxu0 %v896
        %1054 = vmatprep.subr.mxu0 %v899
        %1055 = vmatpush1.msra.mxu0 %v898
        %1056 = vmatprep.subr.mxu0 %v901
        %1057 = vmatpush1.msra.mxu0 %v900
        %1058 = vmatprep.subr.mxu0 %v903
        %1059 = vmatpush1.msra.mxu0 %v902
        %1060 = vmatprep.subr.mxu0 %v905
        %1061 = vmatpush1.msra.mxu0 %v904
        %1062 = vmatprep.subr.mxu0 %v907
        %1063 = vmatpush1.msra.mxu0 %v906
        %1064 = vmatprep.subr.mxu0 %v909
        %1065 = vmatpush1.msra.mxu0 %v908
        %1066 = vmatprep.subr.mxu0 %v911
        %1067 = vmatpush1.msra.mxu0 %v910
        %1068 = vmatprep.subr.mxu0 %v913
        %1069 = vmatpush1.msra.mxu0 %v912
        %1070 = vmatprep.subr.mxu0 %v915
        %1071 = vmatpush1.msra.mxu0 %v914
        %1072 = vmatprep.subr.mxu0 %v917
        %1073 = vmatpush1.msra.mxu0 %v916
        %1074 = vmatprep.subr.mxu0 %v919
        %1075 = vmatpush1.msra.mxu0 %v918
        %1076 = vmatprep.subr.mxu0 %v921
        %1077 = vmatpush1.msra.mxu0 %v920
        %1078 = vmatprep.subr.mxu0 %v923
        %1079 = vmatpush1.msra.mxu0 %v922
        %1080 = vmatprep.subr.mxu0 %v925
        %1081 = vmatpush1.msra.mxu0 %v924
        %1082 = vmatprep.subr.mxu0 %v927
        %1083 = vmatpush1.msra.mxu0 %v926
        %1084 = vmatprep.subr.mxu0 %v929
        %1085 = vmatpush1.msra.mxu0 %v928
        %1086 = vmatprep.subr.mxu0 %v931
        %1087 = vmatpush1.msra.mxu0 %v930
        %1088 = vmatprep.subr.mxu0 %v933
        %1089 = vmatpush1.msra.mxu0 %v932
        %1090 = vmatprep.subr.mxu0 %v935
        %1091 = vmatpush1.msra.mxu0 %v934
        %1092 = vmatprep.subr.mxu0 %v937
        %1093 = vmatpush1.msra.mxu0 %v936
        %1094 = vmatprep.subr.mxu0 %v939
        %1095 = vmatpush1.msra.mxu0 %v938
        %1096 = vmatprep.subr.mxu0 %v941
        %1097 = vmatpush1.msra.mxu0 %v940
        %1098 = vmatprep.mubr.f32.mxu0 %v958
        %1099 = vmatmul.mubr.f32.gmra.mrb[0].mxu0 %v954
        %v1100 = vpop.f32.mrb[0].mxu0
        %v1101 = vadd.f32 %v1030, %v1100
        %v1102 = vpop.f32.mrb[0].mxu0
        %v1103 = vadd.f32 %v1032, %v1102
        %1104 = vdwg.mxu0
        %v1105 = vadd.f32 %v807, %v1101
        %v1106 = vadd.f32 %v809, %v1103
        %s1107 = scalar_lea.vmem %s196, 3 [#allocation2]
        %v1108 = vld [vmem:[%s1107] ss:$4 sm:$0xf]
        %s1109 = scalar_lea.vmem [#allocation5], 3072
        %v1110 = vld [vmem:[%s1109] sm:$0xff]
        %v1111 = vld [vmem:[%s1109 + $0x8] sm:$0xff]
        %v1112 = vld [vmem:[%s1109 + $0x10] sm:$0xff]
        %v1113 = vld [vmem:[%s1109 + $0x18] sm:$0xff]
        %v1114 = vld [vmem:[%s1109 + $0x20] sm:$0xff]
        %v1115 = vld [vmem:[%s1109 + $0x28] sm:$0xff]
        %v1116 = vld [vmem:[%s1109 + $0x30] sm:$0xff]
        %v1117 = vld [vmem:[%s1109 + $0x38] sm:$0xff]
        %v1118 = vld [vmem:[%s1109 + $0x40] sm:$0xff]
        %v1119 = vld [vmem:[%s1109 + $0x48] sm:$0xff]
        %v1120 = vld [vmem:[%s1109 + $0x50] sm:$0xff]
        %v1121 = vld [vmem:[%s1109 + $0x58] sm:$0xff]
        %v1122 = vld [vmem:[%s1109 + $0x60] sm:$0xff]
        %v1123 = vld [vmem:[%s1109 + $0x68] sm:$0xff]
        %v1124 = vld [vmem:[%s1109 + $0x70] sm:$0xff]
        %v1125 = vld [vmem:[%s1109 + $0x78] sm:$0xff]
        %v1126 = vld [vmem:[%s1109 + $0x80] sm:$0xff]
        %v1127 = vld [vmem:[%s1109 + $0x88] sm:$0xff]
        %v1128 = vld [vmem:[%s1109 + $0x90] sm:$0xff]
        %v1129 = vld [vmem:[%s1109 + $0x98] sm:$0xff]
        %v1130 = vld [vmem:[%s1109 + $0xa0] sm:$0xff]
        %v1131 = vld [vmem:[%s1109 + $0xa8] sm:$0xff]
        %v1132 = vld [vmem:[%s1109 + $0xb0] sm:$0xff]
        %v1133 = vld [vmem:[%s1109 + $0xb8] sm:$0xff]
        %v1134 = vld [vmem:[%s1109 + $0xc0] sm:$0xff]
        %v1135 = vld [vmem:[%s1109 + $0xc8] sm:$0xff]
        %v1136 = vld [vmem:[%s1109 + $0xd0] sm:$0xff]
        %v1137 = vld [vmem:[%s1109 + $0xd8] sm:$0xff]
        %v1138 = vld [vmem:[%s1109 + $0xe0] sm:$0xff]
        %v1139 = vld [vmem:[%s1109 + $0xe8] sm:$0xff]
        %v1140 = vld [vmem:[%s1109 + $0xf0] sm:$0xff]
        %v1141 = vld [vmem:[%s1109 + $0xf8] sm:$0xff]
        %v1142 = vld [vmem:[%s1109 + $0x100] sm:$0xff]
        %v1143 = vld [vmem:[%s1109 + $0x108] sm:$0xff]
        %v1144 = vld [vmem:[%s1109 + $0x110] sm:$0xff]
        %v1145 = vld [vmem:[%s1109 + $0x118] sm:$0xff]
        %v1146 = vld [vmem:[%s1109 + $0x120] sm:$0xff]
        %v1147 = vld [vmem:[%s1109 + $0x128] sm:$0xff]
        %v1148 = vld [vmem:[%s1109 + $0x130] sm:$0xff]
        %v1149 = vld [vmem:[%s1109 + $0x138] sm:$0xff]
        %v1150 = vld [vmem:[%s1109 + $0x140] sm:$0xff]
        %v1151 = vld [vmem:[%s1109 + $0x148] sm:$0xff]
        %v1152 = vld [vmem:[%s1109 + $0x150] sm:$0xff]
        %v1153 = vld [vmem:[%s1109 + $0x158] sm:$0xff]
        %v1154 = vld [vmem:[%s1109 + $0x160] sm:$0xff]
        %v1155 = vld [vmem:[%s1109 + $0x168] sm:$0xff]
        %v1156 = vld [vmem:[%s1109 + $0x170] sm:$0xff]
        %v1157 = vld [vmem:[%s1109 + $0x178] sm:$0xff]
        %v1158 = vld [vmem:[%s1109 + $0x180] sm:$0xff]
        %v1159 = vld [vmem:[%s1109 + $0x188] sm:$0xff]
        %v1160 = vld [vmem:[%s1109 + $0x190] sm:$0xff]
        %v1161 = vld [vmem:[%s1109 + $0x198] sm:$0xff]
        %v1162 = vld [vmem:[%s1109 + $0x1a0] sm:$0xff]
        %v1163 = vld [vmem:[%s1109 + $0x1a8] sm:$0xff]
        %v1164 = vld [vmem:[%s1109 + $0x1b0] sm:$0xff]
        %v1165 = vld [vmem:[%s1109 + $0x1b8] sm:$0xff]
        %v1166 = vld [vmem:[%s1109 + $0x1c0] sm:$0xff]
        %v1167 = vld [vmem:[%s1109 + $0x1c8] sm:$0xff]
        %v1168 = vld [vmem:[%s1109 + $0x1d0] sm:$0xff]
        %v1169 = vld [vmem:[%s1109 + $0x1d8] sm:$0xff]
        %v1170 = vld [vmem:[%s1109 + $0x1e0] sm:$0xff]
        %v1171 = vld [vmem:[%s1109 + $0x1e8] sm:$0xff]
        %v1172 = vld [vmem:[%s1109 + $0x1f0] sm:$0xff]
        %v1173 = vld [vmem:[%s1109 + $0x1f8] sm:$0xff]
        %v1174 = vld [vmem:[%s1109 + $0x200] sm:$0xff]
        %v1175 = vld [vmem:[%s1109 + $0x208] sm:$0xff]
        %v1176 = vld [vmem:[%s1109 + $0x210] sm:$0xff]
        %v1177 = vld [vmem:[%s1109 + $0x218] sm:$0xff]
        %v1178 = vld [vmem:[%s1109 + $0x220] sm:$0xff]
        %v1179 = vld [vmem:[%s1109 + $0x228] sm:$0xff]
        %v1180 = vld [vmem:[%s1109 + $0x230] sm:$0xff]
        %v1181 = vld [vmem:[%s1109 + $0x238] sm:$0xff]
        %v1182 = vld [vmem:[%s1109 + $0x240] sm:$0xff]
        %v1183 = vld [vmem:[%s1109 + $0x248] sm:$0xff]
        %v1184 = vld [vmem:[%s1109 + $0x250] sm:$0xff]
        %v1185 = vld [vmem:[%s1109 + $0x258] sm:$0xff]
        %v1186 = vld [vmem:[%s1109 + $0x260] sm:$0xff]
        %v1187 = vld [vmem:[%s1109 + $0x268] sm:$0xff]
        %v1188 = vld [vmem:[%s1109 + $0x270] sm:$0xff]
        %v1189 = vld [vmem:[%s1109 + $0x278] sm:$0xff]
        %v1190 = vld [vmem:[%s1109 + $0x280] sm:$0xff]
        %v1191 = vld [vmem:[%s1109 + $0x288] sm:$0xff]
        %v1192 = vld [vmem:[%s1109 + $0x290] sm:$0xff]
        %v1193 = vld [vmem:[%s1109 + $0x298] sm:$0xff]
        %v1194 = vld [vmem:[%s1109 + $0x2a0] sm:$0xff]
        %v1195 = vld [vmem:[%s1109 + $0x2a8] sm:$0xff]
        %v1196 = vld [vmem:[%s1109 + $0x2b0] sm:$0xff]
        %v1197 = vld [vmem:[%s1109 + $0x2b8] sm:$0xff]
        %v1198 = vld [vmem:[%s1109 + $0x2c0] sm:$0xff]
        %v1199 = vld [vmem:[%s1109 + $0x2c8] sm:$0xff]
        %v1200 = vld [vmem:[%s1109 + $0x2d0] sm:$0xff]
        %v1201 = vld [vmem:[%s1109 + $0x2d8] sm:$0xff]
        %v1202 = vld [vmem:[%s1109 + $0x2e0] sm:$0xff]
        %v1203 = vld [vmem:[%s1109 + $0x2e8] sm:$0xff]
        %v1204 = vld [vmem:[%s1109 + $0x2f0] sm:$0xff]
        %v1205 = vld [vmem:[%s1109 + $0x2f8] sm:$0xff]
        %v1206 = vld [vmem:[%s1109 + $0x300] sm:$0xff]
        %v1207 = vld [vmem:[%s1109 + $0x308] sm:$0xff]
        %v1208 = vld [vmem:[%s1109 + $0x310] sm:$0xff]
        %v1209 = vld [vmem:[%s1109 + $0x318] sm:$0xff]
        %v1210 = vld [vmem:[%s1109 + $0x320] sm:$0xff]
        %v1211 = vld [vmem:[%s1109 + $0x328] sm:$0xff]
        %v1212 = vld [vmem:[%s1109 + $0x330] sm:$0xff]
        %v1213 = vld [vmem:[%s1109 + $0x338] sm:$0xff]
        %v1214 = vld [vmem:[%s1109 + $0x340] sm:$0xff]
        %v1215 = vld [vmem:[%s1109 + $0x348] sm:$0xff]
        %v1216 = vld [vmem:[%s1109 + $0x350] sm:$0xff]
        %v1217 = vld [vmem:[%s1109 + $0x358] sm:$0xff]
        %v1218 = vld [vmem:[%s1109 + $0x360] sm:$0xff]
        %v1219 = vld [vmem:[%s1109 + $0x368] sm:$0xff]
        %v1220 = vld [vmem:[%s1109 + $0x370] sm:$0xff]
        %v1221 = vld [vmem:[%s1109 + $0x378] sm:$0xff]
        %v1222 = vld [vmem:[%s1109 + $0x380] sm:$0xff]
        %v1223 = vld [vmem:[%s1109 + $0x388] sm:$0xff]
        %v1224 = vld [vmem:[%s1109 + $0x390] sm:$0xff]
        %v1225 = vld [vmem:[%s1109 + $0x398] sm:$0xff]
        %v1226 = vld [vmem:[%s1109 + $0x3a0] sm:$0xff]
        %v1227 = vld [vmem:[%s1109 + $0x3a8] sm:$0xff]
        %v1228 = vld [vmem:[%s1109 + $0x3b0] sm:$0xff]
        %v1229 = vld [vmem:[%s1109 + $0x3b8] sm:$0xff]
        %v1230 = vld [vmem:[%s1109 + $0x3c0] sm:$0xff]
        %v1231 = vld [vmem:[%s1109 + $0x3c8] sm:$0xff]
        %v1232 = vld [vmem:[%s1109 + $0x3d0] sm:$0xff]
        %v1233 = vld [vmem:[%s1109 + $0x3d8] sm:$0xff]
        %v1234 = vld [vmem:[%s1109 + $0x3e0] sm:$0xff]
        %v1235 = vld [vmem:[%s1109 + $0x3e8] sm:$0xff]
        %v1236 = vld [vmem:[%s1109 + $0x3f0] sm:$0xff]
        %v1237 = vld [vmem:[%s1109 + $0x3f8] sm:$0xff]
        %v1239 = vlaneseq
        %v1240 = vshrl.u32 %v1239, 7
        %v1241 = vsub.s32 0, %v1240
        %v1242 = vrot.slane %v1108, %v1241
        %v1243 = vlaneseq
        %v1244 = vshrl.u32 %v1243, 7
        %v1245 = vsub.s32 1, %v1244
        %v1246 = vrot.slane %v1108, %v1245
        %v1247 = vlaneseq
        %v1248 = vshrl.u32 %v1247, 7
        %v1249 = vsub.s32 2, %v1248
        %v1250 = vrot.slane %v1108, %v1249
        %v1251 = vlaneseq
        %v1252 = vshrl.u32 %v1251, 7
        %v1253 = vsub.s32 3, %v1252
        %v1254 = vrot.slane %v1108, %v1253
        %1259 = vmatprep.subr.mxu0 %v1111
        %1260 = vmatpush1.msra.mxu0 %v1110
        %1261 = vmatprep.subr.mxu0 %v1113
        %1262 = vmatpush1.msra.mxu0 %v1112
        %1263 = vmatprep.subr.mxu0 %v1115
        %1264 = vmatpush1.msra.mxu0 %v1114
        %1265 = vmatprep.subr.mxu0 %v1117
        %1266 = vmatpush1.msra.mxu0 %v1116
        %1267 = vmatprep.subr.mxu0 %v1119
        %1268 = vmatpush1.msra.mxu0 %v1118
        %1269 = vmatprep.subr.mxu0 %v1121
        %1270 = vmatpush1.msra.mxu0 %v1120
        %1271 = vmatprep.subr.mxu0 %v1123
        %1272 = vmatpush1.msra.mxu0 %v1122
        %1273 = vmatprep.subr.mxu0 %v1125
        %1274 = vmatpush1.msra.mxu0 %v1124
        %1275 = vmatprep.subr.mxu0 %v1127
        %1276 = vmatpush1.msra.mxu0 %v1126
        %1277 = vmatprep.subr.mxu0 %v1129
        %1278 = vmatpush1.msra.mxu0 %v1128
        %1279 = vmatprep.subr.mxu0 %v1131
        %1280 = vmatpush1.msra.mxu0 %v1130
        %1281 = vmatprep.subr.mxu0 %v1133
        %1282 = vmatpush1.msra.mxu0 %v1132
        %1283 = vmatprep.subr.mxu0 %v1135
        %1284 = vmatpush1.msra.mxu0 %v1134
        %1285 = vmatprep.subr.mxu0 %v1137
        %1286 = vmatpush1.msra.mxu0 %v1136
        %1287 = vmatprep.subr.mxu0 %v1139
        %1288 = vmatpush1.msra.mxu0 %v1138
        %1289 = vmatprep.subr.mxu0 %v1141
        %1290 = vmatpush1.msra.mxu0 %v1140
        %1291 = vmatprep.subr.mxu0 %v1143
        %1292 = vmatpush1.msra.mxu0 %v1142
        %1293 = vmatprep.subr.mxu0 %v1145
        %1294 = vmatpush1.msra.mxu0 %v1144
        %1295 = vmatprep.subr.mxu0 %v1147
        %1296 = vmatpush1.msra.mxu0 %v1146
        %1297 = vmatprep.subr.mxu0 %v1149
        %1298 = vmatpush1.msra.mxu0 %v1148
        %1299 = vmatprep.subr.mxu0 %v1151
        %1300 = vmatpush1.msra.mxu0 %v1150
        %1301 = vmatprep.subr.mxu0 %v1153
        %1302 = vmatpush1.msra.mxu0 %v1152
        %1303 = vmatprep.subr.mxu0 %v1155
        %1304 = vmatpush1.msra.mxu0 %v1154
        %1305 = vmatprep.subr.mxu0 %v1157
        %1306 = vmatpush1.msra.mxu0 %v1156
        %1307 = vmatprep.subr.mxu0 %v1159
        %1308 = vmatpush1.msra.mxu0 %v1158
        %1309 = vmatprep.subr.mxu0 %v1161
        %1310 = vmatpush1.msra.mxu0 %v1160
        %1311 = vmatprep.subr.mxu0 %v1163
        %1312 = vmatpush1.msra.mxu0 %v1162
        %1313 = vmatprep.subr.mxu0 %v1165
        %1314 = vmatpush1.msra.mxu0 %v1164
        %1315 = vmatprep.subr.mxu0 %v1167
        %1316 = vmatpush1.msra.mxu0 %v1166
        %1317 = vmatprep.subr.mxu0 %v1169
        %1318 = vmatpush1.msra.mxu0 %v1168
        %1319 = vmatprep.subr.mxu0 %v1171
        %1320 = vmatpush1.msra.mxu0 %v1170
        %1321 = vmatprep.subr.mxu0 %v1173
        %1322 = vmatpush1.msra.mxu0 %v1172
        %1323 = vmatprep.mubr.f32.mxu0 %v1246
        %1324 = vmatmul.mubr.f32.gmra.mrb[0].mxu0 %v1242
        %v1325 = vpop.f32.mrb[0].mxu0
        %v1326 = vadd.f32 0.0, %v1325
        %v1327 = vpop.f32.mrb[0].mxu0
        %v1328 = vadd.f32 0.0, %v1327
        %1329 = vdwg.mxu0
        %1330 = vmatprep.subr.mxu0 %v1175
        %1331 = vmatpush1.msra.mxu0 %v1174
        %1332 = vmatprep.subr.mxu0 %v1177
        %1333 = vmatpush1.msra.mxu0 %v1176
        %1334 = vmatprep.subr.mxu0 %v1179
        %1335 = vmatpush1.msra.mxu0 %v1178
        %1336 = vmatprep.subr.mxu0 %v1181
        %1337 = vmatpush1.msra.mxu0 %v1180
        %1338 = vmatprep.subr.mxu0 %v1183
        %1339 = vmatpush1.msra.mxu0 %v1182
        %1340 = vmatprep.subr.mxu0 %v1185
        %1341 = vmatpush1.msra.mxu0 %v1184
        %1342 = vmatprep.subr.mxu0 %v1187
        %1343 = vmatpush1.msra.mxu0 %v1186
        %1344 = vmatprep.subr.mxu0 %v1189
        %1345 = vmatpush1.msra.mxu0 %v1188
        %1346 = vmatprep.subr.mxu0 %v1191
        %1347 = vmatpush1.msra.mxu0 %v1190
        %1348 = vmatprep.subr.mxu0 %v1193
        %1349 = vmatpush1.msra.mxu0 %v1192
        %1350 = vmatprep.subr.mxu0 %v1195
        %1351 = vmatpush1.msra.mxu0 %v1194
        %1352 = vmatprep.subr.mxu0 %v1197
        %1353 = vmatpush1.msra.mxu0 %v1196
        %1354 = vmatprep.subr.mxu0 %v1199
        %1355 = vmatpush1.msra.mxu0 %v1198
        %1356 = vmatprep.subr.mxu0 %v1201
        %1357 = vmatpush1.msra.mxu0 %v1200
        %1358 = vmatprep.subr.mxu0 %v1203
        %1359 = vmatpush1.msra.mxu0 %v1202
        %1360 = vmatprep.subr.mxu0 %v1205
        %1361 = vmatpush1.msra.mxu0 %v1204
        %1362 = vmatprep.subr.mxu0 %v1207
        %1363 = vmatpush1.msra.mxu0 %v1206
        %1364 = vmatprep.subr.mxu0 %v1209
        %1365 = vmatpush1.msra.mxu0 %v1208
        %1366 = vmatprep.subr.mxu0 %v1211
        %1367 = vmatpush1.msra.mxu0 %v1210
        %1368 = vmatprep.subr.mxu0 %v1213
        %1369 = vmatpush1.msra.mxu0 %v1212
        %1370 = vmatprep.subr.mxu0 %v1215
        %1371 = vmatpush1.msra.mxu0 %v1214
        %1372 = vmatprep.subr.mxu0 %v1217
        %1373 = vmatpush1.msra.mxu0 %v1216
        %1374 = vmatprep.subr.mxu0 %v1219
        %1375 = vmatpush1.msra.mxu0 %v1218
        %1376 = vmatprep.subr.mxu0 %v1221
        %1377 = vmatpush1.msra.mxu0 %v1220
        %1378 = vmatprep.subr.mxu0 %v1223
        %1379 = vmatpush1.msra.mxu0 %v1222
        %1380 = vmatprep.subr.mxu0 %v1225
        %1381 = vmatpush1.msra.mxu0 %v1224
        %1382 = vmatprep.subr.mxu0 %v1227
        %1383 = vmatpush1.msra.mxu0 %v1226
        %1384 = vmatprep.subr.mxu0 %v1229
        %1385 = vmatpush1.msra.mxu0 %v1228
        %1386 = vmatprep.subr.mxu0 %v1231
        %1387 = vmatpush1.msra.mxu0 %v1230
        %1388 = vmatprep.subr.mxu0 %v1233
        %1389 = vmatpush1.msra.mxu0 %v1232
        %1390 = vmatprep.subr.mxu0 %v1235
        %1391 = vmatpush1.msra.mxu0 %v1234
        %1392 = vmatprep.subr.mxu0 %v1237
        %1393 = vmatpush1.msra.mxu0 %v1236
        %1394 = vmatprep.mubr.f32.mxu0 %v1254
        %1395 = vmatmul.mubr.f32.gmra.mrb[0].mxu0 %v1250
        %v1396 = vpop.f32.mrb[0].mxu0
        %v1397 = vadd.f32 %v1326, %v1396
        %v1398 = vpop.f32.mrb[0].mxu0
        %v1399 = vadd.f32 %v1328, %v1398
        %1400 = vdwg.mxu0
        %v1401 = vadd.f32 %v1105, %v1397
        %v1402 = vadd.f32 %v1106, %v1399
        %v1405 = vcombine.low %v1401, %v1402
        %v1407 = vunpack.c.l.s4 1966171168
        %v1408 = vunpack.c.0.s8 %v1407
        %v1409 = vlaneseq
        %v1410 = vshrl.u32 %v1409, 7
        %v1411 = vsub.s32 %v1408, %v1410
        %v1412 = vrot.slane %v1405, %v1411
        %v1414 = vunpack.c.l.s4 1966171168
        %v1415 = vunpack.c.0.s8 %v1414
        %v1416 = vlaneseq
        %v1417 = vshrl.u32 %v1416, 7
        %v1418 = vsub.s32 %v1415, %v1417
        %v1419 = vrot.slane %v1412, %v1418
        %v1421 = vlaneseq
        %vm1422 = vcmp.ge.s32.totalorder %v1421, 0
        %vm1423 = vcmp.lt.s32.totalorder %v1421, 256
        %vm1424 = vmand %vm1422, %vm1423
        %1425 = vst.msk [vmem:[%s220] sm:$0x3] %vm1424, %v1419
        %v1426 = vlaneseq
        %v1427 = vshrl.u32 %v1426, 7
        %vm1428 = vcmp.lt.s32.totalorder %v1427, 0
        %v1429 = vsub.s32 0, %v1427
        %v1430 = vsel %vm1428, %v1429, %v1427
        %v1431 = vshrl.u32 %v1430, 1
        %v1432 = vand.u32 %v1430, 1
        %v1433 = vsub.s32 0, %v1432
        %v1434 = vsel %vm1428, %v1433, %v1432
        %vm1435 = vcmp.ne.s32.totalorder %v1434, 0
        %vm1436 = vcmp.lt.s32.totalorder %v1434, 0
        %vm1437 = vmand %vm1436, %vm1435
        %v1438 = vadd.s32 %v1434, 2
        %v1439 = vsel %vm1437, %v1438, %v1434
        %vm1440 = vcmp.lt.s32.totalorder %v1439, 1
        %v1441 = vsel %vm1440, 1, 0
        %vm1442 = vcmp.eq.s32.totalorder %v1441, 1
        %v1443 = vsel %vm1442, %v1401, 0.0
        %v1444 = vsel %vm1442, %v1402, 0.0
        %p1445 = scmp.eq.s32.totalorder %s24, 0
        // Predicated region
        $region37: #{discriminator_forward.13} parent=27 // pred_check
          %p1446 = pneg %p1445
        $region38: #{discriminator_forward.13} parent=27 // pred_check_branch
          %1448 = sbr.rel (%p1446) target = $region40
        $region39: #{discriminator_forward.13} parent=27 // pred_region
          %1449 = vst.msk [vmem:[#allocation8] sm:$0x3] %vm1424, 0.0
          %1450 = vst.msk [vmem:[#allocation10] sm:$0x3] %vm1424, 0.0
        $region40: #{discriminator_forward.13} parent=27 // pred_fallthru
          _
        %v1451 = vld [vmem:[#allocation8] sm:$0x3]
        %v1452 = vadd.f32 %v1443, 0.0
        %v1453 = vadd.f32 %v1444, 0.0
        %v1456 = vcombine.low %v1452, %v1453
        %v1458 = vunpack.c.l.s4 1966171168
        %v1459 = vunpack.c.0.s8 %v1458
        %v1460 = vlaneseq
        %v1461 = vshrl.u32 %v1460, 7
        %v1462 = vsub.s32 %v1459, %v1461
        %v1463 = vrot.slane %v1456, %v1462
        %v1465 = vunpack.c.l.s4 1966171168
        %v1466 = vunpack.c.0.s8 %v1465
        %v1467 = vlaneseq
        %v1468 = vshrl.u32 %v1467, 7
        %v1469 = vsub.s32 %v1466, %v1468
        %v1470 = vrot.slane %v1463, %v1469
        %v1472 = vadd.f32 %v1451, %v1470
        %1473 = vst.msk [vmem:[#allocation8] sm:$0x3] %vm1424, %v1472
        %v1474 = vld [vmem:[#allocation10] sm:$0x3]
        %v1475 = vmul.f32 %v1443, %v1443
        %v1476 = vmul.f32 %v1444, %v1444
        %v1477 = vadd.f32 %v1475, 0.0
        %v1478 = vadd.f32 %v1476, 0.0
        %v1481 = vcombine.low %v1477, %v1478
        %v1483 = vunpack.c.l.s4 1966171168
        %v1484 = vunpack.c.0.s8 %v1483
        %v1485 = vlaneseq
        %v1486 = vshrl.u32 %v1485, 7
        %v1487 = vsub.s32 %v1484, %v1486
        %v1488 = vrot.slane %v1481, %v1487
        %v1490 = vunpack.c.l.s4 1966171168
        %v1491 = vunpack.c.0.s8 %v1490
        %v1492 = vlaneseq
        %v1493 = vshrl.u32 %v1492, 7
        %v1494 = vsub.s32 %v1491, %v1493
        %v1495 = vrot.slane %v1488, %v1494
        %v1497 = vadd.f32 %v1474, %v1495
        %1498 = vst.msk [vmem:[#allocation10] sm:$0x3] %vm1424, %v1497
        %s1499 = sand.u32 %s79, 1
        %s1500 = scalar_lea.sflag [#allocation4], %s1499
        %s1501 = sand.u32 %s79, 1
        %s1502 = smul.addr %s1501, 2
        %s1503 = scalar_lea.vmem [#allocation7], %s1502
        // Predicated region
        $region41: #{discriminator_forward.13} parent=27 // pred_check
          %p1504 = pneg %p89
        $region42: #{discriminator_forward.13} parent=27 // pred_check_branch
          %1506 = sbr.rel (%p1504) target = $region44
        $region43: #{discriminator_forward.13} parent=27 // pred_region
          %s1508 = ssub.s32 32, 32
          %1509 = vsyncadd %s1500, %s1508
          %s1510 = smul.addr %s24, 2
          %s1511 = smul.addr %s1510, 16
          %s1512 = scalar_lea.hbm %s2, %s1511
          %s1514 = sshll.u32 %s1503, 4
          %s1515 = int_to_ptr.vmem [resolvable:$true] %s1514
          %1517 = dma.vmem_to_hbm [thread:$0]  %s1515, 32, %s1512, %s1500
        $region44: #{discriminator_forward.13} parent=27 // pred_fallthru
          _
        // Predicated region
        $region45: #{discriminator_forward.13} parent=27 // pred_check
          %p1518 = pneg %p110
        $region46: #{discriminator_forward.13} parent=27 // pred_check_branch
          %1520 = sbr.rel (%p1518) target = $region48
        $region47: #{discriminator_forward.13} parent=27 // pred_region
          %s1522 = ssub.s32 32, 32
          %1523 = vsyncadd [#allocation9], %s1522
          %s1525 = sshll.u32 [#allocation8], 4
          %s1526 = int_to_ptr.vmem [resolvable:$true] %s1525
          %1528 = dma.vmem_to_hbm [thread:$0]  %s1526, 32, %s3, [#allocation9]
        $region48: #{discriminator_forward.13} parent=27 // pred_fallthru
          _
        // Predicated region
        $region49: #{discriminator_forward.13} parent=27 // pred_check
          %p1529 = pneg %p131
        $region50: #{discriminator_forward.13} parent=27 // pred_check_branch
          %1531 = sbr.rel (%p1529) target = $region52
        $region51: #{discriminator_forward.13} parent=27 // pred_region
          %s1533 = ssub.s32 32, 32
          %1534 = vsyncadd [#allocation9], %s1533
          %s1536 = sshll.u32 [#allocation10], 4
          %s1537 = int_to_ptr.vmem [resolvable:$true] %s1536
          %1539 = dma.vmem_to_hbm [thread:$0]  %s1537, 32, %s4, [#allocation9]
        $region52: #{discriminator_forward.13} parent=27 // pred_fallthru
          _
        // Predicated region
        $region53: #{discriminator_forward.13} parent=27 // pred_check
          %p1540 = pneg %p110
        $region54: #{discriminator_forward.13} parent=27 // pred_check_branch
          %1542 = sbr.rel (%p1540) target = $region56
        $region55: #{discriminator_forward.13} parent=27 // pred_region
          %1543 = dma.done [#allocation9], 32
        $region56: #{discriminator_forward.13} parent=27 // pred_fallthru
          _
        // Predicated region
        $region57: #{discriminator_forward.13} parent=27 // pred_check
          %p1544 = pneg %p131
        $region58: #{discriminator_forward.13} parent=27 // pred_check_branch
          %1546 = sbr.rel (%p1544) target = $region60
        $region59: #{discriminator_forward.13} parent=27 // pred_region
          %1547 = dma.done [#allocation9], 32
        $region60: #{discriminator_forward.13} parent=27 // pred_fallthru
          _
      $region28: #{discriminator_forward.13} parent=5 // pred_fallthru
        _
      %p1548 = scmp.le.s32.totalorder 2, %s19
      // Predicated region
      $region61: #{discriminator_forward.13} parent=5 // pred_check
        %p1549 = pneg %p1548
      $region62: #{discriminator_forward.13} parent=5 // pred_check_branch
        %1551 = sbr.rel (%p1549) target = $region64
      $region63: #{discriminator_forward.13} parent=5 // pred_region
        %s1552 = ssub.s32 %s19, 2
        // Predicated region
        $region65: #{discriminator_forward.13} parent=63 // pred_check
          %p1553 = pneg %p95
        $region66: #{discriminator_forward.13} parent=63 // pred_check_branch
          %1555 = sbr.rel (%p1553) target = $region68
        $region67: #{discriminator_forward.13} parent=63 // pred_region
          %s1556 = sand.u32 %s80, 1
          %s1557 = scalar_lea.sflag [#allocation4], %s1556
          %s1558 = sand.u32 %s80, 1
          %s1559 = smul.addr %s1558, 2
          %s1560 = scalar_lea.vmem [#allocation7], %s1559
          %1561 = dma.done %s1557, 32
        $region68: #{discriminator_forward.13} parent=63 // pred_fallthru
          _
      $region64: #{discriminator_forward.13} parent=5 // pred_fallthru
        _
    $region6: #{discriminator_forward.13} parent=1 // loop_footer
      %s23 = sadd.s32 1, %s19
    $region7: #{discriminator_forward.13} parent=1 // loop_footer_branch
      %18 = sbr.rel target = $region3
    $region8: #{discriminator_forward.13} parent=1 // loop_exit
      _
    %1562 = vsyncpa [#allocation3], 1
    %s1563 = scalar_lea.sflag [#allocation3], 1
    %1564 = vsyncpa %s1563, 1
    %1565 = vsyncpa [#allocation6], 1
    %1566 = vsyncpa [#allocation4], 1
    %s1567 = scalar_lea.sflag [#allocation4], 1
    %1568 = vsyncpa %s1567, 1
    %1569 = vsyncpa [#allocation9], 1

// kernel: discriminator_forward.15
$region0: #{discriminator_forward.15}
  #allocation0 [shape = 'u32[]', space=smem, size = 0x4, offset = 0x4, fixed_abs, tag = 'smem constant byte address 0x4 - core index']
  #allocation1 [shape = 'u32[144,128]{1,0:T(1,128)}', space=vmem, size = 0x12000, scoped, tag = 'internal scratch']
  %s0 = inlined_call_operand.hbm [shape: f32[2,16,256], index: 0, kind: input, shape index: {}]
  %s1 = inlined_call_operand.hbm [shape: f32[16,256], index: 1, kind: input, shape index: {}]
  %s2 = inlined_call_operand.hbm [shape: f32[2,1,1], index: 2, kind: output, shape index: {}]
  %s3 = sld [smem:[#allocation0]]
  $region49: #{discriminator_forward.15} parent=0
    _
  %s5 = ssub.s32 1, %s3
  %s6 = scalar_select 0, %s5, %s3
  $region1: #{discriminator_forward.15} parent=0
    #allocation2 [shape = 'u8[32768]{0}', space=vmem, size = 0x8000, scoped, tag = 'input window, operand 0']
    #allocation3 [shape = 's32[2]{0}', space=sflag, size = 0x8, scoped, tag = 'scoped memory for discriminator_forward.15']
    #allocation4 [shape = 's32[2]{0}', space=sflag, size = 0x8, scoped, tag = 'scoped memory for discriminator_forward.15']
    #allocation5 [shape = 'u8[16384]{0}', space=vmem, size = 0x4000, scoped, tag = 'input window, operand 1, single buffered']
    #allocation6 [shape = 's32[1]{0}', space=sflag, size = 0x4, scoped, tag = 'scoped memory for discriminator_forward.15']
    #allocation7 [shape = 'u8[1024]{0}', space=vmem, size = 0x400, scoped, tag = 'output window, operand 0']
    %7 = vsyncpa [#allocation3], 0
    %s8 = scalar_lea.sflag [#allocation3], 1
    %9 = vsyncpa %s8, 0
    %10 = vsyncpa [#allocation6], 0
    %11 = vsyncpa [#allocation4], 0
    %s12 = scalar_lea.sflag [#allocation4], 1
    %13 = vsyncpa %s12, 0
    loop: start=0, step=1, limit=4
    $region2: #{discriminator_forward.15} parent=1 // loop_pre_header
      _
    $region3: #{discriminator_forward.15} parent=1 // loop_header
      %s15 = sphi 0, %s19
      %p16 = scmp.ge.s32.totalorder %s15, 4
      %s25 = sphi 0, %s27
      %s28 = sphi 0, %s25
      %s29 = sphi 0, %s28
      %s45 = sphi 0, %s29
      %s49 = sphi 0, %s49
      %s51 = sphi 0, %s49
      %s52 = sphi 0, %s51
      %s66 = sphi 0, %s52
      %s72 = sphi 0, %s74
      %s75 = sphi 0, %s72
      %s76 = sphi 0, %s75
      %s92 = sphi 0, %s76
    $region4: #{discriminator_forward.15} parent=1 // loop_header_branch
      %18 = sbr.rel (%p16) target = $region8
    $region5: #{discriminator_forward.15} parent=1 // loop_body
      %s20 = ssub.s32 %s15, 1
      %s21 = ssub.s32 %s15, 2
      %s22 = sadd.s32 %s15, 1
      %s23 = ssub.s32 %s15, %s22
      %p24 = scmp.eq.s32.totalorder %s23, 0
      %s26 = sadd.s32 %s25, 1
      %s27 = scalar_select %p24, %s25, %s26
      %p30 = pneg %p24
      %p31 = scmp.eq.s32.totalorder %s15, 1
      %p32 = por %p30, %p31
      %p33 = scmp.ne.s32.totalorder %s25, %s28
      %p34 = scmp.eq.s32.totalorder %s15, 0
      %p35 = por %p33, %p34
      %p36 = scmp.ne.s32.totalorder %s25, %s28
      %p37 = scmp.eq.s32.totalorder %s20, 1
      %p38 = por %p36, %p37
      %p39 = scmp.ne.s32.totalorder %s28, %s29
      %p40 = scmp.eq.s32.totalorder %s20, 0
      %p41 = por %p39, %p40
      %p42 = scmp.ne.s32.totalorder %s28, %s29
      %p43 = scmp.eq.s32.totalorder %s21, 1
      %p44 = por %p42, %p43
      %p46 = scmp.ne.s32.totalorder %s29, %s45
      %p47 = scmp.eq.s32.totalorder %s21, 0
      %p48 = por %p46, %p47
      %s50 = sadd.s32 %s49, 1
      %p53 = scmp.eq.s32.totalorder %s15, 1
      %p54 = scmp.ne.s32.totalorder %s49, %s51
      %p55 = scmp.eq.s32.totalorder %s15, 0
      %p56 = por %p54, %p55
      %p57 = scmp.ne.s32.totalorder %s49, %s51
      %p58 = scmp.eq.s32.totalorder %s20, 1
      %p59 = por %p57, %p58
      %p60 = scmp.ne.s32.totalorder %s51, %s52
      %p61 = scmp.eq.s32.totalorder %s20, 0
      %p62 = por %p60, %p61
      %p63 = scmp.ne.s32.totalorder %s51, %s52
      %p64 = scmp.eq.s32.totalorder %s21, 1
      %p65 = por %p63, %p64
      %p67 = scmp.ne.s32.totalorder %s52, %s66
      %p68 = scmp.eq.s32.totalorder %s21, 0
      %p69 = por %p67, %p68
      %s70 = ssub.s32 %s15, %s22
      %p71 = scmp.eq.s32.totalorder %s70, 0
      %s73 = sadd.s32 %s72, 1
      %s74 = scalar_select %p71, %s72, %s73
      %p77 = pneg %p71
      %p78 = scmp.eq.s32.totalorder %s15, 1
      %p79 = por %p77, %p78
      %p80 = scmp.ne.s32.totalorder %s72, %s75
      %p81 = scmp.eq.s32.totalorder %s15, 0
      %p82 = por %p80, %p81
      %p83 = scmp.ne.s32.totalorder %s72, %s75
      %p84 = scmp.eq.s32.totalorder %s20, 1
      %p85 = por %p83, %p84
      %p86 = scmp.ne.s32.totalorder %s75, %s76
      %p87 = scmp.eq.s32.totalorder %s20, 0
      %p88 = por %p86, %p87
      %p89 = scmp.ne.s32.totalorder %s75, %s76
      %p90 = scmp.eq.s32.totalorder %s21, 1
      %p91 = por %p89, %p90
      %p93 = scmp.ne.s32.totalorder %s76, %s92
      %p94 = scmp.eq.s32.totalorder %s21, 0
      %p95 = por %p93, %p94
      %p96 = scmp.le.s32.totalorder 1, %s15
      %p97 = scmp.lt.s32.totalorder %s15, 3
      %p98 = pnand %p96, %p97
      %p99 = pneg %p98
      // Predicated region
      $region9: #{discriminator_forward.15} parent=5 // pred_check
        _
      $region10: #{discriminator_forward.15} parent=5 // pred_check_branch
        %101 = sbr.rel (%p98) target = $region12
      $region11: #{discriminator_forward.15} parent=5 // pred_region
        %s102 = ssub.s32 %s15, 1
        // Predicated region
        $region13: #{discriminator_forward.15} parent=11 // pred_check
          %p103 = pneg %p62
        $region14: #{discriminator_forward.15} parent=11 // pred_check_branch
          %105 = sbr.rel (%p103) target = $region16
        $region15: #{discriminator_forward.15} parent=11 // pred_region
          %s107 = ssub.s32 512, 512
          %108 = vsyncadd [#allocation6], %s107
          %s109 = sshll.u32 [#allocation5], 4
          %s110 = int_to_ptr.vmem [resolvable:$true] %s109
          %115 = dma.hbm_to_vmem [thread:$0]  %s1, 512, %s110, [#allocation6], 256, 256, 16
        $region16: #{discriminator_forward.15} parent=11 // pred_fallthru
          _
      $region12: #{discriminator_forward.15} parent=5 // pred_fallthru
        _
      %p116 = scmp.lt.s32.totalorder %s15, 2
      // Predicated region
      $region17: #{discriminator_forward.15} parent=5 // pred_check
        %p117 = pneg %p116
      $region18: #{discriminator_forward.15} parent=5 // pred_check_branch
        %119 = sbr.rel (%p117) target = $region20
      $region19: #{discriminator_forward.15} parent=5 // pred_region
        // Predicated region
        $region21: #{discriminator_forward.15} parent=19 // pred_check
          %p120 = pneg %p35
        $region22: #{discriminator_forward.15} parent=19 // pred_check_branch
          %122 = sbr.rel (%p120) target = $region24
        $region23: #{discriminator_forward.15} parent=19 // pred_region
          %s123 = sand.u32 %s25, 1
          %s124 = scalar_lea.sflag [#allocation3], %s123
          %s125 = sand.u32 %s25, 1
          %s126 = smul.addr %s125, 32
          %s127 = scalar_lea.vmem [#allocation2], %s126
          %s129 = ssub.s32 512, 512
          %130 = vsyncadd %s124, %s129
          %s131 = smul.addr %s15, 4
          %s132 = smul.addr %s131, 128
          %s133 = scalar_lea.hbm %s0, %s132
          %s134 = sshll.u32 %s127, 4
          %s135 = int_to_ptr.vmem [resolvable:$true] %s134
          %140 = dma.hbm_to_vmem [thread:$0]  %s133, 512, %s135, %s124, 256, 256, 16
        $region24: #{discriminator_forward.15} parent=19 // pred_fallthru
          _
      $region20: #{discriminator_forward.15} parent=5 // pred_fallthru
        _
      %p141 = scmp.le.s32.totalorder 1, %s15
      %p142 = scmp.lt.s32.totalorder %s15, 3
      %p143 = pnand %p141, %p142
      %p144 = pneg %p143
      // Predicated region
      $region25: #{discriminator_forward.15} parent=5 // pred_check
        _
      $region26: #{discriminator_forward.15} parent=5 // pred_check_branch
        %146 = sbr.rel (%p143) target = $region28
      $region27: #{discriminator_forward.15} parent=5 // pred_region
        %s147 = ssub.s32 %s15, 1
        %s148 = sand.u32 %s28, 1
        %s149 = scalar_lea.sflag [#allocation3], %s148
        %s150 = sand.u32 %s28, 1
        %s151 = smul.addr %s150, 32
        %s152 = scalar_lea.vmem [#allocation2], %s151
        // Predicated region
        $region29: #{discriminator_forward.15} parent=27 // pred_check
          %p153 = pneg %p41
        $region30: #{discriminator_forward.15} parent=27 // pred_check_branch
          %155 = sbr.rel (%p153) target = $region32
        $region31: #{discriminator_forward.15} parent=27 // pred_region
          %156 = dma.done %s149, 512
        $region32: #{discriminator_forward.15} parent=27 // pred_fallthru
          _
        // Predicated region
        $region33: #{discriminator_forward.15} parent=27 // pred_check
          %p157 = pneg %p62
        $region34: #{discriminator_forward.15} parent=27 // pred_check_branch
          %159 = sbr.rel (%p157) target = $region36
        $region35: #{discriminator_forward.15} parent=27 // pred_region
          %160 = dma.done [#allocation6], 512
        $region36: #{discriminator_forward.15} parent=27 // pred_fallthru
          _
        %s161 = sand.u32 %s28, 1
        %s162 = scalar_lea.sflag [#allocation3], %s161
        %s163 = sand.u32 %s28, 1
        %s164 = smul.addr %s163, 32
        %s165 = scalar_lea.vmem [#allocation2], %s164
        %p166 = pneg %p41
        %p167 = pneg %p38
        %p168 = pneg %p62
        %p169 = pneg %p59
        %p170 = pneg %p88
        %p171 = pneg %p85
        %s172 = sand.u32 %s75, 1
        %s173 = scalar_lea.sflag [#allocation4], %s172
        %s174 = sand.u32 %s75, 1
        %s175 = scalar_lea.vmem [#allocation7], %s174
        %v176 = vld [vmem:[%s152] ss:$8 sm:$0x3]
        %v177 = vld [vmem:[#allocation5] ss:$8 sm:$0x3]
        %v178 = vmul.f32 %v176, %v177
        %s179 = scalar_lea.vmem %s152, 1 [#allocation2]
        %v180 = vld [vmem:[%s179] ss:$8 sm:$0x3]
        %s181 = scalar_lea.vmem [#allocation5], 1
        %v182 = vld [vmem:[%s181] ss:$8 sm:$0x3]
        %v183 = vmul.f32 %v180, %v182
        %v184 = vadd.f32 %v178, %v183
        %s185 = scalar_lea.vmem %s152, 2 [#allocation2]
        %v186 = vld [vmem:[%s185] ss:$8 sm:$0x3]
        %s187 = scalar_lea.vmem [#allocation5], 2
        %v188 = vld [vmem:[%s187] ss:$8 sm:$0x3]
        %v189 = vmul.f32 %v186, %v188
        %v190 = vadd.f32 %v184, %v189
        %s191 = scalar_lea.vmem %s152, 3 [#allocation2]
        %v192 = vld [vmem:[%s191] ss:$8 sm:$0x3]
        %s193 = scalar_lea.vmem [#allocation5], 3
        %v194 = vld [vmem:[%s193] ss:$8 sm:$0x3]
        %v195 = vmul.f32 %v192, %v194
        %v196 = vadd.f32 %v190, %v195
        %s197 = scalar_lea.vmem %s152, 4 [#allocation2]
        %v198 = vld [vmem:[%s197] ss:$8 sm:$0x3]
        %s199 = scalar_lea.vmem [#allocation5], 4
        %v200 = vld [vmem:[%s199] ss:$8 sm:$0x3]
        %v201 = vmul.f32 %v198, %v200
        %v202 = vadd.f32 %v196, %v201
        %s203 = scalar_lea.vmem %s152, 5 [#allocation2]
        %v204 = vld [vmem:[%s203] ss:$8 sm:$0x3]
        %s205 = scalar_lea.vmem [#allocation5], 5
        %v206 = vld [vmem:[%s205] ss:$8 sm:$0x3]
        %v207 = vmul.f32 %v204, %v206
        %v208 = vadd.f32 %v202, %v207
        %s209 = scalar_lea.vmem %s152, 6 [#allocation2]
        %v210 = vld [vmem:[%s209] ss:$8 sm:$0x3]
        %s211 = scalar_lea.vmem [#allocation5], 6
        %v212 = vld [vmem:[%s211] ss:$8 sm:$0x3]
        %v213 = vmul.f32 %v210, %v212
        %v214 = vadd.f32 %v208, %v213
        %s215 = scalar_lea.vmem %s152, 7 [#allocation2]
        %v216 = vld [vmem:[%s215] ss:$8 sm:$0x3]
        %s217 = scalar_lea.vmem [#allocation5], 7
        %v218 = vld [vmem:[%s217] ss:$8 sm:$0x3]
        %v219 = vmul.f32 %v216, %v218
        %v220 = vadd.f32 %v214, %v219
        %s221 = scalar_lea.vmem %s152, 16 [#allocation2]
        %v222 = vld [vmem:[%s221] ss:$8 sm:$0x3]
        %s223 = scalar_lea.vmem [#allocation5], 16
        %v224 = vld [vmem:[%s223] ss:$8 sm:$0x3]
        %v225 = vmul.f32 %v222, %v224
        %v226 = vadd.f32 %v220, %v225
        %s227 = scalar_lea.vmem %s152, 17 [#allocation2]
        %v228 = vld [vmem:[%s227] ss:$8 sm:$0x3]
        %s229 = scalar_lea.vmem [#allocation5], 17
        %v230 = vld [vmem:[%s229] ss:$8 sm:$0x3]
        %v231 = vmul.f32 %v228, %v230
        %v232 = vadd.f32 %v226, %v231
        %s233 = scalar_lea.vmem %s152, 18 [#allocation2]
        %v234 = vld [vmem:[%s233] ss:$8 sm:$0x3]
        %s235 = scalar_lea.vmem [#allocation5], 18
        %v236 = vld [vmem:[%s235] ss:$8 sm:$0x3]
        %v237 = vmul.f32 %v234, %v236
        %v238 = vadd.f32 %v232, %v237
        %s239 = scalar_lea.vmem %s152, 19 [#allocation2]
        %v240 = vld [vmem:[%s239] ss:$8 sm:$0x3]
        %s241 = scalar_lea.vmem [#allocation5], 19
        %v242 = vld [vmem:[%s241] ss:$8 sm:$0x3]
        %v243 = vmul.f32 %v240, %v242
        %v244 = vadd.f32 %v238, %v243
        %s245 = scalar_lea.vmem %s152, 20 [#allocation2]
        %v246 = vld [vmem:[%s245] ss:$8 sm:$0x3]
        %s247 = scalar_lea.vmem [#allocation5], 20
        %v248 = vld [vmem:[%s247] ss:$8 sm:$0x3]
        %v249 = vmul.f32 %v246, %v248
        %v250 = vadd.f32 %v244, %v249
        %s251 = scalar_lea.vmem %s152, 21 [#allocation2]
        %v252 = vld [vmem:[%s251] ss:$8 sm:$0x3]
        %s253 = scalar_lea.vmem [#allocation5], 21
        %v254 = vld [vmem:[%s253] ss:$8 sm:$0x3]
        %v255 = vmul.f32 %v252, %v254
        %v256 = vadd.f32 %v250, %v255
        %s257 = scalar_lea.vmem %s152, 22 [#allocation2]
        %v258 = vld [vmem:[%s257] ss:$8 sm:$0x3]
        %s259 = scalar_lea.vmem [#allocation5], 22
        %v260 = vld [vmem:[%s259] ss:$8 sm:$0x3]
        %v261 = vmul.f32 %v258, %v260
        %v262 = vadd.f32 %v256, %v261
        %s263 = scalar_lea.vmem %s152, 23 [#allocation2]
        %v264 = vld [vmem:[%s263] ss:$8 sm:$0x3]
        %s265 = scalar_lea.vmem [#allocation5], 23
        %v266 = vld [vmem:[%s265] ss:$8 sm:$0x3]
        %v267 = vmul.f32 %v264, %v266
        %v268 = vadd.f32 %v262, %v267
        %v270 = vlaneseq
        %v271 = vshrl.u32 %v270, 7
        %v272 = vsub.s32 0, %v271
        %v273 = vrot.slane %v268, %v272
        %v274 = vlaneseq
        %v275 = vshrl.u32 %v274, 7
        %v276 = vsub.s32 1, %v275
        %v277 = vrot.slane %v268, %v276
        %vm280 = vcmask 1040384
        %v281 = vsel %vm280, %v273, 0.0
        %v282 = vsel %vm280, %v277, 0.0
        %v283 = vadd.f32 %v281, %v282
        %284 = vadd.xlane.f32.xlu0 %v283
        %v285 = vpop.xlane.xlu0 %284
        %vm286 = vcmask 0
        %287 = vst.msk [vmem:[%s175] sm:$0x1] %vm286, %v285
        %s288 = sand.u32 %s75, 1
        %s289 = scalar_lea.sflag [#allocation4], %s288
        %s290 = sand.u32 %s75, 1
        %s291 = scalar_lea.vmem [#allocation7], %s290
        // Predicated region
        $region37: #{discriminator_forward.15} parent=27 // pred_check
          %p292 = pneg %p85
        $region38: #{discriminator_forward.15} parent=27 // pred_check_branch
          %294 = sbr.rel (%p292) target = $region40
        $region39: #{discriminator_forward.15} parent=27 // pred_region
          %s296 = ssub.s32 16, 16
          %297 = vsyncadd %s289, %s296
          %s298 = smul.addr %s20, 16
          %s299 = scalar_lea.hbm %s2, %s298
          %s301 = sshll.u32 %s291, 4
          %s302 = int_to_ptr.vmem [resolvable:$true] %s301
          %304 = dma.vmem_to_hbm [thread:$0]  %s302, 16, %s299, %s289
        $region40: #{discriminator_forward.15} parent=27 // pred_fallthru
          _
      $region28: #{discriminator_forward.15} parent=5 // pred_fallthru
        _
      %p305 = scmp.le.s32.totalorder 2, %s15
      // Predicated region
      $region41: #{discriminator_forward.15} parent=5 // pred_check
        %p306 = pneg %p305
      $region42: #{discriminator_forward.15} parent=5 // pred_check_branch
        %308 = sbr.rel (%p306) target = $region44
      $region43: #{discriminator_forward.15} parent=5 // pred_region
        %s309 = ssub.s32 %s15, 2
        // Predicated region
        $region45: #{discriminator_forward.15} parent=43 // pred_check
          %p310 = pneg %p91
        $region46: #{discriminator_forward.15} parent=43 // pred_check_branch
          %312 = sbr.rel (%p310) target = $region48
        $region47: #{discriminator_forward.15} parent=43 // pred_region
          %s313 = sand.u32 %s76, 1
          %s314 = scalar_lea.sflag [#allocation4], %s313
          %s315 = sand.u32 %s76, 1
          %s316 = scalar_lea.vmem [#allocation7], %s315
          %317 = dma.done %s314, 16
        $region48: #{discriminator_forward.15} parent=43 // pred_fallthru
          _
      $region44: #{discriminator_forward.15} parent=5 // pred_fallthru
        _
    $region6: #{discriminator_forward.15} parent=1 // loop_footer
      %s19 = sadd.s32 1, %s15
    $region7: #{discriminator_forward.15} parent=1 // loop_footer_branch
      %14 = sbr.rel target = $region3
    $region8: #{discriminator_forward.15} parent=1 // loop_exit
      _
    %318 = vsyncpa [#allocation3], 1
    %s319 = scalar_lea.sflag [#allocation3], 1
    %320 = vsyncpa %s319, 1
    %321 = vsyncpa [#allocation6], 1
    %322 = vsyncpa [#allocation4], 1
    %s323 = scalar_lea.sflag [#allocation4], 1
    %324 = vsyncpa %s323, 1

</llo_original>
